<compile_context>
chip_gen: v7x
topology: tpu7x:2x2x1
jax: 0.10.0
libtpu: 0.0.40
codegen_flags: <defaults>
</compile_context>

<pallas_src>
import functools

import jax
import jax.numpy as jnp
import numpy as np
from jax.experimental import pallas as pl
from jax.experimental.pallas import tpu as pltpu


def _lstm_stack_kernel(x_ref, wih_ref, whh_ref, b_ref, out_ref,
                       act_scr, pre_scr, *, num_layers, hidden, seq_len,
                       batch_pad):
    """All layers + all timesteps of the LSTM stack in one kernel invocation.

    x_ref:   (T*Bp, H)    layer-0 input, feature dim zero-padded up to H
    wih_ref: (L, H, 4H)   input-to-hidden weights (transposed, gates i|f|o|g)
    whh_ref: (L, H, 4H)   hidden-to-hidden weights (transposed, gates i|f|o|g)
    b_ref:   (L, 1, 4H)   combined bias b_ih + b_hh (gates i|f|o|g)
    out_ref: (T*Bp, H)    last layer's hidden state for every timestep
    act_scr: (T*Bp, H)    VMEM scratch: inter-layer activations
    pre_scr: (T*Bp, 4H)   VMEM scratch: hoisted input projection
    """
    T, Bp, H = seq_len, batch_pad, hidden

    for layer in range(num_layers):
        wih = wih_ref[layer]                       # (H, 4H)
        whh = whh_ref[layer]                       # (H, 4H)
        bias = b_ref[layer]                        # (1, 4H)

        src = x_ref if layer == 0 else act_scr
        dst = out_ref if layer == num_layers - 1 else act_scr

        # Hoisted input projection for all timesteps: one MXU call (M = T*Bp),
        # removed from the serial recurrent path.
        pre_scr[...] = (
            jnp.dot(src[...], wih, preferred_element_type=jnp.float32) + bias)

        # Fully-unrolled recurrence (T small & static); h/c stay in registers.
        h = jnp.zeros((Bp, H), jnp.float32)
        c = jnp.zeros((Bp, H), jnp.float32)
        for t in range(T):
            # Static, sublane-aligned slice (t*Bp is a multiple of 8).
            gates = (pre_scr[pl.ds(t * Bp, Bp), :]
                     + jnp.dot(h, whh, preferred_element_type=jnp.float32))
            sig = jax.nn.sigmoid(gates[:, :3 * H])      # i | f | o in one pass
            i_g = sig[:, 0 * H:1 * H]
            f_g = sig[:, 1 * H:2 * H]
            o_g = sig[:, 2 * H:3 * H]
            g_g = jnp.tanh(gates[:, 3 * H:])
            c = f_g * c + i_g * g_g
            h = o_g * jnp.tanh(c)
            dst[pl.ds(t * Bp, Bp), :] = h


def lstm_forward(x_bfs, stacked_params):
    """Matches LSTM.forward: (batch, features, seq_len) -> (batch, out_dim, seq_len)."""
    wih_s, whh_s, b_s = stacked_params
    B, F, T = x_bfs.shape
    L, H, _ = whh_s.shape
    assert F <= H, "layer-0 feature dim is zero-padded up to hidden size"

    # Pad batch up to a sublane multiple so every per-timestep tile is aligned.
    Bp = max(8, ((B + 7) // 8) * 8)

    # (B, F, T) -> time-major flat (T*Bp, H); features zero-padded to H so all
    # layers share one stacked weight shape (padding rows of W_ih are zero),
    # batch rows B..Bp are zero and sliced off at the end.
    x_tm = jnp.transpose(x_bfs, (2, 0, 1)).astype(jnp.float32)       # (T, B, F)
    x_pad = jnp.zeros((T, Bp, H), jnp.float32).at[:, :B, :F].set(x_tm)
    x_flat = x_pad.reshape(T * Bp, H)

    kernel = functools.partial(
        _lstm_stack_kernel, num_layers=L, hidden=H, seq_len=T, batch_pad=Bp)

    out_flat = pl.pallas_call(
        kernel,
        out_shape=jax.ShapeDtypeStruct((T * Bp, H), jnp.float32),
        scratch_shapes=[
            pltpu.VMEM((T * Bp, H), jnp.float32),       # inter-layer activations
            pltpu.VMEM((T * Bp, 4 * H), jnp.float32),   # hoisted input projection
        ],
    )(x_flat, wih_s, whh_s, b_s)

    out = out_flat.reshape(T, Bp, H)[:, :B, :]           # drop batch padding
    # TODO(synk): inter-layer dropout (p=0.3) and the trailing nn.Dropout are
    # identity in eval mode; training-mode dropout is not implemented.
    return jnp.transpose(out, (1, 2, 0))                 # (B, out_dim, T)


def init_lstm_params(key, in_dim, out_dim, num_layers):
    """PyTorch-layout params: w_ih (4H, D), w_hh (4H, H), b_ih/b_hh (4H,),
    gate order (i, f, g, o), U(-1/sqrt(H), 1/sqrt(H)) init."""
    params = []
    k = 1.0 / float(out_dim) ** 0.5
    for layer in range(num_layers):
        d = in_dim if layer == 0 else out_dim
        key, k1, k2, k3, k4 = jax.random.split(key, 5)
        w_ih = jax.random.uniform(k1, (4 * out_dim, d), jnp.float32, -k, k)
        w_hh = jax.random.uniform(k2, (4 * out_dim, out_dim), jnp.float32, -k, k)
        b_ih = jax.random.uniform(k3, (4 * out_dim,), jnp.float32, -k, k)
        b_hh = jax.random.uniform(k4, (4 * out_dim,), jnp.float32, -k, k)
        params.append((w_ih, w_hh, b_ih, b_hh))
    return params


def prepare_params(params, in_dim, out_dim):
    """PyTorch layout -> kernel layout: reorder gates (i,f,g,o)->(i,f,o,g),
    transpose so the kernel computes x @ W^T, zero-pad layer-0's input dim to
    H, combine the two biases, and stack layers into (L, H, 4H)/(L, 1, 4H)."""
    H = out_dim
    L = len(params)
    # new gate order [i | f | o | g] as indices into the PyTorch (i,f,g,o) order
    order = np.concatenate([np.arange(H), H + np.arange(H),
                            3 * H + np.arange(H), 2 * H + np.arange(H)])
    wih_s = np.zeros((L, H, 4 * H), np.float32)
    whh_s = np.zeros((L, H, 4 * H), np.float32)
    b_s = np.zeros((L, 1, 4 * H), np.float32)
    for l, (w_ih, w_hh, b_ih, b_hh) in enumerate(params):
        w_ih = np.asarray(w_ih)[order, :]            # (4H, D_l), gates reordered
        w_hh = np.asarray(w_hh)[order, :]            # (4H, H)
        bias = np.asarray(b_ih + b_hh)[order]        # (4H,)
        d = w_ih.shape[1]
        assert d <= H
        wih_s[l, :d, :] = w_ih.T                     # zero-pad input dim up to H
        whh_s[l, :, :] = w_hh.T
        b_s[l, 0, :] = bias
    return jnp.asarray(wih_s), jnp.asarray(whh_s), jnp.asarray(b_s)


if __name__ == "__main__":
    batch, in_dim, seq_len = 2, 4, 16
    out_dim, num_layers = 32, 3

    key = jax.random.PRNGKey(0)
    key, kx, kp = jax.random.split(key, 3)
    x = jax.random.normal(kx, (batch, in_dim, seq_len), jnp.float32)

    params = init_lstm_params(kp, in_dim, out_dim, num_layers)
    stacked = prepare_params(params, in_dim, out_dim)

    y = lstm_forward(x, stacked)
    jax.block_until_ready(y)

    assert y.shape == (batch, out_dim, seq_len), y.shape
    assert bool(jnp.all(jnp.isfinite(y)))
    print("KERNEL_OK")
</pallas_src>

<mosaic_0001>
module attributes {stable_mosaic.version = 11 : i64} {
  func.func @_lstm_stack_kernel(%arg0: memref<128x32xf32, #tpu.memory_space<vmem>>, %arg1: memref<3x32x128xf32, #tpu.memory_space<vmem>>, %arg2: memref<3x32x128xf32, #tpu.memory_space<vmem>>, %arg3: memref<3x1x128xf32, #tpu.memory_space<vmem>>, %arg4: memref<128x32xf32, #tpu.memory_space<vmem>>, %arg5: memref<128x32xf32, #tpu.memory_space<vmem>>, %arg6: memref<128x128xf32, #tpu.memory_space<vmem>>) attributes {dimension_semantics = [], scalar_prefetch = 0 : i64, scratch_operands = 2 : i64, tpu.core_type = #tpu.core_type<tc>} {
    %c0 = arith.constant 0 : index
    %c0_0 = arith.constant 0 : index
    %c0_1 = arith.constant 0 : index
    %0 = vector.load %arg1[%c0, %c0_0, %c0_1] : memref<3x32x128xf32, #tpu.memory_space<vmem>>, vector<1x32x128xf32>
    %1 = vector.shape_cast %0 : vector<1x32x128xf32> to vector<32x128xf32>
    %c0_2 = arith.constant 0 : index
    %c0_3 = arith.constant 0 : index
    %c0_4 = arith.constant 0 : index
    %2 = vector.load %arg2[%c0_2, %c0_3, %c0_4] : memref<3x32x128xf32, #tpu.memory_space<vmem>>, vector<1x32x128xf32>
    %3 = vector.shape_cast %2 : vector<1x32x128xf32> to vector<32x128xf32>
    %c0_5 = arith.constant 0 : index
    %c0_6 = arith.constant 0 : index
    %c0_7 = arith.constant 0 : index
    %4 = vector.load %arg3[%c0_5, %c0_6, %c0_7] : memref<3x1x128xf32, #tpu.memory_space<vmem>>, vector<1x1x128xf32>
    %5 = vector.shape_cast %4 : vector<1x1x128xf32> to vector<1x128xf32>
    %c0_8 = arith.constant 0 : index
    %c0_9 = arith.constant 0 : index
    %6 = vector.load %arg0[%c0_8, %c0_9] : memref<128x32xf32, #tpu.memory_space<vmem>>, vector<128x32xf32>
    %cst = arith.constant dense<0.000000e+00> : vector<128x128xf32>
    %7 = tpu.matmul %6, %1, %cst {dimension_numbers = #tpu.dot_dimension_numbers<[1], [0], [0], [1], [0, 0, 1, 1], [], []>} : vector<128x32xf32>, vector<32x128xf32>, vector<128x128xf32> -> vector<128x128xf32>
    %8 = vector.broadcast %5 : vector<1x128xf32> to vector<128x128xf32>
    %9 = arith.addf %7, %8 : vector<128x128xf32>
    %c0_10 = arith.constant 0 : index
    %c0_11 = arith.constant 0 : index
    %10 = vector.load %arg6[%c0_10, %c0_11] : memref<128x128xf32, #tpu.memory_space<vmem>>, vector<128x128xf32>
    tpu.vector_store %arg6[%c0_10, %c0_11], %9 {strides = array<i32>} : memref<128x128xf32, #tpu.memory_space<vmem>>, vector<128x128xf32>,
    %cst_12 = arith.constant 0.000000e+00 : f32
    %11 = vector.broadcast %cst_12 : f32 to vector<8x32xf32>
    %cst_13 = arith.constant 0.000000e+00 : f32
    %12 = vector.broadcast %cst_13 : f32 to vector<8x32xf32>
    %c0_14 = arith.constant 0 : index
    %c0_15 = arith.constant 0 : index
    %13 = vector.load %arg6[%c0_14, %c0_15] : memref<128x128xf32, #tpu.memory_space<vmem>>, vector<8x128xf32>
    %cst_16 = arith.constant dense<0.000000e+00> : vector<8x128xf32>
    %14 = tpu.matmul %11, %3, %cst_16 {dimension_numbers = #tpu.dot_dimension_numbers<[1], [0], [0], [1], [0, 0, 1, 1], [], []>} : vector<8x32xf32>, vector<32x128xf32>, vector<8x128xf32> -> vector<8x128xf32>
    %15 = arith.addf %13, %14 : vector<8x128xf32>
    %16 = vector.extract_strided_slice %15 {offsets = [0, 0], sizes = [8, 96], strides = [1, 1]} : vector<8x128xf32> to vector<8x96xf32>
    %17 = arith.negf %16 : vector<8x96xf32>
    %18 = math.exp %17 : vector<8x96xf32>
    %cst_17 = arith.constant 1.000000e+00 : f32
    %19 = vector.broadcast %cst_17 : f32 to vector<8x96xf32>
    %20 = arith.addf %19, %18 : vector<8x96xf32>
    %21 = arith.divf %19, %20 : vector<8x96xf32>
    %22 = vector.extract_strided_slice %21 {offsets = [0, 0], sizes = [8, 32], strides = [1, 1]} : vector<8x96xf32> to vector<8x32xf32>
    %23 = vector.extract_strided_slice %21 {offsets = [0, 32], sizes = [8, 32], strides = [1, 1]} : vector<8x96xf32> to vector<8x32xf32>
    %24 = vector.extract_strided_slice %21 {offsets = [0, 64], sizes = [8, 32], strides = [1, 1]} : vector<8x96xf32> to vector<8x32xf32>
    %25 = vector.extract_strided_slice %15 {offsets = [0, 96], sizes = [8, 32], strides = [1, 1]} : vector<8x128xf32> to vector<8x32xf32>
    %26 = math.tanh %25 : vector<8x32xf32>
    %27 = arith.mulf %23, %12 : vector<8x32xf32>
    %28 = arith.mulf %22, %26 : vector<8x32xf32>
    %29 = arith.addf %27, %28 : vector<8x32xf32>
    %30 = math.tanh %29 : vector<8x32xf32>
    %31 = arith.mulf %24, %30 : vector<8x32xf32>
    %c0_18 = arith.constant 0 : index
    %c0_19 = arith.constant 0 : index
    %32 = vector.load %arg5[%c0_18, %c0_19] : memref<128x32xf32, #tpu.memory_space<vmem>>, vector<8x32xf32>
    tpu.vector_store %arg5[%c0_18, %c0_19], %31 {strides = array<i32>} : memref<128x32xf32, #tpu.memory_space<vmem>>, vector<8x32xf32>,
    %c8 = arith.constant 8 : index
    %c0_20 = arith.constant 0 : index
    %33 = vector.load %arg6[%c8, %c0_20] : memref<128x128xf32, #tpu.memory_space<vmem>>, vector<8x128xf32>
    %cst_21 = arith.constant dense<0.000000e+00> : vector<8x128xf32>
    %34 = tpu.matmul %31, %3, %cst_21 {dimension_numbers = #tpu.dot_dimension_numbers<[1], [0], [0], [1], [0, 0, 1, 1], [], []>} : vector<8x32xf32>, vector<32x128xf32>, vector<8x128xf32> -> vector<8x128xf32>
    %35 = arith.addf %33, %34 : vector<8x128xf32>
    %36 = vector.extract_strided_slice %35 {offsets = [0, 0], sizes = [8, 96], strides = [1, 1]} : vector<8x128xf32> to vector<8x96xf32>
    %37 = arith.negf %36 : vector<8x96xf32>
    %38 = math.exp %37 : vector<8x96xf32>
    %cst_22 = arith.constant 1.000000e+00 : f32
    %39 = vector.broadcast %cst_22 : f32 to vector<8x96xf32>
    %40 = arith.addf %39, %38 : vector<8x96xf32>
    %41 = arith.divf %39, %40 : vector<8x96xf32>
    %42 = vector.extract_strided_slice %41 {offsets = [0, 0], sizes = [8, 32], strides = [1, 1]} : vector<8x96xf32> to vector<8x32xf32>
    %43 = vector.extract_strided_slice %41 {offsets = [0, 32], sizes = [8, 32], strides = [1, 1]} : vector<8x96xf32> to vector<8x32xf32>
    %44 = vector.extract_strided_slice %41 {offsets = [0, 64], sizes = [8, 32], strides = [1, 1]} : vector<8x96xf32> to vector<8x32xf32>
    %45 = vector.extract_strided_slice %35 {offsets = [0, 96], sizes = [8, 32], strides = [1, 1]} : vector<8x128xf32> to vector<8x32xf32>
    %46 = math.tanh %45 : vector<8x32xf32>
    %47 = arith.mulf %43, %29 : vector<8x32xf32>
    %48 = arith.mulf %42, %46 : vector<8x32xf32>
    %49 = arith.addf %47, %48 : vector<8x32xf32>
    %50 = math.tanh %49 : vector<8x32xf32>
    %51 = arith.mulf %44, %50 : vector<8x32xf32>
    %c8_23 = arith.constant 8 : index
    %c0_24 = arith.constant 0 : index
    %52 = vector.load %arg5[%c8_23, %c0_24] : memref<128x32xf32, #tpu.memory_space<vmem>>, vector<8x32xf32>
    tpu.vector_store %arg5[%c8_23, %c0_24], %51 {strides = array<i32>} : memref<128x32xf32, #tpu.memory_space<vmem>>, vector<8x32xf32>,
    %c16 = arith.constant 16 : index
    %c0_25 = arith.constant 0 : index
    %53 = vector.load %arg6[%c16, %c0_25] : memref<128x128xf32, #tpu.memory_space<vmem>>, vector<8x128xf32>
    %cst_26 = arith.constant dense<0.000000e+00> : vector<8x128xf32>
    %54 = tpu.matmul %51, %3, %cst_26 {dimension_numbers = #tpu.dot_dimension_numbers<[1], [0], [0], [1], [0, 0, 1, 1], [], []>} : vector<8x32xf32>, vector<32x128xf32>, vector<8x128xf32> -> vector<8x128xf32>
    %55 = arith.addf %53, %54 : vector<8x128xf32>
    %56 = vector.extract_strided_slice %55 {offsets = [0, 0], sizes = [8, 96], strides = [1, 1]} : vector<8x128xf32> to vector<8x96xf32>
    %57 = arith.negf %56 : vector<8x96xf32>
    %58 = math.exp %57 : vector<8x96xf32>
    %cst_27 = arith.constant 1.000000e+00 : f32
    %59 = vector.broadcast %cst_27 : f32 to vector<8x96xf32>
    %60 = arith.addf %59, %58 : vector<8x96xf32>
    %61 = arith.divf %59, %60 : vector<8x96xf32>
    %62 = vector.extract_strided_slice %61 {offsets = [0, 0], sizes = [8, 32], strides = [1, 1]} : vector<8x96xf32> to vector<8x32xf32>
    %63 = vector.extract_strided_slice %61 {offsets = [0, 32], sizes = [8, 32], strides = [1, 1]} : vector<8x96xf32> to vector<8x32xf32>
    %64 = vector.extract_strided_slice %61 {offsets = [0, 64], sizes = [8, 32], strides = [1, 1]} : vector<8x96xf32> to vector<8x32xf32>
    %65 = vector.extract_strided_slice %55 {offsets = [0, 96], sizes = [8, 32], strides = [1, 1]} : vector<8x128xf32> to vector<8x32xf32>
    %66 = math.tanh %65 : vector<8x32xf32>
    %67 = arith.mulf %63, %49 : vector<8x32xf32>
    %68 = arith.mulf %62, %66 : vector<8x32xf32>
    %69 = arith.addf %67, %68 : vector<8x32xf32>
    %70 = math.tanh %69 : vector<8x32xf32>
    %71 = arith.mulf %64, %70 : vector<8x32xf32>
    %c16_28 = arith.constant 16 : index
    %c0_29 = arith.constant 0 : index
    %72 = vector.load %arg5[%c16_28, %c0_29] : memref<128x32xf32, #tpu.memory_space<vmem>>, vector<8x32xf32>
    tpu.vector_store %arg5[%c16_28, %c0_29], %71 {strides = array<i32>} : memref<128x32xf32, #tpu.memory_space<vmem>>, vector<8x32xf32>,
    %c24 = arith.constant 24 : index
    %c0_30 = arith.constant 0 : index
    %73 = vector.load %arg6[%c24, %c0_30] : memref<128x128xf32, #tpu.memory_space<vmem>>, vector<8x128xf32>
    %cst_31 = arith.constant dense<0.000000e+00> : vector<8x128xf32>
    %74 = tpu.matmul %71, %3, %cst_31 {dimension_numbers = #tpu.dot_dimension_numbers<[1], [0], [0], [1], [0, 0, 1, 1], [], []>} : vector<8x32xf32>, vector<32x128xf32>, vector<8x128xf32> -> vector<8x128xf32>
    %75 = arith.addf %73, %74 : vector<8x128xf32>
    %76 = vector.extract_strided_slice %75 {offsets = [0, 0], sizes = [8, 96], strides = [1, 1]} : vector<8x128xf32> to vector<8x96xf32>
    %77 = arith.negf %76 : vector<8x96xf32>
    %78 = math.exp %77 : vector<8x96xf32>
    %cst_32 = arith.constant 1.000000e+00 : f32
    %79 = vector.broadcast %cst_32 : f32 to vector<8x96xf32>
    %80 = arith.addf %79, %78 : vector<8x96xf32>
    %81 = arith.divf %79, %80 : vector<8x96xf32>
    %82 = vector.extract_strided_slice %81 {offsets = [0, 0], sizes = [8, 32], strides = [1, 1]} : vector<8x96xf32> to vector<8x32xf32>
    %83 = vector.extract_strided_slice %81 {offsets = [0, 32], sizes = [8, 32], strides = [1, 1]} : vector<8x96xf32> to vector<8x32xf32>
    %84 = vector.extract_strided_slice %81 {offsets = [0, 64], sizes = [8, 32], strides = [1, 1]} : vector<8x96xf32> to vector<8x32xf32>
    %85 = vector.extract_strided_slice %75 {offsets = [0, 96], sizes = [8, 32], strides = [1, 1]} : vector<8x128xf32> to vector<8x32xf32>
    %86 = math.tanh %85 : vector<8x32xf32>
    %87 = arith.mulf %83, %69 : vector<8x32xf32>
    %88 = arith.mulf %82, %86 : vector<8x32xf32>
    %89 = arith.addf %87, %88 : vector<8x32xf32>
    %90 = math.tanh %89 : vector<8x32xf32>
    %91 = arith.mulf %84, %90 : vector<8x32xf32>
    %c24_33 = arith.constant 24 : index
    %c0_34 = arith.constant 0 : index
    %92 = vector.load %arg5[%c24_33, %c0_34] : memref<128x32xf32, #tpu.memory_space<vmem>>, vector<8x32xf32>
    tpu.vector_store %arg5[%c24_33, %c0_34], %91 {strides = array<i32>} : memref<128x32xf32, #tpu.memory_space<vmem>>, vector<8x32xf32>,
    %c32 = arith.constant 32 : index
    %c0_35 = arith.constant 0 : index
    %93 = vector.load %arg6[%c32, %c0_35] : memref<128x128xf32, #tpu.memory_space<vmem>>, vector<8x128xf32>
    %cst_36 = arith.constant dense<0.000000e+00> : vector<8x128xf32>
    %94 = tpu.matmul %91, %3, %cst_36 {dimension_numbers = #tpu.dot_dimension_numbers<[1], [0], [0], [1], [0, 0, 1, 1], [], []>} : vector<8x32xf32>, vector<32x128xf32>, vector<8x128xf32> -> vector<8x128xf32>
    %95 = arith.addf %93, %94 : vector<8x128xf32>
    %96 = vector.extract_strided_slice %95 {offsets = [0, 0], sizes = [8, 96], strides = [1, 1]} : vector<8x128xf32> to vector<8x96xf32>
    %97 = arith.negf %96 : vector<8x96xf32>
    %98 = math.exp %97 : vector<8x96xf32>
    %cst_37 = arith.constant 1.000000e+00 : f32
    %99 = vector.broadcast %cst_37 : f32 to vector<8x96xf32>
    %100 = arith.addf %99, %98 : vector<8x96xf32>
    %101 = arith.divf %99, %100 : vector<8x96xf32>
    %102 = vector.extract_strided_slice %101 {offsets = [0, 0], sizes = [8, 32], strides = [1, 1]} : vector<8x96xf32> to vector<8x32xf32>
    %103 = vector.extract_strided_slice %101 {offsets = [0, 32], sizes = [8, 32], strides = [1, 1]} : vector<8x96xf32> to vector<8x32xf32>
    %104 = vector.extract_strided_slice %101 {offsets = [0, 64], sizes = [8, 32], strides = [1, 1]} : vector<8x96xf32> to vector<8x32xf32>
    %105 = vector.extract_strided_slice %95 {offsets = [0, 96], sizes = [8, 32], strides = [1, 1]} : vector<8x128xf32> to vector<8x32xf32>
    %106 = math.tanh %105 : vector<8x32xf32>
    %107 = arith.mulf %103, %89 : vector<8x32xf32>
    %108 = arith.mulf %102, %106 : vector<8x32xf32>
    %109 = arith.addf %107, %108 : vector<8x32xf32>
    %110 = math.tanh %109 : vector<8x32xf32>
    %111 = arith.mulf %104, %110 : vector<8x32xf32>
    %c32_38 = arith.constant 32 : index
    %c0_39 = arith.constant 0 : index
    %112 = vector.load %arg5[%c32_38, %c0_39] : memref<128x32xf32, #tpu.memory_space<vmem>>, vector<8x32xf32>
    tpu.vector_store %arg5[%c32_38, %c0_39], %111 {strides = array<i32>} : memref<128x32xf32, #tpu.memory_space<vmem>>, vector<8x32xf32>,
    %c40 = arith.constant 40 : index
    %c0_40 = arith.constant 0 : index
    %113 = vector.load %arg6[%c40, %c0_40] : memref<128x128xf32, #tpu.memory_space<vmem>>, vector<8x128xf32>
    %cst_41 = arith.constant dense<0.000000e+00> : vector<8x128xf32>
    %114 = tpu.matmul %111, %3, %cst_41 {dimension_numbers = #tpu.dot_dimension_numbers<[1], [0], [0], [1], [0, 0, 1, 1], [], []>} : vector<8x32xf32>, vector<32x128xf32>, vector<8x128xf32> -> vector<8x128xf32>
    %115 = arith.addf %113, %114 : vector<8x128xf32>
    %116 = vector.extract_strided_slice %115 {offsets = [0, 0], sizes = [8, 96], strides = [1, 1]} : vector<8x128xf32> to vector<8x96xf32>
    %117 = arith.negf %116 : vector<8x96xf32>
    %118 = math.exp %117 : vector<8x96xf32>
    %cst_42 = arith.constant 1.000000e+00 : f32
    %119 = vector.broadcast %cst_42 : f32 to vector<8x96xf32>
    %120 = arith.addf %119, %118 : vector<8x96xf32>
    %121 = arith.divf %119, %120 : vector<8x96xf32>
    %122 = vector.extract_strided_slice %121 {offsets = [0, 0], sizes = [8, 32], strides = [1, 1]} : vector<8x96xf32> to vector<8x32xf32>
    %123 = vector.extract_strided_slice %121 {offsets = [0, 32], sizes = [8, 32], strides = [1, 1]} : vector<8x96xf32> to vector<8x32xf32>
    %124 = vector.extract_strided_slice %121 {offsets = [0, 64], sizes = [8, 32], strides = [1, 1]} : vector<8x96xf32> to vector<8x32xf32>
    %125 = vector.extract_strided_slice %115 {offsets = [0, 96], sizes = [8, 32], strides = [1, 1]} : vector<8x128xf32> to vector<8x32xf32>
    %126 = math.tanh %125 : vector<8x32xf32>
    %127 = arith.mulf %123, %109 : vector<8x32xf32>
    %128 = arith.mulf %122, %126 : vector<8x32xf32>
    %129 = arith.addf %127, %128 : vector<8x32xf32>
    %130 = math.tanh %129 : vector<8x32xf32>
    %131 = arith.mulf %124, %130 : vector<8x32xf32>
    %c40_43 = arith.constant 40 : index
    %c0_44 = arith.constant 0 : index
    %132 = vector.load %arg5[%c40_43, %c0_44] : memref<128x32xf32, #tpu.memory_space<vmem>>, vector<8x32xf32>
    tpu.vector_store %arg5[%c40_43, %c0_44], %131 {strides = array<i32>} : memref<128x32xf32, #tpu.memory_space<vmem>>, vector<8x32xf32>,
    %c48 = arith.constant 48 : index
    %c0_45 = arith.constant 0 : index
    %133 = vector.load %arg6[%c48, %c0_45] : memref<128x128xf32, #tpu.memory_space<vmem>>, vector<8x128xf32>
    %cst_46 = arith.constant dense<0.000000e+00> : vector<8x128xf32>
    %134 = tpu.matmul %131, %3, %cst_46 {dimension_numbers = #tpu.dot_dimension_numbers<[1], [0], [0], [1], [0, 0, 1, 1], [], []>} : vector<8x32xf32>, vector<32x128xf32>, vector<8x128xf32> -> vector<8x128xf32>
    %135 = arith.addf %133, %134 : vector<8x128xf32>
    %136 = vector.extract_strided_slice %135 {offsets = [0, 0], sizes = [8, 96], strides = [1, 1]} : vector<8x128xf32> to vector<8x96xf32>
    %137 = arith.negf %136 : vector<8x96xf32>
    %138 = math.exp %137 : vector<8x96xf32>
    %cst_47 = arith.constant 1.000000e+00 : f32
    %139 = vector.broadcast %cst_47 : f32 to vector<8x96xf32>
    %140 = arith.addf %139, %138 : vector<8x96xf32>
    %141 = arith.divf %139, %140 : vector<8x96xf32>
    %142 = vector.extract_strided_slice %141 {offsets = [0, 0], sizes = [8, 32], strides = [1, 1]} : vector<8x96xf32> to vector<8x32xf32>
    %143 = vector.extract_strided_slice %141 {offsets = [0, 32], sizes = [8, 32], strides = [1, 1]} : vector<8x96xf32> to vector<8x32xf32>
    %144 = vector.extract_strided_slice %141 {offsets = [0, 64], sizes = [8, 32], strides = [1, 1]} : vector<8x96xf32> to vector<8x32xf32>
    %145 = vector.extract_strided_slice %135 {offsets = [0, 96], sizes = [8, 32], strides = [1, 1]} : vector<8x128xf32> to vector<8x32xf32>
    %146 = math.tanh %145 : vector<8x32xf32>
    %147 = arith.mulf %143, %129 : vector<8x32xf32>
    %148 = arith.mulf %142, %146 : vector<8x32xf32>
    %149 = arith.addf %147, %148 : vector<8x32xf32>
    %150 = math.tanh %149 : vector<8x32xf32>
    %151 = arith.mulf %144, %150 : vector<8x32xf32>
    %c48_48 = arith.constant 48 : index
    %c0_49 = arith.constant 0 : index
    %152 = vector.load %arg5[%c48_48, %c0_49] : memref<128x32xf32, #tpu.memory_space<vmem>>, vector<8x32xf32>
    tpu.vector_store %arg5[%c48_48, %c0_49], %151 {strides = array<i32>} : memref<128x32xf32, #tpu.memory_space<vmem>>, vector<8x32xf32>,
    %c56 = arith.constant 56 : index
    %c0_50 = arith.constant 0 : index
    %153 = vector.load %arg6[%c56, %c0_50] : memref<128x128xf32, #tpu.memory_space<vmem>>, vector<8x128xf32>
    %cst_51 = arith.constant dense<0.000000e+00> : vector<8x128xf32>
    %154 = tpu.matmul %151, %3, %cst_51 {dimension_numbers = #tpu.dot_dimension_numbers<[1], [0], [0], [1], [0, 0, 1, 1], [], []>} : vector<8x32xf32>, vector<32x128xf32>, vector<8x128xf32> -> vector<8x128xf32>
    %155 = arith.addf %153, %154 : vector<8x128xf32>
    %156 = vector.extract_strided_slice %155 {offsets = [0, 0], sizes = [8, 96], strides = [1, 1]} : vector<8x128xf32> to vector<8x96xf32>
    %157 = arith.negf %156 : vector<8x96xf32>
    %158 = math.exp %157 : vector<8x96xf32>
    %cst_52 = arith.constant 1.000000e+00 : f32
    %159 = vector.broadcast %cst_52 : f32 to vector<8x96xf32>
    %160 = arith.addf %159, %158 : vector<8x96xf32>
    %161 = arith.divf %159, %160 : vector<8x96xf32>
    %162 = vector.extract_strided_slice %161 {offsets = [0, 0], sizes = [8, 32], strides = [1, 1]} : vector<8x96xf32> to vector<8x32xf32>
    %163 = vector.extract_strided_slice %161 {offsets = [0, 32], sizes = [8, 32], strides = [1, 1]} : vector<8x96xf32> to vector<8x32xf32>
    %164 = vector.extract_strided_slice %161 {offsets = [0, 64], sizes = [8, 32], strides = [1, 1]} : vector<8x96xf32> to vector<8x32xf32>
    %165 = vector.extract_strided_slice %155 {offsets = [0, 96], sizes = [8, 32], strides = [1, 1]} : vector<8x128xf32> to vector<8x32xf32>
    %166 = math.tanh %165 : vector<8x32xf32>
    %167 = arith.mulf %163, %149 : vector<8x32xf32>
    %168 = arith.mulf %162, %166 : vector<8x32xf32>
    %169 = arith.addf %167, %168 : vector<8x32xf32>
    %170 = math.tanh %169 : vector<8x32xf32>
    %171 = arith.mulf %164, %170 : vector<8x32xf32>
    %c56_53 = arith.constant 56 : index
    %c0_54 = arith.constant 0 : index
    %172 = vector.load %arg5[%c56_53, %c0_54] : memref<128x32xf32, #tpu.memory_space<vmem>>, vector<8x32xf32>
    tpu.vector_store %arg5[%c56_53, %c0_54], %171 {strides = array<i32>} : memref<128x32xf32, #tpu.memory_space<vmem>>, vector<8x32xf32>,
    %c64 = arith.constant 64 : index
    %c0_55 = arith.constant 0 : index
    %173 = vector.load %arg6[%c64, %c0_55] : memref<128x128xf32, #tpu.memory_space<vmem>>, vector<8x128xf32>
    %cst_56 = arith.constant dense<0.000000e+00> : vector<8x128xf32>
    %174 = tpu.matmul %171, %3, %cst_56 {dimension_numbers = #tpu.dot_dimension_numbers<[1], [0], [0], [1], [0, 0, 1, 1], [], []>} : vector<8x32xf32>, vector<32x128xf32>, vector<8x128xf32> -> vector<8x128xf32>
    %175 = arith.addf %173, %174 : vector<8x128xf32>
    %176 = vector.extract_strided_slice %175 {offsets = [0, 0], sizes = [8, 96], strides = [1, 1]} : vector<8x128xf32> to vector<8x96xf32>
    %177 = arith.negf %176 : vector<8x96xf32>
    %178 = math.exp %177 : vector<8x96xf32>
    %cst_57 = arith.constant 1.000000e+00 : f32
    %179 = vector.broadcast %cst_57 : f32 to vector<8x96xf32>
    %180 = arith.addf %179, %178 : vector<8x96xf32>
    %181 = arith.divf %179, %180 : vector<8x96xf32>
    %182 = vector.extract_strided_slice %181 {offsets = [0, 0], sizes = [8, 32], strides = [1, 1]} : vector<8x96xf32> to vector<8x32xf32>
    %183 = vector.extract_strided_slice %181 {offsets = [0, 32], sizes = [8, 32], strides = [1, 1]} : vector<8x96xf32> to vector<8x32xf32>
    %184 = vector.extract_strided_slice %181 {offsets = [0, 64], sizes = [8, 32], strides = [1, 1]} : vector<8x96xf32> to vector<8x32xf32>
    %185 = vector.extract_strided_slice %175 {offsets = [0, 96], sizes = [8, 32], strides = [1, 1]} : vector<8x128xf32> to vector<8x32xf32>
    %186 = math.tanh %185 : vector<8x32xf32>
    %187 = arith.mulf %183, %169 : vector<8x32xf32>
    %188 = arith.mulf %182, %186 : vector<8x32xf32>
    %189 = arith.addf %187, %188 : vector<8x32xf32>
    %190 = math.tanh %189 : vector<8x32xf32>
    %191 = arith.mulf %184, %190 : vector<8x32xf32>
    %c64_58 = arith.constant 64 : index
    %c0_59 = arith.constant 0 : index
    %192 = vector.load %arg5[%c64_58, %c0_59] : memref<128x32xf32, #tpu.memory_space<vmem>>, vector<8x32xf32>
    tpu.vector_store %arg5[%c64_58, %c0_59], %191 {strides = array<i32>} : memref<128x32xf32, #tpu.memory_space<vmem>>, vector<8x32xf32>,
    %c72 = arith.constant 72 : index
    %c0_60 = arith.constant 0 : index
    %193 = vector.load %arg6[%c72, %c0_60] : memref<128x128xf32, #tpu.memory_space<vmem>>, vector<8x128xf32>
    %cst_61 = arith.constant dense<0.000000e+00> : vector<8x128xf32>
    %194 = tpu.matmul %191, %3, %cst_61 {dimension_numbers = #tpu.dot_dimension_numbers<[1], [0], [0], [1], [0, 0, 1, 1], [], []>} : vector<8x32xf32>, vector<32x128xf32>, vector<8x128xf32> -> vector<8x128xf32>
    %195 = arith.addf %193, %194 : vector<8x128xf32>
    %196 = vector.extract_strided_slice %195 {offsets = [0, 0], sizes = [8, 96], strides = [1, 1]} : vector<8x128xf32> to vector<8x96xf32>
    %197 = arith.negf %196 : vector<8x96xf32>
    %198 = math.exp %197 : vector<8x96xf32>
    %cst_62 = arith.constant 1.000000e+00 : f32
    %199 = vector.broadcast %cst_62 : f32 to vector<8x96xf32>
    %200 = arith.addf %199, %198 : vector<8x96xf32>
    %201 = arith.divf %199, %200 : vector<8x96xf32>
    %202 = vector.extract_strided_slice %201 {offsets = [0, 0], sizes = [8, 32], strides = [1, 1]} : vector<8x96xf32> to vector<8x32xf32>
    %203 = vector.extract_strided_slice %201 {offsets = [0, 32], sizes = [8, 32], strides = [1, 1]} : vector<8x96xf32> to vector<8x32xf32>
    %204 = vector.extract_strided_slice %201 {offsets = [0, 64], sizes = [8, 32], strides = [1, 1]} : vector<8x96xf32> to vector<8x32xf32>
    %205 = vector.extract_strided_slice %195 {offsets = [0, 96], sizes = [8, 32], strides = [1, 1]} : vector<8x128xf32> to vector<8x32xf32>
    %206 = math.tanh %205 : vector<8x32xf32>
    %207 = arith.mulf %203, %189 : vector<8x32xf32>
    %208 = arith.mulf %202, %206 : vector<8x32xf32>
    %209 = arith.addf %207, %208 : vector<8x32xf32>
    %210 = math.tanh %209 : vector<8x32xf32>
    %211 = arith.mulf %204, %210 : vector<8x32xf32>
    %c72_63 = arith.constant 72 : index
    %c0_64 = arith.constant 0 : index
    %212 = vector.load %arg5[%c72_63, %c0_64] : memref<128x32xf32, #tpu.memory_space<vmem>>, vector<8x32xf32>
    tpu.vector_store %arg5[%c72_63, %c0_64], %211 {strides = array<i32>} : memref<128x32xf32, #tpu.memory_space<vmem>>, vector<8x32xf32>,
    %c80 = arith.constant 80 : index
    %c0_65 = arith.constant 0 : index
    %213 = vector.load %arg6[%c80, %c0_65] : memref<128x128xf32, #tpu.memory_space<vmem>>, vector<8x128xf32>
    %cst_66 = arith.constant dense<0.000000e+00> : vector<8x128xf32>
    %214 = tpu.matmul %211, %3, %cst_66 {dimension_numbers = #tpu.dot_dimension_numbers<[1], [0], [0], [1], [0, 0, 1, 1], [], []>} : vector<8x32xf32>, vector<32x128xf32>, vector<8x128xf32> -> vector<8x128xf32>
    %215 = arith.addf %213, %214 : vector<8x128xf32>
    %216 = vector.extract_strided_slice %215 {offsets = [0, 0], sizes = [8, 96], strides = [1, 1]} : vector<8x128xf32> to vector<8x96xf32>
    %217 = arith.negf %216 : vector<8x96xf32>
    %218 = math.exp %217 : vector<8x96xf32>
    %cst_67 = arith.constant 1.000000e+00 : f32
    %219 = vector.broadcast %cst_67 : f32 to vector<8x96xf32>
    %220 = arith.addf %219, %218 : vector<8x96xf32>
    %221 = arith.divf %219, %220 : vector<8x96xf32>
    %222 = vector.extract_strided_slice %221 {offsets = [0, 0], sizes = [8, 32], strides = [1, 1]} : vector<8x96xf32> to vector<8x32xf32>
    %223 = vector.extract_strided_slice %221 {offsets = [0, 32], sizes = [8, 32], strides = [1, 1]} : vector<8x96xf32> to vector<8x32xf32>
    %224 = vector.extract_strided_slice %221 {offsets = [0, 64], sizes = [8, 32], strides = [1, 1]} : vector<8x96xf32> to vector<8x32xf32>
    %225 = vector.extract_strided_slice %215 {offsets = [0, 96], sizes = [8, 32], strides = [1, 1]} : vector<8x128xf32> to vector<8x32xf32>
    %226 = math.tanh %225 : vector<8x32xf32>
    %227 = arith.mulf %223, %209 : vector<8x32xf32>
    %228 = arith.mulf %222, %226 : vector<8x32xf32>
    %229 = arith.addf %227, %228 : vector<8x32xf32>
    %230 = math.tanh %229 : vector<8x32xf32>
    %231 = arith.mulf %224, %230 : vector<8x32xf32>
    %c80_68 = arith.constant 80 : index
    %c0_69 = arith.constant 0 : index
    %232 = vector.load %arg5[%c80_68, %c0_69] : memref<128x32xf32, #tpu.memory_space<vmem>>, vector<8x32xf32>
    tpu.vector_store %arg5[%c80_68, %c0_69], %231 {strides = array<i32>} : memref<128x32xf32, #tpu.memory_space<vmem>>, vector<8x32xf32>,
    %c88 = arith.constant 88 : index
    %c0_70 = arith.constant 0 : index
    %233 = vector.load %arg6[%c88, %c0_70] : memref<128x128xf32, #tpu.memory_space<vmem>>, vector<8x128xf32>
    %cst_71 = arith.constant dense<0.000000e+00> : vector<8x128xf32>
    %234 = tpu.matmul %231, %3, %cst_71 {dimension_numbers = #tpu.dot_dimension_numbers<[1], [0], [0], [1], [0, 0, 1, 1], [], []>} : vector<8x32xf32>, vector<32x128xf32>, vector<8x128xf32> -> vector<8x128xf32>
    %235 = arith.addf %233, %234 : vector<8x128xf32>
    %236 = vector.extract_strided_slice %235 {offsets = [0, 0], sizes = [8, 96], strides = [1, 1]} : vector<8x128xf32> to vector<8x96xf32>
    %237 = arith.negf %236 : vector<8x96xf32>
    %238 = math.exp %237 : vector<8x96xf32>
    %cst_72 = arith.constant 1.000000e+00 : f32
    %239 = vector.broadcast %cst_72 : f32 to vector<8x96xf32>
    %240 = arith.addf %239, %238 : vector<8x96xf32>
    %241 = arith.divf %239, %240 : vector<8x96xf32>
    %242 = vector.extract_strided_slice %241 {offsets = [0, 0], sizes = [8, 32], strides = [1, 1]} : vector<8x96xf32> to vector<8x32xf32>
    %243 = vector.extract_strided_slice %241 {offsets = [0, 32], sizes = [8, 32], strides = [1, 1]} : vector<8x96xf32> to vector<8x32xf32>
    %244 = vector.extract_strided_slice %241 {offsets = [0, 64], sizes = [8, 32], strides = [1, 1]} : vector<8x96xf32> to vector<8x32xf32>
    %245 = vector.extract_strided_slice %235 {offsets = [0, 96], sizes = [8, 32], strides = [1, 1]} : vector<8x128xf32> to vector<8x32xf32>
    %246 = math.tanh %245 : vector<8x32xf32>
    %247 = arith.mulf %243, %229 : vector<8x32xf32>
    %248 = arith.mulf %242, %246 : vector<8x32xf32>
    %249 = arith.addf %247, %248 : vector<8x32xf32>
    %250 = math.tanh %249 : vector<8x32xf32>
    %251 = arith.mulf %244, %250 : vector<8x32xf32>
    %c88_73 = arith.constant 88 : index
    %c0_74 = arith.constant 0 : index
    %252 = vector.load %arg5[%c88_73, %c0_74] : memref<128x32xf32, #tpu.memory_space<vmem>>, vector<8x32xf32>
    tpu.vector_store %arg5[%c88_73, %c0_74], %251 {strides = array<i32>} : memref<128x32xf32, #tpu.memory_space<vmem>>, vector<8x32xf32>,
    %c96 = arith.constant 96 : index
    %c0_75 = arith.constant 0 : index
    %253 = vector.load %arg6[%c96, %c0_75] : memref<128x128xf32, #tpu.memory_space<vmem>>, vector<8x128xf32>
    %cst_76 = arith.constant dense<0.000000e+00> : vector<8x128xf32>
    %254 = tpu.matmul %251, %3, %cst_76 {dimension_numbers = #tpu.dot_dimension_numbers<[1], [0], [0], [1], [0, 0, 1, 1], [], []>} : vector<8x32xf32>, vector<32x128xf32>, vector<8x128xf32> -> vector<8x128xf32>
    %255 = arith.addf %253, %254 : vector<8x128xf32>
    %256 = vector.extract_strided_slice %255 {offsets = [0, 0], sizes = [8, 96], strides = [1, 1]} : vector<8x128xf32> to vector<8x96xf32>
    %257 = arith.negf %256 : vector<8x96xf32>
    %258 = math.exp %257 : vector<8x96xf32>
    %cst_77 = arith.constant 1.000000e+00 : f32
    %259 = vector.broadcast %cst_77 : f32 to vector<8x96xf32>
    %260 = arith.addf %259, %258 : vector<8x96xf32>
    %261 = arith.divf %259, %260 : vector<8x96xf32>
    %262 = vector.extract_strided_slice %261 {offsets = [0, 0], sizes = [8, 32], strides = [1, 1]} : vector<8x96xf32> to vector<8x32xf32>
    %263 = vector.extract_strided_slice %261 {offsets = [0, 32], sizes = [8, 32], strides = [1, 1]} : vector<8x96xf32> to vector<8x32xf32>
    %264 = vector.extract_strided_slice %261 {offsets = [0, 64], sizes = [8, 32], strides = [1, 1]} : vector<8x96xf32> to vector<8x32xf32>
    %265 = vector.extract_strided_slice %255 {offsets = [0, 96], sizes = [8, 32], strides = [1, 1]} : vector<8x128xf32> to vector<8x32xf32>
    %266 = math.tanh %265 : vector<8x32xf32>
    %267 = arith.mulf %263, %249 : vector<8x32xf32>
    %268 = arith.mulf %262, %266 : vector<8x32xf32>
    %269 = arith.addf %267, %268 : vector<8x32xf32>
    %270 = math.tanh %269 : vector<8x32xf32>
    %271 = arith.mulf %264, %270 : vector<8x32xf32>
    %c96_78 = arith.constant 96 : index
    %c0_79 = arith.constant 0 : index
    %272 = vector.load %arg5[%c96_78, %c0_79] : memref<128x32xf32, #tpu.memory_space<vmem>>, vector<8x32xf32>
    tpu.vector_store %arg5[%c96_78, %c0_79], %271 {strides = array<i32>} : memref<128x32xf32, #tpu.memory_space<vmem>>, vector<8x32xf32>,
    %c104 = arith.constant 104 : index
    %c0_80 = arith.constant 0 : index
    %273 = vector.load %arg6[%c104, %c0_80] : memref<128x128xf32, #tpu.memory_space<vmem>>, vector<8x128xf32>
    %cst_81 = arith.constant dense<0.000000e+00> : vector<8x128xf32>
    %274 = tpu.matmul %271, %3, %cst_81 {dimension_numbers = #tpu.dot_dimension_numbers<[1], [0], [0], [1], [0, 0, 1, 1], [], []>} : vector<8x32xf32>, vector<32x128xf32>, vector<8x128xf32> -> vector<8x128xf32>
    %275 = arith.addf %273, %274 : vector<8x128xf32>
    %276 = vector.extract_strided_slice %275 {offsets = [0, 0], sizes = [8, 96], strides = [1, 1]} : vector<8x128xf32> to vector<8x96xf32>
    %277 = arith.negf %276 : vector<8x96xf32>
    %278 = math.exp %277 : vector<8x96xf32>
    %cst_82 = arith.constant 1.000000e+00 : f32
    %279 = vector.broadcast %cst_82 : f32 to vector<8x96xf32>
    %280 = arith.addf %279, %278 : vector<8x96xf32>
    %281 = arith.divf %279, %280 : vector<8x96xf32>
    %282 = vector.extract_strided_slice %281 {offsets = [0, 0], sizes = [8, 32], strides = [1, 1]} : vector<8x96xf32> to vector<8x32xf32>
    %283 = vector.extract_strided_slice %281 {offsets = [0, 32], sizes = [8, 32], strides = [1, 1]} : vector<8x96xf32> to vector<8x32xf32>
    %284 = vector.extract_strided_slice %281 {offsets = [0, 64], sizes = [8, 32], strides = [1, 1]} : vector<8x96xf32> to vector<8x32xf32>
    %285 = vector.extract_strided_slice %275 {offsets = [0, 96], sizes = [8, 32], strides = [1, 1]} : vector<8x128xf32> to vector<8x32xf32>
    %286 = math.tanh %285 : vector<8x32xf32>
    %287 = arith.mulf %283, %269 : vector<8x32xf32>
    %288 = arith.mulf %282, %286 : vector<8x32xf32>
    %289 = arith.addf %287, %288 : vector<8x32xf32>
    %290 = math.tanh %289 : vector<8x32xf32>
    %291 = arith.mulf %284, %290 : vector<8x32xf32>
    %c104_83 = arith.constant 104 : index
    %c0_84 = arith.constant 0 : index
    %292 = vector.load %arg5[%c104_83, %c0_84] : memref<128x32xf32, #tpu.memory_space<vmem>>, vector<8x32xf32>
    tpu.vector_store %arg5[%c104_83, %c0_84], %291 {strides = array<i32>} : memref<128x32xf32, #tpu.memory_space<vmem>>, vector<8x32xf32>,
    %c112 = arith.constant 112 : index
    %c0_85 = arith.constant 0 : index
    %293 = vector.load %arg6[%c112, %c0_85] : memref<128x128xf32, #tpu.memory_space<vmem>>, vector<8x128xf32>
    %cst_86 = arith.constant dense<0.000000e+00> : vector<8x128xf32>
    %294 = tpu.matmul %291, %3, %cst_86 {dimension_numbers = #tpu.dot_dimension_numbers<[1], [0], [0], [1], [0, 0, 1, 1], [], []>} : vector<8x32xf32>, vector<32x128xf32>, vector<8x128xf32> -> vector<8x128xf32>
    %295 = arith.addf %293, %294 : vector<8x128xf32>
    %296 = vector.extract_strided_slice %295 {offsets = [0, 0], sizes = [8, 96], strides = [1, 1]} : vector<8x128xf32> to vector<8x96xf32>
    %297 = arith.negf %296 : vector<8x96xf32>
    %298 = math.exp %297 : vector<8x96xf32>
    %cst_87 = arith.constant 1.000000e+00 : f32
    %299 = vector.broadcast %cst_87 : f32 to vector<8x96xf32>
    %300 = arith.addf %299, %298 : vector<8x96xf32>
    %301 = arith.divf %299, %300 : vector<8x96xf32>
    %302 = vector.extract_strided_slice %301 {offsets = [0, 0], sizes = [8, 32], strides = [1, 1]} : vector<8x96xf32> to vector<8x32xf32>
    %303 = vector.extract_strided_slice %301 {offsets = [0, 32], sizes = [8, 32], strides = [1, 1]} : vector<8x96xf32> to vector<8x32xf32>
    %304 = vector.extract_strided_slice %301 {offsets = [0, 64], sizes = [8, 32], strides = [1, 1]} : vector<8x96xf32> to vector<8x32xf32>
    %305 = vector.extract_strided_slice %295 {offsets = [0, 96], sizes = [8, 32], strides = [1, 1]} : vector<8x128xf32> to vector<8x32xf32>
    %306 = math.tanh %305 : vector<8x32xf32>
    %307 = arith.mulf %303, %289 : vector<8x32xf32>
    %308 = arith.mulf %302, %306 : vector<8x32xf32>
    %309 = arith.addf %307, %308 : vector<8x32xf32>
    %310 = math.tanh %309 : vector<8x32xf32>
    %311 = arith.mulf %304, %310 : vector<8x32xf32>
    %c112_88 = arith.constant 112 : index
    %c0_89 = arith.constant 0 : index
    %312 = vector.load %arg5[%c112_88, %c0_89] : memref<128x32xf32, #tpu.memory_space<vmem>>, vector<8x32xf32>
    tpu.vector_store %arg5[%c112_88, %c0_89], %311 {strides = array<i32>} : memref<128x32xf32, #tpu.memory_space<vmem>>, vector<8x32xf32>,
    %c120 = arith.constant 120 : index
    %c0_90 = arith.constant 0 : index
    %313 = vector.load %arg6[%c120, %c0_90] : memref<128x128xf32, #tpu.memory_space<vmem>>, vector<8x128xf32>
    %cst_91 = arith.constant dense<0.000000e+00> : vector<8x128xf32>
    %314 = tpu.matmul %311, %3, %cst_91 {dimension_numbers = #tpu.dot_dimension_numbers<[1], [0], [0], [1], [0, 0, 1, 1], [], []>} : vector<8x32xf32>, vector<32x128xf32>, vector<8x128xf32> -> vector<8x128xf32>
    %315 = arith.addf %313, %314 : vector<8x128xf32>
    %316 = vector.extract_strided_slice %315 {offsets = [0, 0], sizes = [8, 96], strides = [1, 1]} : vector<8x128xf32> to vector<8x96xf32>
    %317 = arith.negf %316 : vector<8x96xf32>
    %318 = math.exp %317 : vector<8x96xf32>
    %cst_92 = arith.constant 1.000000e+00 : f32
    %319 = vector.broadcast %cst_92 : f32 to vector<8x96xf32>
    %320 = arith.addf %319, %318 : vector<8x96xf32>
    %321 = arith.divf %319, %320 : vector<8x96xf32>
    %322 = vector.extract_strided_slice %321 {offsets = [0, 0], sizes = [8, 32], strides = [1, 1]} : vector<8x96xf32> to vector<8x32xf32>
    %323 = vector.extract_strided_slice %321 {offsets = [0, 32], sizes = [8, 32], strides = [1, 1]} : vector<8x96xf32> to vector<8x32xf32>
    %324 = vector.extract_strided_slice %321 {offsets = [0, 64], sizes = [8, 32], strides = [1, 1]} : vector<8x96xf32> to vector<8x32xf32>
    %325 = vector.extract_strided_slice %315 {offsets = [0, 96], sizes = [8, 32], strides = [1, 1]} : vector<8x128xf32> to vector<8x32xf32>
    %326 = math.tanh %325 : vector<8x32xf32>
    %327 = arith.mulf %323, %309 : vector<8x32xf32>
    %328 = arith.mulf %322, %326 : vector<8x32xf32>
    %329 = arith.addf %327, %328 : vector<8x32xf32>
    %330 = math.tanh %329 : vector<8x32xf32>
    %331 = arith.mulf %324, %330 : vector<8x32xf32>
    %c120_93 = arith.constant 120 : index
    %c0_94 = arith.constant 0 : index
    %332 = vector.load %arg5[%c120_93, %c0_94] : memref<128x32xf32, #tpu.memory_space<vmem>>, vector<8x32xf32>
    tpu.vector_store %arg5[%c120_93, %c0_94], %331 {strides = array<i32>} : memref<128x32xf32, #tpu.memory_space<vmem>>, vector<8x32xf32>,
    %c1 = arith.constant 1 : index
    %c0_95 = arith.constant 0 : index
    %c0_96 = arith.constant 0 : index
    %333 = vector.load %arg1[%c1, %c0_95, %c0_96] : memref<3x32x128xf32, #tpu.memory_space<vmem>>, vector<1x32x128xf32>
    %334 = vector.shape_cast %333 : vector<1x32x128xf32> to vector<32x128xf32>
    %c1_97 = arith.constant 1 : index
    %c0_98 = arith.constant 0 : index
    %c0_99 = arith.constant 0 : index
    %335 = vector.load %arg2[%c1_97, %c0_98, %c0_99] : memref<3x32x128xf32, #tpu.memory_space<vmem>>, vector<1x32x128xf32>
    %336 = vector.shape_cast %335 : vector<1x32x128xf32> to vector<32x128xf32>
    %c1_100 = arith.constant 1 : index
    %c0_101 = arith.constant 0 : index
    %c0_102 = arith.constant 0 : index
    %337 = vector.load %arg3[%c1_100, %c0_101, %c0_102] : memref<3x1x128xf32, #tpu.memory_space<vmem>>, vector<1x1x128xf32>
    %338 = vector.shape_cast %337 : vector<1x1x128xf32> to vector<1x128xf32>
    %c0_103 = arith.constant 0 : index
    %c0_104 = arith.constant 0 : index
    %339 = vector.load %arg5[%c0_103, %c0_104] : memref<128x32xf32, #tpu.memory_space<vmem>>, vector<128x32xf32>
    %cst_105 = arith.constant dense<0.000000e+00> : vector<128x128xf32>
    %340 = tpu.matmul %339, %334, %cst_105 {dimension_numbers = #tpu.dot_dimension_numbers<[1], [0], [0], [1], [0, 0, 1, 1], [], []>} : vector<128x32xf32>, vector<32x128xf32>, vector<128x128xf32> -> vector<128x128xf32>
    %341 = vector.broadcast %338 : vector<1x128xf32> to vector<128x128xf32>
    %342 = arith.addf %340, %341 : vector<128x128xf32>
    %c0_106 = arith.constant 0 : index
    %c0_107 = arith.constant 0 : index
    %343 = vector.load %arg6[%c0_106, %c0_107] : memref<128x128xf32, #tpu.memory_space<vmem>>, vector<128x128xf32>
    tpu.vector_store %arg6[%c0_106, %c0_107], %342 {strides = array<i32>} : memref<128x128xf32, #tpu.memory_space<vmem>>, vector<128x128xf32>,
    %cst_108 = arith.constant 0.000000e+00 : f32
    %344 = vector.broadcast %cst_108 : f32 to vector<8x32xf32>
    %cst_109 = arith.constant 0.000000e+00 : f32
    %345 = vector.broadcast %cst_109 : f32 to vector<8x32xf32>
    %c0_110 = arith.constant 0 : index
    %c0_111 = arith.constant 0 : index
    %346 = vector.load %arg6[%c0_110, %c0_111] : memref<128x128xf32, #tpu.memory_space<vmem>>, vector<8x128xf32>
    %cst_112 = arith.constant dense<0.000000e+00> : vector<8x128xf32>
    %347 = tpu.matmul %344, %336, %cst_112 {dimension_numbers = #tpu.dot_dimension_numbers<[1], [0], [0], [1], [0, 0, 1, 1], [], []>} : vector<8x32xf32>, vector<32x128xf32>, vector<8x128xf32> -> vector<8x128xf32>
    %348 = arith.addf %346, %347 : vector<8x128xf32>
    %349 = vector.extract_strided_slice %348 {offsets = [0, 0], sizes = [8, 96], strides = [1, 1]} : vector<8x128xf32> to vector<8x96xf32>
    %350 = arith.negf %349 : vector<8x96xf32>
    %351 = math.exp %350 : vector<8x96xf32>
    %cst_113 = arith.constant 1.000000e+00 : f32
    %352 = vector.broadcast %cst_113 : f32 to vector<8x96xf32>
    %353 = arith.addf %352, %351 : vector<8x96xf32>
    %354 = arith.divf %352, %353 : vector<8x96xf32>
    %355 = vector.extract_strided_slice %354 {offsets = [0, 0], sizes = [8, 32], strides = [1, 1]} : vector<8x96xf32> to vector<8x32xf32>
    %356 = vector.extract_strided_slice %354 {offsets = [0, 32], sizes = [8, 32], strides = [1, 1]} : vector<8x96xf32> to vector<8x32xf32>
    %357 = vector.extract_strided_slice %354 {offsets = [0, 64], sizes = [8, 32], strides = [1, 1]} : vector<8x96xf32> to vector<8x32xf32>
    %358 = vector.extract_strided_slice %348 {offsets = [0, 96], sizes = [8, 32], strides = [1, 1]} : vector<8x128xf32> to vector<8x32xf32>
    %359 = math.tanh %358 : vector<8x32xf32>
    %360 = arith.mulf %356, %345 : vector<8x32xf32>
    %361 = arith.mulf %355, %359 : vector<8x32xf32>
    %362 = arith.addf %360, %361 : vector<8x32xf32>
    %363 = math.tanh %362 : vector<8x32xf32>
    %364 = arith.mulf %357, %363 : vector<8x32xf32>
    %c0_114 = arith.constant 0 : index
    %c0_115 = arith.constant 0 : index
    %365 = vector.load %arg5[%c0_114, %c0_115] : memref<128x32xf32, #tpu.memory_space<vmem>>, vector<8x32xf32>
    tpu.vector_store %arg5[%c0_114, %c0_115], %364 {strides = array<i32>} : memref<128x32xf32, #tpu.memory_space<vmem>>, vector<8x32xf32>,
    %c8_116 = arith.constant 8 : index
    %c0_117 = arith.constant 0 : index
    %366 = vector.load %arg6[%c8_116, %c0_117] : memref<128x128xf32, #tpu.memory_space<vmem>>, vector<8x128xf32>
    %cst_118 = arith.constant dense<0.000000e+00> : vector<8x128xf32>
    %367 = tpu.matmul %364, %336, %cst_118 {dimension_numbers = #tpu.dot_dimension_numbers<[1], [0], [0], [1], [0, 0, 1, 1], [], []>} : vector<8x32xf32>, vector<32x128xf32>, vector<8x128xf32> -> vector<8x128xf32>
    %368 = arith.addf %366, %367 : vector<8x128xf32>
    %369 = vector.extract_strided_slice %368 {offsets = [0, 0], sizes = [8, 96], strides = [1, 1]} : vector<8x128xf32> to vector<8x96xf32>
    %370 = arith.negf %369 : vector<8x96xf32>
    %371 = math.exp %370 : vector<8x96xf32>
    %cst_119 = arith.constant 1.000000e+00 : f32
    %372 = vector.broadcast %cst_119 : f32 to vector<8x96xf32>
    %373 = arith.addf %372, %371 : vector<8x96xf32>
    %374 = arith.divf %372, %373 : vector<8x96xf32>
    %375 = vector.extract_strided_slice %374 {offsets = [0, 0], sizes = [8, 32], strides = [1, 1]} : vector<8x96xf32> to vector<8x32xf32>
    %376 = vector.extract_strided_slice %374 {offsets = [0, 32], sizes = [8, 32], strides = [1, 1]} : vector<8x96xf32> to vector<8x32xf32>
    %377 = vector.extract_strided_slice %374 {offsets = [0, 64], sizes = [8, 32], strides = [1, 1]} : vector<8x96xf32> to vector<8x32xf32>
    %378 = vector.extract_strided_slice %368 {offsets = [0, 96], sizes = [8, 32], strides = [1, 1]} : vector<8x128xf32> to vector<8x32xf32>
    %379 = math.tanh %378 : vector<8x32xf32>
    %380 = arith.mulf %376, %362 : vector<8x32xf32>
    %381 = arith.mulf %375, %379 : vector<8x32xf32>
    %382 = arith.addf %380, %381 : vector<8x32xf32>
    %383 = math.tanh %382 : vector<8x32xf32>
    %384 = arith.mulf %377, %383 : vector<8x32xf32>
    %c8_120 = arith.constant 8 : index
    %c0_121 = arith.constant 0 : index
    %385 = vector.load %arg5[%c8_120, %c0_121] : memref<128x32xf32, #tpu.memory_space<vmem>>, vector<8x32xf32>
    tpu.vector_store %arg5[%c8_120, %c0_121], %384 {strides = array<i32>} : memref<128x32xf32, #tpu.memory_space<vmem>>, vector<8x32xf32>,
    %c16_122 = arith.constant 16 : index
    %c0_123 = arith.constant 0 : index
    %386 = vector.load %arg6[%c16_122, %c0_123] : memref<128x128xf32, #tpu.memory_space<vmem>>, vector<8x128xf32>
    %cst_124 = arith.constant dense<0.000000e+00> : vector<8x128xf32>
    %387 = tpu.matmul %384, %336, %cst_124 {dimension_numbers = #tpu.dot_dimension_numbers<[1], [0], [0], [1], [0, 0, 1, 1], [], []>} : vector<8x32xf32>, vector<32x128xf32>, vector<8x128xf32> -> vector<8x128xf32>
    %388 = arith.addf %386, %387 : vector<8x128xf32>
    %389 = vector.extract_strided_slice %388 {offsets = [0, 0], sizes = [8, 96], strides = [1, 1]} : vector<8x128xf32> to vector<8x96xf32>
    %390 = arith.negf %389 : vector<8x96xf32>
    %391 = math.exp %390 : vector<8x96xf32>
    %cst_125 = arith.constant 1.000000e+00 : f32
    %392 = vector.broadcast %cst_125 : f32 to vector<8x96xf32>
    %393 = arith.addf %392, %391 : vector<8x96xf32>
    %394 = arith.divf %392, %393 : vector<8x96xf32>
    %395 = vector.extract_strided_slice %394 {offsets = [0, 0], sizes = [8, 32], strides = [1, 1]} : vector<8x96xf32> to vector<8x32xf32>
    %396 = vector.extract_strided_slice %394 {offsets = [0, 32], sizes = [8, 32], strides = [1, 1]} : vector<8x96xf32> to vector<8x32xf32>
    %397 = vector.extract_strided_slice %394 {offsets = [0, 64], sizes = [8, 32], strides = [1, 1]} : vector<8x96xf32> to vector<8x32xf32>
    %398 = vector.extract_strided_slice %388 {offsets = [0, 96], sizes = [8, 32], strides = [1, 1]} : vector<8x128xf32> to vector<8x32xf32>
    %399 = math.tanh %398 : vector<8x32xf32>
    %400 = arith.mulf %396, %382 : vector<8x32xf32>
    %401 = arith.mulf %395, %399 : vector<8x32xf32>
    %402 = arith.addf %400, %401 : vector<8x32xf32>
    %403 = math.tanh %402 : vector<8x32xf32>
    %404 = arith.mulf %397, %403 : vector<8x32xf32>
    %c16_126 = arith.constant 16 : index
    %c0_127 = arith.constant 0 : index
    %405 = vector.load %arg5[%c16_126, %c0_127] : memref<128x32xf32, #tpu.memory_space<vmem>>, vector<8x32xf32>
    tpu.vector_store %arg5[%c16_126, %c0_127], %404 {strides = array<i32>} : memref<128x32xf32, #tpu.memory_space<vmem>>, vector<8x32xf32>,
    %c24_128 = arith.constant 24 : index
    %c0_129 = arith.constant 0 : index
    %406 = vector.load %arg6[%c24_128, %c0_129] : memref<128x128xf32, #tpu.memory_space<vmem>>, vector<8x128xf32>
    %cst_130 = arith.constant dense<0.000000e+00> : vector<8x128xf32>
    %407 = tpu.matmul %404, %336, %cst_130 {dimension_numbers = #tpu.dot_dimension_numbers<[1], [0], [0], [1], [0, 0, 1, 1], [], []>} : vector<8x32xf32>, vector<32x128xf32>, vector<8x128xf32> -> vector<8x128xf32>
    %408 = arith.addf %406, %407 : vector<8x128xf32>
    %409 = vector.extract_strided_slice %408 {offsets = [0, 0], sizes = [8, 96], strides = [1, 1]} : vector<8x128xf32> to vector<8x96xf32>
    %410 = arith.negf %409 : vector<8x96xf32>
    %411 = math.exp %410 : vector<8x96xf32>
    %cst_131 = arith.constant 1.000000e+00 : f32
    %412 = vector.broadcast %cst_131 : f32 to vector<8x96xf32>
    %413 = arith.addf %412, %411 : vector<8x96xf32>
    %414 = arith.divf %412, %413 : vector<8x96xf32>
    %415 = vector.extract_strided_slice %414 {offsets = [0, 0], sizes = [8, 32], strides = [1, 1]} : vector<8x96xf32> to vector<8x32xf32>
    %416 = vector.extract_strided_slice %414 {offsets = [0, 32], sizes = [8, 32], strides = [1, 1]} : vector<8x96xf32> to vector<8x32xf32>
    %417 = vector.extract_strided_slice %414 {offsets = [0, 64], sizes = [8, 32], strides = [1, 1]} : vector<8x96xf32> to vector<8x32xf32>
    %418 = vector.extract_strided_slice %408 {offsets = [0, 96], sizes = [8, 32], strides = [1, 1]} : vector<8x128xf32> to vector<8x32xf32>
    %419 = math.tanh %418 : vector<8x32xf32>
    %420 = arith.mulf %416, %402 : vector<8x32xf32>
    %421 = arith.mulf %415, %419 : vector<8x32xf32>
    %422 = arith.addf %420, %421 : vector<8x32xf32>
    %423 = math.tanh %422 : vector<8x32xf32>
    %424 = arith.mulf %417, %423 : vector<8x32xf32>
    %c24_132 = arith.constant 24 : index
    %c0_133 = arith.constant 0 : index
    %425 = vector.load %arg5[%c24_132, %c0_133] : memref<128x32xf32, #tpu.memory_space<vmem>>, vector<8x32xf32>
    tpu.vector_store %arg5[%c24_132, %c0_133], %424 {strides = array<i32>} : memref<128x32xf32, #tpu.memory_space<vmem>>, vector<8x32xf32>,
    %c32_134 = arith.constant 32 : index
    %c0_135 = arith.constant 0 : index
    %426 = vector.load %arg6[%c32_134, %c0_135] : memref<128x128xf32, #tpu.memory_space<vmem>>, vector<8x128xf32>
    %cst_136 = arith.constant dense<0.000000e+00> : vector<8x128xf32>
    %427 = tpu.matmul %424, %336, %cst_136 {dimension_numbers = #tpu.dot_dimension_numbers<[1], [0], [0], [1], [0, 0, 1, 1], [], []>} : vector<8x32xf32>, vector<32x128xf32>, vector<8x128xf32> -> vector<8x128xf32>
    %428 = arith.addf %426, %427 : vector<8x128xf32>
    %429 = vector.extract_strided_slice %428 {offsets = [0, 0], sizes = [8, 96], strides = [1, 1]} : vector<8x128xf32> to vector<8x96xf32>
    %430 = arith.negf %429 : vector<8x96xf32>
    %431 = math.exp %430 : vector<8x96xf32>
    %cst_137 = arith.constant 1.000000e+00 : f32
    %432 = vector.broadcast %cst_137 : f32 to vector<8x96xf32>
    %433 = arith.addf %432, %431 : vector<8x96xf32>
    %434 = arith.divf %432, %433 : vector<8x96xf32>
    %435 = vector.extract_strided_slice %434 {offsets = [0, 0], sizes = [8, 32], strides = [1, 1]} : vector<8x96xf32> to vector<8x32xf32>
    %436 = vector.extract_strided_slice %434 {offsets = [0, 32], sizes = [8, 32], strides = [1, 1]} : vector<8x96xf32> to vector<8x32xf32>
    %437 = vector.extract_strided_slice %434 {offsets = [0, 64], sizes = [8, 32], strides = [1, 1]} : vector<8x96xf32> to vector<8x32xf32>
    %438 = vector.extract_strided_slice %428 {offsets = [0, 96], sizes = [8, 32], strides = [1, 1]} : vector<8x128xf32> to vector<8x32xf32>
    %439 = math.tanh %438 : vector<8x32xf32>
    %440 = arith.mulf %436, %422 : vector<8x32xf32>
    %441 = arith.mulf %435, %439 : vector<8x32xf32>
    %442 = arith.addf %440, %441 : vector<8x32xf32>
    %443 = math.tanh %442 : vector<8x32xf32>
    %444 = arith.mulf %437, %443 : vector<8x32xf32>
    %c32_138 = arith.constant 32 : index
    %c0_139 = arith.constant 0 : index
    %445 = vector.load %arg5[%c32_138, %c0_139] : memref<128x32xf32, #tpu.memory_space<vmem>>, vector<8x32xf32>
    tpu.vector_store %arg5[%c32_138, %c0_139], %444 {strides = array<i32>} : memref<128x32xf32, #tpu.memory_space<vmem>>, vector<8x32xf32>,
    %c40_140 = arith.constant 40 : index
    %c0_141 = arith.constant 0 : index
    %446 = vector.load %arg6[%c40_140, %c0_141] : memref<128x128xf32, #tpu.memory_space<vmem>>, vector<8x128xf32>
    %cst_142 = arith.constant dense<0.000000e+00> : vector<8x128xf32>
    %447 = tpu.matmul %444, %336, %cst_142 {dimension_numbers = #tpu.dot_dimension_numbers<[1], [0], [0], [1], [0, 0, 1, 1], [], []>} : vector<8x32xf32>, vector<32x128xf32>, vector<8x128xf32> -> vector<8x128xf32>
    %448 = arith.addf %446, %447 : vector<8x128xf32>
    %449 = vector.extract_strided_slice %448 {offsets = [0, 0], sizes = [8, 96], strides = [1, 1]} : vector<8x128xf32> to vector<8x96xf32>
    %450 = arith.negf %449 : vector<8x96xf32>
    %451 = math.exp %450 : vector<8x96xf32>
    %cst_143 = arith.constant 1.000000e+00 : f32
    %452 = vector.broadcast %cst_143 : f32 to vector<8x96xf32>
    %453 = arith.addf %452, %451 : vector<8x96xf32>
    %454 = arith.divf %452, %453 : vector<8x96xf32>
    %455 = vector.extract_strided_slice %454 {offsets = [0, 0], sizes = [8, 32], strides = [1, 1]} : vector<8x96xf32> to vector<8x32xf32>
    %456 = vector.extract_strided_slice %454 {offsets = [0, 32], sizes = [8, 32], strides = [1, 1]} : vector<8x96xf32> to vector<8x32xf32>
    %457 = vector.extract_strided_slice %454 {offsets = [0, 64], sizes = [8, 32], strides = [1, 1]} : vector<8x96xf32> to vector<8x32xf32>
    %458 = vector.extract_strided_slice %448 {offsets = [0, 96], sizes = [8, 32], strides = [1, 1]} : vector<8x128xf32> to vector<8x32xf32>
    %459 = math.tanh %458 : vector<8x32xf32>
    %460 = arith.mulf %456, %442 : vector<8x32xf32>
    %461 = arith.mulf %455, %459 : vector<8x32xf32>
    %462 = arith.addf %460, %461 : vector<8x32xf32>
    %463 = math.tanh %462 : vector<8x32xf32>
    %464 = arith.mulf %457, %463 : vector<8x32xf32>
    %c40_144 = arith.constant 40 : index
    %c0_145 = arith.constant 0 : index
    %465 = vector.load %arg5[%c40_144, %c0_145] : memref<128x32xf32, #tpu.memory_space<vmem>>, vector<8x32xf32>
    tpu.vector_store %arg5[%c40_144, %c0_145], %464 {strides = array<i32>} : memref<128x32xf32, #tpu.memory_space<vmem>>, vector<8x32xf32>,
    %c48_146 = arith.constant 48 : index
    %c0_147 = arith.constant 0 : index
    %466 = vector.load %arg6[%c48_146, %c0_147] : memref<128x128xf32, #tpu.memory_space<vmem>>, vector<8x128xf32>
    %cst_148 = arith.constant dense<0.000000e+00> : vector<8x128xf32>
    %467 = tpu.matmul %464, %336, %cst_148 {dimension_numbers = #tpu.dot_dimension_numbers<[1], [0], [0], [1], [0, 0, 1, 1], [], []>} : vector<8x32xf32>, vector<32x128xf32>, vector<8x128xf32> -> vector<8x128xf32>
    %468 = arith.addf %466, %467 : vector<8x128xf32>
    %469 = vector.extract_strided_slice %468 {offsets = [0, 0], sizes = [8, 96], strides = [1, 1]} : vector<8x128xf32> to vector<8x96xf32>
    %470 = arith.negf %469 : vector<8x96xf32>
    %471 = math.exp %470 : vector<8x96xf32>
    %cst_149 = arith.constant 1.000000e+00 : f32
    %472 = vector.broadcast %cst_149 : f32 to vector<8x96xf32>
    %473 = arith.addf %472, %471 : vector<8x96xf32>
    %474 = arith.divf %472, %473 : vector<8x96xf32>
    %475 = vector.extract_strided_slice %474 {offsets = [0, 0], sizes = [8, 32], strides = [1, 1]} : vector<8x96xf32> to vector<8x32xf32>
    %476 = vector.extract_strided_slice %474 {offsets = [0, 32], sizes = [8, 32], strides = [1, 1]} : vector<8x96xf32> to vector<8x32xf32>
    %477 = vector.extract_strided_slice %474 {offsets = [0, 64], sizes = [8, 32], strides = [1, 1]} : vector<8x96xf32> to vector<8x32xf32>
    %478 = vector.extract_strided_slice %468 {offsets = [0, 96], sizes = [8, 32], strides = [1, 1]} : vector<8x128xf32> to vector<8x32xf32>
    %479 = math.tanh %478 : vector<8x32xf32>
    %480 = arith.mulf %476, %462 : vector<8x32xf32>
    %481 = arith.mulf %475, %479 : vector<8x32xf32>
    %482 = arith.addf %480, %481 : vector<8x32xf32>
    %483 = math.tanh %482 : vector<8x32xf32>
    %484 = arith.mulf %477, %483 : vector<8x32xf32>
    %c48_150 = arith.constant 48 : index
    %c0_151 = arith.constant 0 : index
    %485 = vector.load %arg5[%c48_150, %c0_151] : memref<128x32xf32, #tpu.memory_space<vmem>>, vector<8x32xf32>
    tpu.vector_store %arg5[%c48_150, %c0_151], %484 {strides = array<i32>} : memref<128x32xf32, #tpu.memory_space<vmem>>, vector<8x32xf32>,
    %c56_152 = arith.constant 56 : index
    %c0_153 = arith.constant 0 : index
    %486 = vector.load %arg6[%c56_152, %c0_153] : memref<128x128xf32, #tpu.memory_space<vmem>>, vector<8x128xf32>
    %cst_154 = arith.constant dense<0.000000e+00> : vector<8x128xf32>
    %487 = tpu.matmul %484, %336, %cst_154 {dimension_numbers = #tpu.dot_dimension_numbers<[1], [0], [0], [1], [0, 0, 1, 1], [], []>} : vector<8x32xf32>, vector<32x128xf32>, vector<8x128xf32> -> vector<8x128xf32>
    %488 = arith.addf %486, %487 : vector<8x128xf32>
    %489 = vector.extract_strided_slice %488 {offsets = [0, 0], sizes = [8, 96], strides = [1, 1]} : vector<8x128xf32> to vector<8x96xf32>
    %490 = arith.negf %489 : vector<8x96xf32>
    %491 = math.exp %490 : vector<8x96xf32>
    %cst_155 = arith.constant 1.000000e+00 : f32
    %492 = vector.broadcast %cst_155 : f32 to vector<8x96xf32>
    %493 = arith.addf %492, %491 : vector<8x96xf32>
    %494 = arith.divf %492, %493 : vector<8x96xf32>
    %495 = vector.extract_strided_slice %494 {offsets = [0, 0], sizes = [8, 32], strides = [1, 1]} : vector<8x96xf32> to vector<8x32xf32>
    %496 = vector.extract_strided_slice %494 {offsets = [0, 32], sizes = [8, 32], strides = [1, 1]} : vector<8x96xf32> to vector<8x32xf32>
    %497 = vector.extract_strided_slice %494 {offsets = [0, 64], sizes = [8, 32], strides = [1, 1]} : vector<8x96xf32> to vector<8x32xf32>
    %498 = vector.extract_strided_slice %488 {offsets = [0, 96], sizes = [8, 32], strides = [1, 1]} : vector<8x128xf32> to vector<8x32xf32>
    %499 = math.tanh %498 : vector<8x32xf32>
    %500 = arith.mulf %496, %482 : vector<8x32xf32>
    %501 = arith.mulf %495, %499 : vector<8x32xf32>
    %502 = arith.addf %500, %501 : vector<8x32xf32>
    %503 = math.tanh %502 : vector<8x32xf32>
    %504 = arith.mulf %497, %503 : vector<8x32xf32>
    %c56_156 = arith.constant 56 : index
    %c0_157 = arith.constant 0 : index
    %505 = vector.load %arg5[%c56_156, %c0_157] : memref<128x32xf32, #tpu.memory_space<vmem>>, vector<8x32xf32>
    tpu.vector_store %arg5[%c56_156, %c0_157], %504 {strides = array<i32>} : memref<128x32xf32, #tpu.memory_space<vmem>>, vector<8x32xf32>,
    %c64_158 = arith.constant 64 : index
    %c0_159 = arith.constant 0 : index
    %506 = vector.load %arg6[%c64_158, %c0_159] : memref<128x128xf32, #tpu.memory_space<vmem>>, vector<8x128xf32>
    %cst_160 = arith.constant dense<0.000000e+00> : vector<8x128xf32>
    %507 = tpu.matmul %504, %336, %cst_160 {dimension_numbers = #tpu.dot_dimension_numbers<[1], [0], [0], [1], [0, 0, 1, 1], [], []>} : vector<8x32xf32>, vector<32x128xf32>, vector<8x128xf32> -> vector<8x128xf32>
    %508 = arith.addf %506, %507 : vector<8x128xf32>
    %509 = vector.extract_strided_slice %508 {offsets = [0, 0], sizes = [8, 96], strides = [1, 1]} : vector<8x128xf32> to vector<8x96xf32>
    %510 = arith.negf %509 : vector<8x96xf32>
    %511 = math.exp %510 : vector<8x96xf32>
    %cst_161 = arith.constant 1.000000e+00 : f32
    %512 = vector.broadcast %cst_161 : f32 to vector<8x96xf32>
    %513 = arith.addf %512, %511 : vector<8x96xf32>
    %514 = arith.divf %512, %513 : vector<8x96xf32>
    %515 = vector.extract_strided_slice %514 {offsets = [0, 0], sizes = [8, 32], strides = [1, 1]} : vector<8x96xf32> to vector<8x32xf32>
    %516 = vector.extract_strided_slice %514 {offsets = [0, 32], sizes = [8, 32], strides = [1, 1]} : vector<8x96xf32> to vector<8x32xf32>
    %517 = vector.extract_strided_slice %514 {offsets = [0, 64], sizes = [8, 32], strides = [1, 1]} : vector<8x96xf32> to vector<8x32xf32>
    %518 = vector.extract_strided_slice %508 {offsets = [0, 96], sizes = [8, 32], strides = [1, 1]} : vector<8x128xf32> to vector<8x32xf32>
    %519 = math.tanh %518 : vector<8x32xf32>
    %520 = arith.mulf %516, %502 : vector<8x32xf32>
    %521 = arith.mulf %515, %519 : vector<8x32xf32>
    %522 = arith.addf %520, %521 : vector<8x32xf32>
    %523 = math.tanh %522 : vector<8x32xf32>
    %524 = arith.mulf %517, %523 : vector<8x32xf32>
    %c64_162 = arith.constant 64 : index
    %c0_163 = arith.constant 0 : index
    %525 = vector.load %arg5[%c64_162, %c0_163] : memref<128x32xf32, #tpu.memory_space<vmem>>, vector<8x32xf32>
    tpu.vector_store %arg5[%c64_162, %c0_163], %524 {strides = array<i32>} : memref<128x32xf32, #tpu.memory_space<vmem>>, vector<8x32xf32>,
    %c72_164 = arith.constant 72 : index
    %c0_165 = arith.constant 0 : index
    %526 = vector.load %arg6[%c72_164, %c0_165] : memref<128x128xf32, #tpu.memory_space<vmem>>, vector<8x128xf32>
    %cst_166 = arith.constant dense<0.000000e+00> : vector<8x128xf32>
    %527 = tpu.matmul %524, %336, %cst_166 {dimension_numbers = #tpu.dot_dimension_numbers<[1], [0], [0], [1], [0, 0, 1, 1], [], []>} : vector<8x32xf32>, vector<32x128xf32>, vector<8x128xf32> -> vector<8x128xf32>
    %528 = arith.addf %526, %527 : vector<8x128xf32>
    %529 = vector.extract_strided_slice %528 {offsets = [0, 0], sizes = [8, 96], strides = [1, 1]} : vector<8x128xf32> to vector<8x96xf32>
    %530 = arith.negf %529 : vector<8x96xf32>
    %531 = math.exp %530 : vector<8x96xf32>
    %cst_167 = arith.constant 1.000000e+00 : f32
    %532 = vector.broadcast %cst_167 : f32 to vector<8x96xf32>
    %533 = arith.addf %532, %531 : vector<8x96xf32>
    %534 = arith.divf %532, %533 : vector<8x96xf32>
    %535 = vector.extract_strided_slice %534 {offsets = [0, 0], sizes = [8, 32], strides = [1, 1]} : vector<8x96xf32> to vector<8x32xf32>
    %536 = vector.extract_strided_slice %534 {offsets = [0, 32], sizes = [8, 32], strides = [1, 1]} : vector<8x96xf32> to vector<8x32xf32>
    %537 = vector.extract_strided_slice %534 {offsets = [0, 64], sizes = [8, 32], strides = [1, 1]} : vector<8x96xf32> to vector<8x32xf32>
    %538 = vector.extract_strided_slice %528 {offsets = [0, 96], sizes = [8, 32], strides = [1, 1]} : vector<8x128xf32> to vector<8x32xf32>
    %539 = math.tanh %538 : vector<8x32xf32>
    %540 = arith.mulf %536, %522 : vector<8x32xf32>
    %541 = arith.mulf %535, %539 : vector<8x32xf32>
    %542 = arith.addf %540, %541 : vector<8x32xf32>
    %543 = math.tanh %542 : vector<8x32xf32>
    %544 = arith.mulf %537, %543 : vector<8x32xf32>
    %c72_168 = arith.constant 72 : index
    %c0_169 = arith.constant 0 : index
    %545 = vector.load %arg5[%c72_168, %c0_169] : memref<128x32xf32, #tpu.memory_space<vmem>>, vector<8x32xf32>
    tpu.vector_store %arg5[%c72_168, %c0_169], %544 {strides = array<i32>} : memref<128x32xf32, #tpu.memory_space<vmem>>, vector<8x32xf32>,
    %c80_170 = arith.constant 80 : index
    %c0_171 = arith.constant 0 : index
    %546 = vector.load %arg6[%c80_170, %c0_171] : memref<128x128xf32, #tpu.memory_space<vmem>>, vector<8x128xf32>
    %cst_172 = arith.constant dense<0.000000e+00> : vector<8x128xf32>
    %547 = tpu.matmul %544, %336, %cst_172 {dimension_numbers = #tpu.dot_dimension_numbers<[1], [0], [0], [1], [0, 0, 1, 1], [], []>} : vector<8x32xf32>, vector<32x128xf32>, vector<8x128xf32> -> vector<8x128xf32>
    %548 = arith.addf %546, %547 : vector<8x128xf32>
    %549 = vector.extract_strided_slice %548 {offsets = [0, 0], sizes = [8, 96], strides = [1, 1]} : vector<8x128xf32> to vector<8x96xf32>
    %550 = arith.negf %549 : vector<8x96xf32>
    %551 = math.exp %550 : vector<8x96xf32>
    %cst_173 = arith.constant 1.000000e+00 : f32
    %552 = vector.broadcast %cst_173 : f32 to vector<8x96xf32>
    %553 = arith.addf %552, %551 : vector<8x96xf32>
    %554 = arith.divf %552, %553 : vector<8x96xf32>
    %555 = vector.extract_strided_slice %554 {offsets = [0, 0], sizes = [8, 32], strides = [1, 1]} : vector<8x96xf32> to vector<8x32xf32>
    %556 = vector.extract_strided_slice %554 {offsets = [0, 32], sizes = [8, 32], strides = [1, 1]} : vector<8x96xf32> to vector<8x32xf32>
    %557 = vector.extract_strided_slice %554 {offsets = [0, 64], sizes = [8, 32], strides = [1, 1]} : vector<8x96xf32> to vector<8x32xf32>
    %558 = vector.extract_strided_slice %548 {offsets = [0, 96], sizes = [8, 32], strides = [1, 1]} : vector<8x128xf32> to vector<8x32xf32>
    %559 = math.tanh %558 : vector<8x32xf32>
    %560 = arith.mulf %556, %542 : vector<8x32xf32>
    %561 = arith.mulf %555, %559 : vector<8x32xf32>
    %562 = arith.addf %560, %561 : vector<8x32xf32>
    %563 = math.tanh %562 : vector<8x32xf32>
    %564 = arith.mulf %557, %563 : vector<8x32xf32>
    %c80_174 = arith.constant 80 : index
    %c0_175 = arith.constant 0 : index
    %565 = vector.load %arg5[%c80_174, %c0_175] : memref<128x32xf32, #tpu.memory_space<vmem>>, vector<8x32xf32>
    tpu.vector_store %arg5[%c80_174, %c0_175], %564 {strides = array<i32>} : memref<128x32xf32, #tpu.memory_space<vmem>>, vector<8x32xf32>,
    %c88_176 = arith.constant 88 : index
    %c0_177 = arith.constant 0 : index
    %566 = vector.load %arg6[%c88_176, %c0_177] : memref<128x128xf32, #tpu.memory_space<vmem>>, vector<8x128xf32>
    %cst_178 = arith.constant dense<0.000000e+00> : vector<8x128xf32>
    %567 = tpu.matmul %564, %336, %cst_178 {dimension_numbers = #tpu.dot_dimension_numbers<[1], [0], [0], [1], [0, 0, 1, 1], [], []>} : vector<8x32xf32>, vector<32x128xf32>, vector<8x128xf32> -> vector<8x128xf32>
    %568 = arith.addf %566, %567 : vector<8x128xf32>
    %569 = vector.extract_strided_slice %568 {offsets = [0, 0], sizes = [8, 96], strides = [1, 1]} : vector<8x128xf32> to vector<8x96xf32>
    %570 = arith.negf %569 : vector<8x96xf32>
    %571 = math.exp %570 : vector<8x96xf32>
    %cst_179 = arith.constant 1.000000e+00 : f32
    %572 = vector.broadcast %cst_179 : f32 to vector<8x96xf32>
    %573 = arith.addf %572, %571 : vector<8x96xf32>
    %574 = arith.divf %572, %573 : vector<8x96xf32>
    %575 = vector.extract_strided_slice %574 {offsets = [0, 0], sizes = [8, 32], strides = [1, 1]} : vector<8x96xf32> to vector<8x32xf32>
    %576 = vector.extract_strided_slice %574 {offsets = [0, 32], sizes = [8, 32], strides = [1, 1]} : vector<8x96xf32> to vector<8x32xf32>
    %577 = vector.extract_strided_slice %574 {offsets = [0, 64], sizes = [8, 32], strides = [1, 1]} : vector<8x96xf32> to vector<8x32xf32>
    %578 = vector.extract_strided_slice %568 {offsets = [0, 96], sizes = [8, 32], strides = [1, 1]} : vector<8x128xf32> to vector<8x32xf32>
    %579 = math.tanh %578 : vector<8x32xf32>
    %580 = arith.mulf %576, %562 : vector<8x32xf32>
    %581 = arith.mulf %575, %579 : vector<8x32xf32>
    %582 = arith.addf %580, %581 : vector<8x32xf32>
    %583 = math.tanh %582 : vector<8x32xf32>
    %584 = arith.mulf %577, %583 : vector<8x32xf32>
    %c88_180 = arith.constant 88 : index
    %c0_181 = arith.constant 0 : index
    %585 = vector.load %arg5[%c88_180, %c0_181] : memref<128x32xf32, #tpu.memory_space<vmem>>, vector<8x32xf32>
    tpu.vector_store %arg5[%c88_180, %c0_181], %584 {strides = array<i32>} : memref<128x32xf32, #tpu.memory_space<vmem>>, vector<8x32xf32>,
    %c96_182 = arith.constant 96 : index
    %c0_183 = arith.constant 0 : index
    %586 = vector.load %arg6[%c96_182, %c0_183] : memref<128x128xf32, #tpu.memory_space<vmem>>, vector<8x128xf32>
    %cst_184 = arith.constant dense<0.000000e+00> : vector<8x128xf32>
    %587 = tpu.matmul %584, %336, %cst_184 {dimension_numbers = #tpu.dot_dimension_numbers<[1], [0], [0], [1], [0, 0, 1, 1], [], []>} : vector<8x32xf32>, vector<32x128xf32>, vector<8x128xf32> -> vector<8x128xf32>
    %588 = arith.addf %586, %587 : vector<8x128xf32>
    %589 = vector.extract_strided_slice %588 {offsets = [0, 0], sizes = [8, 96], strides = [1, 1]} : vector<8x128xf32> to vector<8x96xf32>
    %590 = arith.negf %589 : vector<8x96xf32>
    %591 = math.exp %590 : vector<8x96xf32>
    %cst_185 = arith.constant 1.000000e+00 : f32
    %592 = vector.broadcast %cst_185 : f32 to vector<8x96xf32>
    %593 = arith.addf %592, %591 : vector<8x96xf32>
    %594 = arith.divf %592, %593 : vector<8x96xf32>
    %595 = vector.extract_strided_slice %594 {offsets = [0, 0], sizes = [8, 32], strides = [1, 1]} : vector<8x96xf32> to vector<8x32xf32>
    %596 = vector.extract_strided_slice %594 {offsets = [0, 32], sizes = [8, 32], strides = [1, 1]} : vector<8x96xf32> to vector<8x32xf32>
    %597 = vector.extract_strided_slice %594 {offsets = [0, 64], sizes = [8, 32], strides = [1, 1]} : vector<8x96xf32> to vector<8x32xf32>
    %598 = vector.extract_strided_slice %588 {offsets = [0, 96], sizes = [8, 32], strides = [1, 1]} : vector<8x128xf32> to vector<8x32xf32>
    %599 = math.tanh %598 : vector<8x32xf32>
    %600 = arith.mulf %596, %582 : vector<8x32xf32>
    %601 = arith.mulf %595, %599 : vector<8x32xf32>
    %602 = arith.addf %600, %601 : vector<8x32xf32>
    %603 = math.tanh %602 : vector<8x32xf32>
    %604 = arith.mulf %597, %603 : vector<8x32xf32>
    %c96_186 = arith.constant 96 : index
    %c0_187 = arith.constant 0 : index
    %605 = vector.load %arg5[%c96_186, %c0_187] : memref<128x32xf32, #tpu.memory_space<vmem>>, vector<8x32xf32>
    tpu.vector_store %arg5[%c96_186, %c0_187], %604 {strides = array<i32>} : memref<128x32xf32, #tpu.memory_space<vmem>>, vector<8x32xf32>,
    %c104_188 = arith.constant 104 : index
    %c0_189 = arith.constant 0 : index
    %606 = vector.load %arg6[%c104_188, %c0_189] : memref<128x128xf32, #tpu.memory_space<vmem>>, vector<8x128xf32>
    %cst_190 = arith.constant dense<0.000000e+00> : vector<8x128xf32>
    %607 = tpu.matmul %604, %336, %cst_190 {dimension_numbers = #tpu.dot_dimension_numbers<[1], [0], [0], [1], [0, 0, 1, 1], [], []>} : vector<8x32xf32>, vector<32x128xf32>, vector<8x128xf32> -> vector<8x128xf32>
    %608 = arith.addf %606, %607 : vector<8x128xf32>
    %609 = vector.extract_strided_slice %608 {offsets = [0, 0], sizes = [8, 96], strides = [1, 1]} : vector<8x128xf32> to vector<8x96xf32>
    %610 = arith.negf %609 : vector<8x96xf32>
    %611 = math.exp %610 : vector<8x96xf32>
    %cst_191 = arith.constant 1.000000e+00 : f32
    %612 = vector.broadcast %cst_191 : f32 to vector<8x96xf32>
    %613 = arith.addf %612, %611 : vector<8x96xf32>
    %614 = arith.divf %612, %613 : vector<8x96xf32>
    %615 = vector.extract_strided_slice %614 {offsets = [0, 0], sizes = [8, 32], strides = [1, 1]} : vector<8x96xf32> to vector<8x32xf32>
    %616 = vector.extract_strided_slice %614 {offsets = [0, 32], sizes = [8, 32], strides = [1, 1]} : vector<8x96xf32> to vector<8x32xf32>
    %617 = vector.extract_strided_slice %614 {offsets = [0, 64], sizes = [8, 32], strides = [1, 1]} : vector<8x96xf32> to vector<8x32xf32>
    %618 = vector.extract_strided_slice %608 {offsets = [0, 96], sizes = [8, 32], strides = [1, 1]} : vector<8x128xf32> to vector<8x32xf32>
    %619 = math.tanh %618 : vector<8x32xf32>
    %620 = arith.mulf %616, %602 : vector<8x32xf32>
    %621 = arith.mulf %615, %619 : vector<8x32xf32>
    %622 = arith.addf %620, %621 : vector<8x32xf32>
    %623 = math.tanh %622 : vector<8x32xf32>
    %624 = arith.mulf %617, %623 : vector<8x32xf32>
    %c104_192 = arith.constant 104 : index
    %c0_193 = arith.constant 0 : index
    %625 = vector.load %arg5[%c104_192, %c0_193] : memref<128x32xf32, #tpu.memory_space<vmem>>, vector<8x32xf32>
    tpu.vector_store %arg5[%c104_192, %c0_193], %624 {strides = array<i32>} : memref<128x32xf32, #tpu.memory_space<vmem>>, vector<8x32xf32>,
    %c112_194 = arith.constant 112 : index
    %c0_195 = arith.constant 0 : index
    %626 = vector.load %arg6[%c112_194, %c0_195] : memref<128x128xf32, #tpu.memory_space<vmem>>, vector<8x128xf32>
    %cst_196 = arith.constant dense<0.000000e+00> : vector<8x128xf32>
    %627 = tpu.matmul %624, %336, %cst_196 {dimension_numbers = #tpu.dot_dimension_numbers<[1], [0], [0], [1], [0, 0, 1, 1], [], []>} : vector<8x32xf32>, vector<32x128xf32>, vector<8x128xf32> -> vector<8x128xf32>
    %628 = arith.addf %626, %627 : vector<8x128xf32>
    %629 = vector.extract_strided_slice %628 {offsets = [0, 0], sizes = [8, 96], strides = [1, 1]} : vector<8x128xf32> to vector<8x96xf32>
    %630 = arith.negf %629 : vector<8x96xf32>
    %631 = math.exp %630 : vector<8x96xf32>
    %cst_197 = arith.constant 1.000000e+00 : f32
    %632 = vector.broadcast %cst_197 : f32 to vector<8x96xf32>
    %633 = arith.addf %632, %631 : vector<8x96xf32>
    %634 = arith.divf %632, %633 : vector<8x96xf32>
    %635 = vector.extract_strided_slice %634 {offsets = [0, 0], sizes = [8, 32], strides = [1, 1]} : vector<8x96xf32> to vector<8x32xf32>
    %636 = vector.extract_strided_slice %634 {offsets = [0, 32], sizes = [8, 32], strides = [1, 1]} : vector<8x96xf32> to vector<8x32xf32>
    %637 = vector.extract_strided_slice %634 {offsets = [0, 64], sizes = [8, 32], strides = [1, 1]} : vector<8x96xf32> to vector<8x32xf32>
    %638 = vector.extract_strided_slice %628 {offsets = [0, 96], sizes = [8, 32], strides = [1, 1]} : vector<8x128xf32> to vector<8x32xf32>
    %639 = math.tanh %638 : vector<8x32xf32>
    %640 = arith.mulf %636, %622 : vector<8x32xf32>
    %641 = arith.mulf %635, %639 : vector<8x32xf32>
    %642 = arith.addf %640, %641 : vector<8x32xf32>
    %643 = math.tanh %642 : vector<8x32xf32>
    %644 = arith.mulf %637, %643 : vector<8x32xf32>
    %c112_198 = arith.constant 112 : index
    %c0_199 = arith.constant 0 : index
    %645 = vector.load %arg5[%c112_198, %c0_199] : memref<128x32xf32, #tpu.memory_space<vmem>>, vector<8x32xf32>
    tpu.vector_store %arg5[%c112_198, %c0_199], %644 {strides = array<i32>} : memref<128x32xf32, #tpu.memory_space<vmem>>, vector<8x32xf32>,
    %c120_200 = arith.constant 120 : index
    %c0_201 = arith.constant 0 : index
    %646 = vector.load %arg6[%c120_200, %c0_201] : memref<128x128xf32, #tpu.memory_space<vmem>>, vector<8x128xf32>
    %cst_202 = arith.constant dense<0.000000e+00> : vector<8x128xf32>
    %647 = tpu.matmul %644, %336, %cst_202 {dimension_numbers = #tpu.dot_dimension_numbers<[1], [0], [0], [1], [0, 0, 1, 1], [], []>} : vector<8x32xf32>, vector<32x128xf32>, vector<8x128xf32> -> vector<8x128xf32>
    %648 = arith.addf %646, %647 : vector<8x128xf32>
    %649 = vector.extract_strided_slice %648 {offsets = [0, 0], sizes = [8, 96], strides = [1, 1]} : vector<8x128xf32> to vector<8x96xf32>
    %650 = arith.negf %649 : vector<8x96xf32>
    %651 = math.exp %650 : vector<8x96xf32>
    %cst_203 = arith.constant 1.000000e+00 : f32
    %652 = vector.broadcast %cst_203 : f32 to vector<8x96xf32>
    %653 = arith.addf %652, %651 : vector<8x96xf32>
    %654 = arith.divf %652, %653 : vector<8x96xf32>
    %655 = vector.extract_strided_slice %654 {offsets = [0, 0], sizes = [8, 32], strides = [1, 1]} : vector<8x96xf32> to vector<8x32xf32>
    %656 = vector.extract_strided_slice %654 {offsets = [0, 32], sizes = [8, 32], strides = [1, 1]} : vector<8x96xf32> to vector<8x32xf32>
    %657 = vector.extract_strided_slice %654 {offsets = [0, 64], sizes = [8, 32], strides = [1, 1]} : vector<8x96xf32> to vector<8x32xf32>
    %658 = vector.extract_strided_slice %648 {offsets = [0, 96], sizes = [8, 32], strides = [1, 1]} : vector<8x128xf32> to vector<8x32xf32>
    %659 = math.tanh %658 : vector<8x32xf32>
    %660 = arith.mulf %656, %642 : vector<8x32xf32>
    %661 = arith.mulf %655, %659 : vector<8x32xf32>
    %662 = arith.addf %660, %661 : vector<8x32xf32>
    %663 = math.tanh %662 : vector<8x32xf32>
    %664 = arith.mulf %657, %663 : vector<8x32xf32>
    %c120_204 = arith.constant 120 : index
    %c0_205 = arith.constant 0 : index
    %665 = vector.load %arg5[%c120_204, %c0_205] : memref<128x32xf32, #tpu.memory_space<vmem>>, vector<8x32xf32>
    tpu.vector_store %arg5[%c120_204, %c0_205], %664 {strides = array<i32>} : memref<128x32xf32, #tpu.memory_space<vmem>>, vector<8x32xf32>,
    %c2 = arith.constant 2 : index
    %c0_206 = arith.constant 0 : index
    %c0_207 = arith.constant 0 : index
    %666 = vector.load %arg1[%c2, %c0_206, %c0_207] : memref<3x32x128xf32, #tpu.memory_space<vmem>>, vector<1x32x128xf32>
    %667 = vector.shape_cast %666 : vector<1x32x128xf32> to vector<32x128xf32>
    %c2_208 = arith.constant 2 : index
    %c0_209 = arith.constant 0 : index
    %c0_210 = arith.constant 0 : index
    %668 = vector.load %arg2[%c2_208, %c0_209, %c0_210] : memref<3x32x128xf32, #tpu.memory_space<vmem>>, vector<1x32x128xf32>
    %669 = vector.shape_cast %668 : vector<1x32x128xf32> to vector<32x128xf32>
    %c2_211 = arith.constant 2 : index
    %c0_212 = arith.constant 0 : index
    %c0_213 = arith.constant 0 : index
    %670 = vector.load %arg3[%c2_211, %c0_212, %c0_213] : memref<3x1x128xf32, #tpu.memory_space<vmem>>, vector<1x1x128xf32>
    %671 = vector.shape_cast %670 : vector<1x1x128xf32> to vector<1x128xf32>
    %c0_214 = arith.constant 0 : index
    %c0_215 = arith.constant 0 : index
    %672 = vector.load %arg5[%c0_214, %c0_215] : memref<128x32xf32, #tpu.memory_space<vmem>>, vector<128x32xf32>
    %cst_216 = arith.constant dense<0.000000e+00> : vector<128x128xf32>
    %673 = tpu.matmul %672, %667, %cst_216 {dimension_numbers = #tpu.dot_dimension_numbers<[1], [0], [0], [1], [0, 0, 1, 1], [], []>} : vector<128x32xf32>, vector<32x128xf32>, vector<128x128xf32> -> vector<128x128xf32>
    %674 = vector.broadcast %671 : vector<1x128xf32> to vector<128x128xf32>
    %675 = arith.addf %673, %674 : vector<128x128xf32>
    %c0_217 = arith.constant 0 : index
    %c0_218 = arith.constant 0 : index
    %676 = vector.load %arg6[%c0_217, %c0_218] : memref<128x128xf32, #tpu.memory_space<vmem>>, vector<128x128xf32>
    tpu.vector_store %arg6[%c0_217, %c0_218], %675 {strides = array<i32>} : memref<128x128xf32, #tpu.memory_space<vmem>>, vector<128x128xf32>,
    %cst_219 = arith.constant 0.000000e+00 : f32
    %677 = vector.broadcast %cst_219 : f32 to vector<8x32xf32>
    %cst_220 = arith.constant 0.000000e+00 : f32
    %678 = vector.broadcast %cst_220 : f32 to vector<8x32xf32>
    %c0_221 = arith.constant 0 : index
    %c0_222 = arith.constant 0 : index
    %679 = vector.load %arg6[%c0_221, %c0_222] : memref<128x128xf32, #tpu.memory_space<vmem>>, vector<8x128xf32>
    %cst_223 = arith.constant dense<0.000000e+00> : vector<8x128xf32>
    %680 = tpu.matmul %677, %669, %cst_223 {dimension_numbers = #tpu.dot_dimension_numbers<[1], [0], [0], [1], [0, 0, 1, 1], [], []>} : vector<8x32xf32>, vector<32x128xf32>, vector<8x128xf32> -> vector<8x128xf32>
    %681 = arith.addf %679, %680 : vector<8x128xf32>
    %682 = vector.extract_strided_slice %681 {offsets = [0, 0], sizes = [8, 96], strides = [1, 1]} : vector<8x128xf32> to vector<8x96xf32>
    %683 = arith.negf %682 : vector<8x96xf32>
    %684 = math.exp %683 : vector<8x96xf32>
    %cst_224 = arith.constant 1.000000e+00 : f32
    %685 = vector.broadcast %cst_224 : f32 to vector<8x96xf32>
    %686 = arith.addf %685, %684 : vector<8x96xf32>
    %687 = arith.divf %685, %686 : vector<8x96xf32>
    %688 = vector.extract_strided_slice %687 {offsets = [0, 0], sizes = [8, 32], strides = [1, 1]} : vector<8x96xf32> to vector<8x32xf32>
    %689 = vector.extract_strided_slice %687 {offsets = [0, 32], sizes = [8, 32], strides = [1, 1]} : vector<8x96xf32> to vector<8x32xf32>
    %690 = vector.extract_strided_slice %687 {offsets = [0, 64], sizes = [8, 32], strides = [1, 1]} : vector<8x96xf32> to vector<8x32xf32>
    %691 = vector.extract_strided_slice %681 {offsets = [0, 96], sizes = [8, 32], strides = [1, 1]} : vector<8x128xf32> to vector<8x32xf32>
    %692 = math.tanh %691 : vector<8x32xf32>
    %693 = arith.mulf %689, %678 : vector<8x32xf32>
    %694 = arith.mulf %688, %692 : vector<8x32xf32>
    %695 = arith.addf %693, %694 : vector<8x32xf32>
    %696 = math.tanh %695 : vector<8x32xf32>
    %697 = arith.mulf %690, %696 : vector<8x32xf32>
    %c0_225 = arith.constant 0 : index
    %c0_226 = arith.constant 0 : index
    %698 = vector.load %arg4[%c0_225, %c0_226] : memref<128x32xf32, #tpu.memory_space<vmem>>, vector<8x32xf32>
    tpu.vector_store %arg4[%c0_225, %c0_226], %697 {strides = array<i32>} : memref<128x32xf32, #tpu.memory_space<vmem>>, vector<8x32xf32>,
    %c8_227 = arith.constant 8 : index
    %c0_228 = arith.constant 0 : index
    %699 = vector.load %arg6[%c8_227, %c0_228] : memref<128x128xf32, #tpu.memory_space<vmem>>, vector<8x128xf32>
    %cst_229 = arith.constant dense<0.000000e+00> : vector<8x128xf32>
    %700 = tpu.matmul %697, %669, %cst_229 {dimension_numbers = #tpu.dot_dimension_numbers<[1], [0], [0], [1], [0, 0, 1, 1], [], []>} : vector<8x32xf32>, vector<32x128xf32>, vector<8x128xf32> -> vector<8x128xf32>
    %701 = arith.addf %699, %700 : vector<8x128xf32>
    %702 = vector.extract_strided_slice %701 {offsets = [0, 0], sizes = [8, 96], strides = [1, 1]} : vector<8x128xf32> to vector<8x96xf32>
    %703 = arith.negf %702 : vector<8x96xf32>
    %704 = math.exp %703 : vector<8x96xf32>
    %cst_230 = arith.constant 1.000000e+00 : f32
    %705 = vector.broadcast %cst_230 : f32 to vector<8x96xf32>
    %706 = arith.addf %705, %704 : vector<8x96xf32>
    %707 = arith.divf %705, %706 : vector<8x96xf32>
    %708 = vector.extract_strided_slice %707 {offsets = [0, 0], sizes = [8, 32], strides = [1, 1]} : vector<8x96xf32> to vector<8x32xf32>
    %709 = vector.extract_strided_slice %707 {offsets = [0, 32], sizes = [8, 32], strides = [1, 1]} : vector<8x96xf32> to vector<8x32xf32>
    %710 = vector.extract_strided_slice %707 {offsets = [0, 64], sizes = [8, 32], strides = [1, 1]} : vector<8x96xf32> to vector<8x32xf32>
    %711 = vector.extract_strided_slice %701 {offsets = [0, 96], sizes = [8, 32], strides = [1, 1]} : vector<8x128xf32> to vector<8x32xf32>
    %712 = math.tanh %711 : vector<8x32xf32>
    %713 = arith.mulf %709, %695 : vector<8x32xf32>
    %714 = arith.mulf %708, %712 : vector<8x32xf32>
    %715 = arith.addf %713, %714 : vector<8x32xf32>
    %716 = math.tanh %715 : vector<8x32xf32>
    %717 = arith.mulf %710, %716 : vector<8x32xf32>
    %c8_231 = arith.constant 8 : index
    %c0_232 = arith.constant 0 : index
    %718 = vector.load %arg4[%c8_231, %c0_232] : memref<128x32xf32, #tpu.memory_space<vmem>>, vector<8x32xf32>
    tpu.vector_store %arg4[%c8_231, %c0_232], %717 {strides = array<i32>} : memref<128x32xf32, #tpu.memory_space<vmem>>, vector<8x32xf32>,
    %c16_233 = arith.constant 16 : index
    %c0_234 = arith.constant 0 : index
    %719 = vector.load %arg6[%c16_233, %c0_234] : memref<128x128xf32, #tpu.memory_space<vmem>>, vector<8x128xf32>
    %cst_235 = arith.constant dense<0.000000e+00> : vector<8x128xf32>
    %720 = tpu.matmul %717, %669, %cst_235 {dimension_numbers = #tpu.dot_dimension_numbers<[1], [0], [0], [1], [0, 0, 1, 1], [], []>} : vector<8x32xf32>, vector<32x128xf32>, vector<8x128xf32> -> vector<8x128xf32>
    %721 = arith.addf %719, %720 : vector<8x128xf32>
    %722 = vector.extract_strided_slice %721 {offsets = [0, 0], sizes = [8, 96], strides = [1, 1]} : vector<8x128xf32> to vector<8x96xf32>
    %723 = arith.negf %722 : vector<8x96xf32>
    %724 = math.exp %723 : vector<8x96xf32>
    %cst_236 = arith.constant 1.000000e+00 : f32
    %725 = vector.broadcast %cst_236 : f32 to vector<8x96xf32>
    %726 = arith.addf %725, %724 : vector<8x96xf32>
    %727 = arith.divf %725, %726 : vector<8x96xf32>
    %728 = vector.extract_strided_slice %727 {offsets = [0, 0], sizes = [8, 32], strides = [1, 1]} : vector<8x96xf32> to vector<8x32xf32>
    %729 = vector.extract_strided_slice %727 {offsets = [0, 32], sizes = [8, 32], strides = [1, 1]} : vector<8x96xf32> to vector<8x32xf32>
    %730 = vector.extract_strided_slice %727 {offsets = [0, 64], sizes = [8, 32], strides = [1, 1]} : vector<8x96xf32> to vector<8x32xf32>
    %731 = vector.extract_strided_slice %721 {offsets = [0, 96], sizes = [8, 32], strides = [1, 1]} : vector<8x128xf32> to vector<8x32xf32>
    %732 = math.tanh %731 : vector<8x32xf32>
    %733 = arith.mulf %729, %715 : vector<8x32xf32>
    %734 = arith.mulf %728, %732 : vector<8x32xf32>
    %735 = arith.addf %733, %734 : vector<8x32xf32>
    %736 = math.tanh %735 : vector<8x32xf32>
    %737 = arith.mulf %730, %736 : vector<8x32xf32>
    %c16_237 = arith.constant 16 : index
    %c0_238 = arith.constant 0 : index
    %738 = vector.load %arg4[%c16_237, %c0_238] : memref<128x32xf32, #tpu.memory_space<vmem>>, vector<8x32xf32>
    tpu.vector_store %arg4[%c16_237, %c0_238], %737 {strides = array<i32>} : memref<128x32xf32, #tpu.memory_space<vmem>>, vector<8x32xf32>,
    %c24_239 = arith.constant 24 : index
    %c0_240 = arith.constant 0 : index
    %739 = vector.load %arg6[%c24_239, %c0_240] : memref<128x128xf32, #tpu.memory_space<vmem>>, vector<8x128xf32>
    %cst_241 = arith.constant dense<0.000000e+00> : vector<8x128xf32>
    %740 = tpu.matmul %737, %669, %cst_241 {dimension_numbers = #tpu.dot_dimension_numbers<[1], [0], [0], [1], [0, 0, 1, 1], [], []>} : vector<8x32xf32>, vector<32x128xf32>, vector<8x128xf32> -> vector<8x128xf32>
    %741 = arith.addf %739, %740 : vector<8x128xf32>
    %742 = vector.extract_strided_slice %741 {offsets = [0, 0], sizes = [8, 96], strides = [1, 1]} : vector<8x128xf32> to vector<8x96xf32>
    %743 = arith.negf %742 : vector<8x96xf32>
    %744 = math.exp %743 : vector<8x96xf32>
    %cst_242 = arith.constant 1.000000e+00 : f32
    %745 = vector.broadcast %cst_242 : f32 to vector<8x96xf32>
    %746 = arith.addf %745, %744 : vector<8x96xf32>
    %747 = arith.divf %745, %746 : vector<8x96xf32>
    %748 = vector.extract_strided_slice %747 {offsets = [0, 0], sizes = [8, 32], strides = [1, 1]} : vector<8x96xf32> to vector<8x32xf32>
    %749 = vector.extract_strided_slice %747 {offsets = [0, 32], sizes = [8, 32], strides = [1, 1]} : vector<8x96xf32> to vector<8x32xf32>
    %750 = vector.extract_strided_slice %747 {offsets = [0, 64], sizes = [8, 32], strides = [1, 1]} : vector<8x96xf32> to vector<8x32xf32>
    %751 = vector.extract_strided_slice %741 {offsets = [0, 96], sizes = [8, 32], strides = [1, 1]} : vector<8x128xf32> to vector<8x32xf32>
    %752 = math.tanh %751 : vector<8x32xf32>
    %753 = arith.mulf %749, %735 : vector<8x32xf32>
    %754 = arith.mulf %748, %752 : vector<8x32xf32>
    %755 = arith.addf %753, %754 : vector<8x32xf32>
    %756 = math.tanh %755 : vector<8x32xf32>
    %757 = arith.mulf %750, %756 : vector<8x32xf32>
    %c24_243 = arith.constant 24 : index
    %c0_244 = arith.constant 0 : index
    %758 = vector.load %arg4[%c24_243, %c0_244] : memref<128x32xf32, #tpu.memory_space<vmem>>, vector<8x32xf32>
    tpu.vector_store %arg4[%c24_243, %c0_244], %757 {strides = array<i32>} : memref<128x32xf32, #tpu.memory_space<vmem>>, vector<8x32xf32>,
    %c32_245 = arith.constant 32 : index
    %c0_246 = arith.constant 0 : index
    %759 = vector.load %arg6[%c32_245, %c0_246] : memref<128x128xf32, #tpu.memory_space<vmem>>, vector<8x128xf32>
    %cst_247 = arith.constant dense<0.000000e+00> : vector<8x128xf32>
    %760 = tpu.matmul %757, %669, %cst_247 {dimension_numbers = #tpu.dot_dimension_numbers<[1], [0], [0], [1], [0, 0, 1, 1], [], []>} : vector<8x32xf32>, vector<32x128xf32>, vector<8x128xf32> -> vector<8x128xf32>
    %761 = arith.addf %759, %760 : vector<8x128xf32>
    %762 = vector.extract_strided_slice %761 {offsets = [0, 0], sizes = [8, 96], strides = [1, 1]} : vector<8x128xf32> to vector<8x96xf32>
    %763 = arith.negf %762 : vector<8x96xf32>
    %764 = math.exp %763 : vector<8x96xf32>
    %cst_248 = arith.constant 1.000000e+00 : f32
    %765 = vector.broadcast %cst_248 : f32 to vector<8x96xf32>
    %766 = arith.addf %765, %764 : vector<8x96xf32>
    %767 = arith.divf %765, %766 : vector<8x96xf32>
    %768 = vector.extract_strided_slice %767 {offsets = [0, 0], sizes = [8, 32], strides = [1, 1]} : vector<8x96xf32> to vector<8x32xf32>
    %769 = vector.extract_strided_slice %767 {offsets = [0, 32], sizes = [8, 32], strides = [1, 1]} : vector<8x96xf32> to vector<8x32xf32>
    %770 = vector.extract_strided_slice %767 {offsets = [0, 64], sizes = [8, 32], strides = [1, 1]} : vector<8x96xf32> to vector<8x32xf32>
    %771 = vector.extract_strided_slice %761 {offsets = [0, 96], sizes = [8, 32], strides = [1, 1]} : vector<8x128xf32> to vector<8x32xf32>
    %772 = math.tanh %771 : vector<8x32xf32>
    %773 = arith.mulf %769, %755 : vector<8x32xf32>
    %774 = arith.mulf %768, %772 : vector<8x32xf32>
    %775 = arith.addf %773, %774 : vector<8x32xf32>
    %776 = math.tanh %775 : vector<8x32xf32>
    %777 = arith.mulf %770, %776 : vector<8x32xf32>
    %c32_249 = arith.constant 32 : index
    %c0_250 = arith.constant 0 : index
    %778 = vector.load %arg4[%c32_249, %c0_250] : memref<128x32xf32, #tpu.memory_space<vmem>>, vector<8x32xf32>
    tpu.vector_store %arg4[%c32_249, %c0_250], %777 {strides = array<i32>} : memref<128x32xf32, #tpu.memory_space<vmem>>, vector<8x32xf32>,
    %c40_251 = arith.constant 40 : index
    %c0_252 = arith.constant 0 : index
    %779 = vector.load %arg6[%c40_251, %c0_252] : memref<128x128xf32, #tpu.memory_space<vmem>>, vector<8x128xf32>
    %cst_253 = arith.constant dense<0.000000e+00> : vector<8x128xf32>
    %780 = tpu.matmul %777, %669, %cst_253 {dimension_numbers = #tpu.dot_dimension_numbers<[1], [0], [0], [1], [0, 0, 1, 1], [], []>} : vector<8x32xf32>, vector<32x128xf32>, vector<8x128xf32> -> vector<8x128xf32>
    %781 = arith.addf %779, %780 : vector<8x128xf32>
    %782 = vector.extract_strided_slice %781 {offsets = [0, 0], sizes = [8, 96], strides = [1, 1]} : vector<8x128xf32> to vector<8x96xf32>
    %783 = arith.negf %782 : vector<8x96xf32>
    %784 = math.exp %783 : vector<8x96xf32>
    %cst_254 = arith.constant 1.000000e+00 : f32
    %785 = vector.broadcast %cst_254 : f32 to vector<8x96xf32>
    %786 = arith.addf %785, %784 : vector<8x96xf32>
    %787 = arith.divf %785, %786 : vector<8x96xf32>
    %788 = vector.extract_strided_slice %787 {offsets = [0, 0], sizes = [8, 32], strides = [1, 1]} : vector<8x96xf32> to vector<8x32xf32>
    %789 = vector.extract_strided_slice %787 {offsets = [0, 32], sizes = [8, 32], strides = [1, 1]} : vector<8x96xf32> to vector<8x32xf32>
    %790 = vector.extract_strided_slice %787 {offsets = [0, 64], sizes = [8, 32], strides = [1, 1]} : vector<8x96xf32> to vector<8x32xf32>
    %791 = vector.extract_strided_slice %781 {offsets = [0, 96], sizes = [8, 32], strides = [1, 1]} : vector<8x128xf32> to vector<8x32xf32>
    %792 = math.tanh %791 : vector<8x32xf32>
    %793 = arith.mulf %789, %775 : vector<8x32xf32>
    %794 = arith.mulf %788, %792 : vector<8x32xf32>
    %795 = arith.addf %793, %794 : vector<8x32xf32>
    %796 = math.tanh %795 : vector<8x32xf32>
    %797 = arith.mulf %790, %796 : vector<8x32xf32>
    %c40_255 = arith.constant 40 : index
    %c0_256 = arith.constant 0 : index
    %798 = vector.load %arg4[%c40_255, %c0_256] : memref<128x32xf32, #tpu.memory_space<vmem>>, vector<8x32xf32>
    tpu.vector_store %arg4[%c40_255, %c0_256], %797 {strides = array<i32>} : memref<128x32xf32, #tpu.memory_space<vmem>>, vector<8x32xf32>,
    %c48_257 = arith.constant 48 : index
    %c0_258 = arith.constant 0 : index
    %799 = vector.load %arg6[%c48_257, %c0_258] : memref<128x128xf32, #tpu.memory_space<vmem>>, vector<8x128xf32>
    %cst_259 = arith.constant dense<0.000000e+00> : vector<8x128xf32>
    %800 = tpu.matmul %797, %669, %cst_259 {dimension_numbers = #tpu.dot_dimension_numbers<[1], [0], [0], [1], [0, 0, 1, 1], [], []>} : vector<8x32xf32>, vector<32x128xf32>, vector<8x128xf32> -> vector<8x128xf32>
    %801 = arith.addf %799, %800 : vector<8x128xf32>
    %802 = vector.extract_strided_slice %801 {offsets = [0, 0], sizes = [8, 96], strides = [1, 1]} : vector<8x128xf32> to vector<8x96xf32>
    %803 = arith.negf %802 : vector<8x96xf32>
    %804 = math.exp %803 : vector<8x96xf32>
    %cst_260 = arith.constant 1.000000e+00 : f32
    %805 = vector.broadcast %cst_260 : f32 to vector<8x96xf32>
    %806 = arith.addf %805, %804 : vector<8x96xf32>
    %807 = arith.divf %805, %806 : vector<8x96xf32>
    %808 = vector.extract_strided_slice %807 {offsets = [0, 0], sizes = [8, 32], strides = [1, 1]} : vector<8x96xf32> to vector<8x32xf32>
    %809 = vector.extract_strided_slice %807 {offsets = [0, 32], sizes = [8, 32], strides = [1, 1]} : vector<8x96xf32> to vector<8x32xf32>
    %810 = vector.extract_strided_slice %807 {offsets = [0, 64], sizes = [8, 32], strides = [1, 1]} : vector<8x96xf32> to vector<8x32xf32>
    %811 = vector.extract_strided_slice %801 {offsets = [0, 96], sizes = [8, 32], strides = [1, 1]} : vector<8x128xf32> to vector<8x32xf32>
    %812 = math.tanh %811 : vector<8x32xf32>
    %813 = arith.mulf %809, %795 : vector<8x32xf32>
    %814 = arith.mulf %808, %812 : vector<8x32xf32>
    %815 = arith.addf %813, %814 : vector<8x32xf32>
    %816 = math.tanh %815 : vector<8x32xf32>
    %817 = arith.mulf %810, %816 : vector<8x32xf32>
    %c48_261 = arith.constant 48 : index
    %c0_262 = arith.constant 0 : index
    %818 = vector.load %arg4[%c48_261, %c0_262] : memref<128x32xf32, #tpu.memory_space<vmem>>, vector<8x32xf32>
    tpu.vector_store %arg4[%c48_261, %c0_262], %817 {strides = array<i32>} : memref<128x32xf32, #tpu.memory_space<vmem>>, vector<8x32xf32>,
    %c56_263 = arith.constant 56 : index
    %c0_264 = arith.constant 0 : index
    %819 = vector.load %arg6[%c56_263, %c0_264] : memref<128x128xf32, #tpu.memory_space<vmem>>, vector<8x128xf32>
    %cst_265 = arith.constant dense<0.000000e+00> : vector<8x128xf32>
    %820 = tpu.matmul %817, %669, %cst_265 {dimension_numbers = #tpu.dot_dimension_numbers<[1], [0], [0], [1], [0, 0, 1, 1], [], []>} : vector<8x32xf32>, vector<32x128xf32>, vector<8x128xf32> -> vector<8x128xf32>
    %821 = arith.addf %819, %820 : vector<8x128xf32>
    %822 = vector.extract_strided_slice %821 {offsets = [0, 0], sizes = [8, 96], strides = [1, 1]} : vector<8x128xf32> to vector<8x96xf32>
    %823 = arith.negf %822 : vector<8x96xf32>
    %824 = math.exp %823 : vector<8x96xf32>
    %cst_266 = arith.constant 1.000000e+00 : f32
    %825 = vector.broadcast %cst_266 : f32 to vector<8x96xf32>
    %826 = arith.addf %825, %824 : vector<8x96xf32>
    %827 = arith.divf %825, %826 : vector<8x96xf32>
    %828 = vector.extract_strided_slice %827 {offsets = [0, 0], sizes = [8, 32], strides = [1, 1]} : vector<8x96xf32> to vector<8x32xf32>
    %829 = vector.extract_strided_slice %827 {offsets = [0, 32], sizes = [8, 32], strides = [1, 1]} : vector<8x96xf32> to vector<8x32xf32>
    %830 = vector.extract_strided_slice %827 {offsets = [0, 64], sizes = [8, 32], strides = [1, 1]} : vector<8x96xf32> to vector<8x32xf32>
    %831 = vector.extract_strided_slice %821 {offsets = [0, 96], sizes = [8, 32], strides = [1, 1]} : vector<8x128xf32> to vector<8x32xf32>
    %832 = math.tanh %831 : vector<8x32xf32>
    %833 = arith.mulf %829, %815 : vector<8x32xf32>
    %834 = arith.mulf %828, %832 : vector<8x32xf32>
    %835 = arith.addf %833, %834 : vector<8x32xf32>
    %836 = math.tanh %835 : vector<8x32xf32>
    %837 = arith.mulf %830, %836 : vector<8x32xf32>
    %c56_267 = arith.constant 56 : index
    %c0_268 = arith.constant 0 : index
    %838 = vector.load %arg4[%c56_267, %c0_268] : memref<128x32xf32, #tpu.memory_space<vmem>>, vector<8x32xf32>
    tpu.vector_store %arg4[%c56_267, %c0_268], %837 {strides = array<i32>} : memref<128x32xf32, #tpu.memory_space<vmem>>, vector<8x32xf32>,
    %c64_269 = arith.constant 64 : index
    %c0_270 = arith.constant 0 : index
    %839 = vector.load %arg6[%c64_269, %c0_270] : memref<128x128xf32, #tpu.memory_space<vmem>>, vector<8x128xf32>
    %cst_271 = arith.constant dense<0.000000e+00> : vector<8x128xf32>
    %840 = tpu.matmul %837, %669, %cst_271 {dimension_numbers = #tpu.dot_dimension_numbers<[1], [0], [0], [1], [0, 0, 1, 1], [], []>} : vector<8x32xf32>, vector<32x128xf32>, vector<8x128xf32> -> vector<8x128xf32>
    %841 = arith.addf %839, %840 : vector<8x128xf32>
    %842 = vector.extract_strided_slice %841 {offsets = [0, 0], sizes = [8, 96], strides = [1, 1]} : vector<8x128xf32> to vector<8x96xf32>
    %843 = arith.negf %842 : vector<8x96xf32>
    %844 = math.exp %843 : vector<8x96xf32>
    %cst_272 = arith.constant 1.000000e+00 : f32
    %845 = vector.broadcast %cst_272 : f32 to vector<8x96xf32>
    %846 = arith.addf %845, %844 : vector<8x96xf32>
    %847 = arith.divf %845, %846 : vector<8x96xf32>
    %848 = vector.extract_strided_slice %847 {offsets = [0, 0], sizes = [8, 32], strides = [1, 1]} : vector<8x96xf32> to vector<8x32xf32>
    %849 = vector.extract_strided_slice %847 {offsets = [0, 32], sizes = [8, 32], strides = [1, 1]} : vector<8x96xf32> to vector<8x32xf32>
    %850 = vector.extract_strided_slice %847 {offsets = [0, 64], sizes = [8, 32], strides = [1, 1]} : vector<8x96xf32> to vector<8x32xf32>
    %851 = vector.extract_strided_slice %841 {offsets = [0, 96], sizes = [8, 32], strides = [1, 1]} : vector<8x128xf32> to vector<8x32xf32>
    %852 = math.tanh %851 : vector<8x32xf32>
    %853 = arith.mulf %849, %835 : vector<8x32xf32>
    %854 = arith.mulf %848, %852 : vector<8x32xf32>
    %855 = arith.addf %853, %854 : vector<8x32xf32>
    %856 = math.tanh %855 : vector<8x32xf32>
    %857 = arith.mulf %850, %856 : vector<8x32xf32>
    %c64_273 = arith.constant 64 : index
    %c0_274 = arith.constant 0 : index
    %858 = vector.load %arg4[%c64_273, %c0_274] : memref<128x32xf32, #tpu.memory_space<vmem>>, vector<8x32xf32>
    tpu.vector_store %arg4[%c64_273, %c0_274], %857 {strides = array<i32>} : memref<128x32xf32, #tpu.memory_space<vmem>>, vector<8x32xf32>,
    %c72_275 = arith.constant 72 : index
    %c0_276 = arith.constant 0 : index
    %859 = vector.load %arg6[%c72_275, %c0_276] : memref<128x128xf32, #tpu.memory_space<vmem>>, vector<8x128xf32>
    %cst_277 = arith.constant dense<0.000000e+00> : vector<8x128xf32>
    %860 = tpu.matmul %857, %669, %cst_277 {dimension_numbers = #tpu.dot_dimension_numbers<[1], [0], [0], [1], [0, 0, 1, 1], [], []>} : vector<8x32xf32>, vector<32x128xf32>, vector<8x128xf32> -> vector<8x128xf32>
    %861 = arith.addf %859, %860 : vector<8x128xf32>
    %862 = vector.extract_strided_slice %861 {offsets = [0, 0], sizes = [8, 96], strides = [1, 1]} : vector<8x128xf32> to vector<8x96xf32>
    %863 = arith.negf %862 : vector<8x96xf32>
    %864 = math.exp %863 : vector<8x96xf32>
    %cst_278 = arith.constant 1.000000e+00 : f32
    %865 = vector.broadcast %cst_278 : f32 to vector<8x96xf32>
    %866 = arith.addf %865, %864 : vector<8x96xf32>
    %867 = arith.divf %865, %866 : vector<8x96xf32>
    %868 = vector.extract_strided_slice %867 {offsets = [0, 0], sizes = [8, 32], strides = [1, 1]} : vector<8x96xf32> to vector<8x32xf32>
    %869 = vector.extract_strided_slice %867 {offsets = [0, 32], sizes = [8, 32], strides = [1, 1]} : vector<8x96xf32> to vector<8x32xf32>
    %870 = vector.extract_strided_slice %867 {offsets = [0, 64], sizes = [8, 32], strides = [1, 1]} : vector<8x96xf32> to vector<8x32xf32>
    %871 = vector.extract_strided_slice %861 {offsets = [0, 96], sizes = [8, 32], strides = [1, 1]} : vector<8x128xf32> to vector<8x32xf32>
    %872 = math.tanh %871 : vector<8x32xf32>
    %873 = arith.mulf %869, %855 : vector<8x32xf32>
    %874 = arith.mulf %868, %872 : vector<8x32xf32>
    %875 = arith.addf %873, %874 : vector<8x32xf32>
    %876 = math.tanh %875 : vector<8x32xf32>
    %877 = arith.mulf %870, %876 : vector<8x32xf32>
    %c72_279 = arith.constant 72 : index
    %c0_280 = arith.constant 0 : index
    %878 = vector.load %arg4[%c72_279, %c0_280] : memref<128x32xf32, #tpu.memory_space<vmem>>, vector<8x32xf32>
    tpu.vector_store %arg4[%c72_279, %c0_280], %877 {strides = array<i32>} : memref<128x32xf32, #tpu.memory_space<vmem>>, vector<8x32xf32>,
    %c80_281 = arith.constant 80 : index
    %c0_282 = arith.constant 0 : index
    %879 = vector.load %arg6[%c80_281, %c0_282] : memref<128x128xf32, #tpu.memory_space<vmem>>, vector<8x128xf32>
    %cst_283 = arith.constant dense<0.000000e+00> : vector<8x128xf32>
    %880 = tpu.matmul %877, %669, %cst_283 {dimension_numbers = #tpu.dot_dimension_numbers<[1], [0], [0], [1], [0, 0, 1, 1], [], []>} : vector<8x32xf32>, vector<32x128xf32>, vector<8x128xf32> -> vector<8x128xf32>
    %881 = arith.addf %879, %880 : vector<8x128xf32>
    %882 = vector.extract_strided_slice %881 {offsets = [0, 0], sizes = [8, 96], strides = [1, 1]} : vector<8x128xf32> to vector<8x96xf32>
    %883 = arith.negf %882 : vector<8x96xf32>
    %884 = math.exp %883 : vector<8x96xf32>
    %cst_284 = arith.constant 1.000000e+00 : f32
    %885 = vector.broadcast %cst_284 : f32 to vector<8x96xf32>
    %886 = arith.addf %885, %884 : vector<8x96xf32>
    %887 = arith.divf %885, %886 : vector<8x96xf32>
    %888 = vector.extract_strided_slice %887 {offsets = [0, 0], sizes = [8, 32], strides = [1, 1]} : vector<8x96xf32> to vector<8x32xf32>
    %889 = vector.extract_strided_slice %887 {offsets = [0, 32], sizes = [8, 32], strides = [1, 1]} : vector<8x96xf32> to vector<8x32xf32>
    %890 = vector.extract_strided_slice %887 {offsets = [0, 64], sizes = [8, 32], strides = [1, 1]} : vector<8x96xf32> to vector<8x32xf32>
    %891 = vector.extract_strided_slice %881 {offsets = [0, 96], sizes = [8, 32], strides = [1, 1]} : vector<8x128xf32> to vector<8x32xf32>
    %892 = math.tanh %891 : vector<8x32xf32>
    %893 = arith.mulf %889, %875 : vector<8x32xf32>
    %894 = arith.mulf %888, %892 : vector<8x32xf32>
    %895 = arith.addf %893, %894 : vector<8x32xf32>
    %896 = math.tanh %895 : vector<8x32xf32>
    %897 = arith.mulf %890, %896 : vector<8x32xf32>
    %c80_285 = arith.constant 80 : index
    %c0_286 = arith.constant 0 : index
    %898 = vector.load %arg4[%c80_285, %c0_286] : memref<128x32xf32, #tpu.memory_space<vmem>>, vector<8x32xf32>
    tpu.vector_store %arg4[%c80_285, %c0_286], %897 {strides = array<i32>} : memref<128x32xf32, #tpu.memory_space<vmem>>, vector<8x32xf32>,
    %c88_287 = arith.constant 88 : index
    %c0_288 = arith.constant 0 : index
    %899 = vector.load %arg6[%c88_287, %c0_288] : memref<128x128xf32, #tpu.memory_space<vmem>>, vector<8x128xf32>
    %cst_289 = arith.constant dense<0.000000e+00> : vector<8x128xf32>
    %900 = tpu.matmul %897, %669, %cst_289 {dimension_numbers = #tpu.dot_dimension_numbers<[1], [0], [0], [1], [0, 0, 1, 1], [], []>} : vector<8x32xf32>, vector<32x128xf32>, vector<8x128xf32> -> vector<8x128xf32>
    %901 = arith.addf %899, %900 : vector<8x128xf32>
    %902 = vector.extract_strided_slice %901 {offsets = [0, 0], sizes = [8, 96], strides = [1, 1]} : vector<8x128xf32> to vector<8x96xf32>
    %903 = arith.negf %902 : vector<8x96xf32>
    %904 = math.exp %903 : vector<8x96xf32>
    %cst_290 = arith.constant 1.000000e+00 : f32
    %905 = vector.broadcast %cst_290 : f32 to vector<8x96xf32>
    %906 = arith.addf %905, %904 : vector<8x96xf32>
    %907 = arith.divf %905, %906 : vector<8x96xf32>
    %908 = vector.extract_strided_slice %907 {offsets = [0, 0], sizes = [8, 32], strides = [1, 1]} : vector<8x96xf32> to vector<8x32xf32>
    %909 = vector.extract_strided_slice %907 {offsets = [0, 32], sizes = [8, 32], strides = [1, 1]} : vector<8x96xf32> to vector<8x32xf32>
    %910 = vector.extract_strided_slice %907 {offsets = [0, 64], sizes = [8, 32], strides = [1, 1]} : vector<8x96xf32> to vector<8x32xf32>
    %911 = vector.extract_strided_slice %901 {offsets = [0, 96], sizes = [8, 32], strides = [1, 1]} : vector<8x128xf32> to vector<8x32xf32>
    %912 = math.tanh %911 : vector<8x32xf32>
    %913 = arith.mulf %909, %895 : vector<8x32xf32>
    %914 = arith.mulf %908, %912 : vector<8x32xf32>
    %915 = arith.addf %913, %914 : vector<8x32xf32>
    %916 = math.tanh %915 : vector<8x32xf32>
    %917 = arith.mulf %910, %916 : vector<8x32xf32>
    %c88_291 = arith.constant 88 : index
    %c0_292 = arith.constant 0 : index
    %918 = vector.load %arg4[%c88_291, %c0_292] : memref<128x32xf32, #tpu.memory_space<vmem>>, vector<8x32xf32>
    tpu.vector_store %arg4[%c88_291, %c0_292], %917 {strides = array<i32>} : memref<128x32xf32, #tpu.memory_space<vmem>>, vector<8x32xf32>,
    %c96_293 = arith.constant 96 : index
    %c0_294 = arith.constant 0 : index
    %919 = vector.load %arg6[%c96_293, %c0_294] : memref<128x128xf32, #tpu.memory_space<vmem>>, vector<8x128xf32>
    %cst_295 = arith.constant dense<0.000000e+00> : vector<8x128xf32>
    %920 = tpu.matmul %917, %669, %cst_295 {dimension_numbers = #tpu.dot_dimension_numbers<[1], [0], [0], [1], [0, 0, 1, 1], [], []>} : vector<8x32xf32>, vector<32x128xf32>, vector<8x128xf32> -> vector<8x128xf32>
    %921 = arith.addf %919, %920 : vector<8x128xf32>
    %922 = vector.extract_strided_slice %921 {offsets = [0, 0], sizes = [8, 96], strides = [1, 1]} : vector<8x128xf32> to vector<8x96xf32>
    %923 = arith.negf %922 : vector<8x96xf32>
    %924 = math.exp %923 : vector<8x96xf32>
    %cst_296 = arith.constant 1.000000e+00 : f32
    %925 = vector.broadcast %cst_296 : f32 to vector<8x96xf32>
    %926 = arith.addf %925, %924 : vector<8x96xf32>
    %927 = arith.divf %925, %926 : vector<8x96xf32>
    %928 = vector.extract_strided_slice %927 {offsets = [0, 0], sizes = [8, 32], strides = [1, 1]} : vector<8x96xf32> to vector<8x32xf32>
    %929 = vector.extract_strided_slice %927 {offsets = [0, 32], sizes = [8, 32], strides = [1, 1]} : vector<8x96xf32> to vector<8x32xf32>
    %930 = vector.extract_strided_slice %927 {offsets = [0, 64], sizes = [8, 32], strides = [1, 1]} : vector<8x96xf32> to vector<8x32xf32>
    %931 = vector.extract_strided_slice %921 {offsets = [0, 96], sizes = [8, 32], strides = [1, 1]} : vector<8x128xf32> to vector<8x32xf32>
    %932 = math.tanh %931 : vector<8x32xf32>
    %933 = arith.mulf %929, %915 : vector<8x32xf32>
    %934 = arith.mulf %928, %932 : vector<8x32xf32>
    %935 = arith.addf %933, %934 : vector<8x32xf32>
    %936 = math.tanh %935 : vector<8x32xf32>
    %937 = arith.mulf %930, %936 : vector<8x32xf32>
    %c96_297 = arith.constant 96 : index
    %c0_298 = arith.constant 0 : index
    %938 = vector.load %arg4[%c96_297, %c0_298] : memref<128x32xf32, #tpu.memory_space<vmem>>, vector<8x32xf32>
    tpu.vector_store %arg4[%c96_297, %c0_298], %937 {strides = array<i32>} : memref<128x32xf32, #tpu.memory_space<vmem>>, vector<8x32xf32>,
    %c104_299 = arith.constant 104 : index
    %c0_300 = arith.constant 0 : index
    %939 = vector.load %arg6[%c104_299, %c0_300] : memref<128x128xf32, #tpu.memory_space<vmem>>, vector<8x128xf32>
    %cst_301 = arith.constant dense<0.000000e+00> : vector<8x128xf32>
    %940 = tpu.matmul %937, %669, %cst_301 {dimension_numbers = #tpu.dot_dimension_numbers<[1], [0], [0], [1], [0, 0, 1, 1], [], []>} : vector<8x32xf32>, vector<32x128xf32>, vector<8x128xf32> -> vector<8x128xf32>
    %941 = arith.addf %939, %940 : vector<8x128xf32>
    %942 = vector.extract_strided_slice %941 {offsets = [0, 0], sizes = [8, 96], strides = [1, 1]} : vector<8x128xf32> to vector<8x96xf32>
    %943 = arith.negf %942 : vector<8x96xf32>
    %944 = math.exp %943 : vector<8x96xf32>
    %cst_302 = arith.constant 1.000000e+00 : f32
    %945 = vector.broadcast %cst_302 : f32 to vector<8x96xf32>
    %946 = arith.addf %945, %944 : vector<8x96xf32>
    %947 = arith.divf %945, %946 : vector<8x96xf32>
    %948 = vector.extract_strided_slice %947 {offsets = [0, 0], sizes = [8, 32], strides = [1, 1]} : vector<8x96xf32> to vector<8x32xf32>
    %949 = vector.extract_strided_slice %947 {offsets = [0, 32], sizes = [8, 32], strides = [1, 1]} : vector<8x96xf32> to vector<8x32xf32>
    %950 = vector.extract_strided_slice %947 {offsets = [0, 64], sizes = [8, 32], strides = [1, 1]} : vector<8x96xf32> to vector<8x32xf32>
    %951 = vector.extract_strided_slice %941 {offsets = [0, 96], sizes = [8, 32], strides = [1, 1]} : vector<8x128xf32> to vector<8x32xf32>
    %952 = math.tanh %951 : vector<8x32xf32>
    %953 = arith.mulf %949, %935 : vector<8x32xf32>
    %954 = arith.mulf %948, %952 : vector<8x32xf32>
    %955 = arith.addf %953, %954 : vector<8x32xf32>
    %956 = math.tanh %955 : vector<8x32xf32>
    %957 = arith.mulf %950, %956 : vector<8x32xf32>
    %c104_303 = arith.constant 104 : index
    %c0_304 = arith.constant 0 : index
    %958 = vector.load %arg4[%c104_303, %c0_304] : memref<128x32xf32, #tpu.memory_space<vmem>>, vector<8x32xf32>
    tpu.vector_store %arg4[%c104_303, %c0_304], %957 {strides = array<i32>} : memref<128x32xf32, #tpu.memory_space<vmem>>, vector<8x32xf32>,
    %c112_305 = arith.constant 112 : index
    %c0_306 = arith.constant 0 : index
    %959 = vector.load %arg6[%c112_305, %c0_306] : memref<128x128xf32, #tpu.memory_space<vmem>>, vector<8x128xf32>
    %cst_307 = arith.constant dense<0.000000e+00> : vector<8x128xf32>
    %960 = tpu.matmul %957, %669, %cst_307 {dimension_numbers = #tpu.dot_dimension_numbers<[1], [0], [0], [1], [0, 0, 1, 1], [], []>} : vector<8x32xf32>, vector<32x128xf32>, vector<8x128xf32> -> vector<8x128xf32>
    %961 = arith.addf %959, %960 : vector<8x128xf32>
    %962 = vector.extract_strided_slice %961 {offsets = [0, 0], sizes = [8, 96], strides = [1, 1]} : vector<8x128xf32> to vector<8x96xf32>
    %963 = arith.negf %962 : vector<8x96xf32>
    %964 = math.exp %963 : vector<8x96xf32>
    %cst_308 = arith.constant 1.000000e+00 : f32
    %965 = vector.broadcast %cst_308 : f32 to vector<8x96xf32>
    %966 = arith.addf %965, %964 : vector<8x96xf32>
    %967 = arith.divf %965, %966 : vector<8x96xf32>
    %968 = vector.extract_strided_slice %967 {offsets = [0, 0], sizes = [8, 32], strides = [1, 1]} : vector<8x96xf32> to vector<8x32xf32>
    %969 = vector.extract_strided_slice %967 {offsets = [0, 32], sizes = [8, 32], strides = [1, 1]} : vector<8x96xf32> to vector<8x32xf32>
    %970 = vector.extract_strided_slice %967 {offsets = [0, 64], sizes = [8, 32], strides = [1, 1]} : vector<8x96xf32> to vector<8x32xf32>
    %971 = vector.extract_strided_slice %961 {offsets = [0, 96], sizes = [8, 32], strides = [1, 1]} : vector<8x128xf32> to vector<8x32xf32>
    %972 = math.tanh %971 : vector<8x32xf32>
    %973 = arith.mulf %969, %955 : vector<8x32xf32>
    %974 = arith.mulf %968, %972 : vector<8x32xf32>
    %975 = arith.addf %973, %974 : vector<8x32xf32>
    %976 = math.tanh %975 : vector<8x32xf32>
    %977 = arith.mulf %970, %976 : vector<8x32xf32>
    %c112_309 = arith.constant 112 : index
    %c0_310 = arith.constant 0 : index
    %978 = vector.load %arg4[%c112_309, %c0_310] : memref<128x32xf32, #tpu.memory_space<vmem>>, vector<8x32xf32>
    tpu.vector_store %arg4[%c112_309, %c0_310], %977 {strides = array<i32>} : memref<128x32xf32, #tpu.memory_space<vmem>>, vector<8x32xf32>,
    %c120_311 = arith.constant 120 : index
    %c0_312 = arith.constant 0 : index
    %979 = vector.load %arg6[%c120_311, %c0_312] : memref<128x128xf32, #tpu.memory_space<vmem>>, vector<8x128xf32>
    %cst_313 = arith.constant dense<0.000000e+00> : vector<8x128xf32>
    %980 = tpu.matmul %977, %669, %cst_313 {dimension_numbers = #tpu.dot_dimension_numbers<[1], [0], [0], [1], [0, 0, 1, 1], [], []>} : vector<8x32xf32>, vector<32x128xf32>, vector<8x128xf32> -> vector<8x128xf32>
    %981 = arith.addf %979, %980 : vector<8x128xf32>
    %982 = vector.extract_strided_slice %981 {offsets = [0, 0], sizes = [8, 96], strides = [1, 1]} : vector<8x128xf32> to vector<8x96xf32>
    %983 = arith.negf %982 : vector<8x96xf32>
    %984 = math.exp %983 : vector<8x96xf32>
    %cst_314 = arith.constant 1.000000e+00 : f32
    %985 = vector.broadcast %cst_314 : f32 to vector<8x96xf32>
    %986 = arith.addf %985, %984 : vector<8x96xf32>
    %987 = arith.divf %985, %986 : vector<8x96xf32>
    %988 = vector.extract_strided_slice %987 {offsets = [0, 0], sizes = [8, 32], strides = [1, 1]} : vector<8x96xf32> to vector<8x32xf32>
    %989 = vector.extract_strided_slice %987 {offsets = [0, 32], sizes = [8, 32], strides = [1, 1]} : vector<8x96xf32> to vector<8x32xf32>
    %990 = vector.extract_strided_slice %987 {offsets = [0, 64], sizes = [8, 32], strides = [1, 1]} : vector<8x96xf32> to vector<8x32xf32>
    %991 = vector.extract_strided_slice %981 {offsets = [0, 96], sizes = [8, 32], strides = [1, 1]} : vector<8x128xf32> to vector<8x32xf32>
    %992 = math.tanh %991 : vector<8x32xf32>
    %993 = arith.mulf %989, %975 : vector<8x32xf32>
    %994 = arith.mulf %988, %992 : vector<8x32xf32>
    %995 = arith.addf %993, %994 : vector<8x32xf32>
    %996 = math.tanh %995 : vector<8x32xf32>
    %997 = arith.mulf %990, %996 : vector<8x32xf32>
    %c120_315 = arith.constant 120 : index
    %c0_316 = arith.constant 0 : index
    %998 = vector.load %arg4[%c120_315, %c0_316] : memref<128x32xf32, #tpu.memory_space<vmem>>, vector<8x32xf32>
    tpu.vector_store %arg4[%c120_315, %c0_316], %997 {strides = array<i32>} : memref<128x32xf32, #tpu.memory_space<vmem>>, vector<8x32xf32>,
    return
  }
}

</mosaic_0001>

<llo_original>
// kernel: tpu_custom_call.1
$region0: #{tpu_custom_call.1}
  #allocation0 [shape = 'u32[]', space=smem, size = 0x4, offset = 0x4, fixed_abs, tag = 'smem constant byte address 0x4 - core index']
  #allocation1 [shape = 'u32[144,128]{1,0:T(1,128)}', space=vmem, size = 0x12000, scoped, tag = 'internal scratch']
  #allocation2 [shape = 'f32[128,32]{1,0:T(8,128)}', space=vmem, size = 0x10000, scoped, tag = 'scratch operand']
  #allocation3 [shape = 'f32[128,128]{1,0:T(8,128)}', space=vmem, size = 0x10000, scoped, tag = 'scratch operand']
  %s0 = inlined_call_operand.vmem [shape: f32[128,32], index: 0, kind: input, shape index: {}]
  %s1 = inlined_call_operand.vmem [shape: f32[3,32,128], index: 1, kind: input, shape index: {}]
  %s2 = inlined_call_operand.hbm [shape: f32[3,32,128], index: 2, kind: input, shape index: {}]
  %s3 = inlined_call_operand.vmem [shape: f32[3,1,128], index: 3, kind: input, shape index: {}]
  %s4 = inlined_call_operand.vmem [shape: f32[128,32], index: 4, kind: output, shape index: {}]
  %s5 = sld [smem:[#allocation0]]
  $region30: #{tpu_custom_call.1} parent=0
    _
  %s7 = ssub.s32 1, %s5
  %s8 = scalar_select 0, %s7, %s5
  $region1: #{tpu_custom_call.1} parent=0
    #allocation4 [shape = 'u8[49152]{0}', space=vmem, size = 0xc000, scoped, tag = 'input window, operand 2, single buffered']
    #allocation5 [shape = 's32[1]{0}', space=sflag, size = 0x4, scoped, tag = 'scoped memory for tpu_custom_call.1']
    %9 = vsyncpa [#allocation5], 0
    // Predicated region
    $region2: #{tpu_custom_call.1} parent=1 // pred_check
      _
    $region3: #{tpu_custom_call.1} parent=1 // pred_check_branch
      %11 = sbr.rel (0) target = $region5
    $region4: #{tpu_custom_call.1} parent=1 // pred_region
      _
    $region5: #{tpu_custom_call.1} parent=1 // pred_fallthru
      _
    // Predicated region
    $region6: #{tpu_custom_call.1} parent=1 // pred_check
      _
    $region7: #{tpu_custom_call.1} parent=1 // pred_check_branch
      %13 = sbr.rel (0) target = $region9
    $region8: #{tpu_custom_call.1} parent=1 // pred_region
      _
    $region9: #{tpu_custom_call.1} parent=1 // pred_fallthru
      _
    // Predicated region
    $region10: #{tpu_custom_call.1} parent=1 // pred_check
      _
    $region11: #{tpu_custom_call.1} parent=1 // pred_check_branch
      %15 = sbr.rel (0) target = $region13
    $region12: #{tpu_custom_call.1} parent=1 // pred_region
      %s17 = ssub.s32 1536, 1536
      %18 = vsyncadd [#allocation5], %s17
      %s19 = sshll.u32 [#allocation4], 4
      %s20 = int_to_ptr.vmem [resolvable:$true] %s19
      %25 = dma.hbm_to_vmem [thread:$0]  %s2, 1536, %s20, [#allocation5], 128, 128, 8
    $region13: #{tpu_custom_call.1} parent=1 // pred_fallthru
      _
    // Predicated region
    $region14: #{tpu_custom_call.1} parent=1 // pred_check
      _
    $region15: #{tpu_custom_call.1} parent=1 // pred_check_branch
      %27 = sbr.rel (0) target = $region17
    $region16: #{tpu_custom_call.1} parent=1 // pred_region
      _
    $region17: #{tpu_custom_call.1} parent=1 // pred_fallthru
      _
    // Predicated region
    $region18: #{tpu_custom_call.1} parent=1 // pred_check
      _
    $region19: #{tpu_custom_call.1} parent=1 // pred_check_branch
      %29 = sbr.rel (0) target = $region21
    $region20: #{tpu_custom_call.1} parent=1 // pred_region
      %30 = dma.done [#allocation5], 1536
    $region21: #{tpu_custom_call.1} parent=1 // pred_fallthru
      _
    %v31 = vld [vmem:[%s1] sm:$0xff]
    %v32 = vld [vmem:[%s1 + $0x8] sm:$0xff]
    %v33 = vld [vmem:[%s1 + $0x10] sm:$0xff]
    %v34 = vld [vmem:[%s1 + $0x18] sm:$0xff]
    %v35 = vld [vmem:[#allocation4] sm:$0xff]
    %v36 = vld [vmem:[#allocation4 + $0x8] sm:$0xff]
    %v37 = vld [vmem:[#allocation4 + $0x10] sm:$0xff]
    %v38 = vld [vmem:[#allocation4 + $0x18] sm:$0xff]
    %v39 = vld [vmem:[%s3] sm:$0x1]
    %v40 = vld [vmem:[%s0] sm:$0xff]
    %v41 = vld [vmem:[%s0 + $0x8] sm:$0xff]
    %v42 = vld [vmem:[%s0 + $0x10] sm:$0xff]
    %v43 = vld [vmem:[%s0 + $0x18] sm:$0xff]
    %v44 = vld [vmem:[%s0 + $0x20] sm:$0xff]
    %v45 = vld [vmem:[%s0 + $0x28] sm:$0xff]
    %v46 = vld [vmem:[%s0 + $0x30] sm:$0xff]
    %v47 = vld [vmem:[%s0 + $0x38] sm:$0xff]
    %v48 = vld [vmem:[%s0 + $0x40] sm:$0xff]
    %v49 = vld [vmem:[%s0 + $0x48] sm:$0xff]
    %v50 = vld [vmem:[%s0 + $0x50] sm:$0xff]
    %v51 = vld [vmem:[%s0 + $0x58] sm:$0xff]
    %v52 = vld [vmem:[%s0 + $0x60] sm:$0xff]
    %v53 = vld [vmem:[%s0 + $0x68] sm:$0xff]
    %v54 = vld [vmem:[%s0 + $0x70] sm:$0xff]
    %v55 = vld [vmem:[%s0 + $0x78] sm:$0xff]
    %v57 = vlaneseq
    %v58 = vshrl.u32 %v57, 7
    %v59 = vsub.s32 0, %v58
    %v60 = vrot.slane %v39, %v59
    %vm62 = vcmask 261120
    %v64 = vsel %vm62, %v40, 0
    %v67 = vsel %vm62, %v41, 0
    %v70 = vsel %vm62, %v42, 0
    %v73 = vsel %vm62, %v43, 0
    %v76 = vsel %vm62, %v44, 0
    %v79 = vsel %vm62, %v45, 0
    %v82 = vsel %vm62, %v46, 0
    %v85 = vsel %vm62, %v47, 0
    %v88 = vsel %vm62, %v48, 0
    %v91 = vsel %vm62, %v49, 0
    %v94 = vsel %vm62, %v50, 0
    %v97 = vsel %vm62, %v51, 0
    %v100 = vsel %vm62, %v52, 0
    %v103 = vsel %vm62, %v53, 0
    %v106 = vsel %vm62, %v54, 0
    %v109 = vsel %vm62, %v55, 0
    %111 = vmatprep.subr.mxu0 0.0
    %112 = vmatpush1.msra.mxu0 %v31
    %113 = vmatprep.subr.mxu0 0.0
    %114 = vmatpush1.msra.mxu0 %v32
    %115 = vmatprep.subr.mxu0 0.0
    %116 = vmatpush1.msra.mxu0 %v33
    %117 = vmatprep.subr.mxu0 0.0
    %118 = vmatpush1.msra.mxu0 %v34
    %119 = vmatprep.subr.mxu0 0.0
    %120 = vmatpush1.msra.mxu0 0.0
    %121 = vmatprep.subr.mxu0 0.0
    %122 = vmatpush1.msra.mxu0 0.0
    %123 = vmatprep.subr.mxu0 0.0
    %124 = vmatpush1.msra.mxu0 0.0
    %125 = vmatprep.subr.mxu0 0.0
    %126 = vmatpush1.msra.mxu0 0.0
    %127 = vmatprep.subr.mxu0 0.0
    %128 = vmatpush1.msra.mxu0 0.0
    %129 = vmatprep.subr.mxu0 0.0
    %130 = vmatpush1.msra.mxu0 0.0
    %131 = vmatprep.subr.mxu0 0.0
    %132 = vmatpush1.msra.mxu0 0.0
    %133 = vmatprep.subr.mxu0 0.0
    %134 = vmatpush1.msra.mxu0 0.0
    %135 = vmatprep.subr.mxu0 0.0
    %136 = vmatpush1.msra.mxu0 0.0
    %137 = vmatprep.subr.mxu0 0.0
    %138 = vmatpush1.msra.mxu0 0.0
    %139 = vmatprep.subr.mxu0 0.0
    %140 = vmatpush1.msra.mxu0 0.0
    %141 = vmatprep.subr.mxu0 0.0
    %142 = vmatpush1.msra.mxu0 0.0
    %143 = vmatprep.subr.mxu0 0.0
    %144 = vmatpush1.msra.mxu0 0.0
    %145 = vmatprep.subr.mxu0 0.0
    %146 = vmatpush1.msra.mxu0 0.0
    %147 = vmatprep.subr.mxu0 0.0
    %148 = vmatpush1.msra.mxu0 0.0
    %149 = vmatprep.subr.mxu0 0.0
    %150 = vmatpush1.msra.mxu0 0.0
    %151 = vmatprep.subr.mxu0 0.0
    %152 = vmatpush1.msra.mxu0 0.0
    %153 = vmatprep.subr.mxu0 0.0
    %154 = vmatpush1.msra.mxu0 0.0
    %155 = vmatprep.subr.mxu0 0.0
    %156 = vmatpush1.msra.mxu0 0.0
    %157 = vmatprep.subr.mxu0 0.0
    %158 = vmatpush1.msra.mxu0 0.0
    %159 = vmatprep.subr.mxu0 0.0
    %160 = vmatpush1.msra.mxu0 0.0
    %161 = vmatprep.subr.mxu0 0.0
    %162 = vmatpush1.msra.mxu0 0.0
    %163 = vmatprep.subr.mxu0 0.0
    %164 = vmatpush1.msra.mxu0 0.0
    %165 = vmatprep.subr.mxu0 0.0
    %166 = vmatpush1.msra.mxu0 0.0
    %167 = vmatprep.subr.mxu0 0.0
    %168 = vmatpush1.msra.mxu0 0.0
    %169 = vmatprep.subr.mxu0 0.0
    %170 = vmatpush1.msra.mxu0 0.0
    %171 = vmatprep.subr.mxu0 0.0
    %172 = vmatpush1.msra.mxu0 0.0
    %173 = vmatprep.subr.mxu0 0.0
    %174 = vmatpush1.msra.mxu0 0.0
    %175 = vmatprep.mubr.f32.mxu0 0.0
    %176 = vmatmul.mubr.f32.gmra.mrb[0].mxu0 %v64
    %v177 = vpop.f32.mrb[0].mxu0
    %v178 = vadd.f32 %v60, %v177
    %v179 = vpop.f32.mrb[0].mxu0
    %180 = vmatprep.mubr.f32.mxu0 0.0
    %181 = vmatmul.mubr.f32.gmra.mrb[0].mxu0 %v67
    %v182 = vpop.f32.mrb[0].mxu0
    %v183 = vadd.f32 %v60, %v182
    %v184 = vpop.f32.mrb[0].mxu0
    %185 = vmatprep.mubr.f32.mxu0 0.0
    %186 = vmatmul.mubr.f32.gmra.mrb[0].mxu0 %v70
    %v187 = vpop.f32.mrb[0].mxu0
    %v188 = vadd.f32 %v60, %v187
    %v189 = vpop.f32.mrb[0].mxu0
    %190 = vmatprep.mubr.f32.mxu0 0.0
    %191 = vmatmul.mubr.f32.gmra.mrb[0].mxu0 %v73
    %v192 = vpop.f32.mrb[0].mxu0
    %v193 = vadd.f32 %v60, %v192
    %v194 = vpop.f32.mrb[0].mxu0
    %195 = vmatprep.mubr.f32.mxu0 0.0
    %196 = vmatmul.mubr.f32.gmra.mrb[0].mxu0 %v76
    %v197 = vpop.f32.mrb[0].mxu0
    %v198 = vadd.f32 %v60, %v197
    %v199 = vpop.f32.mrb[0].mxu0
    %200 = vmatprep.mubr.f32.mxu0 0.0
    %201 = vmatmul.mubr.f32.gmra.mrb[0].mxu0 %v79
    %v202 = vpop.f32.mrb[0].mxu0
    %v203 = vadd.f32 %v60, %v202
    %v204 = vpop.f32.mrb[0].mxu0
    %205 = vmatprep.mubr.f32.mxu0 0.0
    %206 = vmatmul.mubr.f32.gmra.mrb[0].mxu0 %v82
    %v207 = vpop.f32.mrb[0].mxu0
    %v208 = vadd.f32 %v60, %v207
    %v209 = vpop.f32.mrb[0].mxu0
    %210 = vmatprep.mubr.f32.mxu0 0.0
    %211 = vmatmul.mubr.f32.gmra.mrb[0].mxu0 %v85
    %v212 = vpop.f32.mrb[0].mxu0
    %v213 = vadd.f32 %v60, %v212
    %v214 = vpop.f32.mrb[0].mxu0
    %215 = vmatprep.mubr.f32.mxu0 0.0
    %216 = vmatmul.mubr.f32.gmra.mrb[0].mxu0 %v88
    %v217 = vpop.f32.mrb[0].mxu0
    %v218 = vadd.f32 %v60, %v217
    %v219 = vpop.f32.mrb[0].mxu0
    %220 = vmatprep.mubr.f32.mxu0 0.0
    %221 = vmatmul.mubr.f32.gmra.mrb[0].mxu0 %v91
    %v222 = vpop.f32.mrb[0].mxu0
    %v223 = vadd.f32 %v60, %v222
    %v224 = vpop.f32.mrb[0].mxu0
    %225 = vmatprep.mubr.f32.mxu0 0.0
    %226 = vmatmul.mubr.f32.gmra.mrb[0].mxu0 %v94
    %v227 = vpop.f32.mrb[0].mxu0
    %v228 = vadd.f32 %v60, %v227
    %v229 = vpop.f32.mrb[0].mxu0
    %230 = vmatprep.mubr.f32.mxu0 0.0
    %231 = vmatmul.mubr.f32.gmra.mrb[0].mxu0 %v97
    %v232 = vpop.f32.mrb[0].mxu0
    %v233 = vadd.f32 %v60, %v232
    %v234 = vpop.f32.mrb[0].mxu0
    %235 = vmatprep.mubr.f32.mxu0 0.0
    %236 = vmatmul.mubr.f32.gmra.mrb[0].mxu0 %v100
    %v237 = vpop.f32.mrb[0].mxu0
    %v238 = vadd.f32 %v60, %v237
    %v239 = vpop.f32.mrb[0].mxu0
    %240 = vmatprep.mubr.f32.mxu0 0.0
    %241 = vmatmul.mubr.f32.gmra.mrb[0].mxu0 %v103
    %v242 = vpop.f32.mrb[0].mxu0
    %v243 = vadd.f32 %v60, %v242
    %v244 = vpop.f32.mrb[0].mxu0
    %245 = vmatprep.mubr.f32.mxu0 0.0
    %246 = vmatmul.mubr.f32.gmra.mrb[0].mxu0 %v106
    %v247 = vpop.f32.mrb[0].mxu0
    %v248 = vadd.f32 %v60, %v247
    %v249 = vpop.f32.mrb[0].mxu0
    %250 = vmatprep.mubr.f32.mxu0 0.0
    %251 = vmatmul.mubr.f32.gmra.mrb[0].mxu0 %v109
    %v252 = vpop.f32.mrb[0].mxu0
    %v253 = vadd.f32 %v60, %v252
    %v254 = vpop.f32.mrb[0].mxu0
    %255 = vdwg.mxu0
    %256 = vst [vmem:[#allocation3] sm:$0xff] %v178
    %257 = vst [vmem:[#allocation3 + $0x8] sm:$0xff] %v183
    %258 = vst [vmem:[#allocation3 + $0x10] sm:$0xff] %v188
    %259 = vst [vmem:[#allocation3 + $0x18] sm:$0xff] %v193
    %260 = vst [vmem:[#allocation3 + $0x20] sm:$0xff] %v198
    %261 = vst [vmem:[#allocation3 + $0x28] sm:$0xff] %v203
    %262 = vst [vmem:[#allocation3 + $0x30] sm:$0xff] %v208
    %263 = vst [vmem:[#allocation3 + $0x38] sm:$0xff] %v213
    %264 = vst [vmem:[#allocation3 + $0x40] sm:$0xff] %v218
    %265 = vst [vmem:[#allocation3 + $0x48] sm:$0xff] %v223
    %266 = vst [vmem:[#allocation3 + $0x50] sm:$0xff] %v228
    %267 = vst [vmem:[#allocation3 + $0x58] sm:$0xff] %v233
    %268 = vst [vmem:[#allocation3 + $0x60] sm:$0xff] %v238
    %269 = vst [vmem:[#allocation3 + $0x68] sm:$0xff] %v243
    %270 = vst [vmem:[#allocation3 + $0x70] sm:$0xff] %v248
    %271 = vst [vmem:[#allocation3 + $0x78] sm:$0xff] %v253
    %v272 = vld [vmem:[#allocation3] sm:$0xff]
    %v274 = vsel %vm62, 0.0, 0
    %276 = vmatprep.subr.mxu0 0.0
    %277 = vmatpush1.msra.mxu0 %v35
    %278 = vmatprep.subr.mxu0 0.0
    %279 = vmatpush1.msra.mxu0 %v36
    %280 = vmatprep.subr.mxu0 0.0
    %281 = vmatpush1.msra.mxu0 %v37
    %282 = vmatprep.subr.mxu0 0.0
    %283 = vmatpush1.msra.mxu0 %v38
    %284 = vmatprep.subr.mxu0 0.0
    %285 = vmatpush1.msra.mxu0 0.0
    %286 = vmatprep.subr.mxu0 0.0
    %287 = vmatpush1.msra.mxu0 0.0
    %288 = vmatprep.subr.mxu0 0.0
    %289 = vmatpush1.msra.mxu0 0.0
    %290 = vmatprep.subr.mxu0 0.0
    %291 = vmatpush1.msra.mxu0 0.0
    %292 = vmatprep.subr.mxu0 0.0
    %293 = vmatpush1.msra.mxu0 0.0
    %294 = vmatprep.subr.mxu0 0.0
    %295 = vmatpush1.msra.mxu0 0.0
    %296 = vmatprep.subr.mxu0 0.0
    %297 = vmatpush1.msra.mxu0 0.0
    %298 = vmatprep.subr.mxu0 0.0
    %299 = vmatpush1.msra.mxu0 0.0
    %300 = vmatprep.subr.mxu0 0.0
    %301 = vmatpush1.msra.mxu0 0.0
    %302 = vmatprep.subr.mxu0 0.0
    %303 = vmatpush1.msra.mxu0 0.0
    %304 = vmatprep.subr.mxu0 0.0
    %305 = vmatpush1.msra.mxu0 0.0
    %306 = vmatprep.subr.mxu0 0.0
    %307 = vmatpush1.msra.mxu0 0.0
    %308 = vmatprep.subr.mxu0 0.0
    %309 = vmatpush1.msra.mxu0 0.0
    %310 = vmatprep.subr.mxu0 0.0
    %311 = vmatpush1.msra.mxu0 0.0
    %312 = vmatprep.subr.mxu0 0.0
    %313 = vmatpush1.msra.mxu0 0.0
    %314 = vmatprep.subr.mxu0 0.0
    %315 = vmatpush1.msra.mxu0 0.0
    %316 = vmatprep.subr.mxu0 0.0
    %317 = vmatpush1.msra.mxu0 0.0
    %318 = vmatprep.subr.mxu0 0.0
    %319 = vmatpush1.msra.mxu0 0.0
    %320 = vmatprep.subr.mxu0 0.0
    %321 = vmatpush1.msra.mxu0 0.0
    %322 = vmatprep.subr.mxu0 0.0
    %323 = vmatpush1.msra.mxu0 0.0
    %324 = vmatprep.subr.mxu0 0.0
    %325 = vmatpush1.msra.mxu0 0.0
    %326 = vmatprep.subr.mxu0 0.0
    %327 = vmatpush1.msra.mxu0 0.0
    %328 = vmatprep.subr.mxu0 0.0
    %329 = vmatpush1.msra.mxu0 0.0
    %330 = vmatprep.subr.mxu0 0.0
    %331 = vmatpush1.msra.mxu0 0.0
    %332 = vmatprep.subr.mxu0 0.0
    %333 = vmatpush1.msra.mxu0 0.0
    %334 = vmatprep.subr.mxu0 0.0
    %335 = vmatpush1.msra.mxu0 0.0
    %336 = vmatprep.subr.mxu0 0.0
    %337 = vmatpush1.msra.mxu0 0.0
    %338 = vmatprep.subr.mxu0 0.0
    %339 = vmatpush1.msra.mxu0 0.0
    %340 = vmatprep.mubr.f32.mxu0 0.0
    %341 = vmatmul.mubr.f32.gmra.mrb[0].mxu0 %v274
    %v342 = vpop.f32.mrb[0].mxu0
    %v343 = vadd.f32 0.0, %v342
    %v344 = vpop.f32.mrb[0].mxu0
    %345 = vdwg.mxu0
    %v346 = vadd.f32 %v272, %v343
    %v347 = vxor.u32 %v346, 2147483648
    %v348 = vmul.f32 %v347, 1.442695
    %v349 = vpow.pop %v348
    %v350 = vadd.f32 %v349, 1.0
    %v351 = vrcp.pop %v350
    %v352 = vmul.f32 1.0, %v351
    %v353 = vtanh.pop %v346
    %v354 = vmul.f32 %v352, 0.0
    %356 = vrot.lane.b32.xlu0 %v353, 32
    %v357 = vpop.permute.xlu0 %356
    %v359 = vmul.f32 %v352, %v357
    %361 = vrot.lane.b32.xlu0 %v359, 32
    %v362 = vpop.permute.xlu0 %361
    %v364 = vadd.f32 %v354, %v362
    %v365 = vtanh.pop %v364
    %367 = vrot.lane.b32.xlu0 %v365, 32
    %v368 = vpop.permute.xlu0 %367
    %v370 = vmul.f32 %v352, %v368
    %372 = vrot.lane.b32.xlu0 %v370, 64
    %v373 = vpop.permute.xlu0 %372
    %375 = vst.msk [vmem:[#allocation2] sm:$0xff] %vm62, %v373
    %v376 = vld [vmem:[#allocation3 + $0x8] sm:$0xff]
    %v377 = vsel %vm62, %v373, 0
    %379 = vmatprep.subr.mxu0 0.0
    %380 = vmatpush1.msra.mxu0 %v35
    %381 = vmatprep.subr.mxu0 0.0
    %382 = vmatpush1.msra.mxu0 %v36
    %383 = vmatprep.subr.mxu0 0.0
    %384 = vmatpush1.msra.mxu0 %v37
    %385 = vmatprep.subr.mxu0 0.0
    %386 = vmatpush1.msra.mxu0 %v38
    %387 = vmatprep.subr.mxu0 0.0
    %388 = vmatpush1.msra.mxu0 0.0
    %389 = vmatprep.subr.mxu0 0.0
    %390 = vmatpush1.msra.mxu0 0.0
    %391 = vmatprep.subr.mxu0 0.0
    %392 = vmatpush1.msra.mxu0 0.0
    %393 = vmatprep.subr.mxu0 0.0
    %394 = vmatpush1.msra.mxu0 0.0
    %395 = vmatprep.subr.mxu0 0.0
    %396 = vmatpush1.msra.mxu0 0.0
    %397 = vmatprep.subr.mxu0 0.0
    %398 = vmatpush1.msra.mxu0 0.0
    %399 = vmatprep.subr.mxu0 0.0
    %400 = vmatpush1.msra.mxu0 0.0
    %401 = vmatprep.subr.mxu0 0.0
    %402 = vmatpush1.msra.mxu0 0.0
    %403 = vmatprep.subr.mxu0 0.0
    %404 = vmatpush1.msra.mxu0 0.0
    %405 = vmatprep.subr.mxu0 0.0
    %406 = vmatpush1.msra.mxu0 0.0
    %407 = vmatprep.subr.mxu0 0.0
    %408 = vmatpush1.msra.mxu0 0.0
    %409 = vmatprep.subr.mxu0 0.0
    %410 = vmatpush1.msra.mxu0 0.0
    %411 = vmatprep.subr.mxu0 0.0
    %412 = vmatpush1.msra.mxu0 0.0
    %413 = vmatprep.subr.mxu0 0.0
    %414 = vmatpush1.msra.mxu0 0.0
    %415 = vmatprep.subr.mxu0 0.0
    %416 = vmatpush1.msra.mxu0 0.0
    %417 = vmatprep.subr.mxu0 0.0
    %418 = vmatpush1.msra.mxu0 0.0
    %419 = vmatprep.subr.mxu0 0.0
    %420 = vmatpush1.msra.mxu0 0.0
    %421 = vmatprep.subr.mxu0 0.0
    %422 = vmatpush1.msra.mxu0 0.0
    %423 = vmatprep.subr.mxu0 0.0
    %424 = vmatpush1.msra.mxu0 0.0
    %425 = vmatprep.subr.mxu0 0.0
    %426 = vmatpush1.msra.mxu0 0.0
    %427 = vmatprep.subr.mxu0 0.0
    %428 = vmatpush1.msra.mxu0 0.0
    %429 = vmatprep.subr.mxu0 0.0
    %430 = vmatpush1.msra.mxu0 0.0
    %431 = vmatprep.subr.mxu0 0.0
    %432 = vmatpush1.msra.mxu0 0.0
    %433 = vmatprep.subr.mxu0 0.0
    %434 = vmatpush1.msra.mxu0 0.0
    %435 = vmatprep.subr.mxu0 0.0
    %436 = vmatpush1.msra.mxu0 0.0
    %437 = vmatprep.subr.mxu0 0.0
    %438 = vmatpush1.msra.mxu0 0.0
    %439 = vmatprep.subr.mxu0 0.0
    %440 = vmatpush1.msra.mxu0 0.0
    %441 = vmatprep.subr.mxu0 0.0
    %442 = vmatpush1.msra.mxu0 0.0
    %443 = vmatprep.mubr.f32.mxu0 0.0
    %444 = vmatmul.mubr.f32.gmra.mrb[0].mxu0 %v377
    %v445 = vpop.f32.mrb[0].mxu0
    %v446 = vadd.f32 0.0, %v445
    %v447 = vpop.f32.mrb[0].mxu0
    %448 = vdwg.mxu0
    %v449 = vadd.f32 %v376, %v446
    %v450 = vxor.u32 %v449, 2147483648
    %v451 = vmul.f32 %v450, 1.442695
    %v452 = vpow.pop %v451
    %v453 = vadd.f32 %v452, 1.0
    %v454 = vrcp.pop %v453
    %v455 = vmul.f32 1.0, %v454
    %v456 = vtanh.pop %v449
    %v457 = vmul.f32 %v455, %v364
    %459 = vrot.lane.b32.xlu0 %v456, 32
    %v460 = vpop.permute.xlu0 %459
    %v462 = vmul.f32 %v455, %v460
    %464 = vrot.lane.b32.xlu0 %v462, 32
    %v465 = vpop.permute.xlu0 %464
    %v467 = vadd.f32 %v457, %v465
    %v468 = vtanh.pop %v467
    %470 = vrot.lane.b32.xlu0 %v468, 32
    %v471 = vpop.permute.xlu0 %470
    %v473 = vmul.f32 %v455, %v471
    %475 = vrot.lane.b32.xlu0 %v473, 64
    %v476 = vpop.permute.xlu0 %475
    %478 = vst.msk [vmem:[#allocation2 + $0x8] sm:$0xff] %vm62, %v476
    %v479 = vld [vmem:[#allocation3 + $0x10] sm:$0xff]
    %v480 = vsel %vm62, %v476, 0
    %482 = vmatprep.subr.mxu0 0.0
    %483 = vmatpush1.msra.mxu0 %v35
    %484 = vmatprep.subr.mxu0 0.0
    %485 = vmatpush1.msra.mxu0 %v36
    %486 = vmatprep.subr.mxu0 0.0
    %487 = vmatpush1.msra.mxu0 %v37
    %488 = vmatprep.subr.mxu0 0.0
    %489 = vmatpush1.msra.mxu0 %v38
    %490 = vmatprep.subr.mxu0 0.0
    %491 = vmatpush1.msra.mxu0 0.0
    %492 = vmatprep.subr.mxu0 0.0
    %493 = vmatpush1.msra.mxu0 0.0
    %494 = vmatprep.subr.mxu0 0.0
    %495 = vmatpush1.msra.mxu0 0.0
    %496 = vmatprep.subr.mxu0 0.0
    %497 = vmatpush1.msra.mxu0 0.0
    %498 = vmatprep.subr.mxu0 0.0
    %499 = vmatpush1.msra.mxu0 0.0
    %500 = vmatprep.subr.mxu0 0.0
    %501 = vmatpush1.msra.mxu0 0.0
    %502 = vmatprep.subr.mxu0 0.0
    %503 = vmatpush1.msra.mxu0 0.0
    %504 = vmatprep.subr.mxu0 0.0
    %505 = vmatpush1.msra.mxu0 0.0
    %506 = vmatprep.subr.mxu0 0.0
    %507 = vmatpush1.msra.mxu0 0.0
    %508 = vmatprep.subr.mxu0 0.0
    %509 = vmatpush1.msra.mxu0 0.0
    %510 = vmatprep.subr.mxu0 0.0
    %511 = vmatpush1.msra.mxu0 0.0
    %512 = vmatprep.subr.mxu0 0.0
    %513 = vmatpush1.msra.mxu0 0.0
    %514 = vmatprep.subr.mxu0 0.0
    %515 = vmatpush1.msra.mxu0 0.0
    %516 = vmatprep.subr.mxu0 0.0
    %517 = vmatpush1.msra.mxu0 0.0
    %518 = vmatprep.subr.mxu0 0.0
    %519 = vmatpush1.msra.mxu0 0.0
    %520 = vmatprep.subr.mxu0 0.0
    %521 = vmatpush1.msra.mxu0 0.0
    %522 = vmatprep.subr.mxu0 0.0
    %523 = vmatpush1.msra.mxu0 0.0
    %524 = vmatprep.subr.mxu0 0.0
    %525 = vmatpush1.msra.mxu0 0.0
    %526 = vmatprep.subr.mxu0 0.0
    %527 = vmatpush1.msra.mxu0 0.0
    %528 = vmatprep.subr.mxu0 0.0
    %529 = vmatpush1.msra.mxu0 0.0
    %530 = vmatprep.subr.mxu0 0.0
    %531 = vmatpush1.msra.mxu0 0.0
    %532 = vmatprep.subr.mxu0 0.0
    %533 = vmatpush1.msra.mxu0 0.0
    %534 = vmatprep.subr.mxu0 0.0
    %535 = vmatpush1.msra.mxu0 0.0
    %536 = vmatprep.subr.mxu0 0.0
    %537 = vmatpush1.msra.mxu0 0.0
    %538 = vmatprep.subr.mxu0 0.0
    %539 = vmatpush1.msra.mxu0 0.0
    %540 = vmatprep.subr.mxu0 0.0
    %541 = vmatpush1.msra.mxu0 0.0
    %542 = vmatprep.subr.mxu0 0.0
    %543 = vmatpush1.msra.mxu0 0.0
    %544 = vmatprep.subr.mxu0 0.0
    %545 = vmatpush1.msra.mxu0 0.0
    %546 = vmatprep.mubr.f32.mxu0 0.0
    %547 = vmatmul.mubr.f32.gmra.mrb[0].mxu0 %v480
    %v548 = vpop.f32.mrb[0].mxu0
    %v549 = vadd.f32 0.0, %v548
    %v550 = vpop.f32.mrb[0].mxu0
    %551 = vdwg.mxu0
    %v552 = vadd.f32 %v479, %v549
    %v553 = vxor.u32 %v552, 2147483648
    %v554 = vmul.f32 %v553, 1.442695
    %v555 = vpow.pop %v554
    %v556 = vadd.f32 %v555, 1.0
    %v557 = vrcp.pop %v556
    %v558 = vmul.f32 1.0, %v557
    %v559 = vtanh.pop %v552
    %v560 = vmul.f32 %v558, %v467
    %562 = vrot.lane.b32.xlu0 %v559, 32
    %v563 = vpop.permute.xlu0 %562
    %v565 = vmul.f32 %v558, %v563
    %567 = vrot.lane.b32.xlu0 %v565, 32
    %v568 = vpop.permute.xlu0 %567
    %v570 = vadd.f32 %v560, %v568
    %v571 = vtanh.pop %v570
    %573 = vrot.lane.b32.xlu0 %v571, 32
    %v574 = vpop.permute.xlu0 %573
    %v576 = vmul.f32 %v558, %v574
    %578 = vrot.lane.b32.xlu0 %v576, 64
    %v579 = vpop.permute.xlu0 %578
    %581 = vst.msk [vmem:[#allocation2 + $0x10] sm:$0xff] %vm62, %v579
    %v582 = vld [vmem:[#allocation3 + $0x18] sm:$0xff]
    %v583 = vsel %vm62, %v579, 0
    %585 = vmatprep.subr.mxu0 0.0
    %586 = vmatpush1.msra.mxu0 %v35
    %587 = vmatprep.subr.mxu0 0.0
    %588 = vmatpush1.msra.mxu0 %v36
    %589 = vmatprep.subr.mxu0 0.0
    %590 = vmatpush1.msra.mxu0 %v37
    %591 = vmatprep.subr.mxu0 0.0
    %592 = vmatpush1.msra.mxu0 %v38
    %593 = vmatprep.subr.mxu0 0.0
    %594 = vmatpush1.msra.mxu0 0.0
    %595 = vmatprep.subr.mxu0 0.0
    %596 = vmatpush1.msra.mxu0 0.0
    %597 = vmatprep.subr.mxu0 0.0
    %598 = vmatpush1.msra.mxu0 0.0
    %599 = vmatprep.subr.mxu0 0.0
    %600 = vmatpush1.msra.mxu0 0.0
    %601 = vmatprep.subr.mxu0 0.0
    %602 = vmatpush1.msra.mxu0 0.0
    %603 = vmatprep.subr.mxu0 0.0
    %604 = vmatpush1.msra.mxu0 0.0
    %605 = vmatprep.subr.mxu0 0.0
    %606 = vmatpush1.msra.mxu0 0.0
    %607 = vmatprep.subr.mxu0 0.0
    %608 = vmatpush1.msra.mxu0 0.0
    %609 = vmatprep.subr.mxu0 0.0
    %610 = vmatpush1.msra.mxu0 0.0
    %611 = vmatprep.subr.mxu0 0.0
    %612 = vmatpush1.msra.mxu0 0.0
    %613 = vmatprep.subr.mxu0 0.0
    %614 = vmatpush1.msra.mxu0 0.0
    %615 = vmatprep.subr.mxu0 0.0
    %616 = vmatpush1.msra.mxu0 0.0
    %617 = vmatprep.subr.mxu0 0.0
    %618 = vmatpush1.msra.mxu0 0.0
    %619 = vmatprep.subr.mxu0 0.0
    %620 = vmatpush1.msra.mxu0 0.0
    %621 = vmatprep.subr.mxu0 0.0
    %622 = vmatpush1.msra.mxu0 0.0
    %623 = vmatprep.subr.mxu0 0.0
    %624 = vmatpush1.msra.mxu0 0.0
    %625 = vmatprep.subr.mxu0 0.0
    %626 = vmatpush1.msra.mxu0 0.0
    %627 = vmatprep.subr.mxu0 0.0
    %628 = vmatpush1.msra.mxu0 0.0
    %629 = vmatprep.subr.mxu0 0.0
    %630 = vmatpush1.msra.mxu0 0.0
    %631 = vmatprep.subr.mxu0 0.0
    %632 = vmatpush1.msra.mxu0 0.0
    %633 = vmatprep.subr.mxu0 0.0
    %634 = vmatpush1.msra.mxu0 0.0
    %635 = vmatprep.subr.mxu0 0.0
    %636 = vmatpush1.msra.mxu0 0.0
    %637 = vmatprep.subr.mxu0 0.0
    %638 = vmatpush1.msra.mxu0 0.0
    %639 = vmatprep.subr.mxu0 0.0
    %640 = vmatpush1.msra.mxu0 0.0
    %641 = vmatprep.subr.mxu0 0.0
    %642 = vmatpush1.msra.mxu0 0.0
    %643 = vmatprep.subr.mxu0 0.0
    %644 = vmatpush1.msra.mxu0 0.0
    %645 = vmatprep.subr.mxu0 0.0
    %646 = vmatpush1.msra.mxu0 0.0
    %647 = vmatprep.subr.mxu0 0.0
    %648 = vmatpush1.msra.mxu0 0.0
    %649 = vmatprep.mubr.f32.mxu0 0.0
    %650 = vmatmul.mubr.f32.gmra.mrb[0].mxu0 %v583
    %v651 = vpop.f32.mrb[0].mxu0
    %v652 = vadd.f32 0.0, %v651
    %v653 = vpop.f32.mrb[0].mxu0
    %654 = vdwg.mxu0
    %v655 = vadd.f32 %v582, %v652
    %v656 = vxor.u32 %v655, 2147483648
    %v657 = vmul.f32 %v656, 1.442695
    %v658 = vpow.pop %v657
    %v659 = vadd.f32 %v658, 1.0
    %v660 = vrcp.pop %v659
    %v661 = vmul.f32 1.0, %v660
    %v662 = vtanh.pop %v655
    %v663 = vmul.f32 %v661, %v570
    %665 = vrot.lane.b32.xlu0 %v662, 32
    %v666 = vpop.permute.xlu0 %665
    %v668 = vmul.f32 %v661, %v666
    %670 = vrot.lane.b32.xlu0 %v668, 32
    %v671 = vpop.permute.xlu0 %670
    %v673 = vadd.f32 %v663, %v671
    %v674 = vtanh.pop %v673
    %676 = vrot.lane.b32.xlu0 %v674, 32
    %v677 = vpop.permute.xlu0 %676
    %v679 = vmul.f32 %v661, %v677
    %681 = vrot.lane.b32.xlu0 %v679, 64
    %v682 = vpop.permute.xlu0 %681
    %684 = vst.msk [vmem:[#allocation2 + $0x18] sm:$0xff] %vm62, %v682
    %v685 = vld [vmem:[#allocation3 + $0x20] sm:$0xff]
    %v686 = vsel %vm62, %v682, 0
    %688 = vmatprep.subr.mxu0 0.0
    %689 = vmatpush1.msra.mxu0 %v35
    %690 = vmatprep.subr.mxu0 0.0
    %691 = vmatpush1.msra.mxu0 %v36
    %692 = vmatprep.subr.mxu0 0.0
    %693 = vmatpush1.msra.mxu0 %v37
    %694 = vmatprep.subr.mxu0 0.0
    %695 = vmatpush1.msra.mxu0 %v38
    %696 = vmatprep.subr.mxu0 0.0
    %697 = vmatpush1.msra.mxu0 0.0
    %698 = vmatprep.subr.mxu0 0.0
    %699 = vmatpush1.msra.mxu0 0.0
    %700 = vmatprep.subr.mxu0 0.0
    %701 = vmatpush1.msra.mxu0 0.0
    %702 = vmatprep.subr.mxu0 0.0
    %703 = vmatpush1.msra.mxu0 0.0
    %704 = vmatprep.subr.mxu0 0.0
    %705 = vmatpush1.msra.mxu0 0.0
    %706 = vmatprep.subr.mxu0 0.0
    %707 = vmatpush1.msra.mxu0 0.0
    %708 = vmatprep.subr.mxu0 0.0
    %709 = vmatpush1.msra.mxu0 0.0
    %710 = vmatprep.subr.mxu0 0.0
    %711 = vmatpush1.msra.mxu0 0.0
    %712 = vmatprep.subr.mxu0 0.0
    %713 = vmatpush1.msra.mxu0 0.0
    %714 = vmatprep.subr.mxu0 0.0
    %715 = vmatpush1.msra.mxu0 0.0
    %716 = vmatprep.subr.mxu0 0.0
    %717 = vmatpush1.msra.mxu0 0.0
    %718 = vmatprep.subr.mxu0 0.0
    %719 = vmatpush1.msra.mxu0 0.0
    %720 = vmatprep.subr.mxu0 0.0
    %721 = vmatpush1.msra.mxu0 0.0
    %722 = vmatprep.subr.mxu0 0.0
    %723 = vmatpush1.msra.mxu0 0.0
    %724 = vmatprep.subr.mxu0 0.0
    %725 = vmatpush1.msra.mxu0 0.0
    %726 = vmatprep.subr.mxu0 0.0
    %727 = vmatpush1.msra.mxu0 0.0
    %728 = vmatprep.subr.mxu0 0.0
    %729 = vmatpush1.msra.mxu0 0.0
    %730 = vmatprep.subr.mxu0 0.0
    %731 = vmatpush1.msra.mxu0 0.0
    %732 = vmatprep.subr.mxu0 0.0
    %733 = vmatpush1.msra.mxu0 0.0
    %734 = vmatprep.subr.mxu0 0.0
    %735 = vmatpush1.msra.mxu0 0.0
    %736 = vmatprep.subr.mxu0 0.0
    %737 = vmatpush1.msra.mxu0 0.0
    %738 = vmatprep.subr.mxu0 0.0
    %739 = vmatpush1.msra.mxu0 0.0
    %740 = vmatprep.subr.mxu0 0.0
    %741 = vmatpush1.msra.mxu0 0.0
    %742 = vmatprep.subr.mxu0 0.0
    %743 = vmatpush1.msra.mxu0 0.0
    %744 = vmatprep.subr.mxu0 0.0
    %745 = vmatpush1.msra.mxu0 0.0
    %746 = vmatprep.subr.mxu0 0.0
    %747 = vmatpush1.msra.mxu0 0.0
    %748 = vmatprep.subr.mxu0 0.0
    %749 = vmatpush1.msra.mxu0 0.0
    %750 = vmatprep.subr.mxu0 0.0
    %751 = vmatpush1.msra.mxu0 0.0
    %752 = vmatprep.mubr.f32.mxu0 0.0
    %753 = vmatmul.mubr.f32.gmra.mrb[0].mxu0 %v686
    %v754 = vpop.f32.mrb[0].mxu0
    %v755 = vadd.f32 0.0, %v754
    %v756 = vpop.f32.mrb[0].mxu0
    %757 = vdwg.mxu0
    %v758 = vadd.f32 %v685, %v755
    %v759 = vxor.u32 %v758, 2147483648
    %v760 = vmul.f32 %v759, 1.442695
    %v761 = vpow.pop %v760
    %v762 = vadd.f32 %v761, 1.0
    %v763 = vrcp.pop %v762
    %v764 = vmul.f32 1.0, %v763
    %v765 = vtanh.pop %v758
    %v766 = vmul.f32 %v764, %v673
    %768 = vrot.lane.b32.xlu0 %v765, 32
    %v769 = vpop.permute.xlu0 %768
    %v771 = vmul.f32 %v764, %v769
    %773 = vrot.lane.b32.xlu0 %v771, 32
    %v774 = vpop.permute.xlu0 %773
    %v776 = vadd.f32 %v766, %v774
    %v777 = vtanh.pop %v776
    %779 = vrot.lane.b32.xlu0 %v777, 32
    %v780 = vpop.permute.xlu0 %779
    %v782 = vmul.f32 %v764, %v780
    %784 = vrot.lane.b32.xlu0 %v782, 64
    %v785 = vpop.permute.xlu0 %784
    %787 = vst.msk [vmem:[#allocation2 + $0x20] sm:$0xff] %vm62, %v785
    %v788 = vld [vmem:[#allocation3 + $0x28] sm:$0xff]
    %v789 = vsel %vm62, %v785, 0
    %791 = vmatprep.subr.mxu0 0.0
    %792 = vmatpush1.msra.mxu0 %v35
    %793 = vmatprep.subr.mxu0 0.0
    %794 = vmatpush1.msra.mxu0 %v36
    %795 = vmatprep.subr.mxu0 0.0
    %796 = vmatpush1.msra.mxu0 %v37
    %797 = vmatprep.subr.mxu0 0.0
    %798 = vmatpush1.msra.mxu0 %v38
    %799 = vmatprep.subr.mxu0 0.0
    %800 = vmatpush1.msra.mxu0 0.0
    %801 = vmatprep.subr.mxu0 0.0
    %802 = vmatpush1.msra.mxu0 0.0
    %803 = vmatprep.subr.mxu0 0.0
    %804 = vmatpush1.msra.mxu0 0.0
    %805 = vmatprep.subr.mxu0 0.0
    %806 = vmatpush1.msra.mxu0 0.0
    %807 = vmatprep.subr.mxu0 0.0
    %808 = vmatpush1.msra.mxu0 0.0
    %809 = vmatprep.subr.mxu0 0.0
    %810 = vmatpush1.msra.mxu0 0.0
    %811 = vmatprep.subr.mxu0 0.0
    %812 = vmatpush1.msra.mxu0 0.0
    %813 = vmatprep.subr.mxu0 0.0
    %814 = vmatpush1.msra.mxu0 0.0
    %815 = vmatprep.subr.mxu0 0.0
    %816 = vmatpush1.msra.mxu0 0.0
    %817 = vmatprep.subr.mxu0 0.0
    %818 = vmatpush1.msra.mxu0 0.0
    %819 = vmatprep.subr.mxu0 0.0
    %820 = vmatpush1.msra.mxu0 0.0
    %821 = vmatprep.subr.mxu0 0.0
    %822 = vmatpush1.msra.mxu0 0.0
    %823 = vmatprep.subr.mxu0 0.0
    %824 = vmatpush1.msra.mxu0 0.0
    %825 = vmatprep.subr.mxu0 0.0
    %826 = vmatpush1.msra.mxu0 0.0
    %827 = vmatprep.subr.mxu0 0.0
    %828 = vmatpush1.msra.mxu0 0.0
    %829 = vmatprep.subr.mxu0 0.0
    %830 = vmatpush1.msra.mxu0 0.0
    %831 = vmatprep.subr.mxu0 0.0
    %832 = vmatpush1.msra.mxu0 0.0
    %833 = vmatprep.subr.mxu0 0.0
    %834 = vmatpush1.msra.mxu0 0.0
    %835 = vmatprep.subr.mxu0 0.0
    %836 = vmatpush1.msra.mxu0 0.0
    %837 = vmatprep.subr.mxu0 0.0
    %838 = vmatpush1.msra.mxu0 0.0
    %839 = vmatprep.subr.mxu0 0.0
    %840 = vmatpush1.msra.mxu0 0.0
    %841 = vmatprep.subr.mxu0 0.0
    %842 = vmatpush1.msra.mxu0 0.0
    %843 = vmatprep.subr.mxu0 0.0
    %844 = vmatpush1.msra.mxu0 0.0
    %845 = vmatprep.subr.mxu0 0.0
    %846 = vmatpush1.msra.mxu0 0.0
    %847 = vmatprep.subr.mxu0 0.0
    %848 = vmatpush1.msra.mxu0 0.0
    %849 = vmatprep.subr.mxu0 0.0
    %850 = vmatpush1.msra.mxu0 0.0
    %851 = vmatprep.subr.mxu0 0.0
    %852 = vmatpush1.msra.mxu0 0.0
    %853 = vmatprep.subr.mxu0 0.0
    %854 = vmatpush1.msra.mxu0 0.0
    %855 = vmatprep.mubr.f32.mxu0 0.0
    %856 = vmatmul.mubr.f32.gmra.mrb[0].mxu0 %v789
    %v857 = vpop.f32.mrb[0].mxu0
    %v858 = vadd.f32 0.0, %v857
    %v859 = vpop.f32.mrb[0].mxu0
    %860 = vdwg.mxu0
    %v861 = vadd.f32 %v788, %v858
    %v862 = vxor.u32 %v861, 2147483648
    %v863 = vmul.f32 %v862, 1.442695
    %v864 = vpow.pop %v863
    %v865 = vadd.f32 %v864, 1.0
    %v866 = vrcp.pop %v865
    %v867 = vmul.f32 1.0, %v866
    %v868 = vtanh.pop %v861
    %v869 = vmul.f32 %v867, %v776
    %871 = vrot.lane.b32.xlu0 %v868, 32
    %v872 = vpop.permute.xlu0 %871
    %v874 = vmul.f32 %v867, %v872
    %876 = vrot.lane.b32.xlu0 %v874, 32
    %v877 = vpop.permute.xlu0 %876
    %v879 = vadd.f32 %v869, %v877
    %v880 = vtanh.pop %v879
    %882 = vrot.lane.b32.xlu0 %v880, 32
    %v883 = vpop.permute.xlu0 %882
    %v885 = vmul.f32 %v867, %v883
    %887 = vrot.lane.b32.xlu0 %v885, 64
    %v888 = vpop.permute.xlu0 %887
    %890 = vst.msk [vmem:[#allocation2 + $0x28] sm:$0xff] %vm62, %v888
    %v891 = vld [vmem:[#allocation3 + $0x30] sm:$0xff]
    %v892 = vsel %vm62, %v888, 0
    %894 = vmatprep.subr.mxu0 0.0
    %895 = vmatpush1.msra.mxu0 %v35
    %896 = vmatprep.subr.mxu0 0.0
    %897 = vmatpush1.msra.mxu0 %v36
    %898 = vmatprep.subr.mxu0 0.0
    %899 = vmatpush1.msra.mxu0 %v37
    %900 = vmatprep.subr.mxu0 0.0
    %901 = vmatpush1.msra.mxu0 %v38
    %902 = vmatprep.subr.mxu0 0.0
    %903 = vmatpush1.msra.mxu0 0.0
    %904 = vmatprep.subr.mxu0 0.0
    %905 = vmatpush1.msra.mxu0 0.0
    %906 = vmatprep.subr.mxu0 0.0
    %907 = vmatpush1.msra.mxu0 0.0
    %908 = vmatprep.subr.mxu0 0.0
    %909 = vmatpush1.msra.mxu0 0.0
    %910 = vmatprep.subr.mxu0 0.0
    %911 = vmatpush1.msra.mxu0 0.0
    %912 = vmatprep.subr.mxu0 0.0
    %913 = vmatpush1.msra.mxu0 0.0
    %914 = vmatprep.subr.mxu0 0.0
    %915 = vmatpush1.msra.mxu0 0.0
    %916 = vmatprep.subr.mxu0 0.0
    %917 = vmatpush1.msra.mxu0 0.0
    %918 = vmatprep.subr.mxu0 0.0
    %919 = vmatpush1.msra.mxu0 0.0
    %920 = vmatprep.subr.mxu0 0.0
    %921 = vmatpush1.msra.mxu0 0.0
    %922 = vmatprep.subr.mxu0 0.0
    %923 = vmatpush1.msra.mxu0 0.0
    %924 = vmatprep.subr.mxu0 0.0
    %925 = vmatpush1.msra.mxu0 0.0
    %926 = vmatprep.subr.mxu0 0.0
    %927 = vmatpush1.msra.mxu0 0.0
    %928 = vmatprep.subr.mxu0 0.0
    %929 = vmatpush1.msra.mxu0 0.0
    %930 = vmatprep.subr.mxu0 0.0
    %931 = vmatpush1.msra.mxu0 0.0
    %932 = vmatprep.subr.mxu0 0.0
    %933 = vmatpush1.msra.mxu0 0.0
    %934 = vmatprep.subr.mxu0 0.0
    %935 = vmatpush1.msra.mxu0 0.0
    %936 = vmatprep.subr.mxu0 0.0
    %937 = vmatpush1.msra.mxu0 0.0
    %938 = vmatprep.subr.mxu0 0.0
    %939 = vmatpush1.msra.mxu0 0.0
    %940 = vmatprep.subr.mxu0 0.0
    %941 = vmatpush1.msra.mxu0 0.0
    %942 = vmatprep.subr.mxu0 0.0
    %943 = vmatpush1.msra.mxu0 0.0
    %944 = vmatprep.subr.mxu0 0.0
    %945 = vmatpush1.msra.mxu0 0.0
    %946 = vmatprep.subr.mxu0 0.0
    %947 = vmatpush1.msra.mxu0 0.0
    %948 = vmatprep.subr.mxu0 0.0
    %949 = vmatpush1.msra.mxu0 0.0
    %950 = vmatprep.subr.mxu0 0.0
    %951 = vmatpush1.msra.mxu0 0.0
    %952 = vmatprep.subr.mxu0 0.0
    %953 = vmatpush1.msra.mxu0 0.0
    %954 = vmatprep.subr.mxu0 0.0
    %955 = vmatpush1.msra.mxu0 0.0
    %956 = vmatprep.subr.mxu0 0.0
    %957 = vmatpush1.msra.mxu0 0.0
    %958 = vmatprep.mubr.f32.mxu0 0.0
    %959 = vmatmul.mubr.f32.gmra.mrb[0].mxu0 %v892
    %v960 = vpop.f32.mrb[0].mxu0
    %v961 = vadd.f32 0.0, %v960
    %v962 = vpop.f32.mrb[0].mxu0
    %963 = vdwg.mxu0
    %v964 = vadd.f32 %v891, %v961
    %v965 = vxor.u32 %v964, 2147483648
    %v966 = vmul.f32 %v965, 1.442695
    %v967 = vpow.pop %v966
    %v968 = vadd.f32 %v967, 1.0
    %v969 = vrcp.pop %v968
    %v970 = vmul.f32 1.0, %v969
    %v971 = vtanh.pop %v964
    %v972 = vmul.f32 %v970, %v879
    %974 = vrot.lane.b32.xlu0 %v971, 32
    %v975 = vpop.permute.xlu0 %974
    %v977 = vmul.f32 %v970, %v975
    %979 = vrot.lane.b32.xlu0 %v977, 32
    %v980 = vpop.permute.xlu0 %979
    %v982 = vadd.f32 %v972, %v980
    %v983 = vtanh.pop %v982
    %985 = vrot.lane.b32.xlu0 %v983, 32
    %v986 = vpop.permute.xlu0 %985
    %v988 = vmul.f32 %v970, %v986
    %990 = vrot.lane.b32.xlu0 %v988, 64
    %v991 = vpop.permute.xlu0 %990
    %993 = vst.msk [vmem:[#allocation2 + $0x30] sm:$0xff] %vm62, %v991
    %v994 = vld [vmem:[#allocation3 + $0x38] sm:$0xff]
    %v995 = vsel %vm62, %v991, 0
    %997 = vmatprep.subr.mxu0 0.0
    %998 = vmatpush1.msra.mxu0 %v35
    %999 = vmatprep.subr.mxu0 0.0
    %1000 = vmatpush1.msra.mxu0 %v36
    %1001 = vmatprep.subr.mxu0 0.0
    %1002 = vmatpush1.msra.mxu0 %v37
    %1003 = vmatprep.subr.mxu0 0.0
    %1004 = vmatpush1.msra.mxu0 %v38
    %1005 = vmatprep.subr.mxu0 0.0
    %1006 = vmatpush1.msra.mxu0 0.0
    %1007 = vmatprep.subr.mxu0 0.0
    %1008 = vmatpush1.msra.mxu0 0.0
    %1009 = vmatprep.subr.mxu0 0.0
    %1010 = vmatpush1.msra.mxu0 0.0
    %1011 = vmatprep.subr.mxu0 0.0
    %1012 = vmatpush1.msra.mxu0 0.0
    %1013 = vmatprep.subr.mxu0 0.0
    %1014 = vmatpush1.msra.mxu0 0.0
    %1015 = vmatprep.subr.mxu0 0.0
    %1016 = vmatpush1.msra.mxu0 0.0
    %1017 = vmatprep.subr.mxu0 0.0
    %1018 = vmatpush1.msra.mxu0 0.0
    %1019 = vmatprep.subr.mxu0 0.0
    %1020 = vmatpush1.msra.mxu0 0.0
    %1021 = vmatprep.subr.mxu0 0.0
    %1022 = vmatpush1.msra.mxu0 0.0
    %1023 = vmatprep.subr.mxu0 0.0
    %1024 = vmatpush1.msra.mxu0 0.0
    %1025 = vmatprep.subr.mxu0 0.0
    %1026 = vmatpush1.msra.mxu0 0.0
    %1027 = vmatprep.subr.mxu0 0.0
    %1028 = vmatpush1.msra.mxu0 0.0
    %1029 = vmatprep.subr.mxu0 0.0
    %1030 = vmatpush1.msra.mxu0 0.0
    %1031 = vmatprep.subr.mxu0 0.0
    %1032 = vmatpush1.msra.mxu0 0.0
    %1033 = vmatprep.subr.mxu0 0.0
    %1034 = vmatpush1.msra.mxu0 0.0
    %1035 = vmatprep.subr.mxu0 0.0
    %1036 = vmatpush1.msra.mxu0 0.0
    %1037 = vmatprep.subr.mxu0 0.0
    %1038 = vmatpush1.msra.mxu0 0.0
    %1039 = vmatprep.subr.mxu0 0.0
    %1040 = vmatpush1.msra.mxu0 0.0
    %1041 = vmatprep.subr.mxu0 0.0
    %1042 = vmatpush1.msra.mxu0 0.0
    %1043 = vmatprep.subr.mxu0 0.0
    %1044 = vmatpush1.msra.mxu0 0.0
    %1045 = vmatprep.subr.mxu0 0.0
    %1046 = vmatpush1.msra.mxu0 0.0
    %1047 = vmatprep.subr.mxu0 0.0
    %1048 = vmatpush1.msra.mxu0 0.0
    %1049 = vmatprep.subr.mxu0 0.0
    %1050 = vmatpush1.msra.mxu0 0.0
    %1051 = vmatprep.subr.mxu0 0.0
    %1052 = vmatpush1.msra.mxu0 0.0
    %1053 = vmatprep.subr.mxu0 0.0
    %1054 = vmatpush1.msra.mxu0 0.0
    %1055 = vmatprep.subr.mxu0 0.0
    %1056 = vmatpush1.msra.mxu0 0.0
    %1057 = vmatprep.subr.mxu0 0.0
    %1058 = vmatpush1.msra.mxu0 0.0
    %1059 = vmatprep.subr.mxu0 0.0
    %1060 = vmatpush1.msra.mxu0 0.0
    %1061 = vmatprep.mubr.f32.mxu0 0.0
    %1062 = vmatmul.mubr.f32.gmra.mrb[0].mxu0 %v995
    %v1063 = vpop.f32.mrb[0].mxu0
    %v1064 = vadd.f32 0.0, %v1063
    %v1065 = vpop.f32.mrb[0].mxu0
    %1066 = vdwg.mxu0
    %v1067 = vadd.f32 %v994, %v1064
    %v1068 = vxor.u32 %v1067, 2147483648
    %v1069 = vmul.f32 %v1068, 1.442695
    %v1070 = vpow.pop %v1069
    %v1071 = vadd.f32 %v1070, 1.0
    %v1072 = vrcp.pop %v1071
    %v1073 = vmul.f32 1.0, %v1072
    %v1074 = vtanh.pop %v1067
    %v1075 = vmul.f32 %v1073, %v982
    %1077 = vrot.lane.b32.xlu0 %v1074, 32
    %v1078 = vpop.permute.xlu0 %1077
    %v1080 = vmul.f32 %v1073, %v1078
    %1082 = vrot.lane.b32.xlu0 %v1080, 32
    %v1083 = vpop.permute.xlu0 %1082
    %v1085 = vadd.f32 %v1075, %v1083
    %v1086 = vtanh.pop %v1085
    %1088 = vrot.lane.b32.xlu0 %v1086, 32
    %v1089 = vpop.permute.xlu0 %1088
    %v1091 = vmul.f32 %v1073, %v1089
    %1093 = vrot.lane.b32.xlu0 %v1091, 64
    %v1094 = vpop.permute.xlu0 %1093
    %1096 = vst.msk [vmem:[#allocation2 + $0x38] sm:$0xff] %vm62, %v1094
    %v1097 = vld [vmem:[#allocation3 + $0x40] sm:$0xff]
    %v1098 = vsel %vm62, %v1094, 0
    %1100 = vmatprep.subr.mxu0 0.0
    %1101 = vmatpush1.msra.mxu0 %v35
    %1102 = vmatprep.subr.mxu0 0.0
    %1103 = vmatpush1.msra.mxu0 %v36
    %1104 = vmatprep.subr.mxu0 0.0
    %1105 = vmatpush1.msra.mxu0 %v37
    %1106 = vmatprep.subr.mxu0 0.0
    %1107 = vmatpush1.msra.mxu0 %v38
    %1108 = vmatprep.subr.mxu0 0.0
    %1109 = vmatpush1.msra.mxu0 0.0
    %1110 = vmatprep.subr.mxu0 0.0
    %1111 = vmatpush1.msra.mxu0 0.0
    %1112 = vmatprep.subr.mxu0 0.0
    %1113 = vmatpush1.msra.mxu0 0.0
    %1114 = vmatprep.subr.mxu0 0.0
    %1115 = vmatpush1.msra.mxu0 0.0
    %1116 = vmatprep.subr.mxu0 0.0
    %1117 = vmatpush1.msra.mxu0 0.0
    %1118 = vmatprep.subr.mxu0 0.0
    %1119 = vmatpush1.msra.mxu0 0.0
    %1120 = vmatprep.subr.mxu0 0.0
    %1121 = vmatpush1.msra.mxu0 0.0
    %1122 = vmatprep.subr.mxu0 0.0
    %1123 = vmatpush1.msra.mxu0 0.0
    %1124 = vmatprep.subr.mxu0 0.0
    %1125 = vmatpush1.msra.mxu0 0.0
    %1126 = vmatprep.subr.mxu0 0.0
    %1127 = vmatpush1.msra.mxu0 0.0
    %1128 = vmatprep.subr.mxu0 0.0
    %1129 = vmatpush1.msra.mxu0 0.0
    %1130 = vmatprep.subr.mxu0 0.0
    %1131 = vmatpush1.msra.mxu0 0.0
    %1132 = vmatprep.subr.mxu0 0.0
    %1133 = vmatpush1.msra.mxu0 0.0
    %1134 = vmatprep.subr.mxu0 0.0
    %1135 = vmatpush1.msra.mxu0 0.0
    %1136 = vmatprep.subr.mxu0 0.0
    %1137 = vmatpush1.msra.mxu0 0.0
    %1138 = vmatprep.subr.mxu0 0.0
    %1139 = vmatpush1.msra.mxu0 0.0
    %1140 = vmatprep.subr.mxu0 0.0
    %1141 = vmatpush1.msra.mxu0 0.0
    %1142 = vmatprep.subr.mxu0 0.0
    %1143 = vmatpush1.msra.mxu0 0.0
    %1144 = vmatprep.subr.mxu0 0.0
    %1145 = vmatpush1.msra.mxu0 0.0
    %1146 = vmatprep.subr.mxu0 0.0
    %1147 = vmatpush1.msra.mxu0 0.0
    %1148 = vmatprep.subr.mxu0 0.0
    %1149 = vmatpush1.msra.mxu0 0.0
    %1150 = vmatprep.subr.mxu0 0.0
    %1151 = vmatpush1.msra.mxu0 0.0
    %1152 = vmatprep.subr.mxu0 0.0
    %1153 = vmatpush1.msra.mxu0 0.0
    %1154 = vmatprep.subr.mxu0 0.0
    %1155 = vmatpush1.msra.mxu0 0.0
    %1156 = vmatprep.subr.mxu0 0.0
    %1157 = vmatpush1.msra.mxu0 0.0
    %1158 = vmatprep.subr.mxu0 0.0
    %1159 = vmatpush1.msra.mxu0 0.0
    %1160 = vmatprep.subr.mxu0 0.0
    %1161 = vmatpush1.msra.mxu0 0.0
    %1162 = vmatprep.subr.mxu0 0.0
    %1163 = vmatpush1.msra.mxu0 0.0
    %1164 = vmatprep.mubr.f32.mxu0 0.0
    %1165 = vmatmul.mubr.f32.gmra.mrb[0].mxu0 %v1098
    %v1166 = vpop.f32.mrb[0].mxu0
    %v1167 = vadd.f32 0.0, %v1166
    %v1168 = vpop.f32.mrb[0].mxu0
    %1169 = vdwg.mxu0
    %v1170 = vadd.f32 %v1097, %v1167
    %v1171 = vxor.u32 %v1170, 2147483648
    %v1172 = vmul.f32 %v1171, 1.442695
    %v1173 = vpow.pop %v1172
    %v1174 = vadd.f32 %v1173, 1.0
    %v1175 = vrcp.pop %v1174
    %v1176 = vmul.f32 1.0, %v1175
    %v1177 = vtanh.pop %v1170
    %v1178 = vmul.f32 %v1176, %v1085
    %1180 = vrot.lane.b32.xlu0 %v1177, 32
    %v1181 = vpop.permute.xlu0 %1180
    %v1183 = vmul.f32 %v1176, %v1181
    %1185 = vrot.lane.b32.xlu0 %v1183, 32
    %v1186 = vpop.permute.xlu0 %1185
    %v1188 = vadd.f32 %v1178, %v1186
    %v1189 = vtanh.pop %v1188
    %1191 = vrot.lane.b32.xlu0 %v1189, 32
    %v1192 = vpop.permute.xlu0 %1191
    %v1194 = vmul.f32 %v1176, %v1192
    %1196 = vrot.lane.b32.xlu0 %v1194, 64
    %v1197 = vpop.permute.xlu0 %1196
    %1199 = vst.msk [vmem:[#allocation2 + $0x40] sm:$0xff] %vm62, %v1197
    %v1200 = vld [vmem:[#allocation3 + $0x48] sm:$0xff]
    %v1201 = vsel %vm62, %v1197, 0
    %1203 = vmatprep.subr.mxu0 0.0
    %1204 = vmatpush1.msra.mxu0 %v35
    %1205 = vmatprep.subr.mxu0 0.0
    %1206 = vmatpush1.msra.mxu0 %v36
    %1207 = vmatprep.subr.mxu0 0.0
    %1208 = vmatpush1.msra.mxu0 %v37
    %1209 = vmatprep.subr.mxu0 0.0
    %1210 = vmatpush1.msra.mxu0 %v38
    %1211 = vmatprep.subr.mxu0 0.0
    %1212 = vmatpush1.msra.mxu0 0.0
    %1213 = vmatprep.subr.mxu0 0.0
    %1214 = vmatpush1.msra.mxu0 0.0
    %1215 = vmatprep.subr.mxu0 0.0
    %1216 = vmatpush1.msra.mxu0 0.0
    %1217 = vmatprep.subr.mxu0 0.0
    %1218 = vmatpush1.msra.mxu0 0.0
    %1219 = vmatprep.subr.mxu0 0.0
    %1220 = vmatpush1.msra.mxu0 0.0
    %1221 = vmatprep.subr.mxu0 0.0
    %1222 = vmatpush1.msra.mxu0 0.0
    %1223 = vmatprep.subr.mxu0 0.0
    %1224 = vmatpush1.msra.mxu0 0.0
    %1225 = vmatprep.subr.mxu0 0.0
    %1226 = vmatpush1.msra.mxu0 0.0
    %1227 = vmatprep.subr.mxu0 0.0
    %1228 = vmatpush1.msra.mxu0 0.0
    %1229 = vmatprep.subr.mxu0 0.0
    %1230 = vmatpush1.msra.mxu0 0.0
    %1231 = vmatprep.subr.mxu0 0.0
    %1232 = vmatpush1.msra.mxu0 0.0
    %1233 = vmatprep.subr.mxu0 0.0
    %1234 = vmatpush1.msra.mxu0 0.0
    %1235 = vmatprep.subr.mxu0 0.0
    %1236 = vmatpush1.msra.mxu0 0.0
    %1237 = vmatprep.subr.mxu0 0.0
    %1238 = vmatpush1.msra.mxu0 0.0
    %1239 = vmatprep.subr.mxu0 0.0
    %1240 = vmatpush1.msra.mxu0 0.0
    %1241 = vmatprep.subr.mxu0 0.0
    %1242 = vmatpush1.msra.mxu0 0.0
    %1243 = vmatprep.subr.mxu0 0.0
    %1244 = vmatpush1.msra.mxu0 0.0
    %1245 = vmatprep.subr.mxu0 0.0
    %1246 = vmatpush1.msra.mxu0 0.0
    %1247 = vmatprep.subr.mxu0 0.0
    %1248 = vmatpush1.msra.mxu0 0.0
    %1249 = vmatprep.subr.mxu0 0.0
    %1250 = vmatpush1.msra.mxu0 0.0
    %1251 = vmatprep.subr.mxu0 0.0
    %1252 = vmatpush1.msra.mxu0 0.0
    %1253 = vmatprep.subr.mxu0 0.0
    %1254 = vmatpush1.msra.mxu0 0.0
    %1255 = vmatprep.subr.mxu0 0.0
    %1256 = vmatpush1.msra.mxu0 0.0
    %1257 = vmatprep.subr.mxu0 0.0
    %1258 = vmatpush1.msra.mxu0 0.0
    %1259 = vmatprep.subr.mxu0 0.0
    %1260 = vmatpush1.msra.mxu0 0.0
    %1261 = vmatprep.subr.mxu0 0.0
    %1262 = vmatpush1.msra.mxu0 0.0
    %1263 = vmatprep.subr.mxu0 0.0
    %1264 = vmatpush1.msra.mxu0 0.0
    %1265 = vmatprep.subr.mxu0 0.0
    %1266 = vmatpush1.msra.mxu0 0.0
    %1267 = vmatprep.mubr.f32.mxu0 0.0
    %1268 = vmatmul.mubr.f32.gmra.mrb[0].mxu0 %v1201
    %v1269 = vpop.f32.mrb[0].mxu0
    %v1270 = vadd.f32 0.0, %v1269
    %v1271 = vpop.f32.mrb[0].mxu0
    %1272 = vdwg.mxu0
    %v1273 = vadd.f32 %v1200, %v1270
    %v1274 = vxor.u32 %v1273, 2147483648
    %v1275 = vmul.f32 %v1274, 1.442695
    %v1276 = vpow.pop %v1275
    %v1277 = vadd.f32 %v1276, 1.0
    %v1278 = vrcp.pop %v1277
    %v1279 = vmul.f32 1.0, %v1278
    %v1280 = vtanh.pop %v1273
    %v1281 = vmul.f32 %v1279, %v1188
    %1283 = vrot.lane.b32.xlu0 %v1280, 32
    %v1284 = vpop.permute.xlu0 %1283
    %v1286 = vmul.f32 %v1279, %v1284
    %1288 = vrot.lane.b32.xlu0 %v1286, 32
    %v1289 = vpop.permute.xlu0 %1288
    %v1291 = vadd.f32 %v1281, %v1289
    %v1292 = vtanh.pop %v1291
    %1294 = vrot.lane.b32.xlu0 %v1292, 32
    %v1295 = vpop.permute.xlu0 %1294
    %v1297 = vmul.f32 %v1279, %v1295
    %1299 = vrot.lane.b32.xlu0 %v1297, 64
    %v1300 = vpop.permute.xlu0 %1299
    %1302 = vst.msk [vmem:[#allocation2 + $0x48] sm:$0xff] %vm62, %v1300
    %v1303 = vld [vmem:[#allocation3 + $0x50] sm:$0xff]
    %v1304 = vsel %vm62, %v1300, 0
    %1306 = vmatprep.subr.mxu0 0.0
    %1307 = vmatpush1.msra.mxu0 %v35
    %1308 = vmatprep.subr.mxu0 0.0
    %1309 = vmatpush1.msra.mxu0 %v36
    %1310 = vmatprep.subr.mxu0 0.0
    %1311 = vmatpush1.msra.mxu0 %v37
    %1312 = vmatprep.subr.mxu0 0.0
    %1313 = vmatpush1.msra.mxu0 %v38
    %1314 = vmatprep.subr.mxu0 0.0
    %1315 = vmatpush1.msra.mxu0 0.0
    %1316 = vmatprep.subr.mxu0 0.0
    %1317 = vmatpush1.msra.mxu0 0.0
    %1318 = vmatprep.subr.mxu0 0.0
    %1319 = vmatpush1.msra.mxu0 0.0
    %1320 = vmatprep.subr.mxu0 0.0
    %1321 = vmatpush1.msra.mxu0 0.0
    %1322 = vmatprep.subr.mxu0 0.0
    %1323 = vmatpush1.msra.mxu0 0.0
    %1324 = vmatprep.subr.mxu0 0.0
    %1325 = vmatpush1.msra.mxu0 0.0
    %1326 = vmatprep.subr.mxu0 0.0
    %1327 = vmatpush1.msra.mxu0 0.0
    %1328 = vmatprep.subr.mxu0 0.0
    %1329 = vmatpush1.msra.mxu0 0.0
    %1330 = vmatprep.subr.mxu0 0.0
    %1331 = vmatpush1.msra.mxu0 0.0
    %1332 = vmatprep.subr.mxu0 0.0
    %1333 = vmatpush1.msra.mxu0 0.0
    %1334 = vmatprep.subr.mxu0 0.0
    %1335 = vmatpush1.msra.mxu0 0.0
    %1336 = vmatprep.subr.mxu0 0.0
    %1337 = vmatpush1.msra.mxu0 0.0
    %1338 = vmatprep.subr.mxu0 0.0
    %1339 = vmatpush1.msra.mxu0 0.0
    %1340 = vmatprep.subr.mxu0 0.0
    %1341 = vmatpush1.msra.mxu0 0.0
    %1342 = vmatprep.subr.mxu0 0.0
    %1343 = vmatpush1.msra.mxu0 0.0
    %1344 = vmatprep.subr.mxu0 0.0
    %1345 = vmatpush1.msra.mxu0 0.0
    %1346 = vmatprep.subr.mxu0 0.0
    %1347 = vmatpush1.msra.mxu0 0.0
    %1348 = vmatprep.subr.mxu0 0.0
    %1349 = vmatpush1.msra.mxu0 0.0
    %1350 = vmatprep.subr.mxu0 0.0
    %1351 = vmatpush1.msra.mxu0 0.0
    %1352 = vmatprep.subr.mxu0 0.0
    %1353 = vmatpush1.msra.mxu0 0.0
    %1354 = vmatprep.subr.mxu0 0.0
    %1355 = vmatpush1.msra.mxu0 0.0
    %1356 = vmatprep.subr.mxu0 0.0
    %1357 = vmatpush1.msra.mxu0 0.0
    %1358 = vmatprep.subr.mxu0 0.0
    %1359 = vmatpush1.msra.mxu0 0.0
    %1360 = vmatprep.subr.mxu0 0.0
    %1361 = vmatpush1.msra.mxu0 0.0
    %1362 = vmatprep.subr.mxu0 0.0
    %1363 = vmatpush1.msra.mxu0 0.0
    %1364 = vmatprep.subr.mxu0 0.0
    %1365 = vmatpush1.msra.mxu0 0.0
    %1366 = vmatprep.subr.mxu0 0.0
    %1367 = vmatpush1.msra.mxu0 0.0
    %1368 = vmatprep.subr.mxu0 0.0
    %1369 = vmatpush1.msra.mxu0 0.0
    %1370 = vmatprep.mubr.f32.mxu0 0.0
    %1371 = vmatmul.mubr.f32.gmra.mrb[0].mxu0 %v1304
    %v1372 = vpop.f32.mrb[0].mxu0
    %v1373 = vadd.f32 0.0, %v1372
    %v1374 = vpop.f32.mrb[0].mxu0
    %1375 = vdwg.mxu0
    %v1376 = vadd.f32 %v1303, %v1373
    %v1377 = vxor.u32 %v1376, 2147483648
    %v1378 = vmul.f32 %v1377, 1.442695
    %v1379 = vpow.pop %v1378
    %v1380 = vadd.f32 %v1379, 1.0
    %v1381 = vrcp.pop %v1380
    %v1382 = vmul.f32 1.0, %v1381
    %v1383 = vtanh.pop %v1376
    %v1384 = vmul.f32 %v1382, %v1291
    %1386 = vrot.lane.b32.xlu0 %v1383, 32
    %v1387 = vpop.permute.xlu0 %1386
    %v1389 = vmul.f32 %v1382, %v1387
    %1391 = vrot.lane.b32.xlu0 %v1389, 32
    %v1392 = vpop.permute.xlu0 %1391
    %v1394 = vadd.f32 %v1384, %v1392
    %v1395 = vtanh.pop %v1394
    %1397 = vrot.lane.b32.xlu0 %v1395, 32
    %v1398 = vpop.permute.xlu0 %1397
    %v1400 = vmul.f32 %v1382, %v1398
    %1402 = vrot.lane.b32.xlu0 %v1400, 64
    %v1403 = vpop.permute.xlu0 %1402
    %1405 = vst.msk [vmem:[#allocation2 + $0x50] sm:$0xff] %vm62, %v1403
    %v1406 = vld [vmem:[#allocation3 + $0x58] sm:$0xff]
    %v1407 = vsel %vm62, %v1403, 0
    %1409 = vmatprep.subr.mxu0 0.0
    %1410 = vmatpush1.msra.mxu0 %v35
    %1411 = vmatprep.subr.mxu0 0.0
    %1412 = vmatpush1.msra.mxu0 %v36
    %1413 = vmatprep.subr.mxu0 0.0
    %1414 = vmatpush1.msra.mxu0 %v37
    %1415 = vmatprep.subr.mxu0 0.0
    %1416 = vmatpush1.msra.mxu0 %v38
    %1417 = vmatprep.subr.mxu0 0.0
    %1418 = vmatpush1.msra.mxu0 0.0
    %1419 = vmatprep.subr.mxu0 0.0
    %1420 = vmatpush1.msra.mxu0 0.0
    %1421 = vmatprep.subr.mxu0 0.0
    %1422 = vmatpush1.msra.mxu0 0.0
    %1423 = vmatprep.subr.mxu0 0.0
    %1424 = vmatpush1.msra.mxu0 0.0
    %1425 = vmatprep.subr.mxu0 0.0
    %1426 = vmatpush1.msra.mxu0 0.0
    %1427 = vmatprep.subr.mxu0 0.0
    %1428 = vmatpush1.msra.mxu0 0.0
    %1429 = vmatprep.subr.mxu0 0.0
    %1430 = vmatpush1.msra.mxu0 0.0
    %1431 = vmatprep.subr.mxu0 0.0
    %1432 = vmatpush1.msra.mxu0 0.0
    %1433 = vmatprep.subr.mxu0 0.0
    %1434 = vmatpush1.msra.mxu0 0.0
    %1435 = vmatprep.subr.mxu0 0.0
    %1436 = vmatpush1.msra.mxu0 0.0
    %1437 = vmatprep.subr.mxu0 0.0
    %1438 = vmatpush1.msra.mxu0 0.0
    %1439 = vmatprep.subr.mxu0 0.0
    %1440 = vmatpush1.msra.mxu0 0.0
    %1441 = vmatprep.subr.mxu0 0.0
    %1442 = vmatpush1.msra.mxu0 0.0
    %1443 = vmatprep.subr.mxu0 0.0
    %1444 = vmatpush1.msra.mxu0 0.0
    %1445 = vmatprep.subr.mxu0 0.0
    %1446 = vmatpush1.msra.mxu0 0.0
    %1447 = vmatprep.subr.mxu0 0.0
    %1448 = vmatpush1.msra.mxu0 0.0
    %1449 = vmatprep.subr.mxu0 0.0
    %1450 = vmatpush1.msra.mxu0 0.0
    %1451 = vmatprep.subr.mxu0 0.0
    %1452 = vmatpush1.msra.mxu0 0.0
    %1453 = vmatprep.subr.mxu0 0.0
    %1454 = vmatpush1.msra.mxu0 0.0
    %1455 = vmatprep.subr.mxu0 0.0
    %1456 = vmatpush1.msra.mxu0 0.0
    %1457 = vmatprep.subr.mxu0 0.0
    %1458 = vmatpush1.msra.mxu0 0.0
    %1459 = vmatprep.subr.mxu0 0.0
    %1460 = vmatpush1.msra.mxu0 0.0
    %1461 = vmatprep.subr.mxu0 0.0
    %1462 = vmatpush1.msra.mxu0 0.0
    %1463 = vmatprep.subr.mxu0 0.0
    %1464 = vmatpush1.msra.mxu0 0.0
    %1465 = vmatprep.subr.mxu0 0.0
    %1466 = vmatpush1.msra.mxu0 0.0
    %1467 = vmatprep.subr.mxu0 0.0
    %1468 = vmatpush1.msra.mxu0 0.0
    %1469 = vmatprep.subr.mxu0 0.0
    %1470 = vmatpush1.msra.mxu0 0.0
    %1471 = vmatprep.subr.mxu0 0.0
    %1472 = vmatpush1.msra.mxu0 0.0
    %1473 = vmatprep.mubr.f32.mxu0 0.0
    %1474 = vmatmul.mubr.f32.gmra.mrb[0].mxu0 %v1407
    %v1475 = vpop.f32.mrb[0].mxu0
    %v1476 = vadd.f32 0.0, %v1475
    %v1477 = vpop.f32.mrb[0].mxu0
    %1478 = vdwg.mxu0
    %v1479 = vadd.f32 %v1406, %v1476
    %v1480 = vxor.u32 %v1479, 2147483648
    %v1481 = vmul.f32 %v1480, 1.442695
    %v1482 = vpow.pop %v1481
    %v1483 = vadd.f32 %v1482, 1.0
    %v1484 = vrcp.pop %v1483
    %v1485 = vmul.f32 1.0, %v1484
    %v1486 = vtanh.pop %v1479
    %v1487 = vmul.f32 %v1485, %v1394
    %1489 = vrot.lane.b32.xlu0 %v1486, 32
    %v1490 = vpop.permute.xlu0 %1489
    %v1492 = vmul.f32 %v1485, %v1490
    %1494 = vrot.lane.b32.xlu0 %v1492, 32
    %v1495 = vpop.permute.xlu0 %1494
    %v1497 = vadd.f32 %v1487, %v1495
    %v1498 = vtanh.pop %v1497
    %1500 = vrot.lane.b32.xlu0 %v1498, 32
    %v1501 = vpop.permute.xlu0 %1500
    %v1503 = vmul.f32 %v1485, %v1501
    %1505 = vrot.lane.b32.xlu0 %v1503, 64
    %v1506 = vpop.permute.xlu0 %1505
    %1508 = vst.msk [vmem:[#allocation2 + $0x58] sm:$0xff] %vm62, %v1506
    %v1509 = vld [vmem:[#allocation3 + $0x60] sm:$0xff]
    %v1510 = vsel %vm62, %v1506, 0
    %1512 = vmatprep.subr.mxu0 0.0
    %1513 = vmatpush1.msra.mxu0 %v35
    %1514 = vmatprep.subr.mxu0 0.0
    %1515 = vmatpush1.msra.mxu0 %v36
    %1516 = vmatprep.subr.mxu0 0.0
    %1517 = vmatpush1.msra.mxu0 %v37
    %1518 = vmatprep.subr.mxu0 0.0
    %1519 = vmatpush1.msra.mxu0 %v38
    %1520 = vmatprep.subr.mxu0 0.0
    %1521 = vmatpush1.msra.mxu0 0.0
    %1522 = vmatprep.subr.mxu0 0.0
    %1523 = vmatpush1.msra.mxu0 0.0
    %1524 = vmatprep.subr.mxu0 0.0
    %1525 = vmatpush1.msra.mxu0 0.0
    %1526 = vmatprep.subr.mxu0 0.0
    %1527 = vmatpush1.msra.mxu0 0.0
    %1528 = vmatprep.subr.mxu0 0.0
    %1529 = vmatpush1.msra.mxu0 0.0
    %1530 = vmatprep.subr.mxu0 0.0
    %1531 = vmatpush1.msra.mxu0 0.0
    %1532 = vmatprep.subr.mxu0 0.0
    %1533 = vmatpush1.msra.mxu0 0.0
    %1534 = vmatprep.subr.mxu0 0.0
    %1535 = vmatpush1.msra.mxu0 0.0
    %1536 = vmatprep.subr.mxu0 0.0
    %1537 = vmatpush1.msra.mxu0 0.0
    %1538 = vmatprep.subr.mxu0 0.0
    %1539 = vmatpush1.msra.mxu0 0.0
    %1540 = vmatprep.subr.mxu0 0.0
    %1541 = vmatpush1.msra.mxu0 0.0
    %1542 = vmatprep.subr.mxu0 0.0
    %1543 = vmatpush1.msra.mxu0 0.0
    %1544 = vmatprep.subr.mxu0 0.0
    %1545 = vmatpush1.msra.mxu0 0.0
    %1546 = vmatprep.subr.mxu0 0.0
    %1547 = vmatpush1.msra.mxu0 0.0
    %1548 = vmatprep.subr.mxu0 0.0
    %1549 = vmatpush1.msra.mxu0 0.0
    %1550 = vmatprep.subr.mxu0 0.0
    %1551 = vmatpush1.msra.mxu0 0.0
    %1552 = vmatprep.subr.mxu0 0.0
    %1553 = vmatpush1.msra.mxu0 0.0
    %1554 = vmatprep.subr.mxu0 0.0
    %1555 = vmatpush1.msra.mxu0 0.0
    %1556 = vmatprep.subr.mxu0 0.0
    %1557 = vmatpush1.msra.mxu0 0.0
    %1558 = vmatprep.subr.mxu0 0.0
    %1559 = vmatpush1.msra.mxu0 0.0
    %1560 = vmatprep.subr.mxu0 0.0
    %1561 = vmatpush1.msra.mxu0 0.0
    %1562 = vmatprep.subr.mxu0 0.0
    %1563 = vmatpush1.msra.mxu0 0.0
    %1564 = vmatprep.subr.mxu0 0.0
    %1565 = vmatpush1.msra.mxu0 0.0
    %1566 = vmatprep.subr.mxu0 0.0
    %1567 = vmatpush1.msra.mxu0 0.0
    %1568 = vmatprep.subr.mxu0 0.0
    %1569 = vmatpush1.msra.mxu0 0.0
    %1570 = vmatprep.subr.mxu0 0.0
    %1571 = vmatpush1.msra.mxu0 0.0
    %1572 = vmatprep.subr.mxu0 0.0
    %1573 = vmatpush1.msra.mxu0 0.0
    %1574 = vmatprep.subr.mxu0 0.0
    %1575 = vmatpush1.msra.mxu0 0.0
    %1576 = vmatprep.mubr.f32.mxu0 0.0
    %1577 = vmatmul.mubr.f32.gmra.mrb[0].mxu0 %v1510
    %v1578 = vpop.f32.mrb[0].mxu0
    %v1579 = vadd.f32 0.0, %v1578
    %v1580 = vpop.f32.mrb[0].mxu0
    %1581 = vdwg.mxu0
    %v1582 = vadd.f32 %v1509, %v1579
    %v1583 = vxor.u32 %v1582, 2147483648
    %v1584 = vmul.f32 %v1583, 1.442695
    %v1585 = vpow.pop %v1584
    %v1586 = vadd.f32 %v1585, 1.0
    %v1587 = vrcp.pop %v1586
    %v1588 = vmul.f32 1.0, %v1587
    %v1589 = vtanh.pop %v1582
    %v1590 = vmul.f32 %v1588, %v1497
    %1592 = vrot.lane.b32.xlu0 %v1589, 32
    %v1593 = vpop.permute.xlu0 %1592
    %v1595 = vmul.f32 %v1588, %v1593
    %1597 = vrot.lane.b32.xlu0 %v1595, 32
    %v1598 = vpop.permute.xlu0 %1597
    %v1600 = vadd.f32 %v1590, %v1598
    %v1601 = vtanh.pop %v1600
    %1603 = vrot.lane.b32.xlu0 %v1601, 32
    %v1604 = vpop.permute.xlu0 %1603
    %v1606 = vmul.f32 %v1588, %v1604
    %1608 = vrot.lane.b32.xlu0 %v1606, 64
    %v1609 = vpop.permute.xlu0 %1608
    %1611 = vst.msk [vmem:[#allocation2 + $0x60] sm:$0xff] %vm62, %v1609
    %v1612 = vld [vmem:[#allocation3 + $0x68] sm:$0xff]
    %v1613 = vsel %vm62, %v1609, 0
    %1615 = vmatprep.subr.mxu0 0.0
    %1616 = vmatpush1.msra.mxu0 %v35
    %1617 = vmatprep.subr.mxu0 0.0
    %1618 = vmatpush1.msra.mxu0 %v36
    %1619 = vmatprep.subr.mxu0 0.0
    %1620 = vmatpush1.msra.mxu0 %v37
    %1621 = vmatprep.subr.mxu0 0.0
    %1622 = vmatpush1.msra.mxu0 %v38
    %1623 = vmatprep.subr.mxu0 0.0
    %1624 = vmatpush1.msra.mxu0 0.0
    %1625 = vmatprep.subr.mxu0 0.0
    %1626 = vmatpush1.msra.mxu0 0.0
    %1627 = vmatprep.subr.mxu0 0.0
    %1628 = vmatpush1.msra.mxu0 0.0
    %1629 = vmatprep.subr.mxu0 0.0
    %1630 = vmatpush1.msra.mxu0 0.0
    %1631 = vmatprep.subr.mxu0 0.0
    %1632 = vmatpush1.msra.mxu0 0.0
    %1633 = vmatprep.subr.mxu0 0.0
    %1634 = vmatpush1.msra.mxu0 0.0
    %1635 = vmatprep.subr.mxu0 0.0
    %1636 = vmatpush1.msra.mxu0 0.0
    %1637 = vmatprep.subr.mxu0 0.0
    %1638 = vmatpush1.msra.mxu0 0.0
    %1639 = vmatprep.subr.mxu0 0.0
    %1640 = vmatpush1.msra.mxu0 0.0
    %1641 = vmatprep.subr.mxu0 0.0
    %1642 = vmatpush1.msra.mxu0 0.0
    %1643 = vmatprep.subr.mxu0 0.0
    %1644 = vmatpush1.msra.mxu0 0.0
    %1645 = vmatprep.subr.mxu0 0.0
    %1646 = vmatpush1.msra.mxu0 0.0
    %1647 = vmatprep.subr.mxu0 0.0
    %1648 = vmatpush1.msra.mxu0 0.0
    %1649 = vmatprep.subr.mxu0 0.0
    %1650 = vmatpush1.msra.mxu0 0.0
    %1651 = vmatprep.subr.mxu0 0.0
    %1652 = vmatpush1.msra.mxu0 0.0
    %1653 = vmatprep.subr.mxu0 0.0
    %1654 = vmatpush1.msra.mxu0 0.0
    %1655 = vmatprep.subr.mxu0 0.0
    %1656 = vmatpush1.msra.mxu0 0.0
    %1657 = vmatprep.subr.mxu0 0.0
    %1658 = vmatpush1.msra.mxu0 0.0
    %1659 = vmatprep.subr.mxu0 0.0
    %1660 = vmatpush1.msra.mxu0 0.0
    %1661 = vmatprep.subr.mxu0 0.0
    %1662 = vmatpush1.msra.mxu0 0.0
    %1663 = vmatprep.subr.mxu0 0.0
    %1664 = vmatpush1.msra.mxu0 0.0
    %1665 = vmatprep.subr.mxu0 0.0
    %1666 = vmatpush1.msra.mxu0 0.0
    %1667 = vmatprep.subr.mxu0 0.0
    %1668 = vmatpush1.msra.mxu0 0.0
    %1669 = vmatprep.subr.mxu0 0.0
    %1670 = vmatpush1.msra.mxu0 0.0
    %1671 = vmatprep.subr.mxu0 0.0
    %1672 = vmatpush1.msra.mxu0 0.0
    %1673 = vmatprep.subr.mxu0 0.0
    %1674 = vmatpush1.msra.mxu0 0.0
    %1675 = vmatprep.subr.mxu0 0.0
    %1676 = vmatpush1.msra.mxu0 0.0
    %1677 = vmatprep.subr.mxu0 0.0
    %1678 = vmatpush1.msra.mxu0 0.0
    %1679 = vmatprep.mubr.f32.mxu0 0.0
    %1680 = vmatmul.mubr.f32.gmra.mrb[0].mxu0 %v1613
    %v1681 = vpop.f32.mrb[0].mxu0
    %v1682 = vadd.f32 0.0, %v1681
    %v1683 = vpop.f32.mrb[0].mxu0
    %1684 = vdwg.mxu0
    %v1685 = vadd.f32 %v1612, %v1682
    %v1686 = vxor.u32 %v1685, 2147483648
    %v1687 = vmul.f32 %v1686, 1.442695
    %v1688 = vpow.pop %v1687
    %v1689 = vadd.f32 %v1688, 1.0
    %v1690 = vrcp.pop %v1689
    %v1691 = vmul.f32 1.0, %v1690
    %v1692 = vtanh.pop %v1685
    %v1693 = vmul.f32 %v1691, %v1600
    %1695 = vrot.lane.b32.xlu0 %v1692, 32
    %v1696 = vpop.permute.xlu0 %1695
    %v1698 = vmul.f32 %v1691, %v1696
    %1700 = vrot.lane.b32.xlu0 %v1698, 32
    %v1701 = vpop.permute.xlu0 %1700
    %v1703 = vadd.f32 %v1693, %v1701
    %v1704 = vtanh.pop %v1703
    %1706 = vrot.lane.b32.xlu0 %v1704, 32
    %v1707 = vpop.permute.xlu0 %1706
    %v1709 = vmul.f32 %v1691, %v1707
    %1711 = vrot.lane.b32.xlu0 %v1709, 64
    %v1712 = vpop.permute.xlu0 %1711
    %1714 = vst.msk [vmem:[#allocation2 + $0x68] sm:$0xff] %vm62, %v1712
    %v1715 = vld [vmem:[#allocation3 + $0x70] sm:$0xff]
    %v1716 = vsel %vm62, %v1712, 0
    %1718 = vmatprep.subr.mxu0 0.0
    %1719 = vmatpush1.msra.mxu0 %v35
    %1720 = vmatprep.subr.mxu0 0.0
    %1721 = vmatpush1.msra.mxu0 %v36
    %1722 = vmatprep.subr.mxu0 0.0
    %1723 = vmatpush1.msra.mxu0 %v37
    %1724 = vmatprep.subr.mxu0 0.0
    %1725 = vmatpush1.msra.mxu0 %v38
    %1726 = vmatprep.subr.mxu0 0.0
    %1727 = vmatpush1.msra.mxu0 0.0
    %1728 = vmatprep.subr.mxu0 0.0
    %1729 = vmatpush1.msra.mxu0 0.0
    %1730 = vmatprep.subr.mxu0 0.0
    %1731 = vmatpush1.msra.mxu0 0.0
    %1732 = vmatprep.subr.mxu0 0.0
    %1733 = vmatpush1.msra.mxu0 0.0
    %1734 = vmatprep.subr.mxu0 0.0
    %1735 = vmatpush1.msra.mxu0 0.0
    %1736 = vmatprep.subr.mxu0 0.0
    %1737 = vmatpush1.msra.mxu0 0.0
    %1738 = vmatprep.subr.mxu0 0.0
    %1739 = vmatpush1.msra.mxu0 0.0
    %1740 = vmatprep.subr.mxu0 0.0
    %1741 = vmatpush1.msra.mxu0 0.0
    %1742 = vmatprep.subr.mxu0 0.0
    %1743 = vmatpush1.msra.mxu0 0.0
    %1744 = vmatprep.subr.mxu0 0.0
    %1745 = vmatpush1.msra.mxu0 0.0
    %1746 = vmatprep.subr.mxu0 0.0
    %1747 = vmatpush1.msra.mxu0 0.0
    %1748 = vmatprep.subr.mxu0 0.0
    %1749 = vmatpush1.msra.mxu0 0.0
    %1750 = vmatprep.subr.mxu0 0.0
    %1751 = vmatpush1.msra.mxu0 0.0
    %1752 = vmatprep.subr.mxu0 0.0
    %1753 = vmatpush1.msra.mxu0 0.0
    %1754 = vmatprep.subr.mxu0 0.0
    %1755 = vmatpush1.msra.mxu0 0.0
    %1756 = vmatprep.subr.mxu0 0.0
    %1757 = vmatpush1.msra.mxu0 0.0
    %1758 = vmatprep.subr.mxu0 0.0
    %1759 = vmatpush1.msra.mxu0 0.0
    %1760 = vmatprep.subr.mxu0 0.0
    %1761 = vmatpush1.msra.mxu0 0.0
    %1762 = vmatprep.subr.mxu0 0.0
    %1763 = vmatpush1.msra.mxu0 0.0
    %1764 = vmatprep.subr.mxu0 0.0
    %1765 = vmatpush1.msra.mxu0 0.0
    %1766 = vmatprep.subr.mxu0 0.0
    %1767 = vmatpush1.msra.mxu0 0.0
    %1768 = vmatprep.subr.mxu0 0.0
    %1769 = vmatpush1.msra.mxu0 0.0
    %1770 = vmatprep.subr.mxu0 0.0
    %1771 = vmatpush1.msra.mxu0 0.0
    %1772 = vmatprep.subr.mxu0 0.0
    %1773 = vmatpush1.msra.mxu0 0.0
    %1774 = vmatprep.subr.mxu0 0.0
    %1775 = vmatpush1.msra.mxu0 0.0
    %1776 = vmatprep.subr.mxu0 0.0
    %1777 = vmatpush1.msra.mxu0 0.0
    %1778 = vmatprep.subr.mxu0 0.0
    %1779 = vmatpush1.msra.mxu0 0.0
    %1780 = vmatprep.subr.mxu0 0.0
    %1781 = vmatpush1.msra.mxu0 0.0
    %1782 = vmatprep.mubr.f32.mxu0 0.0
    %1783 = vmatmul.mubr.f32.gmra.mrb[0].mxu0 %v1716
    %v1784 = vpop.f32.mrb[0].mxu0
    %v1785 = vadd.f32 0.0, %v1784
    %v1786 = vpop.f32.mrb[0].mxu0
    %1787 = vdwg.mxu0
    %v1788 = vadd.f32 %v1715, %v1785
    %v1789 = vxor.u32 %v1788, 2147483648
    %v1790 = vmul.f32 %v1789, 1.442695
    %v1791 = vpow.pop %v1790
    %v1792 = vadd.f32 %v1791, 1.0
    %v1793 = vrcp.pop %v1792
    %v1794 = vmul.f32 1.0, %v1793
    %v1795 = vtanh.pop %v1788
    %v1796 = vmul.f32 %v1794, %v1703
    %1798 = vrot.lane.b32.xlu0 %v1795, 32
    %v1799 = vpop.permute.xlu0 %1798
    %v1801 = vmul.f32 %v1794, %v1799
    %1803 = vrot.lane.b32.xlu0 %v1801, 32
    %v1804 = vpop.permute.xlu0 %1803
    %v1806 = vadd.f32 %v1796, %v1804
    %v1807 = vtanh.pop %v1806
    %1809 = vrot.lane.b32.xlu0 %v1807, 32
    %v1810 = vpop.permute.xlu0 %1809
    %v1812 = vmul.f32 %v1794, %v1810
    %1814 = vrot.lane.b32.xlu0 %v1812, 64
    %v1815 = vpop.permute.xlu0 %1814
    %1817 = vst.msk [vmem:[#allocation2 + $0x70] sm:$0xff] %vm62, %v1815
    %v1818 = vld [vmem:[#allocation3 + $0x78] sm:$0xff]
    %v1819 = vsel %vm62, %v1815, 0
    %1821 = vmatprep.subr.mxu0 0.0
    %1822 = vmatpush1.msra.mxu0 %v35
    %1823 = vmatprep.subr.mxu0 0.0
    %1824 = vmatpush1.msra.mxu0 %v36
    %1825 = vmatprep.subr.mxu0 0.0
    %1826 = vmatpush1.msra.mxu0 %v37
    %1827 = vmatprep.subr.mxu0 0.0
    %1828 = vmatpush1.msra.mxu0 %v38
    %1829 = vmatprep.subr.mxu0 0.0
    %1830 = vmatpush1.msra.mxu0 0.0
    %1831 = vmatprep.subr.mxu0 0.0
    %1832 = vmatpush1.msra.mxu0 0.0
    %1833 = vmatprep.subr.mxu0 0.0
    %1834 = vmatpush1.msra.mxu0 0.0
    %1835 = vmatprep.subr.mxu0 0.0
    %1836 = vmatpush1.msra.mxu0 0.0
    %1837 = vmatprep.subr.mxu0 0.0
    %1838 = vmatpush1.msra.mxu0 0.0
    %1839 = vmatprep.subr.mxu0 0.0
    %1840 = vmatpush1.msra.mxu0 0.0
    %1841 = vmatprep.subr.mxu0 0.0
    %1842 = vmatpush1.msra.mxu0 0.0
    %1843 = vmatprep.subr.mxu0 0.0
    %1844 = vmatpush1.msra.mxu0 0.0
    %1845 = vmatprep.subr.mxu0 0.0
    %1846 = vmatpush1.msra.mxu0 0.0
    %1847 = vmatprep.subr.mxu0 0.0
    %1848 = vmatpush1.msra.mxu0 0.0
    %1849 = vmatprep.subr.mxu0 0.0
    %1850 = vmatpush1.msra.mxu0 0.0
    %1851 = vmatprep.subr.mxu0 0.0
    %1852 = vmatpush1.msra.mxu0 0.0
    %1853 = vmatprep.subr.mxu0 0.0
    %1854 = vmatpush1.msra.mxu0 0.0
    %1855 = vmatprep.subr.mxu0 0.0
    %1856 = vmatpush1.msra.mxu0 0.0
    %1857 = vmatprep.subr.mxu0 0.0
    %1858 = vmatpush1.msra.mxu0 0.0
    %1859 = vmatprep.subr.mxu0 0.0
    %1860 = vmatpush1.msra.mxu0 0.0
    %1861 = vmatprep.subr.mxu0 0.0
    %1862 = vmatpush1.msra.mxu0 0.0
    %1863 = vmatprep.subr.mxu0 0.0
    %1864 = vmatpush1.msra.mxu0 0.0
    %1865 = vmatprep.subr.mxu0 0.0
    %1866 = vmatpush1.msra.mxu0 0.0
    %1867 = vmatprep.subr.mxu0 0.0
    %1868 = vmatpush1.msra.mxu0 0.0
    %1869 = vmatprep.subr.mxu0 0.0
    %1870 = vmatpush1.msra.mxu0 0.0
    %1871 = vmatprep.subr.mxu0 0.0
    %1872 = vmatpush1.msra.mxu0 0.0
    %1873 = vmatprep.subr.mxu0 0.0
    %1874 = vmatpush1.msra.mxu0 0.0
    %1875 = vmatprep.subr.mxu0 0.0
    %1876 = vmatpush1.msra.mxu0 0.0
    %1877 = vmatprep.subr.mxu0 0.0
    %1878 = vmatpush1.msra.mxu0 0.0
    %1879 = vmatprep.subr.mxu0 0.0
    %1880 = vmatpush1.msra.mxu0 0.0
    %1881 = vmatprep.subr.mxu0 0.0
    %1882 = vmatpush1.msra.mxu0 0.0
    %1883 = vmatprep.subr.mxu0 0.0
    %1884 = vmatpush1.msra.mxu0 0.0
    %1885 = vmatprep.mubr.f32.mxu0 0.0
    %1886 = vmatmul.mubr.f32.gmra.mrb[0].mxu0 %v1819
    %v1887 = vpop.f32.mrb[0].mxu0
    %v1888 = vadd.f32 0.0, %v1887
    %v1889 = vpop.f32.mrb[0].mxu0
    %1890 = vdwg.mxu0
    %v1891 = vadd.f32 %v1818, %v1888
    %v1892 = vxor.u32 %v1891, 2147483648
    %v1893 = vmul.f32 %v1892, 1.442695
    %v1894 = vpow.pop %v1893
    %v1895 = vadd.f32 %v1894, 1.0
    %v1896 = vrcp.pop %v1895
    %v1897 = vmul.f32 1.0, %v1896
    %v1898 = vtanh.pop %v1891
    %v1899 = vmul.f32 %v1897, %v1806
    %1901 = vrot.lane.b32.xlu0 %v1898, 32
    %v1902 = vpop.permute.xlu0 %1901
    %v1904 = vmul.f32 %v1897, %v1902
    %1906 = vrot.lane.b32.xlu0 %v1904, 32
    %v1907 = vpop.permute.xlu0 %1906
    %v1909 = vadd.f32 %v1899, %v1907
    %v1910 = vtanh.pop %v1909
    %1912 = vrot.lane.b32.xlu0 %v1910, 32
    %v1913 = vpop.permute.xlu0 %1912
    %v1915 = vmul.f32 %v1897, %v1913
    %1917 = vrot.lane.b32.xlu0 %v1915, 64
    %v1918 = vpop.permute.xlu0 %1917
    %1920 = vst.msk [vmem:[#allocation2 + $0x78] sm:$0xff] %vm62, %v1918
    %s1921 = scalar_lea.vmem %s1, 32
    %v1922 = vld [vmem:[%s1921] sm:$0xff]
    %v1923 = vld [vmem:[%s1921 + $0x8] sm:$0xff]
    %v1924 = vld [vmem:[%s1921 + $0x10] sm:$0xff]
    %v1925 = vld [vmem:[%s1921 + $0x18] sm:$0xff]
    %s1926 = scalar_lea.vmem [#allocation4], 32
    %v1927 = vld [vmem:[%s1926] sm:$0xff]
    %v1928 = vld [vmem:[%s1926 + $0x8] sm:$0xff]
    %v1929 = vld [vmem:[%s1926 + $0x10] sm:$0xff]
    %v1930 = vld [vmem:[%s1926 + $0x18] sm:$0xff]
    %s1931 = scalar_lea.vmem %s3, 1
    %v1932 = vld [vmem:[%s1931] sm:$0x1]
    %v1933 = vld [vmem:[#allocation2] sm:$0xff]
    %v1934 = vld [vmem:[#allocation2 + $0x8] sm:$0xff]
    %v1935 = vld [vmem:[#allocation2 + $0x10] sm:$0xff]
    %v1936 = vld [vmem:[#allocation2 + $0x18] sm:$0xff]
    %v1937 = vld [vmem:[#allocation2 + $0x20] sm:$0xff]
    %v1938 = vld [vmem:[#allocation2 + $0x28] sm:$0xff]
    %v1939 = vld [vmem:[#allocation2 + $0x30] sm:$0xff]
    %v1940 = vld [vmem:[#allocation2 + $0x38] sm:$0xff]
    %v1941 = vld [vmem:[#allocation2 + $0x40] sm:$0xff]
    %v1942 = vld [vmem:[#allocation2 + $0x48] sm:$0xff]
    %v1943 = vld [vmem:[#allocation2 + $0x50] sm:$0xff]
    %v1944 = vld [vmem:[#allocation2 + $0x58] sm:$0xff]
    %v1945 = vld [vmem:[#allocation2 + $0x60] sm:$0xff]
    %v1946 = vld [vmem:[#allocation2 + $0x68] sm:$0xff]
    %v1947 = vld [vmem:[#allocation2 + $0x70] sm:$0xff]
    %v1948 = vld [vmem:[#allocation2 + $0x78] sm:$0xff]
    %v1950 = vlaneseq
    %v1951 = vshrl.u32 %v1950, 7
    %v1952 = vsub.s32 0, %v1951
    %v1953 = vrot.slane %v1932, %v1952
    %v1956 = vsel %vm62, %v1933, 0
    %v1959 = vsel %vm62, %v1934, 0
    %v1962 = vsel %vm62, %v1935, 0
    %v1965 = vsel %vm62, %v1936, 0
    %v1968 = vsel %vm62, %v1937, 0
    %v1971 = vsel %vm62, %v1938, 0
    %v1974 = vsel %vm62, %v1939, 0
    %v1977 = vsel %vm62, %v1940, 0
    %v1980 = vsel %vm62, %v1941, 0
    %v1983 = vsel %vm62, %v1942, 0
    %v1986 = vsel %vm62, %v1943, 0
    %v1989 = vsel %vm62, %v1944, 0
    %v1992 = vsel %vm62, %v1945, 0
    %v1995 = vsel %vm62, %v1946, 0
    %v1998 = vsel %vm62, %v1947, 0
    %v2001 = vsel %vm62, %v1948, 0
    %2003 = vmatprep.subr.mxu0 0.0
    %2004 = vmatpush1.msra.mxu0 %v1922
    %2005 = vmatprep.subr.mxu0 0.0
    %2006 = vmatpush1.msra.mxu0 %v1923
    %2007 = vmatprep.subr.mxu0 0.0
    %2008 = vmatpush1.msra.mxu0 %v1924
    %2009 = vmatprep.subr.mxu0 0.0
    %2010 = vmatpush1.msra.mxu0 %v1925
    %2011 = vmatprep.subr.mxu0 0.0
    %2012 = vmatpush1.msra.mxu0 0.0
    %2013 = vmatprep.subr.mxu0 0.0
    %2014 = vmatpush1.msra.mxu0 0.0
    %2015 = vmatprep.subr.mxu0 0.0
    %2016 = vmatpush1.msra.mxu0 0.0
    %2017 = vmatprep.subr.mxu0 0.0
    %2018 = vmatpush1.msra.mxu0 0.0
    %2019 = vmatprep.subr.mxu0 0.0
    %2020 = vmatpush1.msra.mxu0 0.0
    %2021 = vmatprep.subr.mxu0 0.0
    %2022 = vmatpush1.msra.mxu0 0.0
    %2023 = vmatprep.subr.mxu0 0.0
    %2024 = vmatpush1.msra.mxu0 0.0
    %2025 = vmatprep.subr.mxu0 0.0
    %2026 = vmatpush1.msra.mxu0 0.0
    %2027 = vmatprep.subr.mxu0 0.0
    %2028 = vmatpush1.msra.mxu0 0.0
    %2029 = vmatprep.subr.mxu0 0.0
    %2030 = vmatpush1.msra.mxu0 0.0
    %2031 = vmatprep.subr.mxu0 0.0
    %2032 = vmatpush1.msra.mxu0 0.0
    %2033 = vmatprep.subr.mxu0 0.0
    %2034 = vmatpush1.msra.mxu0 0.0
    %2035 = vmatprep.subr.mxu0 0.0
    %2036 = vmatpush1.msra.mxu0 0.0
    %2037 = vmatprep.subr.mxu0 0.0
    %2038 = vmatpush1.msra.mxu0 0.0
    %2039 = vmatprep.subr.mxu0 0.0
    %2040 = vmatpush1.msra.mxu0 0.0
    %2041 = vmatprep.subr.mxu0 0.0
    %2042 = vmatpush1.msra.mxu0 0.0
    %2043 = vmatprep.subr.mxu0 0.0
    %2044 = vmatpush1.msra.mxu0 0.0
    %2045 = vmatprep.subr.mxu0 0.0
    %2046 = vmatpush1.msra.mxu0 0.0
    %2047 = vmatprep.subr.mxu0 0.0
    %2048 = vmatpush1.msra.mxu0 0.0
    %2049 = vmatprep.subr.mxu0 0.0
    %2050 = vmatpush1.msra.mxu0 0.0
    %2051 = vmatprep.subr.mxu0 0.0
    %2052 = vmatpush1.msra.mxu0 0.0
    %2053 = vmatprep.subr.mxu0 0.0
    %2054 = vmatpush1.msra.mxu0 0.0
    %2055 = vmatprep.subr.mxu0 0.0
    %2056 = vmatpush1.msra.mxu0 0.0
    %2057 = vmatprep.subr.mxu0 0.0
    %2058 = vmatpush1.msra.mxu0 0.0
    %2059 = vmatprep.subr.mxu0 0.0
    %2060 = vmatpush1.msra.mxu0 0.0
    %2061 = vmatprep.subr.mxu0 0.0
    %2062 = vmatpush1.msra.mxu0 0.0
    %2063 = vmatprep.subr.mxu0 0.0
    %2064 = vmatpush1.msra.mxu0 0.0
    %2065 = vmatprep.subr.mxu0 0.0
    %2066 = vmatpush1.msra.mxu0 0.0
    %2067 = vmatprep.mubr.f32.mxu0 0.0
    %2068 = vmatmul.mubr.f32.gmra.mrb[0].mxu0 %v1956
    %v2069 = vpop.f32.mrb[0].mxu0
    %v2070 = vadd.f32 %v1953, %v2069
    %v2071 = vpop.f32.mrb[0].mxu0
    %2072 = vmatprep.mubr.f32.mxu0 0.0
    %2073 = vmatmul.mubr.f32.gmra.mrb[0].mxu0 %v1959
    %v2074 = vpop.f32.mrb[0].mxu0
    %v2075 = vadd.f32 %v1953, %v2074
    %v2076 = vpop.f32.mrb[0].mxu0
    %2077 = vmatprep.mubr.f32.mxu0 0.0
    %2078 = vmatmul.mubr.f32.gmra.mrb[0].mxu0 %v1962
    %v2079 = vpop.f32.mrb[0].mxu0
    %v2080 = vadd.f32 %v1953, %v2079
    %v2081 = vpop.f32.mrb[0].mxu0
    %2082 = vmatprep.mubr.f32.mxu0 0.0
    %2083 = vmatmul.mubr.f32.gmra.mrb[0].mxu0 %v1965
    %v2084 = vpop.f32.mrb[0].mxu0
    %v2085 = vadd.f32 %v1953, %v2084
    %v2086 = vpop.f32.mrb[0].mxu0
    %2087 = vmatprep.mubr.f32.mxu0 0.0
    %2088 = vmatmul.mubr.f32.gmra.mrb[0].mxu0 %v1968
    %v2089 = vpop.f32.mrb[0].mxu0
    %v2090 = vadd.f32 %v1953, %v2089
    %v2091 = vpop.f32.mrb[0].mxu0
    %2092 = vmatprep.mubr.f32.mxu0 0.0
    %2093 = vmatmul.mubr.f32.gmra.mrb[0].mxu0 %v1971
    %v2094 = vpop.f32.mrb[0].mxu0
    %v2095 = vadd.f32 %v1953, %v2094
    %v2096 = vpop.f32.mrb[0].mxu0
    %2097 = vmatprep.mubr.f32.mxu0 0.0
    %2098 = vmatmul.mubr.f32.gmra.mrb[0].mxu0 %v1974
    %v2099 = vpop.f32.mrb[0].mxu0
    %v2100 = vadd.f32 %v1953, %v2099
    %v2101 = vpop.f32.mrb[0].mxu0
    %2102 = vmatprep.mubr.f32.mxu0 0.0
    %2103 = vmatmul.mubr.f32.gmra.mrb[0].mxu0 %v1977
    %v2104 = vpop.f32.mrb[0].mxu0
    %v2105 = vadd.f32 %v1953, %v2104
    %v2106 = vpop.f32.mrb[0].mxu0
    %2107 = vmatprep.mubr.f32.mxu0 0.0
    %2108 = vmatmul.mubr.f32.gmra.mrb[0].mxu0 %v1980
    %v2109 = vpop.f32.mrb[0].mxu0
    %v2110 = vadd.f32 %v1953, %v2109
    %v2111 = vpop.f32.mrb[0].mxu0
    %2112 = vmatprep.mubr.f32.mxu0 0.0
    %2113 = vmatmul.mubr.f32.gmra.mrb[0].mxu0 %v1983
    %v2114 = vpop.f32.mrb[0].mxu0
    %v2115 = vadd.f32 %v1953, %v2114
    %v2116 = vpop.f32.mrb[0].mxu0
    %2117 = vmatprep.mubr.f32.mxu0 0.0
    %2118 = vmatmul.mubr.f32.gmra.mrb[0].mxu0 %v1986
    %v2119 = vpop.f32.mrb[0].mxu0
    %v2120 = vadd.f32 %v1953, %v2119
    %v2121 = vpop.f32.mrb[0].mxu0
    %2122 = vmatprep.mubr.f32.mxu0 0.0
    %2123 = vmatmul.mubr.f32.gmra.mrb[0].mxu0 %v1989
    %v2124 = vpop.f32.mrb[0].mxu0
    %v2125 = vadd.f32 %v1953, %v2124
    %v2126 = vpop.f32.mrb[0].mxu0
    %2127 = vmatprep.mubr.f32.mxu0 0.0
    %2128 = vmatmul.mubr.f32.gmra.mrb[0].mxu0 %v1992
    %v2129 = vpop.f32.mrb[0].mxu0
    %v2130 = vadd.f32 %v1953, %v2129
    %v2131 = vpop.f32.mrb[0].mxu0
    %2132 = vmatprep.mubr.f32.mxu0 0.0
    %2133 = vmatmul.mubr.f32.gmra.mrb[0].mxu0 %v1995
    %v2134 = vpop.f32.mrb[0].mxu0
    %v2135 = vadd.f32 %v1953, %v2134
    %v2136 = vpop.f32.mrb[0].mxu0
    %2137 = vmatprep.mubr.f32.mxu0 0.0
    %2138 = vmatmul.mubr.f32.gmra.mrb[0].mxu0 %v1998
    %v2139 = vpop.f32.mrb[0].mxu0
    %v2140 = vadd.f32 %v1953, %v2139
    %v2141 = vpop.f32.mrb[0].mxu0
    %2142 = vmatprep.mubr.f32.mxu0 0.0
    %2143 = vmatmul.mubr.f32.gmra.mrb[0].mxu0 %v2001
    %v2144 = vpop.f32.mrb[0].mxu0
    %v2145 = vadd.f32 %v1953, %v2144
    %v2146 = vpop.f32.mrb[0].mxu0
    %2147 = vdwg.mxu0
    %2148 = vst [vmem:[#allocation3] sm:$0xff] %v2070
    %2149 = vst [vmem:[#allocation3 + $0x8] sm:$0xff] %v2075
    %2150 = vst [vmem:[#allocation3 + $0x10] sm:$0xff] %v2080
    %2151 = vst [vmem:[#allocation3 + $0x18] sm:$0xff] %v2085
    %2152 = vst [vmem:[#allocation3 + $0x20] sm:$0xff] %v2090
    %2153 = vst [vmem:[#allocation3 + $0x28] sm:$0xff] %v2095
    %2154 = vst [vmem:[#allocation3 + $0x30] sm:$0xff] %v2100
    %2155 = vst [vmem:[#allocation3 + $0x38] sm:$0xff] %v2105
    %2156 = vst [vmem:[#allocation3 + $0x40] sm:$0xff] %v2110
    %2157 = vst [vmem:[#allocation3 + $0x48] sm:$0xff] %v2115
    %2158 = vst [vmem:[#allocation3 + $0x50] sm:$0xff] %v2120
    %2159 = vst [vmem:[#allocation3 + $0x58] sm:$0xff] %v2125
    %2160 = vst [vmem:[#allocation3 + $0x60] sm:$0xff] %v2130
    %2161 = vst [vmem:[#allocation3 + $0x68] sm:$0xff] %v2135
    %2162 = vst [vmem:[#allocation3 + $0x70] sm:$0xff] %v2140
    %2163 = vst [vmem:[#allocation3 + $0x78] sm:$0xff] %v2145
    %v2164 = vld [vmem:[#allocation3] sm:$0xff]
    %2165 = vmatprep.subr.mxu0 0.0
    %2166 = vmatpush1.msra.mxu0 %v1927
    %2167 = vmatprep.subr.mxu0 0.0
    %2168 = vmatpush1.msra.mxu0 %v1928
    %2169 = vmatprep.subr.mxu0 0.0
    %2170 = vmatpush1.msra.mxu0 %v1929
    %2171 = vmatprep.subr.mxu0 0.0
    %2172 = vmatpush1.msra.mxu0 %v1930
    %2173 = vmatprep.subr.mxu0 0.0
    %2174 = vmatpush1.msra.mxu0 0.0
    %2175 = vmatprep.subr.mxu0 0.0
    %2176 = vmatpush1.msra.mxu0 0.0
    %2177 = vmatprep.subr.mxu0 0.0
    %2178 = vmatpush1.msra.mxu0 0.0
    %2179 = vmatprep.subr.mxu0 0.0
    %2180 = vmatpush1.msra.mxu0 0.0
    %2181 = vmatprep.subr.mxu0 0.0
    %2182 = vmatpush1.msra.mxu0 0.0
    %2183 = vmatprep.subr.mxu0 0.0
    %2184 = vmatpush1.msra.mxu0 0.0
    %2185 = vmatprep.subr.mxu0 0.0
    %2186 = vmatpush1.msra.mxu0 0.0
    %2187 = vmatprep.subr.mxu0 0.0
    %2188 = vmatpush1.msra.mxu0 0.0
    %2189 = vmatprep.subr.mxu0 0.0
    %2190 = vmatpush1.msra.mxu0 0.0
    %2191 = vmatprep.subr.mxu0 0.0
    %2192 = vmatpush1.msra.mxu0 0.0
    %2193 = vmatprep.subr.mxu0 0.0
    %2194 = vmatpush1.msra.mxu0 0.0
    %2195 = vmatprep.subr.mxu0 0.0
    %2196 = vmatpush1.msra.mxu0 0.0
    %2197 = vmatprep.subr.mxu0 0.0
    %2198 = vmatpush1.msra.mxu0 0.0
    %2199 = vmatprep.subr.mxu0 0.0
    %2200 = vmatpush1.msra.mxu0 0.0
    %2201 = vmatprep.subr.mxu0 0.0
    %2202 = vmatpush1.msra.mxu0 0.0
    %2203 = vmatprep.subr.mxu0 0.0
    %2204 = vmatpush1.msra.mxu0 0.0
    %2205 = vmatprep.subr.mxu0 0.0
    %2206 = vmatpush1.msra.mxu0 0.0
    %2207 = vmatprep.subr.mxu0 0.0
    %2208 = vmatpush1.msra.mxu0 0.0
    %2209 = vmatprep.subr.mxu0 0.0
    %2210 = vmatpush1.msra.mxu0 0.0
    %2211 = vmatprep.subr.mxu0 0.0
    %2212 = vmatpush1.msra.mxu0 0.0
    %2213 = vmatprep.subr.mxu0 0.0
    %2214 = vmatpush1.msra.mxu0 0.0
    %2215 = vmatprep.subr.mxu0 0.0
    %2216 = vmatpush1.msra.mxu0 0.0
    %2217 = vmatprep.subr.mxu0 0.0
    %2218 = vmatpush1.msra.mxu0 0.0
    %2219 = vmatprep.subr.mxu0 0.0
    %2220 = vmatpush1.msra.mxu0 0.0
    %2221 = vmatprep.subr.mxu0 0.0
    %2222 = vmatpush1.msra.mxu0 0.0
    %2223 = vmatprep.subr.mxu0 0.0
    %2224 = vmatpush1.msra.mxu0 0.0
    %2225 = vmatprep.subr.mxu0 0.0
    %2226 = vmatpush1.msra.mxu0 0.0
    %2227 = vmatprep.subr.mxu0 0.0
    %2228 = vmatpush1.msra.mxu0 0.0
    %2229 = vmatprep.mubr.f32.mxu0 0.0
    %2230 = vmatmul.mubr.f32.gmra.mrb[0].mxu0 %v274
    %v2231 = vpop.f32.mrb[0].mxu0
    %v2232 = vadd.f32 0.0, %v2231
    %v2233 = vpop.f32.mrb[0].mxu0
    %2234 = vdwg.mxu0
    %v2235 = vadd.f32 %v2164, %v2232
    %v2236 = vxor.u32 %v2235, 2147483648
    %v2237 = vmul.f32 %v2236, 1.442695
    %v2238 = vpow.pop %v2237
    %v2239 = vadd.f32 %v2238, 1.0
    %v2240 = vrcp.pop %v2239
    %v2241 = vmul.f32 1.0, %v2240
    %v2242 = vtanh.pop %v2235
    %v2243 = vmul.f32 %v2241, 0.0
    %2245 = vrot.lane.b32.xlu0 %v2242, 32
    %v2246 = vpop.permute.xlu0 %2245
    %v2248 = vmul.f32 %v2241, %v2246
    %2250 = vrot.lane.b32.xlu0 %v2248, 32
    %v2251 = vpop.permute.xlu0 %2250
    %v2253 = vadd.f32 %v2243, %v2251
    %v2254 = vtanh.pop %v2253
    %2256 = vrot.lane.b32.xlu0 %v2254, 32
    %v2257 = vpop.permute.xlu0 %2256
    %v2259 = vmul.f32 %v2241, %v2257
    %2261 = vrot.lane.b32.xlu0 %v2259, 64
    %v2262 = vpop.permute.xlu0 %2261
    %2264 = vst.msk [vmem:[#allocation2] sm:$0xff] %vm62, %v2262
    %v2265 = vld [vmem:[#allocation3 + $0x8] sm:$0xff]
    %v2266 = vsel %vm62, %v2262, 0
    %2268 = vmatprep.subr.mxu0 0.0
    %2269 = vmatpush1.msra.mxu0 %v1927
    %2270 = vmatprep.subr.mxu0 0.0
    %2271 = vmatpush1.msra.mxu0 %v1928
    %2272 = vmatprep.subr.mxu0 0.0
    %2273 = vmatpush1.msra.mxu0 %v1929
    %2274 = vmatprep.subr.mxu0 0.0
    %2275 = vmatpush1.msra.mxu0 %v1930
    %2276 = vmatprep.subr.mxu0 0.0
    %2277 = vmatpush1.msra.mxu0 0.0
    %2278 = vmatprep.subr.mxu0 0.0
    %2279 = vmatpush1.msra.mxu0 0.0
    %2280 = vmatprep.subr.mxu0 0.0
    %2281 = vmatpush1.msra.mxu0 0.0
    %2282 = vmatprep.subr.mxu0 0.0
    %2283 = vmatpush1.msra.mxu0 0.0
    %2284 = vmatprep.subr.mxu0 0.0
    %2285 = vmatpush1.msra.mxu0 0.0
    %2286 = vmatprep.subr.mxu0 0.0
    %2287 = vmatpush1.msra.mxu0 0.0
    %2288 = vmatprep.subr.mxu0 0.0
    %2289 = vmatpush1.msra.mxu0 0.0
    %2290 = vmatprep.subr.mxu0 0.0
    %2291 = vmatpush1.msra.mxu0 0.0
    %2292 = vmatprep.subr.mxu0 0.0
    %2293 = vmatpush1.msra.mxu0 0.0
    %2294 = vmatprep.subr.mxu0 0.0
    %2295 = vmatpush1.msra.mxu0 0.0
    %2296 = vmatprep.subr.mxu0 0.0
    %2297 = vmatpush1.msra.mxu0 0.0
    %2298 = vmatprep.subr.mxu0 0.0
    %2299 = vmatpush1.msra.mxu0 0.0
    %2300 = vmatprep.subr.mxu0 0.0
    %2301 = vmatpush1.msra.mxu0 0.0
    %2302 = vmatprep.subr.mxu0 0.0
    %2303 = vmatpush1.msra.mxu0 0.0
    %2304 = vmatprep.subr.mxu0 0.0
    %2305 = vmatpush1.msra.mxu0 0.0
    %2306 = vmatprep.subr.mxu0 0.0
    %2307 = vmatpush1.msra.mxu0 0.0
    %2308 = vmatprep.subr.mxu0 0.0
    %2309 = vmatpush1.msra.mxu0 0.0
    %2310 = vmatprep.subr.mxu0 0.0
    %2311 = vmatpush1.msra.mxu0 0.0
    %2312 = vmatprep.subr.mxu0 0.0
    %2313 = vmatpush1.msra.mxu0 0.0
    %2314 = vmatprep.subr.mxu0 0.0
    %2315 = vmatpush1.msra.mxu0 0.0
    %2316 = vmatprep.subr.mxu0 0.0
    %2317 = vmatpush1.msra.mxu0 0.0
    %2318 = vmatprep.subr.mxu0 0.0
    %2319 = vmatpush1.msra.mxu0 0.0
    %2320 = vmatprep.subr.mxu0 0.0
    %2321 = vmatpush1.msra.mxu0 0.0
    %2322 = vmatprep.subr.mxu0 0.0
    %2323 = vmatpush1.msra.mxu0 0.0
    %2324 = vmatprep.subr.mxu0 0.0
    %2325 = vmatpush1.msra.mxu0 0.0
    %2326 = vmatprep.subr.mxu0 0.0
    %2327 = vmatpush1.msra.mxu0 0.0
    %2328 = vmatprep.subr.mxu0 0.0
    %2329 = vmatpush1.msra.mxu0 0.0
    %2330 = vmatprep.subr.mxu0 0.0
    %2331 = vmatpush1.msra.mxu0 0.0
    %2332 = vmatprep.mubr.f32.mxu0 0.0
    %2333 = vmatmul.mubr.f32.gmra.mrb[0].mxu0 %v2266
    %v2334 = vpop.f32.mrb[0].mxu0
    %v2335 = vadd.f32 0.0, %v2334
    %v2336 = vpop.f32.mrb[0].mxu0
    %2337 = vdwg.mxu0
    %v2338 = vadd.f32 %v2265, %v2335
    %v2339 = vxor.u32 %v2338, 2147483648
    %v2340 = vmul.f32 %v2339, 1.442695
    %v2341 = vpow.pop %v2340
    %v2342 = vadd.f32 %v2341, 1.0
    %v2343 = vrcp.pop %v2342
    %v2344 = vmul.f32 1.0, %v2343
    %v2345 = vtanh.pop %v2338
    %v2346 = vmul.f32 %v2344, %v2253
    %2348 = vrot.lane.b32.xlu0 %v2345, 32
    %v2349 = vpop.permute.xlu0 %2348
    %v2351 = vmul.f32 %v2344, %v2349
    %2353 = vrot.lane.b32.xlu0 %v2351, 32
    %v2354 = vpop.permute.xlu0 %2353
    %v2356 = vadd.f32 %v2346, %v2354
    %v2357 = vtanh.pop %v2356
    %2359 = vrot.lane.b32.xlu0 %v2357, 32
    %v2360 = vpop.permute.xlu0 %2359
    %v2362 = vmul.f32 %v2344, %v2360
    %2364 = vrot.lane.b32.xlu0 %v2362, 64
    %v2365 = vpop.permute.xlu0 %2364
    %2367 = vst.msk [vmem:[#allocation2 + $0x8] sm:$0xff] %vm62, %v2365
    %v2368 = vld [vmem:[#allocation3 + $0x10] sm:$0xff]
    %v2369 = vsel %vm62, %v2365, 0
    %2371 = vmatprep.subr.mxu0 0.0
    %2372 = vmatpush1.msra.mxu0 %v1927
    %2373 = vmatprep.subr.mxu0 0.0
    %2374 = vmatpush1.msra.mxu0 %v1928
    %2375 = vmatprep.subr.mxu0 0.0
    %2376 = vmatpush1.msra.mxu0 %v1929
    %2377 = vmatprep.subr.mxu0 0.0
    %2378 = vmatpush1.msra.mxu0 %v1930
    %2379 = vmatprep.subr.mxu0 0.0
    %2380 = vmatpush1.msra.mxu0 0.0
    %2381 = vmatprep.subr.mxu0 0.0
    %2382 = vmatpush1.msra.mxu0 0.0
    %2383 = vmatprep.subr.mxu0 0.0
    %2384 = vmatpush1.msra.mxu0 0.0
    %2385 = vmatprep.subr.mxu0 0.0
    %2386 = vmatpush1.msra.mxu0 0.0
    %2387 = vmatprep.subr.mxu0 0.0
    %2388 = vmatpush1.msra.mxu0 0.0
    %2389 = vmatprep.subr.mxu0 0.0
    %2390 = vmatpush1.msra.mxu0 0.0
    %2391 = vmatprep.subr.mxu0 0.0
    %2392 = vmatpush1.msra.mxu0 0.0
    %2393 = vmatprep.subr.mxu0 0.0
    %2394 = vmatpush1.msra.mxu0 0.0
    %2395 = vmatprep.subr.mxu0 0.0
    %2396 = vmatpush1.msra.mxu0 0.0
    %2397 = vmatprep.subr.mxu0 0.0
    %2398 = vmatpush1.msra.mxu0 0.0
    %2399 = vmatprep.subr.mxu0 0.0
    %2400 = vmatpush1.msra.mxu0 0.0
    %2401 = vmatprep.subr.mxu0 0.0
    %2402 = vmatpush1.msra.mxu0 0.0
    %2403 = vmatprep.subr.mxu0 0.0
    %2404 = vmatpush1.msra.mxu0 0.0
    %2405 = vmatprep.subr.mxu0 0.0
    %2406 = vmatpush1.msra.mxu0 0.0
    %2407 = vmatprep.subr.mxu0 0.0
    %2408 = vmatpush1.msra.mxu0 0.0
    %2409 = vmatprep.subr.mxu0 0.0
    %2410 = vmatpush1.msra.mxu0 0.0
    %2411 = vmatprep.subr.mxu0 0.0
    %2412 = vmatpush1.msra.mxu0 0.0
    %2413 = vmatprep.subr.mxu0 0.0
    %2414 = vmatpush1.msra.mxu0 0.0
    %2415 = vmatprep.subr.mxu0 0.0
    %2416 = vmatpush1.msra.mxu0 0.0
    %2417 = vmatprep.subr.mxu0 0.0
    %2418 = vmatpush1.msra.mxu0 0.0
    %2419 = vmatprep.subr.mxu0 0.0
    %2420 = vmatpush1.msra.mxu0 0.0
    %2421 = vmatprep.subr.mxu0 0.0
    %2422 = vmatpush1.msra.mxu0 0.0
    %2423 = vmatprep.subr.mxu0 0.0
    %2424 = vmatpush1.msra.mxu0 0.0
    %2425 = vmatprep.subr.mxu0 0.0
    %2426 = vmatpush1.msra.mxu0 0.0
    %2427 = vmatprep.subr.mxu0 0.0
    %2428 = vmatpush1.msra.mxu0 0.0
    %2429 = vmatprep.subr.mxu0 0.0
    %2430 = vmatpush1.msra.mxu0 0.0
    %2431 = vmatprep.subr.mxu0 0.0
    %2432 = vmatpush1.msra.mxu0 0.0
    %2433 = vmatprep.subr.mxu0 0.0
    %2434 = vmatpush1.msra.mxu0 0.0
    %2435 = vmatprep.mubr.f32.mxu0 0.0
    %2436 = vmatmul.mubr.f32.gmra.mrb[0].mxu0 %v2369
    %v2437 = vpop.f32.mrb[0].mxu0
    %v2438 = vadd.f32 0.0, %v2437
    %v2439 = vpop.f32.mrb[0].mxu0
    %2440 = vdwg.mxu0
    %v2441 = vadd.f32 %v2368, %v2438
    %v2442 = vxor.u32 %v2441, 2147483648
    %v2443 = vmul.f32 %v2442, 1.442695
    %v2444 = vpow.pop %v2443
    %v2445 = vadd.f32 %v2444, 1.0
    %v2446 = vrcp.pop %v2445
    %v2447 = vmul.f32 1.0, %v2446
    %v2448 = vtanh.pop %v2441
    %v2449 = vmul.f32 %v2447, %v2356
    %2451 = vrot.lane.b32.xlu0 %v2448, 32
    %v2452 = vpop.permute.xlu0 %2451
    %v2454 = vmul.f32 %v2447, %v2452
    %2456 = vrot.lane.b32.xlu0 %v2454, 32
    %v2457 = vpop.permute.xlu0 %2456
    %v2459 = vadd.f32 %v2449, %v2457
    %v2460 = vtanh.pop %v2459
    %2462 = vrot.lane.b32.xlu0 %v2460, 32
    %v2463 = vpop.permute.xlu0 %2462
    %v2465 = vmul.f32 %v2447, %v2463
    %2467 = vrot.lane.b32.xlu0 %v2465, 64
    %v2468 = vpop.permute.xlu0 %2467
    %2470 = vst.msk [vmem:[#allocation2 + $0x10] sm:$0xff] %vm62, %v2468
    %v2471 = vld [vmem:[#allocation3 + $0x18] sm:$0xff]
    %v2472 = vsel %vm62, %v2468, 0
    %2474 = vmatprep.subr.mxu0 0.0
    %2475 = vmatpush1.msra.mxu0 %v1927
    %2476 = vmatprep.subr.mxu0 0.0
    %2477 = vmatpush1.msra.mxu0 %v1928
    %2478 = vmatprep.subr.mxu0 0.0
    %2479 = vmatpush1.msra.mxu0 %v1929
    %2480 = vmatprep.subr.mxu0 0.0
    %2481 = vmatpush1.msra.mxu0 %v1930
    %2482 = vmatprep.subr.mxu0 0.0
    %2483 = vmatpush1.msra.mxu0 0.0
    %2484 = vmatprep.subr.mxu0 0.0
    %2485 = vmatpush1.msra.mxu0 0.0
    %2486 = vmatprep.subr.mxu0 0.0
    %2487 = vmatpush1.msra.mxu0 0.0
    %2488 = vmatprep.subr.mxu0 0.0
    %2489 = vmatpush1.msra.mxu0 0.0
    %2490 = vmatprep.subr.mxu0 0.0
    %2491 = vmatpush1.msra.mxu0 0.0
    %2492 = vmatprep.subr.mxu0 0.0
    %2493 = vmatpush1.msra.mxu0 0.0
    %2494 = vmatprep.subr.mxu0 0.0
    %2495 = vmatpush1.msra.mxu0 0.0
    %2496 = vmatprep.subr.mxu0 0.0
    %2497 = vmatpush1.msra.mxu0 0.0
    %2498 = vmatprep.subr.mxu0 0.0
    %2499 = vmatpush1.msra.mxu0 0.0
    %2500 = vmatprep.subr.mxu0 0.0
    %2501 = vmatpush1.msra.mxu0 0.0
    %2502 = vmatprep.subr.mxu0 0.0
    %2503 = vmatpush1.msra.mxu0 0.0
    %2504 = vmatprep.subr.mxu0 0.0
    %2505 = vmatpush1.msra.mxu0 0.0
    %2506 = vmatprep.subr.mxu0 0.0
    %2507 = vmatpush1.msra.mxu0 0.0
    %2508 = vmatprep.subr.mxu0 0.0
    %2509 = vmatpush1.msra.mxu0 0.0
    %2510 = vmatprep.subr.mxu0 0.0
    %2511 = vmatpush1.msra.mxu0 0.0
    %2512 = vmatprep.subr.mxu0 0.0
    %2513 = vmatpush1.msra.mxu0 0.0
    %2514 = vmatprep.subr.mxu0 0.0
    %2515 = vmatpush1.msra.mxu0 0.0
    %2516 = vmatprep.subr.mxu0 0.0
    %2517 = vmatpush1.msra.mxu0 0.0
    %2518 = vmatprep.subr.mxu0 0.0
    %2519 = vmatpush1.msra.mxu0 0.0
    %2520 = vmatprep.subr.mxu0 0.0
    %2521 = vmatpush1.msra.mxu0 0.0
    %2522 = vmatprep.subr.mxu0 0.0
    %2523 = vmatpush1.msra.mxu0 0.0
    %2524 = vmatprep.subr.mxu0 0.0
    %2525 = vmatpush1.msra.mxu0 0.0
    %2526 = vmatprep.subr.mxu0 0.0
    %2527 = vmatpush1.msra.mxu0 0.0
    %2528 = vmatprep.subr.mxu0 0.0
    %2529 = vmatpush1.msra.mxu0 0.0
    %2530 = vmatprep.subr.mxu0 0.0
    %2531 = vmatpush1.msra.mxu0 0.0
    %2532 = vmatprep.subr.mxu0 0.0
    %2533 = vmatpush1.msra.mxu0 0.0
    %2534 = vmatprep.subr.mxu0 0.0
    %2535 = vmatpush1.msra.mxu0 0.0
    %2536 = vmatprep.subr.mxu0 0.0
    %2537 = vmatpush1.msra.mxu0 0.0
    %2538 = vmatprep.mubr.f32.mxu0 0.0
    %2539 = vmatmul.mubr.f32.gmra.mrb[0].mxu0 %v2472
    %v2540 = vpop.f32.mrb[0].mxu0
    %v2541 = vadd.f32 0.0, %v2540
    %v2542 = vpop.f32.mrb[0].mxu0
    %2543 = vdwg.mxu0
    %v2544 = vadd.f32 %v2471, %v2541
    %v2545 = vxor.u32 %v2544, 2147483648
    %v2546 = vmul.f32 %v2545, 1.442695
    %v2547 = vpow.pop %v2546
    %v2548 = vadd.f32 %v2547, 1.0
    %v2549 = vrcp.pop %v2548
    %v2550 = vmul.f32 1.0, %v2549
    %v2551 = vtanh.pop %v2544
    %v2552 = vmul.f32 %v2550, %v2459
    %2554 = vrot.lane.b32.xlu0 %v2551, 32
    %v2555 = vpop.permute.xlu0 %2554
    %v2557 = vmul.f32 %v2550, %v2555
    %2559 = vrot.lane.b32.xlu0 %v2557, 32
    %v2560 = vpop.permute.xlu0 %2559
    %v2562 = vadd.f32 %v2552, %v2560
    %v2563 = vtanh.pop %v2562
    %2565 = vrot.lane.b32.xlu0 %v2563, 32
    %v2566 = vpop.permute.xlu0 %2565
    %v2568 = vmul.f32 %v2550, %v2566
    %2570 = vrot.lane.b32.xlu0 %v2568, 64
    %v2571 = vpop.permute.xlu0 %2570
    %2573 = vst.msk [vmem:[#allocation2 + $0x18] sm:$0xff] %vm62, %v2571
    %v2574 = vld [vmem:[#allocation3 + $0x20] sm:$0xff]
    %v2575 = vsel %vm62, %v2571, 0
    %2577 = vmatprep.subr.mxu0 0.0
    %2578 = vmatpush1.msra.mxu0 %v1927
    %2579 = vmatprep.subr.mxu0 0.0
    %2580 = vmatpush1.msra.mxu0 %v1928
    %2581 = vmatprep.subr.mxu0 0.0
    %2582 = vmatpush1.msra.mxu0 %v1929
    %2583 = vmatprep.subr.mxu0 0.0
    %2584 = vmatpush1.msra.mxu0 %v1930
    %2585 = vmatprep.subr.mxu0 0.0
    %2586 = vmatpush1.msra.mxu0 0.0
    %2587 = vmatprep.subr.mxu0 0.0
    %2588 = vmatpush1.msra.mxu0 0.0
    %2589 = vmatprep.subr.mxu0 0.0
    %2590 = vmatpush1.msra.mxu0 0.0
    %2591 = vmatprep.subr.mxu0 0.0
    %2592 = vmatpush1.msra.mxu0 0.0
    %2593 = vmatprep.subr.mxu0 0.0
    %2594 = vmatpush1.msra.mxu0 0.0
    %2595 = vmatprep.subr.mxu0 0.0
    %2596 = vmatpush1.msra.mxu0 0.0
    %2597 = vmatprep.subr.mxu0 0.0
    %2598 = vmatpush1.msra.mxu0 0.0
    %2599 = vmatprep.subr.mxu0 0.0
    %2600 = vmatpush1.msra.mxu0 0.0
    %2601 = vmatprep.subr.mxu0 0.0
    %2602 = vmatpush1.msra.mxu0 0.0
    %2603 = vmatprep.subr.mxu0 0.0
    %2604 = vmatpush1.msra.mxu0 0.0
    %2605 = vmatprep.subr.mxu0 0.0
    %2606 = vmatpush1.msra.mxu0 0.0
    %2607 = vmatprep.subr.mxu0 0.0
    %2608 = vmatpush1.msra.mxu0 0.0
    %2609 = vmatprep.subr.mxu0 0.0
    %2610 = vmatpush1.msra.mxu0 0.0
    %2611 = vmatprep.subr.mxu0 0.0
    %2612 = vmatpush1.msra.mxu0 0.0
    %2613 = vmatprep.subr.mxu0 0.0
    %2614 = vmatpush1.msra.mxu0 0.0
    %2615 = vmatprep.subr.mxu0 0.0
    %2616 = vmatpush1.msra.mxu0 0.0
    %2617 = vmatprep.subr.mxu0 0.0
    %2618 = vmatpush1.msra.mxu0 0.0
    %2619 = vmatprep.subr.mxu0 0.0
    %2620 = vmatpush1.msra.mxu0 0.0
    %2621 = vmatprep.subr.mxu0 0.0
    %2622 = vmatpush1.msra.mxu0 0.0
    %2623 = vmatprep.subr.mxu0 0.0
    %2624 = vmatpush1.msra.mxu0 0.0
    %2625 = vmatprep.subr.mxu0 0.0
    %2626 = vmatpush1.msra.mxu0 0.0
    %2627 = vmatprep.subr.mxu0 0.0
    %2628 = vmatpush1.msra.mxu0 0.0
    %2629 = vmatprep.subr.mxu0 0.0
    %2630 = vmatpush1.msra.mxu0 0.0
    %2631 = vmatprep.subr.mxu0 0.0
    %2632 = vmatpush1.msra.mxu0 0.0
    %2633 = vmatprep.subr.mxu0 0.0
    %2634 = vmatpush1.msra.mxu0 0.0
    %2635 = vmatprep.subr.mxu0 0.0
    %2636 = vmatpush1.msra.mxu0 0.0
    %2637 = vmatprep.subr.mxu0 0.0
    %2638 = vmatpush1.msra.mxu0 0.0
    %2639 = vmatprep.subr.mxu0 0.0
    %2640 = vmatpush1.msra.mxu0 0.0
    %2641 = vmatprep.mubr.f32.mxu0 0.0
    %2642 = vmatmul.mubr.f32.gmra.mrb[0].mxu0 %v2575
    %v2643 = vpop.f32.mrb[0].mxu0
    %v2644 = vadd.f32 0.0, %v2643
    %v2645 = vpop.f32.mrb[0].mxu0
    %2646 = vdwg.mxu0
    %v2647 = vadd.f32 %v2574, %v2644
    %v2648 = vxor.u32 %v2647, 2147483648
    %v2649 = vmul.f32 %v2648, 1.442695
    %v2650 = vpow.pop %v2649
    %v2651 = vadd.f32 %v2650, 1.0
    %v2652 = vrcp.pop %v2651
    %v2653 = vmul.f32 1.0, %v2652
    %v2654 = vtanh.pop %v2647
    %v2655 = vmul.f32 %v2653, %v2562
    %2657 = vrot.lane.b32.xlu0 %v2654, 32
    %v2658 = vpop.permute.xlu0 %2657
    %v2660 = vmul.f32 %v2653, %v2658
    %2662 = vrot.lane.b32.xlu0 %v2660, 32
    %v2663 = vpop.permute.xlu0 %2662
    %v2665 = vadd.f32 %v2655, %v2663
    %v2666 = vtanh.pop %v2665
    %2668 = vrot.lane.b32.xlu0 %v2666, 32
    %v2669 = vpop.permute.xlu0 %2668
    %v2671 = vmul.f32 %v2653, %v2669
    %2673 = vrot.lane.b32.xlu0 %v2671, 64
    %v2674 = vpop.permute.xlu0 %2673
    %2676 = vst.msk [vmem:[#allocation2 + $0x20] sm:$0xff] %vm62, %v2674
    %v2677 = vld [vmem:[#allocation3 + $0x28] sm:$0xff]
    %v2678 = vsel %vm62, %v2674, 0
    %2680 = vmatprep.subr.mxu0 0.0
    %2681 = vmatpush1.msra.mxu0 %v1927
    %2682 = vmatprep.subr.mxu0 0.0
    %2683 = vmatpush1.msra.mxu0 %v1928
    %2684 = vmatprep.subr.mxu0 0.0
    %2685 = vmatpush1.msra.mxu0 %v1929
    %2686 = vmatprep.subr.mxu0 0.0
    %2687 = vmatpush1.msra.mxu0 %v1930
    %2688 = vmatprep.subr.mxu0 0.0
    %2689 = vmatpush1.msra.mxu0 0.0
    %2690 = vmatprep.subr.mxu0 0.0
    %2691 = vmatpush1.msra.mxu0 0.0
    %2692 = vmatprep.subr.mxu0 0.0
    %2693 = vmatpush1.msra.mxu0 0.0
    %2694 = vmatprep.subr.mxu0 0.0
    %2695 = vmatpush1.msra.mxu0 0.0
    %2696 = vmatprep.subr.mxu0 0.0
    %2697 = vmatpush1.msra.mxu0 0.0
    %2698 = vmatprep.subr.mxu0 0.0
    %2699 = vmatpush1.msra.mxu0 0.0
    %2700 = vmatprep.subr.mxu0 0.0
    %2701 = vmatpush1.msra.mxu0 0.0
    %2702 = vmatprep.subr.mxu0 0.0
    %2703 = vmatpush1.msra.mxu0 0.0
    %2704 = vmatprep.subr.mxu0 0.0
    %2705 = vmatpush1.msra.mxu0 0.0
    %2706 = vmatprep.subr.mxu0 0.0
    %2707 = vmatpush1.msra.mxu0 0.0
    %2708 = vmatprep.subr.mxu0 0.0
    %2709 = vmatpush1.msra.mxu0 0.0
    %2710 = vmatprep.subr.mxu0 0.0
    %2711 = vmatpush1.msra.mxu0 0.0
    %2712 = vmatprep.subr.mxu0 0.0
    %2713 = vmatpush1.msra.mxu0 0.0
    %2714 = vmatprep.subr.mxu0 0.0
    %2715 = vmatpush1.msra.mxu0 0.0
    %2716 = vmatprep.subr.mxu0 0.0
    %2717 = vmatpush1.msra.mxu0 0.0
    %2718 = vmatprep.subr.mxu0 0.0
    %2719 = vmatpush1.msra.mxu0 0.0
    %2720 = vmatprep.subr.mxu0 0.0
    %2721 = vmatpush1.msra.mxu0 0.0
    %2722 = vmatprep.subr.mxu0 0.0
    %2723 = vmatpush1.msra.mxu0 0.0
    %2724 = vmatprep.subr.mxu0 0.0
    %2725 = vmatpush1.msra.mxu0 0.0
    %2726 = vmatprep.subr.mxu0 0.0
    %2727 = vmatpush1.msra.mxu0 0.0
    %2728 = vmatprep.subr.mxu0 0.0
    %2729 = vmatpush1.msra.mxu0 0.0
    %2730 = vmatprep.subr.mxu0 0.0
    %2731 = vmatpush1.msra.mxu0 0.0
    %2732 = vmatprep.subr.mxu0 0.0
    %2733 = vmatpush1.msra.mxu0 0.0
    %2734 = vmatprep.subr.mxu0 0.0
    %2735 = vmatpush1.msra.mxu0 0.0
    %2736 = vmatprep.subr.mxu0 0.0
    %2737 = vmatpush1.msra.mxu0 0.0
    %2738 = vmatprep.subr.mxu0 0.0
    %2739 = vmatpush1.msra.mxu0 0.0
    %2740 = vmatprep.subr.mxu0 0.0
    %2741 = vmatpush1.msra.mxu0 0.0
    %2742 = vmatprep.subr.mxu0 0.0
    %2743 = vmatpush1.msra.mxu0 0.0
    %2744 = vmatprep.mubr.f32.mxu0 0.0
    %2745 = vmatmul.mubr.f32.gmra.mrb[0].mxu0 %v2678
    %v2746 = vpop.f32.mrb[0].mxu0
    %v2747 = vadd.f32 0.0, %v2746
    %v2748 = vpop.f32.mrb[0].mxu0
    %2749 = vdwg.mxu0
    %v2750 = vadd.f32 %v2677, %v2747
    %v2751 = vxor.u32 %v2750, 2147483648
    %v2752 = vmul.f32 %v2751, 1.442695
    %v2753 = vpow.pop %v2752
    %v2754 = vadd.f32 %v2753, 1.0
    %v2755 = vrcp.pop %v2754
    %v2756 = vmul.f32 1.0, %v2755
    %v2757 = vtanh.pop %v2750
    %v2758 = vmul.f32 %v2756, %v2665
    %2760 = vrot.lane.b32.xlu0 %v2757, 32
    %v2761 = vpop.permute.xlu0 %2760
    %v2763 = vmul.f32 %v2756, %v2761
    %2765 = vrot.lane.b32.xlu0 %v2763, 32
    %v2766 = vpop.permute.xlu0 %2765
    %v2768 = vadd.f32 %v2758, %v2766
    %v2769 = vtanh.pop %v2768
    %2771 = vrot.lane.b32.xlu0 %v2769, 32
    %v2772 = vpop.permute.xlu0 %2771
    %v2774 = vmul.f32 %v2756, %v2772
    %2776 = vrot.lane.b32.xlu0 %v2774, 64
    %v2777 = vpop.permute.xlu0 %2776
    %2779 = vst.msk [vmem:[#allocation2 + $0x28] sm:$0xff] %vm62, %v2777
    %v2780 = vld [vmem:[#allocation3 + $0x30] sm:$0xff]
    %v2781 = vsel %vm62, %v2777, 0
    %2783 = vmatprep.subr.mxu0 0.0
    %2784 = vmatpush1.msra.mxu0 %v1927
    %2785 = vmatprep.subr.mxu0 0.0
    %2786 = vmatpush1.msra.mxu0 %v1928
    %2787 = vmatprep.subr.mxu0 0.0
    %2788 = vmatpush1.msra.mxu0 %v1929
    %2789 = vmatprep.subr.mxu0 0.0
    %2790 = vmatpush1.msra.mxu0 %v1930
    %2791 = vmatprep.subr.mxu0 0.0
    %2792 = vmatpush1.msra.mxu0 0.0
    %2793 = vmatprep.subr.mxu0 0.0
    %2794 = vmatpush1.msra.mxu0 0.0
    %2795 = vmatprep.subr.mxu0 0.0
    %2796 = vmatpush1.msra.mxu0 0.0
    %2797 = vmatprep.subr.mxu0 0.0
    %2798 = vmatpush1.msra.mxu0 0.0
    %2799 = vmatprep.subr.mxu0 0.0
    %2800 = vmatpush1.msra.mxu0 0.0
    %2801 = vmatprep.subr.mxu0 0.0
    %2802 = vmatpush1.msra.mxu0 0.0
    %2803 = vmatprep.subr.mxu0 0.0
    %2804 = vmatpush1.msra.mxu0 0.0
    %2805 = vmatprep.subr.mxu0 0.0
    %2806 = vmatpush1.msra.mxu0 0.0
    %2807 = vmatprep.subr.mxu0 0.0
    %2808 = vmatpush1.msra.mxu0 0.0
    %2809 = vmatprep.subr.mxu0 0.0
    %2810 = vmatpush1.msra.mxu0 0.0
    %2811 = vmatprep.subr.mxu0 0.0
    %2812 = vmatpush1.msra.mxu0 0.0
    %2813 = vmatprep.subr.mxu0 0.0
    %2814 = vmatpush1.msra.mxu0 0.0
    %2815 = vmatprep.subr.mxu0 0.0
    %2816 = vmatpush1.msra.mxu0 0.0
    %2817 = vmatprep.subr.mxu0 0.0
    %2818 = vmatpush1.msra.mxu0 0.0
    %2819 = vmatprep.subr.mxu0 0.0
    %2820 = vmatpush1.msra.mxu0 0.0
    %2821 = vmatprep.subr.mxu0 0.0
    %2822 = vmatpush1.msra.mxu0 0.0
    %2823 = vmatprep.subr.mxu0 0.0
    %2824 = vmatpush1.msra.mxu0 0.0
    %2825 = vmatprep.subr.mxu0 0.0
    %2826 = vmatpush1.msra.mxu0 0.0
    %2827 = vmatprep.subr.mxu0 0.0
    %2828 = vmatpush1.msra.mxu0 0.0
    %2829 = vmatprep.subr.mxu0 0.0
    %2830 = vmatpush1.msra.mxu0 0.0
    %2831 = vmatprep.subr.mxu0 0.0
    %2832 = vmatpush1.msra.mxu0 0.0
    %2833 = vmatprep.subr.mxu0 0.0
    %2834 = vmatpush1.msra.mxu0 0.0
    %2835 = vmatprep.subr.mxu0 0.0
    %2836 = vmatpush1.msra.mxu0 0.0
    %2837 = vmatprep.subr.mxu0 0.0
    %2838 = vmatpush1.msra.mxu0 0.0
    %2839 = vmatprep.subr.mxu0 0.0
    %2840 = vmatpush1.msra.mxu0 0.0
    %2841 = vmatprep.subr.mxu0 0.0
    %2842 = vmatpush1.msra.mxu0 0.0
    %2843 = vmatprep.subr.mxu0 0.0
    %2844 = vmatpush1.msra.mxu0 0.0
    %2845 = vmatprep.subr.mxu0 0.0
    %2846 = vmatpush1.msra.mxu0 0.0
    %2847 = vmatprep.mubr.f32.mxu0 0.0
    %2848 = vmatmul.mubr.f32.gmra.mrb[0].mxu0 %v2781
    %v2849 = vpop.f32.mrb[0].mxu0
    %v2850 = vadd.f32 0.0, %v2849
    %v2851 = vpop.f32.mrb[0].mxu0
    %2852 = vdwg.mxu0
    %v2853 = vadd.f32 %v2780, %v2850
    %v2854 = vxor.u32 %v2853, 2147483648
    %v2855 = vmul.f32 %v2854, 1.442695
    %v2856 = vpow.pop %v2855
    %v2857 = vadd.f32 %v2856, 1.0
    %v2858 = vrcp.pop %v2857
    %v2859 = vmul.f32 1.0, %v2858
    %v2860 = vtanh.pop %v2853
    %v2861 = vmul.f32 %v2859, %v2768
    %2863 = vrot.lane.b32.xlu0 %v2860, 32
    %v2864 = vpop.permute.xlu0 %2863
    %v2866 = vmul.f32 %v2859, %v2864
    %2868 = vrot.lane.b32.xlu0 %v2866, 32
    %v2869 = vpop.permute.xlu0 %2868
    %v2871 = vadd.f32 %v2861, %v2869
    %v2872 = vtanh.pop %v2871
    %2874 = vrot.lane.b32.xlu0 %v2872, 32
    %v2875 = vpop.permute.xlu0 %2874
    %v2877 = vmul.f32 %v2859, %v2875
    %2879 = vrot.lane.b32.xlu0 %v2877, 64
    %v2880 = vpop.permute.xlu0 %2879
    %2882 = vst.msk [vmem:[#allocation2 + $0x30] sm:$0xff] %vm62, %v2880
    %v2883 = vld [vmem:[#allocation3 + $0x38] sm:$0xff]
    %v2884 = vsel %vm62, %v2880, 0
    %2886 = vmatprep.subr.mxu0 0.0
    %2887 = vmatpush1.msra.mxu0 %v1927
    %2888 = vmatprep.subr.mxu0 0.0
    %2889 = vmatpush1.msra.mxu0 %v1928
    %2890 = vmatprep.subr.mxu0 0.0
    %2891 = vmatpush1.msra.mxu0 %v1929
    %2892 = vmatprep.subr.mxu0 0.0
    %2893 = vmatpush1.msra.mxu0 %v1930
    %2894 = vmatprep.subr.mxu0 0.0
    %2895 = vmatpush1.msra.mxu0 0.0
    %2896 = vmatprep.subr.mxu0 0.0
    %2897 = vmatpush1.msra.mxu0 0.0
    %2898 = vmatprep.subr.mxu0 0.0
    %2899 = vmatpush1.msra.mxu0 0.0
    %2900 = vmatprep.subr.mxu0 0.0
    %2901 = vmatpush1.msra.mxu0 0.0
    %2902 = vmatprep.subr.mxu0 0.0
    %2903 = vmatpush1.msra.mxu0 0.0
    %2904 = vmatprep.subr.mxu0 0.0
    %2905 = vmatpush1.msra.mxu0 0.0
    %2906 = vmatprep.subr.mxu0 0.0
    %2907 = vmatpush1.msra.mxu0 0.0
    %2908 = vmatprep.subr.mxu0 0.0
    %2909 = vmatpush1.msra.mxu0 0.0
    %2910 = vmatprep.subr.mxu0 0.0
    %2911 = vmatpush1.msra.mxu0 0.0
    %2912 = vmatprep.subr.mxu0 0.0
    %2913 = vmatpush1.msra.mxu0 0.0
    %2914 = vmatprep.subr.mxu0 0.0
    %2915 = vmatpush1.msra.mxu0 0.0
    %2916 = vmatprep.subr.mxu0 0.0
    %2917 = vmatpush1.msra.mxu0 0.0
    %2918 = vmatprep.subr.mxu0 0.0
    %2919 = vmatpush1.msra.mxu0 0.0
    %2920 = vmatprep.subr.mxu0 0.0
    %2921 = vmatpush1.msra.mxu0 0.0
    %2922 = vmatprep.subr.mxu0 0.0
    %2923 = vmatpush1.msra.mxu0 0.0
    %2924 = vmatprep.subr.mxu0 0.0
    %2925 = vmatpush1.msra.mxu0 0.0
    %2926 = vmatprep.subr.mxu0 0.0
    %2927 = vmatpush1.msra.mxu0 0.0
    %2928 = vmatprep.subr.mxu0 0.0
    %2929 = vmatpush1.msra.mxu0 0.0
    %2930 = vmatprep.subr.mxu0 0.0
    %2931 = vmatpush1.msra.mxu0 0.0
    %2932 = vmatprep.subr.mxu0 0.0
    %2933 = vmatpush1.msra.mxu0 0.0
    %2934 = vmatprep.subr.mxu0 0.0
    %2935 = vmatpush1.msra.mxu0 0.0
    %2936 = vmatprep.subr.mxu0 0.0
    %2937 = vmatpush1.msra.mxu0 0.0
    %2938 = vmatprep.subr.mxu0 0.0
    %2939 = vmatpush1.msra.mxu0 0.0
    %2940 = vmatprep.subr.mxu0 0.0
    %2941 = vmatpush1.msra.mxu0 0.0
    %2942 = vmatprep.subr.mxu0 0.0
    %2943 = vmatpush1.msra.mxu0 0.0
    %2944 = vmatprep.subr.mxu0 0.0
    %2945 = vmatpush1.msra.mxu0 0.0
    %2946 = vmatprep.subr.mxu0 0.0
    %2947 = vmatpush1.msra.mxu0 0.0
    %2948 = vmatprep.subr.mxu0 0.0
    %2949 = vmatpush1.msra.mxu0 0.0
    %2950 = vmatprep.mubr.f32.mxu0 0.0
    %2951 = vmatmul.mubr.f32.gmra.mrb[0].mxu0 %v2884
    %v2952 = vpop.f32.mrb[0].mxu0
    %v2953 = vadd.f32 0.0, %v2952
    %v2954 = vpop.f32.mrb[0].mxu0
    %2955 = vdwg.mxu0
    %v2956 = vadd.f32 %v2883, %v2953
    %v2957 = vxor.u32 %v2956, 2147483648
    %v2958 = vmul.f32 %v2957, 1.442695
    %v2959 = vpow.pop %v2958
    %v2960 = vadd.f32 %v2959, 1.0
    %v2961 = vrcp.pop %v2960
    %v2962 = vmul.f32 1.0, %v2961
    %v2963 = vtanh.pop %v2956
    %v2964 = vmul.f32 %v2962, %v2871
    %2966 = vrot.lane.b32.xlu0 %v2963, 32
    %v2967 = vpop.permute.xlu0 %2966
    %v2969 = vmul.f32 %v2962, %v2967
    %2971 = vrot.lane.b32.xlu0 %v2969, 32
    %v2972 = vpop.permute.xlu0 %2971
    %v2974 = vadd.f32 %v2964, %v2972
    %v2975 = vtanh.pop %v2974
    %2977 = vrot.lane.b32.xlu0 %v2975, 32
    %v2978 = vpop.permute.xlu0 %2977
    %v2980 = vmul.f32 %v2962, %v2978
    %2982 = vrot.lane.b32.xlu0 %v2980, 64
    %v2983 = vpop.permute.xlu0 %2982
    %2985 = vst.msk [vmem:[#allocation2 + $0x38] sm:$0xff] %vm62, %v2983
    %v2986 = vld [vmem:[#allocation3 + $0x40] sm:$0xff]
    %v2987 = vsel %vm62, %v2983, 0
    %2989 = vmatprep.subr.mxu0 0.0
    %2990 = vmatpush1.msra.mxu0 %v1927
    %2991 = vmatprep.subr.mxu0 0.0
    %2992 = vmatpush1.msra.mxu0 %v1928
    %2993 = vmatprep.subr.mxu0 0.0
    %2994 = vmatpush1.msra.mxu0 %v1929
    %2995 = vmatprep.subr.mxu0 0.0
    %2996 = vmatpush1.msra.mxu0 %v1930
    %2997 = vmatprep.subr.mxu0 0.0
    %2998 = vmatpush1.msra.mxu0 0.0
    %2999 = vmatprep.subr.mxu0 0.0
    %3000 = vmatpush1.msra.mxu0 0.0
    %3001 = vmatprep.subr.mxu0 0.0
    %3002 = vmatpush1.msra.mxu0 0.0
    %3003 = vmatprep.subr.mxu0 0.0
    %3004 = vmatpush1.msra.mxu0 0.0
    %3005 = vmatprep.subr.mxu0 0.0
    %3006 = vmatpush1.msra.mxu0 0.0
    %3007 = vmatprep.subr.mxu0 0.0
    %3008 = vmatpush1.msra.mxu0 0.0
    %3009 = vmatprep.subr.mxu0 0.0
    %3010 = vmatpush1.msra.mxu0 0.0
    %3011 = vmatprep.subr.mxu0 0.0
    %3012 = vmatpush1.msra.mxu0 0.0
    %3013 = vmatprep.subr.mxu0 0.0
    %3014 = vmatpush1.msra.mxu0 0.0
    %3015 = vmatprep.subr.mxu0 0.0
    %3016 = vmatpush1.msra.mxu0 0.0
    %3017 = vmatprep.subr.mxu0 0.0
    %3018 = vmatpush1.msra.mxu0 0.0
    %3019 = vmatprep.subr.mxu0 0.0
    %3020 = vmatpush1.msra.mxu0 0.0
    %3021 = vmatprep.subr.mxu0 0.0
    %3022 = vmatpush1.msra.mxu0 0.0
    %3023 = vmatprep.subr.mxu0 0.0
    %3024 = vmatpush1.msra.mxu0 0.0
    %3025 = vmatprep.subr.mxu0 0.0
    %3026 = vmatpush1.msra.mxu0 0.0
    %3027 = vmatprep.subr.mxu0 0.0
    %3028 = vmatpush1.msra.mxu0 0.0
    %3029 = vmatprep.subr.mxu0 0.0
    %3030 = vmatpush1.msra.mxu0 0.0
    %3031 = vmatprep.subr.mxu0 0.0
    %3032 = vmatpush1.msra.mxu0 0.0
    %3033 = vmatprep.subr.mxu0 0.0
    %3034 = vmatpush1.msra.mxu0 0.0
    %3035 = vmatprep.subr.mxu0 0.0
    %3036 = vmatpush1.msra.mxu0 0.0
    %3037 = vmatprep.subr.mxu0 0.0
    %3038 = vmatpush1.msra.mxu0 0.0
    %3039 = vmatprep.subr.mxu0 0.0
    %3040 = vmatpush1.msra.mxu0 0.0
    %3041 = vmatprep.subr.mxu0 0.0
    %3042 = vmatpush1.msra.mxu0 0.0
    %3043 = vmatprep.subr.mxu0 0.0
    %3044 = vmatpush1.msra.mxu0 0.0
    %3045 = vmatprep.subr.mxu0 0.0
    %3046 = vmatpush1.msra.mxu0 0.0
    %3047 = vmatprep.subr.mxu0 0.0
    %3048 = vmatpush1.msra.mxu0 0.0
    %3049 = vmatprep.subr.mxu0 0.0
    %3050 = vmatpush1.msra.mxu0 0.0
    %3051 = vmatprep.subr.mxu0 0.0
    %3052 = vmatpush1.msra.mxu0 0.0
    %3053 = vmatprep.mubr.f32.mxu0 0.0
    %3054 = vmatmul.mubr.f32.gmra.mrb[0].mxu0 %v2987
    %v3055 = vpop.f32.mrb[0].mxu0
    %v3056 = vadd.f32 0.0, %v3055
    %v3057 = vpop.f32.mrb[0].mxu0
    %3058 = vdwg.mxu0
    %v3059 = vadd.f32 %v2986, %v3056
    %v3060 = vxor.u32 %v3059, 2147483648
    %v3061 = vmul.f32 %v3060, 1.442695
    %v3062 = vpow.pop %v3061
    %v3063 = vadd.f32 %v3062, 1.0
    %v3064 = vrcp.pop %v3063
    %v3065 = vmul.f32 1.0, %v3064
    %v3066 = vtanh.pop %v3059
    %v3067 = vmul.f32 %v3065, %v2974
    %3069 = vrot.lane.b32.xlu0 %v3066, 32
    %v3070 = vpop.permute.xlu0 %3069
    %v3072 = vmul.f32 %v3065, %v3070
    %3074 = vrot.lane.b32.xlu0 %v3072, 32
    %v3075 = vpop.permute.xlu0 %3074
    %v3077 = vadd.f32 %v3067, %v3075
    %v3078 = vtanh.pop %v3077
    %3080 = vrot.lane.b32.xlu0 %v3078, 32
    %v3081 = vpop.permute.xlu0 %3080
    %v3083 = vmul.f32 %v3065, %v3081
    %3085 = vrot.lane.b32.xlu0 %v3083, 64
    %v3086 = vpop.permute.xlu0 %3085
    %3088 = vst.msk [vmem:[#allocation2 + $0x40] sm:$0xff] %vm62, %v3086
    %v3089 = vld [vmem:[#allocation3 + $0x48] sm:$0xff]
    %v3090 = vsel %vm62, %v3086, 0
    %3092 = vmatprep.subr.mxu0 0.0
    %3093 = vmatpush1.msra.mxu0 %v1927
    %3094 = vmatprep.subr.mxu0 0.0
    %3095 = vmatpush1.msra.mxu0 %v1928
    %3096 = vmatprep.subr.mxu0 0.0
    %3097 = vmatpush1.msra.mxu0 %v1929
    %3098 = vmatprep.subr.mxu0 0.0
    %3099 = vmatpush1.msra.mxu0 %v1930
    %3100 = vmatprep.subr.mxu0 0.0
    %3101 = vmatpush1.msra.mxu0 0.0
    %3102 = vmatprep.subr.mxu0 0.0
    %3103 = vmatpush1.msra.mxu0 0.0
    %3104 = vmatprep.subr.mxu0 0.0
    %3105 = vmatpush1.msra.mxu0 0.0
    %3106 = vmatprep.subr.mxu0 0.0
    %3107 = vmatpush1.msra.mxu0 0.0
    %3108 = vmatprep.subr.mxu0 0.0
    %3109 = vmatpush1.msra.mxu0 0.0
    %3110 = vmatprep.subr.mxu0 0.0
    %3111 = vmatpush1.msra.mxu0 0.0
    %3112 = vmatprep.subr.mxu0 0.0
    %3113 = vmatpush1.msra.mxu0 0.0
    %3114 = vmatprep.subr.mxu0 0.0
    %3115 = vmatpush1.msra.mxu0 0.0
    %3116 = vmatprep.subr.mxu0 0.0
    %3117 = vmatpush1.msra.mxu0 0.0
    %3118 = vmatprep.subr.mxu0 0.0
    %3119 = vmatpush1.msra.mxu0 0.0
    %3120 = vmatprep.subr.mxu0 0.0
    %3121 = vmatpush1.msra.mxu0 0.0
    %3122 = vmatprep.subr.mxu0 0.0
    %3123 = vmatpush1.msra.mxu0 0.0
    %3124 = vmatprep.subr.mxu0 0.0
    %3125 = vmatpush1.msra.mxu0 0.0
    %3126 = vmatprep.subr.mxu0 0.0
    %3127 = vmatpush1.msra.mxu0 0.0
    %3128 = vmatprep.subr.mxu0 0.0
    %3129 = vmatpush1.msra.mxu0 0.0
    %3130 = vmatprep.subr.mxu0 0.0
    %3131 = vmatpush1.msra.mxu0 0.0
    %3132 = vmatprep.subr.mxu0 0.0
    %3133 = vmatpush1.msra.mxu0 0.0
    %3134 = vmatprep.subr.mxu0 0.0
    %3135 = vmatpush1.msra.mxu0 0.0
    %3136 = vmatprep.subr.mxu0 0.0
    %3137 = vmatpush1.msra.mxu0 0.0
    %3138 = vmatprep.subr.mxu0 0.0
    %3139 = vmatpush1.msra.mxu0 0.0
    %3140 = vmatprep.subr.mxu0 0.0
    %3141 = vmatpush1.msra.mxu0 0.0
    %3142 = vmatprep.subr.mxu0 0.0
    %3143 = vmatpush1.msra.mxu0 0.0
    %3144 = vmatprep.subr.mxu0 0.0
    %3145 = vmatpush1.msra.mxu0 0.0
    %3146 = vmatprep.subr.mxu0 0.0
    %3147 = vmatpush1.msra.mxu0 0.0
    %3148 = vmatprep.subr.mxu0 0.0
    %3149 = vmatpush1.msra.mxu0 0.0
    %3150 = vmatprep.subr.mxu0 0.0
    %3151 = vmatpush1.msra.mxu0 0.0
    %3152 = vmatprep.subr.mxu0 0.0
    %3153 = vmatpush1.msra.mxu0 0.0
    %3154 = vmatprep.subr.mxu0 0.0
    %3155 = vmatpush1.msra.mxu0 0.0
    %3156 = vmatprep.mubr.f32.mxu0 0.0
    %3157 = vmatmul.mubr.f32.gmra.mrb[0].mxu0 %v3090
    %v3158 = vpop.f32.mrb[0].mxu0
    %v3159 = vadd.f32 0.0, %v3158
    %v3160 = vpop.f32.mrb[0].mxu0
    %3161 = vdwg.mxu0
    %v3162 = vadd.f32 %v3089, %v3159
    %v3163 = vxor.u32 %v3162, 2147483648
    %v3164 = vmul.f32 %v3163, 1.442695
    %v3165 = vpow.pop %v3164
    %v3166 = vadd.f32 %v3165, 1.0
    %v3167 = vrcp.pop %v3166
    %v3168 = vmul.f32 1.0, %v3167
    %v3169 = vtanh.pop %v3162
    %v3170 = vmul.f32 %v3168, %v3077
    %3172 = vrot.lane.b32.xlu0 %v3169, 32
    %v3173 = vpop.permute.xlu0 %3172
    %v3175 = vmul.f32 %v3168, %v3173
    %3177 = vrot.lane.b32.xlu0 %v3175, 32
    %v3178 = vpop.permute.xlu0 %3177
    %v3180 = vadd.f32 %v3170, %v3178
    %v3181 = vtanh.pop %v3180
    %3183 = vrot.lane.b32.xlu0 %v3181, 32
    %v3184 = vpop.permute.xlu0 %3183
    %v3186 = vmul.f32 %v3168, %v3184
    %3188 = vrot.lane.b32.xlu0 %v3186, 64
    %v3189 = vpop.permute.xlu0 %3188
    %3191 = vst.msk [vmem:[#allocation2 + $0x48] sm:$0xff] %vm62, %v3189
    %v3192 = vld [vmem:[#allocation3 + $0x50] sm:$0xff]
    %v3193 = vsel %vm62, %v3189, 0
    %3195 = vmatprep.subr.mxu0 0.0
    %3196 = vmatpush1.msra.mxu0 %v1927
    %3197 = vmatprep.subr.mxu0 0.0
    %3198 = vmatpush1.msra.mxu0 %v1928
    %3199 = vmatprep.subr.mxu0 0.0
    %3200 = vmatpush1.msra.mxu0 %v1929
    %3201 = vmatprep.subr.mxu0 0.0
    %3202 = vmatpush1.msra.mxu0 %v1930
    %3203 = vmatprep.subr.mxu0 0.0
    %3204 = vmatpush1.msra.mxu0 0.0
    %3205 = vmatprep.subr.mxu0 0.0
    %3206 = vmatpush1.msra.mxu0 0.0
    %3207 = vmatprep.subr.mxu0 0.0
    %3208 = vmatpush1.msra.mxu0 0.0
    %3209 = vmatprep.subr.mxu0 0.0
    %3210 = vmatpush1.msra.mxu0 0.0
    %3211 = vmatprep.subr.mxu0 0.0
    %3212 = vmatpush1.msra.mxu0 0.0
    %3213 = vmatprep.subr.mxu0 0.0
    %3214 = vmatpush1.msra.mxu0 0.0
    %3215 = vmatprep.subr.mxu0 0.0
    %3216 = vmatpush1.msra.mxu0 0.0
    %3217 = vmatprep.subr.mxu0 0.0
    %3218 = vmatpush1.msra.mxu0 0.0
    %3219 = vmatprep.subr.mxu0 0.0
    %3220 = vmatpush1.msra.mxu0 0.0
    %3221 = vmatprep.subr.mxu0 0.0
    %3222 = vmatpush1.msra.mxu0 0.0
    %3223 = vmatprep.subr.mxu0 0.0
    %3224 = vmatpush1.msra.mxu0 0.0
    %3225 = vmatprep.subr.mxu0 0.0
    %3226 = vmatpush1.msra.mxu0 0.0
    %3227 = vmatprep.subr.mxu0 0.0
    %3228 = vmatpush1.msra.mxu0 0.0
    %3229 = vmatprep.subr.mxu0 0.0
    %3230 = vmatpush1.msra.mxu0 0.0
    %3231 = vmatprep.subr.mxu0 0.0
    %3232 = vmatpush1.msra.mxu0 0.0
    %3233 = vmatprep.subr.mxu0 0.0
    %3234 = vmatpush1.msra.mxu0 0.0
    %3235 = vmatprep.subr.mxu0 0.0
    %3236 = vmatpush1.msra.mxu0 0.0
    %3237 = vmatprep.subr.mxu0 0.0
    %3238 = vmatpush1.msra.mxu0 0.0
    %3239 = vmatprep.subr.mxu0 0.0
    %3240 = vmatpush1.msra.mxu0 0.0
    %3241 = vmatprep.subr.mxu0 0.0
    %3242 = vmatpush1.msra.mxu0 0.0
    %3243 = vmatprep.subr.mxu0 0.0
    %3244 = vmatpush1.msra.mxu0 0.0
    %3245 = vmatprep.subr.mxu0 0.0
    %3246 = vmatpush1.msra.mxu0 0.0
    %3247 = vmatprep.subr.mxu0 0.0
    %3248 = vmatpush1.msra.mxu0 0.0
    %3249 = vmatprep.subr.mxu0 0.0
    %3250 = vmatpush1.msra.mxu0 0.0
    %3251 = vmatprep.subr.mxu0 0.0
    %3252 = vmatpush1.msra.mxu0 0.0
    %3253 = vmatprep.subr.mxu0 0.0
    %3254 = vmatpush1.msra.mxu0 0.0
    %3255 = vmatprep.subr.mxu0 0.0
    %3256 = vmatpush1.msra.mxu0 0.0
    %3257 = vmatprep.subr.mxu0 0.0
    %3258 = vmatpush1.msra.mxu0 0.0
    %3259 = vmatprep.mubr.f32.mxu0 0.0
    %3260 = vmatmul.mubr.f32.gmra.mrb[0].mxu0 %v3193
    %v3261 = vpop.f32.mrb[0].mxu0
    %v3262 = vadd.f32 0.0, %v3261
    %v3263 = vpop.f32.mrb[0].mxu0
    %3264 = vdwg.mxu0
    %v3265 = vadd.f32 %v3192, %v3262
    %v3266 = vxor.u32 %v3265, 2147483648
    %v3267 = vmul.f32 %v3266, 1.442695
    %v3268 = vpow.pop %v3267
    %v3269 = vadd.f32 %v3268, 1.0
    %v3270 = vrcp.pop %v3269
    %v3271 = vmul.f32 1.0, %v3270
    %v3272 = vtanh.pop %v3265
    %v3273 = vmul.f32 %v3271, %v3180
    %3275 = vrot.lane.b32.xlu0 %v3272, 32
    %v3276 = vpop.permute.xlu0 %3275
    %v3278 = vmul.f32 %v3271, %v3276
    %3280 = vrot.lane.b32.xlu0 %v3278, 32
    %v3281 = vpop.permute.xlu0 %3280
    %v3283 = vadd.f32 %v3273, %v3281
    %v3284 = vtanh.pop %v3283
    %3286 = vrot.lane.b32.xlu0 %v3284, 32
    %v3287 = vpop.permute.xlu0 %3286
    %v3289 = vmul.f32 %v3271, %v3287
    %3291 = vrot.lane.b32.xlu0 %v3289, 64
    %v3292 = vpop.permute.xlu0 %3291
    %3294 = vst.msk [vmem:[#allocation2 + $0x50] sm:$0xff] %vm62, %v3292
    %v3295 = vld [vmem:[#allocation3 + $0x58] sm:$0xff]
    %v3296 = vsel %vm62, %v3292, 0
    %3298 = vmatprep.subr.mxu0 0.0
    %3299 = vmatpush1.msra.mxu0 %v1927
    %3300 = vmatprep.subr.mxu0 0.0
    %3301 = vmatpush1.msra.mxu0 %v1928
    %3302 = vmatprep.subr.mxu0 0.0
    %3303 = vmatpush1.msra.mxu0 %v1929
    %3304 = vmatprep.subr.mxu0 0.0
    %3305 = vmatpush1.msra.mxu0 %v1930
    %3306 = vmatprep.subr.mxu0 0.0
    %3307 = vmatpush1.msra.mxu0 0.0
    %3308 = vmatprep.subr.mxu0 0.0
    %3309 = vmatpush1.msra.mxu0 0.0
    %3310 = vmatprep.subr.mxu0 0.0
    %3311 = vmatpush1.msra.mxu0 0.0
    %3312 = vmatprep.subr.mxu0 0.0
    %3313 = vmatpush1.msra.mxu0 0.0
    %3314 = vmatprep.subr.mxu0 0.0
    %3315 = vmatpush1.msra.mxu0 0.0
    %3316 = vmatprep.subr.mxu0 0.0
    %3317 = vmatpush1.msra.mxu0 0.0
    %3318 = vmatprep.subr.mxu0 0.0
    %3319 = vmatpush1.msra.mxu0 0.0
    %3320 = vmatprep.subr.mxu0 0.0
    %3321 = vmatpush1.msra.mxu0 0.0
    %3322 = vmatprep.subr.mxu0 0.0
    %3323 = vmatpush1.msra.mxu0 0.0
    %3324 = vmatprep.subr.mxu0 0.0
    %3325 = vmatpush1.msra.mxu0 0.0
    %3326 = vmatprep.subr.mxu0 0.0
    %3327 = vmatpush1.msra.mxu0 0.0
    %3328 = vmatprep.subr.mxu0 0.0
    %3329 = vmatpush1.msra.mxu0 0.0
    %3330 = vmatprep.subr.mxu0 0.0
    %3331 = vmatpush1.msra.mxu0 0.0
    %3332 = vmatprep.subr.mxu0 0.0
    %3333 = vmatpush1.msra.mxu0 0.0
    %3334 = vmatprep.subr.mxu0 0.0
    %3335 = vmatpush1.msra.mxu0 0.0
    %3336 = vmatprep.subr.mxu0 0.0
    %3337 = vmatpush1.msra.mxu0 0.0
    %3338 = vmatprep.subr.mxu0 0.0
    %3339 = vmatpush1.msra.mxu0 0.0
    %3340 = vmatprep.subr.mxu0 0.0
    %3341 = vmatpush1.msra.mxu0 0.0
    %3342 = vmatprep.subr.mxu0 0.0
    %3343 = vmatpush1.msra.mxu0 0.0
    %3344 = vmatprep.subr.mxu0 0.0
    %3345 = vmatpush1.msra.mxu0 0.0
    %3346 = vmatprep.subr.mxu0 0.0
    %3347 = vmatpush1.msra.mxu0 0.0
    %3348 = vmatprep.subr.mxu0 0.0
    %3349 = vmatpush1.msra.mxu0 0.0
    %3350 = vmatprep.subr.mxu0 0.0
    %3351 = vmatpush1.msra.mxu0 0.0
    %3352 = vmatprep.subr.mxu0 0.0
    %3353 = vmatpush1.msra.mxu0 0.0
    %3354 = vmatprep.subr.mxu0 0.0
    %3355 = vmatpush1.msra.mxu0 0.0
    %3356 = vmatprep.subr.mxu0 0.0
    %3357 = vmatpush1.msra.mxu0 0.0
    %3358 = vmatprep.subr.mxu0 0.0
    %3359 = vmatpush1.msra.mxu0 0.0
    %3360 = vmatprep.subr.mxu0 0.0
    %3361 = vmatpush1.msra.mxu0 0.0
    %3362 = vmatprep.mubr.f32.mxu0 0.0
    %3363 = vmatmul.mubr.f32.gmra.mrb[0].mxu0 %v3296
    %v3364 = vpop.f32.mrb[0].mxu0
    %v3365 = vadd.f32 0.0, %v3364
    %v3366 = vpop.f32.mrb[0].mxu0
    %3367 = vdwg.mxu0
    %v3368 = vadd.f32 %v3295, %v3365
    %v3369 = vxor.u32 %v3368, 2147483648
    %v3370 = vmul.f32 %v3369, 1.442695
    %v3371 = vpow.pop %v3370
    %v3372 = vadd.f32 %v3371, 1.0
    %v3373 = vrcp.pop %v3372
    %v3374 = vmul.f32 1.0, %v3373
    %v3375 = vtanh.pop %v3368
    %v3376 = vmul.f32 %v3374, %v3283
    %3378 = vrot.lane.b32.xlu0 %v3375, 32
    %v3379 = vpop.permute.xlu0 %3378
    %v3381 = vmul.f32 %v3374, %v3379
    %3383 = vrot.lane.b32.xlu0 %v3381, 32
    %v3384 = vpop.permute.xlu0 %3383
    %v3386 = vadd.f32 %v3376, %v3384
    %v3387 = vtanh.pop %v3386
    %3389 = vrot.lane.b32.xlu0 %v3387, 32
    %v3390 = vpop.permute.xlu0 %3389
    %v3392 = vmul.f32 %v3374, %v3390
    %3394 = vrot.lane.b32.xlu0 %v3392, 64
    %v3395 = vpop.permute.xlu0 %3394
    %3397 = vst.msk [vmem:[#allocation2 + $0x58] sm:$0xff] %vm62, %v3395
    %v3398 = vld [vmem:[#allocation3 + $0x60] sm:$0xff]
    %v3399 = vsel %vm62, %v3395, 0
    %3401 = vmatprep.subr.mxu0 0.0
    %3402 = vmatpush1.msra.mxu0 %v1927
    %3403 = vmatprep.subr.mxu0 0.0
    %3404 = vmatpush1.msra.mxu0 %v1928
    %3405 = vmatprep.subr.mxu0 0.0
    %3406 = vmatpush1.msra.mxu0 %v1929
    %3407 = vmatprep.subr.mxu0 0.0
    %3408 = vmatpush1.msra.mxu0 %v1930
    %3409 = vmatprep.subr.mxu0 0.0
    %3410 = vmatpush1.msra.mxu0 0.0
    %3411 = vmatprep.subr.mxu0 0.0
    %3412 = vmatpush1.msra.mxu0 0.0
    %3413 = vmatprep.subr.mxu0 0.0
    %3414 = vmatpush1.msra.mxu0 0.0
    %3415 = vmatprep.subr.mxu0 0.0
    %3416 = vmatpush1.msra.mxu0 0.0
    %3417 = vmatprep.subr.mxu0 0.0
    %3418 = vmatpush1.msra.mxu0 0.0
    %3419 = vmatprep.subr.mxu0 0.0
    %3420 = vmatpush1.msra.mxu0 0.0
    %3421 = vmatprep.subr.mxu0 0.0
    %3422 = vmatpush1.msra.mxu0 0.0
    %3423 = vmatprep.subr.mxu0 0.0
    %3424 = vmatpush1.msra.mxu0 0.0
    %3425 = vmatprep.subr.mxu0 0.0
    %3426 = vmatpush1.msra.mxu0 0.0
    %3427 = vmatprep.subr.mxu0 0.0
    %3428 = vmatpush1.msra.mxu0 0.0
    %3429 = vmatprep.subr.mxu0 0.0
    %3430 = vmatpush1.msra.mxu0 0.0
    %3431 = vmatprep.subr.mxu0 0.0
    %3432 = vmatpush1.msra.mxu0 0.0
    %3433 = vmatprep.subr.mxu0 0.0
    %3434 = vmatpush1.msra.mxu0 0.0
    %3435 = vmatprep.subr.mxu0 0.0
    %3436 = vmatpush1.msra.mxu0 0.0
    %3437 = vmatprep.subr.mxu0 0.0
    %3438 = vmatpush1.msra.mxu0 0.0
    %3439 = vmatprep.subr.mxu0 0.0
    %3440 = vmatpush1.msra.mxu0 0.0
    %3441 = vmatprep.subr.mxu0 0.0
    %3442 = vmatpush1.msra.mxu0 0.0
    %3443 = vmatprep.subr.mxu0 0.0
    %3444 = vmatpush1.msra.mxu0 0.0
    %3445 = vmatprep.subr.mxu0 0.0
    %3446 = vmatpush1.msra.mxu0 0.0
    %3447 = vmatprep.subr.mxu0 0.0
    %3448 = vmatpush1.msra.mxu0 0.0
    %3449 = vmatprep.subr.mxu0 0.0
    %3450 = vmatpush1.msra.mxu0 0.0
    %3451 = vmatprep.subr.mxu0 0.0
    %3452 = vmatpush1.msra.mxu0 0.0
    %3453 = vmatprep.subr.mxu0 0.0
    %3454 = vmatpush1.msra.mxu0 0.0
    %3455 = vmatprep.subr.mxu0 0.0
    %3456 = vmatpush1.msra.mxu0 0.0
    %3457 = vmatprep.subr.mxu0 0.0
    %3458 = vmatpush1.msra.mxu0 0.0
    %3459 = vmatprep.subr.mxu0 0.0
    %3460 = vmatpush1.msra.mxu0 0.0
    %3461 = vmatprep.subr.mxu0 0.0
    %3462 = vmatpush1.msra.mxu0 0.0
    %3463 = vmatprep.subr.mxu0 0.0
    %3464 = vmatpush1.msra.mxu0 0.0
    %3465 = vmatprep.mubr.f32.mxu0 0.0
    %3466 = vmatmul.mubr.f32.gmra.mrb[0].mxu0 %v3399
    %v3467 = vpop.f32.mrb[0].mxu0
    %v3468 = vadd.f32 0.0, %v3467
    %v3469 = vpop.f32.mrb[0].mxu0
    %3470 = vdwg.mxu0
    %v3471 = vadd.f32 %v3398, %v3468
    %v3472 = vxor.u32 %v3471, 2147483648
    %v3473 = vmul.f32 %v3472, 1.442695
    %v3474 = vpow.pop %v3473
    %v3475 = vadd.f32 %v3474, 1.0
    %v3476 = vrcp.pop %v3475
    %v3477 = vmul.f32 1.0, %v3476
    %v3478 = vtanh.pop %v3471
    %v3479 = vmul.f32 %v3477, %v3386
    %3481 = vrot.lane.b32.xlu0 %v3478, 32
    %v3482 = vpop.permute.xlu0 %3481
    %v3484 = vmul.f32 %v3477, %v3482
    %3486 = vrot.lane.b32.xlu0 %v3484, 32
    %v3487 = vpop.permute.xlu0 %3486
    %v3489 = vadd.f32 %v3479, %v3487
    %v3490 = vtanh.pop %v3489
    %3492 = vrot.lane.b32.xlu0 %v3490, 32
    %v3493 = vpop.permute.xlu0 %3492
    %v3495 = vmul.f32 %v3477, %v3493
    %3497 = vrot.lane.b32.xlu0 %v3495, 64
    %v3498 = vpop.permute.xlu0 %3497
    %3500 = vst.msk [vmem:[#allocation2 + $0x60] sm:$0xff] %vm62, %v3498
    %v3501 = vld [vmem:[#allocation3 + $0x68] sm:$0xff]
    %v3502 = vsel %vm62, %v3498, 0
    %3504 = vmatprep.subr.mxu0 0.0
    %3505 = vmatpush1.msra.mxu0 %v1927
    %3506 = vmatprep.subr.mxu0 0.0
    %3507 = vmatpush1.msra.mxu0 %v1928
    %3508 = vmatprep.subr.mxu0 0.0
    %3509 = vmatpush1.msra.mxu0 %v1929
    %3510 = vmatprep.subr.mxu0 0.0
    %3511 = vmatpush1.msra.mxu0 %v1930
    %3512 = vmatprep.subr.mxu0 0.0
    %3513 = vmatpush1.msra.mxu0 0.0
    %3514 = vmatprep.subr.mxu0 0.0
    %3515 = vmatpush1.msra.mxu0 0.0
    %3516 = vmatprep.subr.mxu0 0.0
    %3517 = vmatpush1.msra.mxu0 0.0
    %3518 = vmatprep.subr.mxu0 0.0
    %3519 = vmatpush1.msra.mxu0 0.0
    %3520 = vmatprep.subr.mxu0 0.0
    %3521 = vmatpush1.msra.mxu0 0.0
    %3522 = vmatprep.subr.mxu0 0.0
    %3523 = vmatpush1.msra.mxu0 0.0
    %3524 = vmatprep.subr.mxu0 0.0
    %3525 = vmatpush1.msra.mxu0 0.0
    %3526 = vmatprep.subr.mxu0 0.0
    %3527 = vmatpush1.msra.mxu0 0.0
    %3528 = vmatprep.subr.mxu0 0.0
    %3529 = vmatpush1.msra.mxu0 0.0
    %3530 = vmatprep.subr.mxu0 0.0
    %3531 = vmatpush1.msra.mxu0 0.0
    %3532 = vmatprep.subr.mxu0 0.0
    %3533 = vmatpush1.msra.mxu0 0.0
    %3534 = vmatprep.subr.mxu0 0.0
    %3535 = vmatpush1.msra.mxu0 0.0
    %3536 = vmatprep.subr.mxu0 0.0
    %3537 = vmatpush1.msra.mxu0 0.0
    %3538 = vmatprep.subr.mxu0 0.0
    %3539 = vmatpush1.msra.mxu0 0.0
    %3540 = vmatprep.subr.mxu0 0.0
    %3541 = vmatpush1.msra.mxu0 0.0
    %3542 = vmatprep.subr.mxu0 0.0
    %3543 = vmatpush1.msra.mxu0 0.0
    %3544 = vmatprep.subr.mxu0 0.0
    %3545 = vmatpush1.msra.mxu0 0.0
    %3546 = vmatprep.subr.mxu0 0.0
    %3547 = vmatpush1.msra.mxu0 0.0
    %3548 = vmatprep.subr.mxu0 0.0
    %3549 = vmatpush1.msra.mxu0 0.0
    %3550 = vmatprep.subr.mxu0 0.0
    %3551 = vmatpush1.msra.mxu0 0.0
    %3552 = vmatprep.subr.mxu0 0.0
    %3553 = vmatpush1.msra.mxu0 0.0
    %3554 = vmatprep.subr.mxu0 0.0
    %3555 = vmatpush1.msra.mxu0 0.0
    %3556 = vmatprep.subr.mxu0 0.0
    %3557 = vmatpush1.msra.mxu0 0.0
    %3558 = vmatprep.subr.mxu0 0.0
    %3559 = vmatpush1.msra.mxu0 0.0
    %3560 = vmatprep.subr.mxu0 0.0
    %3561 = vmatpush1.msra.mxu0 0.0
    %3562 = vmatprep.subr.mxu0 0.0
    %3563 = vmatpush1.msra.mxu0 0.0
    %3564 = vmatprep.subr.mxu0 0.0
    %3565 = vmatpush1.msra.mxu0 0.0
    %3566 = vmatprep.subr.mxu0 0.0
    %3567 = vmatpush1.msra.mxu0 0.0
    %3568 = vmatprep.mubr.f32.mxu0 0.0
    %3569 = vmatmul.mubr.f32.gmra.mrb[0].mxu0 %v3502
    %v3570 = vpop.f32.mrb[0].mxu0
    %v3571 = vadd.f32 0.0, %v3570
    %v3572 = vpop.f32.mrb[0].mxu0
    %3573 = vdwg.mxu0
    %v3574 = vadd.f32 %v3501, %v3571
    %v3575 = vxor.u32 %v3574, 2147483648
    %v3576 = vmul.f32 %v3575, 1.442695
    %v3577 = vpow.pop %v3576
    %v3578 = vadd.f32 %v3577, 1.0
    %v3579 = vrcp.pop %v3578
    %v3580 = vmul.f32 1.0, %v3579
    %v3581 = vtanh.pop %v3574
    %v3582 = vmul.f32 %v3580, %v3489
    %3584 = vrot.lane.b32.xlu0 %v3581, 32
    %v3585 = vpop.permute.xlu0 %3584
    %v3587 = vmul.f32 %v3580, %v3585
    %3589 = vrot.lane.b32.xlu0 %v3587, 32
    %v3590 = vpop.permute.xlu0 %3589
    %v3592 = vadd.f32 %v3582, %v3590
    %v3593 = vtanh.pop %v3592
    %3595 = vrot.lane.b32.xlu0 %v3593, 32
    %v3596 = vpop.permute.xlu0 %3595
    %v3598 = vmul.f32 %v3580, %v3596
    %3600 = vrot.lane.b32.xlu0 %v3598, 64
    %v3601 = vpop.permute.xlu0 %3600
    %3603 = vst.msk [vmem:[#allocation2 + $0x68] sm:$0xff] %vm62, %v3601
    %v3604 = vld [vmem:[#allocation3 + $0x70] sm:$0xff]
    %v3605 = vsel %vm62, %v3601, 0
    %3607 = vmatprep.subr.mxu0 0.0
    %3608 = vmatpush1.msra.mxu0 %v1927
    %3609 = vmatprep.subr.mxu0 0.0
    %3610 = vmatpush1.msra.mxu0 %v1928
    %3611 = vmatprep.subr.mxu0 0.0
    %3612 = vmatpush1.msra.mxu0 %v1929
    %3613 = vmatprep.subr.mxu0 0.0
    %3614 = vmatpush1.msra.mxu0 %v1930
    %3615 = vmatprep.subr.mxu0 0.0
    %3616 = vmatpush1.msra.mxu0 0.0
    %3617 = vmatprep.subr.mxu0 0.0
    %3618 = vmatpush1.msra.mxu0 0.0
    %3619 = vmatprep.subr.mxu0 0.0
    %3620 = vmatpush1.msra.mxu0 0.0
    %3621 = vmatprep.subr.mxu0 0.0
    %3622 = vmatpush1.msra.mxu0 0.0
    %3623 = vmatprep.subr.mxu0 0.0
    %3624 = vmatpush1.msra.mxu0 0.0
    %3625 = vmatprep.subr.mxu0 0.0
    %3626 = vmatpush1.msra.mxu0 0.0
    %3627 = vmatprep.subr.mxu0 0.0
    %3628 = vmatpush1.msra.mxu0 0.0
    %3629 = vmatprep.subr.mxu0 0.0
    %3630 = vmatpush1.msra.mxu0 0.0
    %3631 = vmatprep.subr.mxu0 0.0
    %3632 = vmatpush1.msra.mxu0 0.0
    %3633 = vmatprep.subr.mxu0 0.0
    %3634 = vmatpush1.msra.mxu0 0.0
    %3635 = vmatprep.subr.mxu0 0.0
    %3636 = vmatpush1.msra.mxu0 0.0
    %3637 = vmatprep.subr.mxu0 0.0
    %3638 = vmatpush1.msra.mxu0 0.0
    %3639 = vmatprep.subr.mxu0 0.0
    %3640 = vmatpush1.msra.mxu0 0.0
    %3641 = vmatprep.subr.mxu0 0.0
    %3642 = vmatpush1.msra.mxu0 0.0
    %3643 = vmatprep.subr.mxu0 0.0
    %3644 = vmatpush1.msra.mxu0 0.0
    %3645 = vmatprep.subr.mxu0 0.0
    %3646 = vmatpush1.msra.mxu0 0.0
    %3647 = vmatprep.subr.mxu0 0.0
    %3648 = vmatpush1.msra.mxu0 0.0
    %3649 = vmatprep.subr.mxu0 0.0
    %3650 = vmatpush1.msra.mxu0 0.0
    %3651 = vmatprep.subr.mxu0 0.0
    %3652 = vmatpush1.msra.mxu0 0.0
    %3653 = vmatprep.subr.mxu0 0.0
    %3654 = vmatpush1.msra.mxu0 0.0
    %3655 = vmatprep.subr.mxu0 0.0
    %3656 = vmatpush1.msra.mxu0 0.0
    %3657 = vmatprep.subr.mxu0 0.0
    %3658 = vmatpush1.msra.mxu0 0.0
    %3659 = vmatprep.subr.mxu0 0.0
    %3660 = vmatpush1.msra.mxu0 0.0
    %3661 = vmatprep.subr.mxu0 0.0
    %3662 = vmatpush1.msra.mxu0 0.0
    %3663 = vmatprep.subr.mxu0 0.0
    %3664 = vmatpush1.msra.mxu0 0.0
    %3665 = vmatprep.subr.mxu0 0.0
    %3666 = vmatpush1.msra.mxu0 0.0
    %3667 = vmatprep.subr.mxu0 0.0
    %3668 = vmatpush1.msra.mxu0 0.0
    %3669 = vmatprep.subr.mxu0 0.0
    %3670 = vmatpush1.msra.mxu0 0.0
    %3671 = vmatprep.mubr.f32.mxu0 0.0
    %3672 = vmatmul.mubr.f32.gmra.mrb[0].mxu0 %v3605
    %v3673 = vpop.f32.mrb[0].mxu0
    %v3674 = vadd.f32 0.0, %v3673
    %v3675 = vpop.f32.mrb[0].mxu0
    %3676 = vdwg.mxu0
    %v3677 = vadd.f32 %v3604, %v3674
    %v3678 = vxor.u32 %v3677, 2147483648
    %v3679 = vmul.f32 %v3678, 1.442695
    %v3680 = vpow.pop %v3679
    %v3681 = vadd.f32 %v3680, 1.0
    %v3682 = vrcp.pop %v3681
    %v3683 = vmul.f32 1.0, %v3682
    %v3684 = vtanh.pop %v3677
    %v3685 = vmul.f32 %v3683, %v3592
    %3687 = vrot.lane.b32.xlu0 %v3684, 32
    %v3688 = vpop.permute.xlu0 %3687
    %v3690 = vmul.f32 %v3683, %v3688
    %3692 = vrot.lane.b32.xlu0 %v3690, 32
    %v3693 = vpop.permute.xlu0 %3692
    %v3695 = vadd.f32 %v3685, %v3693
    %v3696 = vtanh.pop %v3695
    %3698 = vrot.lane.b32.xlu0 %v3696, 32
    %v3699 = vpop.permute.xlu0 %3698
    %v3701 = vmul.f32 %v3683, %v3699
    %3703 = vrot.lane.b32.xlu0 %v3701, 64
    %v3704 = vpop.permute.xlu0 %3703
    %3706 = vst.msk [vmem:[#allocation2 + $0x70] sm:$0xff] %vm62, %v3704
    %v3707 = vld [vmem:[#allocation3 + $0x78] sm:$0xff]
    %v3708 = vsel %vm62, %v3704, 0
    %3710 = vmatprep.subr.mxu0 0.0
    %3711 = vmatpush1.msra.mxu0 %v1927
    %3712 = vmatprep.subr.mxu0 0.0
    %3713 = vmatpush1.msra.mxu0 %v1928
    %3714 = vmatprep.subr.mxu0 0.0
    %3715 = vmatpush1.msra.mxu0 %v1929
    %3716 = vmatprep.subr.mxu0 0.0
    %3717 = vmatpush1.msra.mxu0 %v1930
    %3718 = vmatprep.subr.mxu0 0.0
    %3719 = vmatpush1.msra.mxu0 0.0
    %3720 = vmatprep.subr.mxu0 0.0
    %3721 = vmatpush1.msra.mxu0 0.0
    %3722 = vmatprep.subr.mxu0 0.0
    %3723 = vmatpush1.msra.mxu0 0.0
    %3724 = vmatprep.subr.mxu0 0.0
    %3725 = vmatpush1.msra.mxu0 0.0
    %3726 = vmatprep.subr.mxu0 0.0
    %3727 = vmatpush1.msra.mxu0 0.0
    %3728 = vmatprep.subr.mxu0 0.0
    %3729 = vmatpush1.msra.mxu0 0.0
    %3730 = vmatprep.subr.mxu0 0.0
    %3731 = vmatpush1.msra.mxu0 0.0
    %3732 = vmatprep.subr.mxu0 0.0
    %3733 = vmatpush1.msra.mxu0 0.0
    %3734 = vmatprep.subr.mxu0 0.0
    %3735 = vmatpush1.msra.mxu0 0.0
    %3736 = vmatprep.subr.mxu0 0.0
    %3737 = vmatpush1.msra.mxu0 0.0
    %3738 = vmatprep.subr.mxu0 0.0
    %3739 = vmatpush1.msra.mxu0 0.0
    %3740 = vmatprep.subr.mxu0 0.0
    %3741 = vmatpush1.msra.mxu0 0.0
    %3742 = vmatprep.subr.mxu0 0.0
    %3743 = vmatpush1.msra.mxu0 0.0
    %3744 = vmatprep.subr.mxu0 0.0
    %3745 = vmatpush1.msra.mxu0 0.0
    %3746 = vmatprep.subr.mxu0 0.0
    %3747 = vmatpush1.msra.mxu0 0.0
    %3748 = vmatprep.subr.mxu0 0.0
    %3749 = vmatpush1.msra.mxu0 0.0
    %3750 = vmatprep.subr.mxu0 0.0
    %3751 = vmatpush1.msra.mxu0 0.0
    %3752 = vmatprep.subr.mxu0 0.0
    %3753 = vmatpush1.msra.mxu0 0.0
    %3754 = vmatprep.subr.mxu0 0.0
    %3755 = vmatpush1.msra.mxu0 0.0
    %3756 = vmatprep.subr.mxu0 0.0
    %3757 = vmatpush1.msra.mxu0 0.0
    %3758 = vmatprep.subr.mxu0 0.0
    %3759 = vmatpush1.msra.mxu0 0.0
    %3760 = vmatprep.subr.mxu0 0.0
    %3761 = vmatpush1.msra.mxu0 0.0
    %3762 = vmatprep.subr.mxu0 0.0
    %3763 = vmatpush1.msra.mxu0 0.0
    %3764 = vmatprep.subr.mxu0 0.0
    %3765 = vmatpush1.msra.mxu0 0.0
    %3766 = vmatprep.subr.mxu0 0.0
    %3767 = vmatpush1.msra.mxu0 0.0
    %3768 = vmatprep.subr.mxu0 0.0
    %3769 = vmatpush1.msra.mxu0 0.0
    %3770 = vmatprep.subr.mxu0 0.0
    %3771 = vmatpush1.msra.mxu0 0.0
    %3772 = vmatprep.subr.mxu0 0.0
    %3773 = vmatpush1.msra.mxu0 0.0
    %3774 = vmatprep.mubr.f32.mxu0 0.0
    %3775 = vmatmul.mubr.f32.gmra.mrb[0].mxu0 %v3708
    %v3776 = vpop.f32.mrb[0].mxu0
    %v3777 = vadd.f32 0.0, %v3776
    %v3778 = vpop.f32.mrb[0].mxu0
    %3779 = vdwg.mxu0
    %v3780 = vadd.f32 %v3707, %v3777
    %v3781 = vxor.u32 %v3780, 2147483648
    %v3782 = vmul.f32 %v3781, 1.442695
    %v3783 = vpow.pop %v3782
    %v3784 = vadd.f32 %v3783, 1.0
    %v3785 = vrcp.pop %v3784
    %v3786 = vmul.f32 1.0, %v3785
    %v3787 = vtanh.pop %v3780
    %v3788 = vmul.f32 %v3786, %v3695
    %3790 = vrot.lane.b32.xlu0 %v3787, 32
    %v3791 = vpop.permute.xlu0 %3790
    %v3793 = vmul.f32 %v3786, %v3791
    %3795 = vrot.lane.b32.xlu0 %v3793, 32
    %v3796 = vpop.permute.xlu0 %3795
    %v3798 = vadd.f32 %v3788, %v3796
    %v3799 = vtanh.pop %v3798
    %3801 = vrot.lane.b32.xlu0 %v3799, 32
    %v3802 = vpop.permute.xlu0 %3801
    %v3804 = vmul.f32 %v3786, %v3802
    %3806 = vrot.lane.b32.xlu0 %v3804, 64
    %v3807 = vpop.permute.xlu0 %3806
    %3809 = vst.msk [vmem:[#allocation2 + $0x78] sm:$0xff] %vm62, %v3807
    %s3810 = scalar_lea.vmem %s1, 64
    %v3811 = vld [vmem:[%s3810] sm:$0xff]
    %v3812 = vld [vmem:[%s3810 + $0x8] sm:$0xff]
    %v3813 = vld [vmem:[%s3810 + $0x10] sm:$0xff]
    %v3814 = vld [vmem:[%s3810 + $0x18] sm:$0xff]
    %s3815 = scalar_lea.vmem [#allocation4], 64
    %v3816 = vld [vmem:[%s3815] sm:$0xff]
    %v3817 = vld [vmem:[%s3815 + $0x8] sm:$0xff]
    %v3818 = vld [vmem:[%s3815 + $0x10] sm:$0xff]
    %v3819 = vld [vmem:[%s3815 + $0x18] sm:$0xff]
    %s3820 = scalar_lea.vmem %s3, 2
    %v3821 = vld [vmem:[%s3820] sm:$0x1]
    %v3822 = vld [vmem:[#allocation2] sm:$0xff]
    %v3823 = vld [vmem:[#allocation2 + $0x8] sm:$0xff]
    %v3824 = vld [vmem:[#allocation2 + $0x10] sm:$0xff]
    %v3825 = vld [vmem:[#allocation2 + $0x18] sm:$0xff]
    %v3826 = vld [vmem:[#allocation2 + $0x20] sm:$0xff]
    %v3827 = vld [vmem:[#allocation2 + $0x28] sm:$0xff]
    %v3828 = vld [vmem:[#allocation2 + $0x30] sm:$0xff]
    %v3829 = vld [vmem:[#allocation2 + $0x38] sm:$0xff]
    %v3830 = vld [vmem:[#allocation2 + $0x40] sm:$0xff]
    %v3831 = vld [vmem:[#allocation2 + $0x48] sm:$0xff]
    %v3832 = vld [vmem:[#allocation2 + $0x50] sm:$0xff]
    %v3833 = vld [vmem:[#allocation2 + $0x58] sm:$0xff]
    %v3834 = vld [vmem:[#allocation2 + $0x60] sm:$0xff]
    %v3835 = vld [vmem:[#allocation2 + $0x68] sm:$0xff]
    %v3836 = vld [vmem:[#allocation2 + $0x70] sm:$0xff]
    %v3837 = vld [vmem:[#allocation2 + $0x78] sm:$0xff]
    %v3839 = vlaneseq
    %v3840 = vshrl.u32 %v3839, 7
    %v3841 = vsub.s32 0, %v3840
    %v3842 = vrot.slane %v3821, %v3841
    %v3845 = vsel %vm62, %v3822, 0
    %v3848 = vsel %vm62, %v3823, 0
    %v3851 = vsel %vm62, %v3824, 0
    %v3854 = vsel %vm62, %v3825, 0
    %v3857 = vsel %vm62, %v3826, 0
    %v3860 = vsel %vm62, %v3827, 0
    %v3863 = vsel %vm62, %v3828, 0
    %v3866 = vsel %vm62, %v3829, 0
    %v3869 = vsel %vm62, %v3830, 0
    %v3872 = vsel %vm62, %v3831, 0
    %v3875 = vsel %vm62, %v3832, 0
    %v3878 = vsel %vm62, %v3833, 0
    %v3881 = vsel %vm62, %v3834, 0
    %v3884 = vsel %vm62, %v3835, 0
    %v3887 = vsel %vm62, %v3836, 0
    %v3890 = vsel %vm62, %v3837, 0
    %3892 = vmatprep.subr.mxu0 0.0
    %3893 = vmatpush1.msra.mxu0 %v3811
    %3894 = vmatprep.subr.mxu0 0.0
    %3895 = vmatpush1.msra.mxu0 %v3812
    %3896 = vmatprep.subr.mxu0 0.0
    %3897 = vmatpush1.msra.mxu0 %v3813
    %3898 = vmatprep.subr.mxu0 0.0
    %3899 = vmatpush1.msra.mxu0 %v3814
    %3900 = vmatprep.subr.mxu0 0.0
    %3901 = vmatpush1.msra.mxu0 0.0
    %3902 = vmatprep.subr.mxu0 0.0
    %3903 = vmatpush1.msra.mxu0 0.0
    %3904 = vmatprep.subr.mxu0 0.0
    %3905 = vmatpush1.msra.mxu0 0.0
    %3906 = vmatprep.subr.mxu0 0.0
    %3907 = vmatpush1.msra.mxu0 0.0
    %3908 = vmatprep.subr.mxu0 0.0
    %3909 = vmatpush1.msra.mxu0 0.0
    %3910 = vmatprep.subr.mxu0 0.0
    %3911 = vmatpush1.msra.mxu0 0.0
    %3912 = vmatprep.subr.mxu0 0.0
    %3913 = vmatpush1.msra.mxu0 0.0
    %3914 = vmatprep.subr.mxu0 0.0
    %3915 = vmatpush1.msra.mxu0 0.0
    %3916 = vmatprep.subr.mxu0 0.0
    %3917 = vmatpush1.msra.mxu0 0.0
    %3918 = vmatprep.subr.mxu0 0.0
    %3919 = vmatpush1.msra.mxu0 0.0
    %3920 = vmatprep.subr.mxu0 0.0
    %3921 = vmatpush1.msra.mxu0 0.0
    %3922 = vmatprep.subr.mxu0 0.0
    %3923 = vmatpush1.msra.mxu0 0.0
    %3924 = vmatprep.subr.mxu0 0.0
    %3925 = vmatpush1.msra.mxu0 0.0
    %3926 = vmatprep.subr.mxu0 0.0
    %3927 = vmatpush1.msra.mxu0 0.0
    %3928 = vmatprep.subr.mxu0 0.0
    %3929 = vmatpush1.msra.mxu0 0.0
    %3930 = vmatprep.subr.mxu0 0.0
    %3931 = vmatpush1.msra.mxu0 0.0
    %3932 = vmatprep.subr.mxu0 0.0
    %3933 = vmatpush1.msra.mxu0 0.0
    %3934 = vmatprep.subr.mxu0 0.0
    %3935 = vmatpush1.msra.mxu0 0.0
    %3936 = vmatprep.subr.mxu0 0.0
    %3937 = vmatpush1.msra.mxu0 0.0
    %3938 = vmatprep.subr.mxu0 0.0
    %3939 = vmatpush1.msra.mxu0 0.0
    %3940 = vmatprep.subr.mxu0 0.0
    %3941 = vmatpush1.msra.mxu0 0.0
    %3942 = vmatprep.subr.mxu0 0.0
    %3943 = vmatpush1.msra.mxu0 0.0
    %3944 = vmatprep.subr.mxu0 0.0
    %3945 = vmatpush1.msra.mxu0 0.0
    %3946 = vmatprep.subr.mxu0 0.0
    %3947 = vmatpush1.msra.mxu0 0.0
    %3948 = vmatprep.subr.mxu0 0.0
    %3949 = vmatpush1.msra.mxu0 0.0
    %3950 = vmatprep.subr.mxu0 0.0
    %3951 = vmatpush1.msra.mxu0 0.0
    %3952 = vmatprep.subr.mxu0 0.0
    %3953 = vmatpush1.msra.mxu0 0.0
    %3954 = vmatprep.subr.mxu0 0.0
    %3955 = vmatpush1.msra.mxu0 0.0
    %3956 = vmatprep.mubr.f32.mxu0 0.0
    %3957 = vmatmul.mubr.f32.gmra.mrb[0].mxu0 %v3845
    %v3958 = vpop.f32.mrb[0].mxu0
    %v3959 = vadd.f32 %v3842, %v3958
    %v3960 = vpop.f32.mrb[0].mxu0
    %3961 = vmatprep.mubr.f32.mxu0 0.0
    %3962 = vmatmul.mubr.f32.gmra.mrb[0].mxu0 %v3848
    %v3963 = vpop.f32.mrb[0].mxu0
    %v3964 = vadd.f32 %v3842, %v3963
    %v3965 = vpop.f32.mrb[0].mxu0
    %3966 = vmatprep.mubr.f32.mxu0 0.0
    %3967 = vmatmul.mubr.f32.gmra.mrb[0].mxu0 %v3851
    %v3968 = vpop.f32.mrb[0].mxu0
    %v3969 = vadd.f32 %v3842, %v3968
    %v3970 = vpop.f32.mrb[0].mxu0
    %3971 = vmatprep.mubr.f32.mxu0 0.0
    %3972 = vmatmul.mubr.f32.gmra.mrb[0].mxu0 %v3854
    %v3973 = vpop.f32.mrb[0].mxu0
    %v3974 = vadd.f32 %v3842, %v3973
    %v3975 = vpop.f32.mrb[0].mxu0
    %3976 = vmatprep.mubr.f32.mxu0 0.0
    %3977 = vmatmul.mubr.f32.gmra.mrb[0].mxu0 %v3857
    %v3978 = vpop.f32.mrb[0].mxu0
    %v3979 = vadd.f32 %v3842, %v3978
    %v3980 = vpop.f32.mrb[0].mxu0
    %3981 = vmatprep.mubr.f32.mxu0 0.0
    %3982 = vmatmul.mubr.f32.gmra.mrb[0].mxu0 %v3860
    %v3983 = vpop.f32.mrb[0].mxu0
    %v3984 = vadd.f32 %v3842, %v3983
    %v3985 = vpop.f32.mrb[0].mxu0
    %3986 = vmatprep.mubr.f32.mxu0 0.0
    %3987 = vmatmul.mubr.f32.gmra.mrb[0].mxu0 %v3863
    %v3988 = vpop.f32.mrb[0].mxu0
    %v3989 = vadd.f32 %v3842, %v3988
    %v3990 = vpop.f32.mrb[0].mxu0
    %3991 = vmatprep.mubr.f32.mxu0 0.0
    %3992 = vmatmul.mubr.f32.gmra.mrb[0].mxu0 %v3866
    %v3993 = vpop.f32.mrb[0].mxu0
    %v3994 = vadd.f32 %v3842, %v3993
    %v3995 = vpop.f32.mrb[0].mxu0
    %3996 = vmatprep.mubr.f32.mxu0 0.0
    %3997 = vmatmul.mubr.f32.gmra.mrb[0].mxu0 %v3869
    %v3998 = vpop.f32.mrb[0].mxu0
    %v3999 = vadd.f32 %v3842, %v3998
    %v4000 = vpop.f32.mrb[0].mxu0
    %4001 = vmatprep.mubr.f32.mxu0 0.0
    %4002 = vmatmul.mubr.f32.gmra.mrb[0].mxu0 %v3872
    %v4003 = vpop.f32.mrb[0].mxu0
    %v4004 = vadd.f32 %v3842, %v4003
    %v4005 = vpop.f32.mrb[0].mxu0
    %4006 = vmatprep.mubr.f32.mxu0 0.0
    %4007 = vmatmul.mubr.f32.gmra.mrb[0].mxu0 %v3875
    %v4008 = vpop.f32.mrb[0].mxu0
    %v4009 = vadd.f32 %v3842, %v4008
    %v4010 = vpop.f32.mrb[0].mxu0
    %4011 = vmatprep.mubr.f32.mxu0 0.0
    %4012 = vmatmul.mubr.f32.gmra.mrb[0].mxu0 %v3878
    %v4013 = vpop.f32.mrb[0].mxu0
    %v4014 = vadd.f32 %v3842, %v4013
    %v4015 = vpop.f32.mrb[0].mxu0
    %4016 = vmatprep.mubr.f32.mxu0 0.0
    %4017 = vmatmul.mubr.f32.gmra.mrb[0].mxu0 %v3881
    %v4018 = vpop.f32.mrb[0].mxu0
    %v4019 = vadd.f32 %v3842, %v4018
    %v4020 = vpop.f32.mrb[0].mxu0
    %4021 = vmatprep.mubr.f32.mxu0 0.0
    %4022 = vmatmul.mubr.f32.gmra.mrb[0].mxu0 %v3884
    %v4023 = vpop.f32.mrb[0].mxu0
    %v4024 = vadd.f32 %v3842, %v4023
    %v4025 = vpop.f32.mrb[0].mxu0
    %4026 = vmatprep.mubr.f32.mxu0 0.0
    %4027 = vmatmul.mubr.f32.gmra.mrb[0].mxu0 %v3887
    %v4028 = vpop.f32.mrb[0].mxu0
    %v4029 = vadd.f32 %v3842, %v4028
    %v4030 = vpop.f32.mrb[0].mxu0
    %4031 = vmatprep.mubr.f32.mxu0 0.0
    %4032 = vmatmul.mubr.f32.gmra.mrb[0].mxu0 %v3890
    %v4033 = vpop.f32.mrb[0].mxu0
    %v4034 = vadd.f32 %v3842, %v4033
    %v4035 = vpop.f32.mrb[0].mxu0
    %4036 = vdwg.mxu0
    %4037 = vst [vmem:[#allocation3] sm:$0xff] %v3959
    %4038 = vst [vmem:[#allocation3 + $0x8] sm:$0xff] %v3964
    %4039 = vst [vmem:[#allocation3 + $0x10] sm:$0xff] %v3969
    %4040 = vst [vmem:[#allocation3 + $0x18] sm:$0xff] %v3974
    %4041 = vst [vmem:[#allocation3 + $0x20] sm:$0xff] %v3979
    %4042 = vst [vmem:[#allocation3 + $0x28] sm:$0xff] %v3984
    %4043 = vst [vmem:[#allocation3 + $0x30] sm:$0xff] %v3989
    %4044 = vst [vmem:[#allocation3 + $0x38] sm:$0xff] %v3994
    %4045 = vst [vmem:[#allocation3 + $0x40] sm:$0xff] %v3999
    %4046 = vst [vmem:[#allocation3 + $0x48] sm:$0xff] %v4004
    %4047 = vst [vmem:[#allocation3 + $0x50] sm:$0xff] %v4009
    %4048 = vst [vmem:[#allocation3 + $0x58] sm:$0xff] %v4014
    %4049 = vst [vmem:[#allocation3 + $0x60] sm:$0xff] %v4019
    %4050 = vst [vmem:[#allocation3 + $0x68] sm:$0xff] %v4024
    %4051 = vst [vmem:[#allocation3 + $0x70] sm:$0xff] %v4029
    %4052 = vst [vmem:[#allocation3 + $0x78] sm:$0xff] %v4034
    %v4053 = vld [vmem:[#allocation3] sm:$0xff]
    %4054 = vmatprep.subr.mxu0 0.0
    %4055 = vmatpush1.msra.mxu0 %v3816
    %4056 = vmatprep.subr.mxu0 0.0
    %4057 = vmatpush1.msra.mxu0 %v3817
    %4058 = vmatprep.subr.mxu0 0.0
    %4059 = vmatpush1.msra.mxu0 %v3818
    %4060 = vmatprep.subr.mxu0 0.0
    %4061 = vmatpush1.msra.mxu0 %v3819
    %4062 = vmatprep.subr.mxu0 0.0
    %4063 = vmatpush1.msra.mxu0 0.0
    %4064 = vmatprep.subr.mxu0 0.0
    %4065 = vmatpush1.msra.mxu0 0.0
    %4066 = vmatprep.subr.mxu0 0.0
    %4067 = vmatpush1.msra.mxu0 0.0
    %4068 = vmatprep.subr.mxu0 0.0
    %4069 = vmatpush1.msra.mxu0 0.0
    %4070 = vmatprep.subr.mxu0 0.0
    %4071 = vmatpush1.msra.mxu0 0.0
    %4072 = vmatprep.subr.mxu0 0.0
    %4073 = vmatpush1.msra.mxu0 0.0
    %4074 = vmatprep.subr.mxu0 0.0
    %4075 = vmatpush1.msra.mxu0 0.0
    %4076 = vmatprep.subr.mxu0 0.0
    %4077 = vmatpush1.msra.mxu0 0.0
    %4078 = vmatprep.subr.mxu0 0.0
    %4079 = vmatpush1.msra.mxu0 0.0
    %4080 = vmatprep.subr.mxu0 0.0
    %4081 = vmatpush1.msra.mxu0 0.0
    %4082 = vmatprep.subr.mxu0 0.0
    %4083 = vmatpush1.msra.mxu0 0.0
    %4084 = vmatprep.subr.mxu0 0.0
    %4085 = vmatpush1.msra.mxu0 0.0
    %4086 = vmatprep.subr.mxu0 0.0
    %4087 = vmatpush1.msra.mxu0 0.0
    %4088 = vmatprep.subr.mxu0 0.0
    %4089 = vmatpush1.msra.mxu0 0.0
    %4090 = vmatprep.subr.mxu0 0.0
    %4091 = vmatpush1.msra.mxu0 0.0
    %4092 = vmatprep.subr.mxu0 0.0
    %4093 = vmatpush1.msra.mxu0 0.0
    %4094 = vmatprep.subr.mxu0 0.0
    %4095 = vmatpush1.msra.mxu0 0.0
    %4096 = vmatprep.subr.mxu0 0.0
    %4097 = vmatpush1.msra.mxu0 0.0
    %4098 = vmatprep.subr.mxu0 0.0
    %4099 = vmatpush1.msra.mxu0 0.0
    %4100 = vmatprep.subr.mxu0 0.0
    %4101 = vmatpush1.msra.mxu0 0.0
    %4102 = vmatprep.subr.mxu0 0.0
    %4103 = vmatpush1.msra.mxu0 0.0
    %4104 = vmatprep.subr.mxu0 0.0
    %4105 = vmatpush1.msra.mxu0 0.0
    %4106 = vmatprep.subr.mxu0 0.0
    %4107 = vmatpush1.msra.mxu0 0.0
    %4108 = vmatprep.subr.mxu0 0.0
    %4109 = vmatpush1.msra.mxu0 0.0
    %4110 = vmatprep.subr.mxu0 0.0
    %4111 = vmatpush1.msra.mxu0 0.0
    %4112 = vmatprep.subr.mxu0 0.0
    %4113 = vmatpush1.msra.mxu0 0.0
    %4114 = vmatprep.subr.mxu0 0.0
    %4115 = vmatpush1.msra.mxu0 0.0
    %4116 = vmatprep.subr.mxu0 0.0
    %4117 = vmatpush1.msra.mxu0 0.0
    %4118 = vmatprep.mubr.f32.mxu0 0.0
    %4119 = vmatmul.mubr.f32.gmra.mrb[0].mxu0 %v274
    %v4120 = vpop.f32.mrb[0].mxu0
    %v4121 = vadd.f32 0.0, %v4120
    %v4122 = vpop.f32.mrb[0].mxu0
    %4123 = vdwg.mxu0
    %v4124 = vadd.f32 %v4053, %v4121
    %v4125 = vxor.u32 %v4124, 2147483648
    %v4126 = vmul.f32 %v4125, 1.442695
    %v4127 = vpow.pop %v4126
    %v4128 = vadd.f32 %v4127, 1.0
    %v4129 = vrcp.pop %v4128
    %v4130 = vmul.f32 1.0, %v4129
    %v4131 = vtanh.pop %v4124
    %v4132 = vmul.f32 %v4130, 0.0
    %4134 = vrot.lane.b32.xlu0 %v4131, 32
    %v4135 = vpop.permute.xlu0 %4134
    %v4137 = vmul.f32 %v4130, %v4135
    %4139 = vrot.lane.b32.xlu0 %v4137, 32
    %v4140 = vpop.permute.xlu0 %4139
    %v4142 = vadd.f32 %v4132, %v4140
    %v4143 = vtanh.pop %v4142
    %4145 = vrot.lane.b32.xlu0 %v4143, 32
    %v4146 = vpop.permute.xlu0 %4145
    %v4148 = vmul.f32 %v4130, %v4146
    %4150 = vrot.lane.b32.xlu0 %v4148, 64
    %v4151 = vpop.permute.xlu0 %4150
    %4153 = vst.msk [vmem:[%s4] sm:$0xff] %vm62, %v4151
    %v4154 = vld [vmem:[#allocation3 + $0x8] sm:$0xff]
    %v4155 = vsel %vm62, %v4151, 0
    %4157 = vmatprep.subr.mxu0 0.0
    %4158 = vmatpush1.msra.mxu0 %v3816
    %4159 = vmatprep.subr.mxu0 0.0
    %4160 = vmatpush1.msra.mxu0 %v3817
    %4161 = vmatprep.subr.mxu0 0.0
    %4162 = vmatpush1.msra.mxu0 %v3818
    %4163 = vmatprep.subr.mxu0 0.0
    %4164 = vmatpush1.msra.mxu0 %v3819
    %4165 = vmatprep.subr.mxu0 0.0
    %4166 = vmatpush1.msra.mxu0 0.0
    %4167 = vmatprep.subr.mxu0 0.0
    %4168 = vmatpush1.msra.mxu0 0.0
    %4169 = vmatprep.subr.mxu0 0.0
    %4170 = vmatpush1.msra.mxu0 0.0
    %4171 = vmatprep.subr.mxu0 0.0
    %4172 = vmatpush1.msra.mxu0 0.0
    %4173 = vmatprep.subr.mxu0 0.0
    %4174 = vmatpush1.msra.mxu0 0.0
    %4175 = vmatprep.subr.mxu0 0.0
    %4176 = vmatpush1.msra.mxu0 0.0
    %4177 = vmatprep.subr.mxu0 0.0
    %4178 = vmatpush1.msra.mxu0 0.0
    %4179 = vmatprep.subr.mxu0 0.0
    %4180 = vmatpush1.msra.mxu0 0.0
    %4181 = vmatprep.subr.mxu0 0.0
    %4182 = vmatpush1.msra.mxu0 0.0
    %4183 = vmatprep.subr.mxu0 0.0
    %4184 = vmatpush1.msra.mxu0 0.0
    %4185 = vmatprep.subr.mxu0 0.0
    %4186 = vmatpush1.msra.mxu0 0.0
    %4187 = vmatprep.subr.mxu0 0.0
    %4188 = vmatpush1.msra.mxu0 0.0
    %4189 = vmatprep.subr.mxu0 0.0
    %4190 = vmatpush1.msra.mxu0 0.0
    %4191 = vmatprep.subr.mxu0 0.0
    %4192 = vmatpush1.msra.mxu0 0.0
    %4193 = vmatprep.subr.mxu0 0.0
    %4194 = vmatpush1.msra.mxu0 0.0
    %4195 = vmatprep.subr.mxu0 0.0
    %4196 = vmatpush1.msra.mxu0 0.0
    %4197 = vmatprep.subr.mxu0 0.0
    %4198 = vmatpush1.msra.mxu0 0.0
    %4199 = vmatprep.subr.mxu0 0.0
    %4200 = vmatpush1.msra.mxu0 0.0
    %4201 = vmatprep.subr.mxu0 0.0
    %4202 = vmatpush1.msra.mxu0 0.0
    %4203 = vmatprep.subr.mxu0 0.0
    %4204 = vmatpush1.msra.mxu0 0.0
    %4205 = vmatprep.subr.mxu0 0.0
    %4206 = vmatpush1.msra.mxu0 0.0
    %4207 = vmatprep.subr.mxu0 0.0
    %4208 = vmatpush1.msra.mxu0 0.0
    %4209 = vmatprep.subr.mxu0 0.0
    %4210 = vmatpush1.msra.mxu0 0.0
    %4211 = vmatprep.subr.mxu0 0.0
    %4212 = vmatpush1.msra.mxu0 0.0
    %4213 = vmatprep.subr.mxu0 0.0
    %4214 = vmatpush1.msra.mxu0 0.0
    %4215 = vmatprep.subr.mxu0 0.0
    %4216 = vmatpush1.msra.mxu0 0.0
    %4217 = vmatprep.subr.mxu0 0.0
    %4218 = vmatpush1.msra.mxu0 0.0
    %4219 = vmatprep.subr.mxu0 0.0
    %4220 = vmatpush1.msra.mxu0 0.0
    %4221 = vmatprep.mubr.f32.mxu0 0.0
    %4222 = vmatmul.mubr.f32.gmra.mrb[0].mxu0 %v4155
    %v4223 = vpop.f32.mrb[0].mxu0
    %v4224 = vadd.f32 0.0, %v4223
    %v4225 = vpop.f32.mrb[0].mxu0
    %4226 = vdwg.mxu0
    %v4227 = vadd.f32 %v4154, %v4224
    %v4228 = vxor.u32 %v4227, 2147483648
    %v4229 = vmul.f32 %v4228, 1.442695
    %v4230 = vpow.pop %v4229
    %v4231 = vadd.f32 %v4230, 1.0
    %v4232 = vrcp.pop %v4231
    %v4233 = vmul.f32 1.0, %v4232
    %v4234 = vtanh.pop %v4227
    %v4235 = vmul.f32 %v4233, %v4142
    %4237 = vrot.lane.b32.xlu0 %v4234, 32
    %v4238 = vpop.permute.xlu0 %4237
    %v4240 = vmul.f32 %v4233, %v4238
    %4242 = vrot.lane.b32.xlu0 %v4240, 32
    %v4243 = vpop.permute.xlu0 %4242
    %v4245 = vadd.f32 %v4235, %v4243
    %v4246 = vtanh.pop %v4245
    %4248 = vrot.lane.b32.xlu0 %v4246, 32
    %v4249 = vpop.permute.xlu0 %4248
    %v4251 = vmul.f32 %v4233, %v4249
    %4253 = vrot.lane.b32.xlu0 %v4251, 64
    %v4254 = vpop.permute.xlu0 %4253
    %4256 = vst.msk [vmem:[%s4 + $0x8] sm:$0xff] %vm62, %v4254
    %v4257 = vld [vmem:[#allocation3 + $0x10] sm:$0xff]
    %v4258 = vsel %vm62, %v4254, 0
    %4260 = vmatprep.subr.mxu0 0.0
    %4261 = vmatpush1.msra.mxu0 %v3816
    %4262 = vmatprep.subr.mxu0 0.0
    %4263 = vmatpush1.msra.mxu0 %v3817
    %4264 = vmatprep.subr.mxu0 0.0
    %4265 = vmatpush1.msra.mxu0 %v3818
    %4266 = vmatprep.subr.mxu0 0.0
    %4267 = vmatpush1.msra.mxu0 %v3819
    %4268 = vmatprep.subr.mxu0 0.0
    %4269 = vmatpush1.msra.mxu0 0.0
    %4270 = vmatprep.subr.mxu0 0.0
    %4271 = vmatpush1.msra.mxu0 0.0
    %4272 = vmatprep.subr.mxu0 0.0
    %4273 = vmatpush1.msra.mxu0 0.0
    %4274 = vmatprep.subr.mxu0 0.0
    %4275 = vmatpush1.msra.mxu0 0.0
    %4276 = vmatprep.subr.mxu0 0.0
    %4277 = vmatpush1.msra.mxu0 0.0
    %4278 = vmatprep.subr.mxu0 0.0
    %4279 = vmatpush1.msra.mxu0 0.0
    %4280 = vmatprep.subr.mxu0 0.0
    %4281 = vmatpush1.msra.mxu0 0.0
    %4282 = vmatprep.subr.mxu0 0.0
    %4283 = vmatpush1.msra.mxu0 0.0
    %4284 = vmatprep.subr.mxu0 0.0
    %4285 = vmatpush1.msra.mxu0 0.0
    %4286 = vmatprep.subr.mxu0 0.0
    %4287 = vmatpush1.msra.mxu0 0.0
    %4288 = vmatprep.subr.mxu0 0.0
    %4289 = vmatpush1.msra.mxu0 0.0
    %4290 = vmatprep.subr.mxu0 0.0
    %4291 = vmatpush1.msra.mxu0 0.0
    %4292 = vmatprep.subr.mxu0 0.0
    %4293 = vmatpush1.msra.mxu0 0.0
    %4294 = vmatprep.subr.mxu0 0.0
    %4295 = vmatpush1.msra.mxu0 0.0
    %4296 = vmatprep.subr.mxu0 0.0
    %4297 = vmatpush1.msra.mxu0 0.0
    %4298 = vmatprep.subr.mxu0 0.0
    %4299 = vmatpush1.msra.mxu0 0.0
    %4300 = vmatprep.subr.mxu0 0.0
    %4301 = vmatpush1.msra.mxu0 0.0
    %4302 = vmatprep.subr.mxu0 0.0
    %4303 = vmatpush1.msra.mxu0 0.0
    %4304 = vmatprep.subr.mxu0 0.0
    %4305 = vmatpush1.msra.mxu0 0.0
    %4306 = vmatprep.subr.mxu0 0.0
    %4307 = vmatpush1.msra.mxu0 0.0
    %4308 = vmatprep.subr.mxu0 0.0
    %4309 = vmatpush1.msra.mxu0 0.0
    %4310 = vmatprep.subr.mxu0 0.0
    %4311 = vmatpush1.msra.mxu0 0.0
    %4312 = vmatprep.subr.mxu0 0.0
    %4313 = vmatpush1.msra.mxu0 0.0
    %4314 = vmatprep.subr.mxu0 0.0
    %4315 = vmatpush1.msra.mxu0 0.0
    %4316 = vmatprep.subr.mxu0 0.0
    %4317 = vmatpush1.msra.mxu0 0.0
    %4318 = vmatprep.subr.mxu0 0.0
    %4319 = vmatpush1.msra.mxu0 0.0
    %4320 = vmatprep.subr.mxu0 0.0
    %4321 = vmatpush1.msra.mxu0 0.0
    %4322 = vmatprep.subr.mxu0 0.0
    %4323 = vmatpush1.msra.mxu0 0.0
    %4324 = vmatprep.mubr.f32.mxu0 0.0
    %4325 = vmatmul.mubr.f32.gmra.mrb[0].mxu0 %v4258
    %v4326 = vpop.f32.mrb[0].mxu0
    %v4327 = vadd.f32 0.0, %v4326
    %v4328 = vpop.f32.mrb[0].mxu0
    %4329 = vdwg.mxu0
    %v4330 = vadd.f32 %v4257, %v4327
    %v4331 = vxor.u32 %v4330, 2147483648
    %v4332 = vmul.f32 %v4331, 1.442695
    %v4333 = vpow.pop %v4332
    %v4334 = vadd.f32 %v4333, 1.0
    %v4335 = vrcp.pop %v4334
    %v4336 = vmul.f32 1.0, %v4335
    %v4337 = vtanh.pop %v4330
    %v4338 = vmul.f32 %v4336, %v4245
    %4340 = vrot.lane.b32.xlu0 %v4337, 32
    %v4341 = vpop.permute.xlu0 %4340
    %v4343 = vmul.f32 %v4336, %v4341
    %4345 = vrot.lane.b32.xlu0 %v4343, 32
    %v4346 = vpop.permute.xlu0 %4345
    %v4348 = vadd.f32 %v4338, %v4346
    %v4349 = vtanh.pop %v4348
    %4351 = vrot.lane.b32.xlu0 %v4349, 32
    %v4352 = vpop.permute.xlu0 %4351
    %v4354 = vmul.f32 %v4336, %v4352
    %4356 = vrot.lane.b32.xlu0 %v4354, 64
    %v4357 = vpop.permute.xlu0 %4356
    %4359 = vst.msk [vmem:[%s4 + $0x10] sm:$0xff] %vm62, %v4357
    %v4360 = vld [vmem:[#allocation3 + $0x18] sm:$0xff]
    %v4361 = vsel %vm62, %v4357, 0
    %4363 = vmatprep.subr.mxu0 0.0
    %4364 = vmatpush1.msra.mxu0 %v3816
    %4365 = vmatprep.subr.mxu0 0.0
    %4366 = vmatpush1.msra.mxu0 %v3817
    %4367 = vmatprep.subr.mxu0 0.0
    %4368 = vmatpush1.msra.mxu0 %v3818
    %4369 = vmatprep.subr.mxu0 0.0
    %4370 = vmatpush1.msra.mxu0 %v3819
    %4371 = vmatprep.subr.mxu0 0.0
    %4372 = vmatpush1.msra.mxu0 0.0
    %4373 = vmatprep.subr.mxu0 0.0
    %4374 = vmatpush1.msra.mxu0 0.0
    %4375 = vmatprep.subr.mxu0 0.0
    %4376 = vmatpush1.msra.mxu0 0.0
    %4377 = vmatprep.subr.mxu0 0.0
    %4378 = vmatpush1.msra.mxu0 0.0
    %4379 = vmatprep.subr.mxu0 0.0
    %4380 = vmatpush1.msra.mxu0 0.0
    %4381 = vmatprep.subr.mxu0 0.0
    %4382 = vmatpush1.msra.mxu0 0.0
    %4383 = vmatprep.subr.mxu0 0.0
    %4384 = vmatpush1.msra.mxu0 0.0
    %4385 = vmatprep.subr.mxu0 0.0
    %4386 = vmatpush1.msra.mxu0 0.0
    %4387 = vmatprep.subr.mxu0 0.0
    %4388 = vmatpush1.msra.mxu0 0.0
    %4389 = vmatprep.subr.mxu0 0.0
    %4390 = vmatpush1.msra.mxu0 0.0
    %4391 = vmatprep.subr.mxu0 0.0
    %4392 = vmatpush1.msra.mxu0 0.0
    %4393 = vmatprep.subr.mxu0 0.0
    %4394 = vmatpush1.msra.mxu0 0.0
    %4395 = vmatprep.subr.mxu0 0.0
    %4396 = vmatpush1.msra.mxu0 0.0
    %4397 = vmatprep.subr.mxu0 0.0
    %4398 = vmatpush1.msra.mxu0 0.0
    %4399 = vmatprep.subr.mxu0 0.0
    %4400 = vmatpush1.msra.mxu0 0.0
    %4401 = vmatprep.subr.mxu0 0.0
    %4402 = vmatpush1.msra.mxu0 0.0
    %4403 = vmatprep.subr.mxu0 0.0
    %4404 = vmatpush1.msra.mxu0 0.0
    %4405 = vmatprep.subr.mxu0 0.0
    %4406 = vmatpush1.msra.mxu0 0.0
    %4407 = vmatprep.subr.mxu0 0.0
    %4408 = vmatpush1.msra.mxu0 0.0
    %4409 = vmatprep.subr.mxu0 0.0
    %4410 = vmatpush1.msra.mxu0 0.0
    %4411 = vmatprep.subr.mxu0 0.0
    %4412 = vmatpush1.msra.mxu0 0.0
    %4413 = vmatprep.subr.mxu0 0.0
    %4414 = vmatpush1.msra.mxu0 0.0
    %4415 = vmatprep.subr.mxu0 0.0
    %4416 = vmatpush1.msra.mxu0 0.0
    %4417 = vmatprep.subr.mxu0 0.0
    %4418 = vmatpush1.msra.mxu0 0.0
    %4419 = vmatprep.subr.mxu0 0.0
    %4420 = vmatpush1.msra.mxu0 0.0
    %4421 = vmatprep.subr.mxu0 0.0
    %4422 = vmatpush1.msra.mxu0 0.0
    %4423 = vmatprep.subr.mxu0 0.0
    %4424 = vmatpush1.msra.mxu0 0.0
    %4425 = vmatprep.subr.mxu0 0.0
    %4426 = vmatpush1.msra.mxu0 0.0
    %4427 = vmatprep.mubr.f32.mxu0 0.0
    %4428 = vmatmul.mubr.f32.gmra.mrb[0].mxu0 %v4361
    %v4429 = vpop.f32.mrb[0].mxu0
    %v4430 = vadd.f32 0.0, %v4429
    %v4431 = vpop.f32.mrb[0].mxu0
    %4432 = vdwg.mxu0
    %v4433 = vadd.f32 %v4360, %v4430
    %v4434 = vxor.u32 %v4433, 2147483648
    %v4435 = vmul.f32 %v4434, 1.442695
    %v4436 = vpow.pop %v4435
    %v4437 = vadd.f32 %v4436, 1.0
    %v4438 = vrcp.pop %v4437
    %v4439 = vmul.f32 1.0, %v4438
    %v4440 = vtanh.pop %v4433
    %v4441 = vmul.f32 %v4439, %v4348
    %4443 = vrot.lane.b32.xlu0 %v4440, 32
    %v4444 = vpop.permute.xlu0 %4443
    %v4446 = vmul.f32 %v4439, %v4444
    %4448 = vrot.lane.b32.xlu0 %v4446, 32
    %v4449 = vpop.permute.xlu0 %4448
    %v4451 = vadd.f32 %v4441, %v4449
    %v4452 = vtanh.pop %v4451
    %4454 = vrot.lane.b32.xlu0 %v4452, 32
    %v4455 = vpop.permute.xlu0 %4454
    %v4457 = vmul.f32 %v4439, %v4455
    %4459 = vrot.lane.b32.xlu0 %v4457, 64
    %v4460 = vpop.permute.xlu0 %4459
    %4462 = vst.msk [vmem:[%s4 + $0x18] sm:$0xff] %vm62, %v4460
    %v4463 = vld [vmem:[#allocation3 + $0x20] sm:$0xff]
    %v4464 = vsel %vm62, %v4460, 0
    %4466 = vmatprep.subr.mxu0 0.0
    %4467 = vmatpush1.msra.mxu0 %v3816
    %4468 = vmatprep.subr.mxu0 0.0
    %4469 = vmatpush1.msra.mxu0 %v3817
    %4470 = vmatprep.subr.mxu0 0.0
    %4471 = vmatpush1.msra.mxu0 %v3818
    %4472 = vmatprep.subr.mxu0 0.0
    %4473 = vmatpush1.msra.mxu0 %v3819
    %4474 = vmatprep.subr.mxu0 0.0
    %4475 = vmatpush1.msra.mxu0 0.0
    %4476 = vmatprep.subr.mxu0 0.0
    %4477 = vmatpush1.msra.mxu0 0.0
    %4478 = vmatprep.subr.mxu0 0.0
    %4479 = vmatpush1.msra.mxu0 0.0
    %4480 = vmatprep.subr.mxu0 0.0
    %4481 = vmatpush1.msra.mxu0 0.0
    %4482 = vmatprep.subr.mxu0 0.0
    %4483 = vmatpush1.msra.mxu0 0.0
    %4484 = vmatprep.subr.mxu0 0.0
    %4485 = vmatpush1.msra.mxu0 0.0
    %4486 = vmatprep.subr.mxu0 0.0
    %4487 = vmatpush1.msra.mxu0 0.0
    %4488 = vmatprep.subr.mxu0 0.0
    %4489 = vmatpush1.msra.mxu0 0.0
    %4490 = vmatprep.subr.mxu0 0.0
    %4491 = vmatpush1.msra.mxu0 0.0
    %4492 = vmatprep.subr.mxu0 0.0
    %4493 = vmatpush1.msra.mxu0 0.0
    %4494 = vmatprep.subr.mxu0 0.0
    %4495 = vmatpush1.msra.mxu0 0.0
    %4496 = vmatprep.subr.mxu0 0.0
    %4497 = vmatpush1.msra.mxu0 0.0
    %4498 = vmatprep.subr.mxu0 0.0
    %4499 = vmatpush1.msra.mxu0 0.0
    %4500 = vmatprep.subr.mxu0 0.0
    %4501 = vmatpush1.msra.mxu0 0.0
    %4502 = vmatprep.subr.mxu0 0.0
    %4503 = vmatpush1.msra.mxu0 0.0
    %4504 = vmatprep.subr.mxu0 0.0
    %4505 = vmatpush1.msra.mxu0 0.0
    %4506 = vmatprep.subr.mxu0 0.0
    %4507 = vmatpush1.msra.mxu0 0.0
    %4508 = vmatprep.subr.mxu0 0.0
    %4509 = vmatpush1.msra.mxu0 0.0
    %4510 = vmatprep.subr.mxu0 0.0
    %4511 = vmatpush1.msra.mxu0 0.0
    %4512 = vmatprep.subr.mxu0 0.0
    %4513 = vmatpush1.msra.mxu0 0.0
    %4514 = vmatprep.subr.mxu0 0.0
    %4515 = vmatpush1.msra.mxu0 0.0
    %4516 = vmatprep.subr.mxu0 0.0
    %4517 = vmatpush1.msra.mxu0 0.0
    %4518 = vmatprep.subr.mxu0 0.0
    %4519 = vmatpush1.msra.mxu0 0.0
    %4520 = vmatprep.subr.mxu0 0.0
    %4521 = vmatpush1.msra.mxu0 0.0
    %4522 = vmatprep.subr.mxu0 0.0
    %4523 = vmatpush1.msra.mxu0 0.0
    %4524 = vmatprep.subr.mxu0 0.0
    %4525 = vmatpush1.msra.mxu0 0.0
    %4526 = vmatprep.subr.mxu0 0.0
    %4527 = vmatpush1.msra.mxu0 0.0
    %4528 = vmatprep.subr.mxu0 0.0
    %4529 = vmatpush1.msra.mxu0 0.0
    %4530 = vmatprep.mubr.f32.mxu0 0.0
    %4531 = vmatmul.mubr.f32.gmra.mrb[0].mxu0 %v4464
    %v4532 = vpop.f32.mrb[0].mxu0
    %v4533 = vadd.f32 0.0, %v4532
    %v4534 = vpop.f32.mrb[0].mxu0
    %4535 = vdwg.mxu0
    %v4536 = vadd.f32 %v4463, %v4533
    %v4537 = vxor.u32 %v4536, 2147483648
    %v4538 = vmul.f32 %v4537, 1.442695
    %v4539 = vpow.pop %v4538
    %v4540 = vadd.f32 %v4539, 1.0
    %v4541 = vrcp.pop %v4540
    %v4542 = vmul.f32 1.0, %v4541
    %v4543 = vtanh.pop %v4536
    %v4544 = vmul.f32 %v4542, %v4451
    %4546 = vrot.lane.b32.xlu0 %v4543, 32
    %v4547 = vpop.permute.xlu0 %4546
    %v4549 = vmul.f32 %v4542, %v4547
    %4551 = vrot.lane.b32.xlu0 %v4549, 32
    %v4552 = vpop.permute.xlu0 %4551
    %v4554 = vadd.f32 %v4544, %v4552
    %v4555 = vtanh.pop %v4554
    %4557 = vrot.lane.b32.xlu0 %v4555, 32
    %v4558 = vpop.permute.xlu0 %4557
    %v4560 = vmul.f32 %v4542, %v4558
    %4562 = vrot.lane.b32.xlu0 %v4560, 64
    %v4563 = vpop.permute.xlu0 %4562
    %4565 = vst.msk [vmem:[%s4 + $0x20] sm:$0xff] %vm62, %v4563
    %v4566 = vld [vmem:[#allocation3 + $0x28] sm:$0xff]
    %v4567 = vsel %vm62, %v4563, 0
    %4569 = vmatprep.subr.mxu0 0.0
    %4570 = vmatpush1.msra.mxu0 %v3816
    %4571 = vmatprep.subr.mxu0 0.0
    %4572 = vmatpush1.msra.mxu0 %v3817
    %4573 = vmatprep.subr.mxu0 0.0
    %4574 = vmatpush1.msra.mxu0 %v3818
    %4575 = vmatprep.subr.mxu0 0.0
    %4576 = vmatpush1.msra.mxu0 %v3819
    %4577 = vmatprep.subr.mxu0 0.0
    %4578 = vmatpush1.msra.mxu0 0.0
    %4579 = vmatprep.subr.mxu0 0.0
    %4580 = vmatpush1.msra.mxu0 0.0
    %4581 = vmatprep.subr.mxu0 0.0
    %4582 = vmatpush1.msra.mxu0 0.0
    %4583 = vmatprep.subr.mxu0 0.0
    %4584 = vmatpush1.msra.mxu0 0.0
    %4585 = vmatprep.subr.mxu0 0.0
    %4586 = vmatpush1.msra.mxu0 0.0
    %4587 = vmatprep.subr.mxu0 0.0
    %4588 = vmatpush1.msra.mxu0 0.0
    %4589 = vmatprep.subr.mxu0 0.0
    %4590 = vmatpush1.msra.mxu0 0.0
    %4591 = vmatprep.subr.mxu0 0.0
    %4592 = vmatpush1.msra.mxu0 0.0
    %4593 = vmatprep.subr.mxu0 0.0
    %4594 = vmatpush1.msra.mxu0 0.0
    %4595 = vmatprep.subr.mxu0 0.0
    %4596 = vmatpush1.msra.mxu0 0.0
    %4597 = vmatprep.subr.mxu0 0.0
    %4598 = vmatpush1.msra.mxu0 0.0
    %4599 = vmatprep.subr.mxu0 0.0
    %4600 = vmatpush1.msra.mxu0 0.0
    %4601 = vmatprep.subr.mxu0 0.0
    %4602 = vmatpush1.msra.mxu0 0.0
    %4603 = vmatprep.subr.mxu0 0.0
    %4604 = vmatpush1.msra.mxu0 0.0
    %4605 = vmatprep.subr.mxu0 0.0
    %4606 = vmatpush1.msra.mxu0 0.0
    %4607 = vmatprep.subr.mxu0 0.0
    %4608 = vmatpush1.msra.mxu0 0.0
    %4609 = vmatprep.subr.mxu0 0.0
    %4610 = vmatpush1.msra.mxu0 0.0
    %4611 = vmatprep.subr.mxu0 0.0
    %4612 = vmatpush1.msra.mxu0 0.0
    %4613 = vmatprep.subr.mxu0 0.0
    %4614 = vmatpush1.msra.mxu0 0.0
    %4615 = vmatprep.subr.mxu0 0.0
    %4616 = vmatpush1.msra.mxu0 0.0
    %4617 = vmatprep.subr.mxu0 0.0
    %4618 = vmatpush1.msra.mxu0 0.0
    %4619 = vmatprep.subr.mxu0 0.0
    %4620 = vmatpush1.msra.mxu0 0.0
    %4621 = vmatprep.subr.mxu0 0.0
    %4622 = vmatpush1.msra.mxu0 0.0
    %4623 = vmatprep.subr.mxu0 0.0
    %4624 = vmatpush1.msra.mxu0 0.0
    %4625 = vmatprep.subr.mxu0 0.0
    %4626 = vmatpush1.msra.mxu0 0.0
    %4627 = vmatprep.subr.mxu0 0.0
    %4628 = vmatpush1.msra.mxu0 0.0
    %4629 = vmatprep.subr.mxu0 0.0
    %4630 = vmatpush1.msra.mxu0 0.0
    %4631 = vmatprep.subr.mxu0 0.0
    %4632 = vmatpush1.msra.mxu0 0.0
    %4633 = vmatprep.mubr.f32.mxu0 0.0
    %4634 = vmatmul.mubr.f32.gmra.mrb[0].mxu0 %v4567
    %v4635 = vpop.f32.mrb[0].mxu0
    %v4636 = vadd.f32 0.0, %v4635
    %v4637 = vpop.f32.mrb[0].mxu0
    %4638 = vdwg.mxu0
    %v4639 = vadd.f32 %v4566, %v4636
    %v4640 = vxor.u32 %v4639, 2147483648
    %v4641 = vmul.f32 %v4640, 1.442695
    %v4642 = vpow.pop %v4641
    %v4643 = vadd.f32 %v4642, 1.0
    %v4644 = vrcp.pop %v4643
    %v4645 = vmul.f32 1.0, %v4644
    %v4646 = vtanh.pop %v4639
    %v4647 = vmul.f32 %v4645, %v4554
    %4649 = vrot.lane.b32.xlu0 %v4646, 32
    %v4650 = vpop.permute.xlu0 %4649
    %v4652 = vmul.f32 %v4645, %v4650
    %4654 = vrot.lane.b32.xlu0 %v4652, 32
    %v4655 = vpop.permute.xlu0 %4654
    %v4657 = vadd.f32 %v4647, %v4655
    %v4658 = vtanh.pop %v4657
    %4660 = vrot.lane.b32.xlu0 %v4658, 32
    %v4661 = vpop.permute.xlu0 %4660
    %v4663 = vmul.f32 %v4645, %v4661
    %4665 = vrot.lane.b32.xlu0 %v4663, 64
    %v4666 = vpop.permute.xlu0 %4665
    %4668 = vst.msk [vmem:[%s4 + $0x28] sm:$0xff] %vm62, %v4666
    %v4669 = vld [vmem:[#allocation3 + $0x30] sm:$0xff]
    %v4670 = vsel %vm62, %v4666, 0
    %4672 = vmatprep.subr.mxu0 0.0
    %4673 = vmatpush1.msra.mxu0 %v3816
    %4674 = vmatprep.subr.mxu0 0.0
    %4675 = vmatpush1.msra.mxu0 %v3817
    %4676 = vmatprep.subr.mxu0 0.0
    %4677 = vmatpush1.msra.mxu0 %v3818
    %4678 = vmatprep.subr.mxu0 0.0
    %4679 = vmatpush1.msra.mxu0 %v3819
    %4680 = vmatprep.subr.mxu0 0.0
    %4681 = vmatpush1.msra.mxu0 0.0
    %4682 = vmatprep.subr.mxu0 0.0
    %4683 = vmatpush1.msra.mxu0 0.0
    %4684 = vmatprep.subr.mxu0 0.0
    %4685 = vmatpush1.msra.mxu0 0.0
    %4686 = vmatprep.subr.mxu0 0.0
    %4687 = vmatpush1.msra.mxu0 0.0
    %4688 = vmatprep.subr.mxu0 0.0
    %4689 = vmatpush1.msra.mxu0 0.0
    %4690 = vmatprep.subr.mxu0 0.0
    %4691 = vmatpush1.msra.mxu0 0.0
    %4692 = vmatprep.subr.mxu0 0.0
    %4693 = vmatpush1.msra.mxu0 0.0
    %4694 = vmatprep.subr.mxu0 0.0
    %4695 = vmatpush1.msra.mxu0 0.0
    %4696 = vmatprep.subr.mxu0 0.0
    %4697 = vmatpush1.msra.mxu0 0.0
    %4698 = vmatprep.subr.mxu0 0.0
    %4699 = vmatpush1.msra.mxu0 0.0
    %4700 = vmatprep.subr.mxu0 0.0
    %4701 = vmatpush1.msra.mxu0 0.0
    %4702 = vmatprep.subr.mxu0 0.0
    %4703 = vmatpush1.msra.mxu0 0.0
    %4704 = vmatprep.subr.mxu0 0.0
    %4705 = vmatpush1.msra.mxu0 0.0
    %4706 = vmatprep.subr.mxu0 0.0
    %4707 = vmatpush1.msra.mxu0 0.0
    %4708 = vmatprep.subr.mxu0 0.0
    %4709 = vmatpush1.msra.mxu0 0.0
    %4710 = vmatprep.subr.mxu0 0.0
    %4711 = vmatpush1.msra.mxu0 0.0
    %4712 = vmatprep.subr.mxu0 0.0
    %4713 = vmatpush1.msra.mxu0 0.0
    %4714 = vmatprep.subr.mxu0 0.0
    %4715 = vmatpush1.msra.mxu0 0.0
    %4716 = vmatprep.subr.mxu0 0.0
    %4717 = vmatpush1.msra.mxu0 0.0
    %4718 = vmatprep.subr.mxu0 0.0
    %4719 = vmatpush1.msra.mxu0 0.0
    %4720 = vmatprep.subr.mxu0 0.0
    %4721 = vmatpush1.msra.mxu0 0.0
    %4722 = vmatprep.subr.mxu0 0.0
    %4723 = vmatpush1.msra.mxu0 0.0
    %4724 = vmatprep.subr.mxu0 0.0
    %4725 = vmatpush1.msra.mxu0 0.0
    %4726 = vmatprep.subr.mxu0 0.0
    %4727 = vmatpush1.msra.mxu0 0.0
    %4728 = vmatprep.subr.mxu0 0.0
    %4729 = vmatpush1.msra.mxu0 0.0
    %4730 = vmatprep.subr.mxu0 0.0
    %4731 = vmatpush1.msra.mxu0 0.0
    %4732 = vmatprep.subr.mxu0 0.0
    %4733 = vmatpush1.msra.mxu0 0.0
    %4734 = vmatprep.subr.mxu0 0.0
    %4735 = vmatpush1.msra.mxu0 0.0
    %4736 = vmatprep.mubr.f32.mxu0 0.0
    %4737 = vmatmul.mubr.f32.gmra.mrb[0].mxu0 %v4670
    %v4738 = vpop.f32.mrb[0].mxu0
    %v4739 = vadd.f32 0.0, %v4738
    %v4740 = vpop.f32.mrb[0].mxu0
    %4741 = vdwg.mxu0
    %v4742 = vadd.f32 %v4669, %v4739
    %v4743 = vxor.u32 %v4742, 2147483648
    %v4744 = vmul.f32 %v4743, 1.442695
    %v4745 = vpow.pop %v4744
    %v4746 = vadd.f32 %v4745, 1.0
    %v4747 = vrcp.pop %v4746
    %v4748 = vmul.f32 1.0, %v4747
    %v4749 = vtanh.pop %v4742
    %v4750 = vmul.f32 %v4748, %v4657
    %4752 = vrot.lane.b32.xlu0 %v4749, 32
    %v4753 = vpop.permute.xlu0 %4752
    %v4755 = vmul.f32 %v4748, %v4753
    %4757 = vrot.lane.b32.xlu0 %v4755, 32
    %v4758 = vpop.permute.xlu0 %4757
    %v4760 = vadd.f32 %v4750, %v4758
    %v4761 = vtanh.pop %v4760
    %4763 = vrot.lane.b32.xlu0 %v4761, 32
    %v4764 = vpop.permute.xlu0 %4763
    %v4766 = vmul.f32 %v4748, %v4764
    %4768 = vrot.lane.b32.xlu0 %v4766, 64
    %v4769 = vpop.permute.xlu0 %4768
    %4771 = vst.msk [vmem:[%s4 + $0x30] sm:$0xff] %vm62, %v4769
    %v4772 = vld [vmem:[#allocation3 + $0x38] sm:$0xff]
    %v4773 = vsel %vm62, %v4769, 0
    %4775 = vmatprep.subr.mxu0 0.0
    %4776 = vmatpush1.msra.mxu0 %v3816
    %4777 = vmatprep.subr.mxu0 0.0
    %4778 = vmatpush1.msra.mxu0 %v3817
    %4779 = vmatprep.subr.mxu0 0.0
    %4780 = vmatpush1.msra.mxu0 %v3818
    %4781 = vmatprep.subr.mxu0 0.0
    %4782 = vmatpush1.msra.mxu0 %v3819
    %4783 = vmatprep.subr.mxu0 0.0
    %4784 = vmatpush1.msra.mxu0 0.0
    %4785 = vmatprep.subr.mxu0 0.0
    %4786 = vmatpush1.msra.mxu0 0.0
    %4787 = vmatprep.subr.mxu0 0.0
    %4788 = vmatpush1.msra.mxu0 0.0
    %4789 = vmatprep.subr.mxu0 0.0
    %4790 = vmatpush1.msra.mxu0 0.0
    %4791 = vmatprep.subr.mxu0 0.0
    %4792 = vmatpush1.msra.mxu0 0.0
    %4793 = vmatprep.subr.mxu0 0.0
    %4794 = vmatpush1.msra.mxu0 0.0
    %4795 = vmatprep.subr.mxu0 0.0
    %4796 = vmatpush1.msra.mxu0 0.0
    %4797 = vmatprep.subr.mxu0 0.0
    %4798 = vmatpush1.msra.mxu0 0.0
    %4799 = vmatprep.subr.mxu0 0.0
    %4800 = vmatpush1.msra.mxu0 0.0
    %4801 = vmatprep.subr.mxu0 0.0
    %4802 = vmatpush1.msra.mxu0 0.0
    %4803 = vmatprep.subr.mxu0 0.0
    %4804 = vmatpush1.msra.mxu0 0.0
    %4805 = vmatprep.subr.mxu0 0.0
    %4806 = vmatpush1.msra.mxu0 0.0
    %4807 = vmatprep.subr.mxu0 0.0
    %4808 = vmatpush1.msra.mxu0 0.0
    %4809 = vmatprep.subr.mxu0 0.0
    %4810 = vmatpush1.msra.mxu0 0.0
    %4811 = vmatprep.subr.mxu0 0.0
    %4812 = vmatpush1.msra.mxu0 0.0
    %4813 = vmatprep.subr.mxu0 0.0
    %4814 = vmatpush1.msra.mxu0 0.0
    %4815 = vmatprep.subr.mxu0 0.0
    %4816 = vmatpush1.msra.mxu0 0.0
    %4817 = vmatprep.subr.mxu0 0.0
    %4818 = vmatpush1.msra.mxu0 0.0
    %4819 = vmatprep.subr.mxu0 0.0
    %4820 = vmatpush1.msra.mxu0 0.0
    %4821 = vmatprep.subr.mxu0 0.0
    %4822 = vmatpush1.msra.mxu0 0.0
    %4823 = vmatprep.subr.mxu0 0.0
    %4824 = vmatpush1.msra.mxu0 0.0
    %4825 = vmatprep.subr.mxu0 0.0
    %4826 = vmatpush1.msra.mxu0 0.0
    %4827 = vmatprep.subr.mxu0 0.0
    %4828 = vmatpush1.msra.mxu0 0.0
    %4829 = vmatprep.subr.mxu0 0.0
    %4830 = vmatpush1.msra.mxu0 0.0
    %4831 = vmatprep.subr.mxu0 0.0
    %4832 = vmatpush1.msra.mxu0 0.0
    %4833 = vmatprep.subr.mxu0 0.0
    %4834 = vmatpush1.msra.mxu0 0.0
    %4835 = vmatprep.subr.mxu0 0.0
    %4836 = vmatpush1.msra.mxu0 0.0
    %4837 = vmatprep.subr.mxu0 0.0
    %4838 = vmatpush1.msra.mxu0 0.0
    %4839 = vmatprep.mubr.f32.mxu0 0.0
    %4840 = vmatmul.mubr.f32.gmra.mrb[0].mxu0 %v4773
    %v4841 = vpop.f32.mrb[0].mxu0
    %v4842 = vadd.f32 0.0, %v4841
    %v4843 = vpop.f32.mrb[0].mxu0
    %4844 = vdwg.mxu0
    %v4845 = vadd.f32 %v4772, %v4842
    %v4846 = vxor.u32 %v4845, 2147483648
    %v4847 = vmul.f32 %v4846, 1.442695
    %v4848 = vpow.pop %v4847
    %v4849 = vadd.f32 %v4848, 1.0
    %v4850 = vrcp.pop %v4849
    %v4851 = vmul.f32 1.0, %v4850
    %v4852 = vtanh.pop %v4845
    %v4853 = vmul.f32 %v4851, %v4760
    %4855 = vrot.lane.b32.xlu0 %v4852, 32
    %v4856 = vpop.permute.xlu0 %4855
    %v4858 = vmul.f32 %v4851, %v4856
    %4860 = vrot.lane.b32.xlu0 %v4858, 32
    %v4861 = vpop.permute.xlu0 %4860
    %v4863 = vadd.f32 %v4853, %v4861
    %v4864 = vtanh.pop %v4863
    %4866 = vrot.lane.b32.xlu0 %v4864, 32
    %v4867 = vpop.permute.xlu0 %4866
    %v4869 = vmul.f32 %v4851, %v4867
    %4871 = vrot.lane.b32.xlu0 %v4869, 64
    %v4872 = vpop.permute.xlu0 %4871
    %4874 = vst.msk [vmem:[%s4 + $0x38] sm:$0xff] %vm62, %v4872
    %v4875 = vld [vmem:[#allocation3 + $0x40] sm:$0xff]
    %v4876 = vsel %vm62, %v4872, 0
    %4878 = vmatprep.subr.mxu0 0.0
    %4879 = vmatpush1.msra.mxu0 %v3816
    %4880 = vmatprep.subr.mxu0 0.0
    %4881 = vmatpush1.msra.mxu0 %v3817
    %4882 = vmatprep.subr.mxu0 0.0
    %4883 = vmatpush1.msra.mxu0 %v3818
    %4884 = vmatprep.subr.mxu0 0.0
    %4885 = vmatpush1.msra.mxu0 %v3819
    %4886 = vmatprep.subr.mxu0 0.0
    %4887 = vmatpush1.msra.mxu0 0.0
    %4888 = vmatprep.subr.mxu0 0.0
    %4889 = vmatpush1.msra.mxu0 0.0
    %4890 = vmatprep.subr.mxu0 0.0
    %4891 = vmatpush1.msra.mxu0 0.0
    %4892 = vmatprep.subr.mxu0 0.0
    %4893 = vmatpush1.msra.mxu0 0.0
    %4894 = vmatprep.subr.mxu0 0.0
    %4895 = vmatpush1.msra.mxu0 0.0
    %4896 = vmatprep.subr.mxu0 0.0
    %4897 = vmatpush1.msra.mxu0 0.0
    %4898 = vmatprep.subr.mxu0 0.0
    %4899 = vmatpush1.msra.mxu0 0.0
    %4900 = vmatprep.subr.mxu0 0.0
    %4901 = vmatpush1.msra.mxu0 0.0
    %4902 = vmatprep.subr.mxu0 0.0
    %4903 = vmatpush1.msra.mxu0 0.0
    %4904 = vmatprep.subr.mxu0 0.0
    %4905 = vmatpush1.msra.mxu0 0.0
    %4906 = vmatprep.subr.mxu0 0.0
    %4907 = vmatpush1.msra.mxu0 0.0
    %4908 = vmatprep.subr.mxu0 0.0
    %4909 = vmatpush1.msra.mxu0 0.0
    %4910 = vmatprep.subr.mxu0 0.0
    %4911 = vmatpush1.msra.mxu0 0.0
    %4912 = vmatprep.subr.mxu0 0.0
    %4913 = vmatpush1.msra.mxu0 0.0
    %4914 = vmatprep.subr.mxu0 0.0
    %4915 = vmatpush1.msra.mxu0 0.0
    %4916 = vmatprep.subr.mxu0 0.0
    %4917 = vmatpush1.msra.mxu0 0.0
    %4918 = vmatprep.subr.mxu0 0.0
    %4919 = vmatpush1.msra.mxu0 0.0
    %4920 = vmatprep.subr.mxu0 0.0
    %4921 = vmatpush1.msra.mxu0 0.0
    %4922 = vmatprep.subr.mxu0 0.0
    %4923 = vmatpush1.msra.mxu0 0.0
    %4924 = vmatprep.subr.mxu0 0.0
    %4925 = vmatpush1.msra.mxu0 0.0
    %4926 = vmatprep.subr.mxu0 0.0
    %4927 = vmatpush1.msra.mxu0 0.0
    %4928 = vmatprep.subr.mxu0 0.0
    %4929 = vmatpush1.msra.mxu0 0.0
    %4930 = vmatprep.subr.mxu0 0.0
    %4931 = vmatpush1.msra.mxu0 0.0
    %4932 = vmatprep.subr.mxu0 0.0
    %4933 = vmatpush1.msra.mxu0 0.0
    %4934 = vmatprep.subr.mxu0 0.0
    %4935 = vmatpush1.msra.mxu0 0.0
    %4936 = vmatprep.subr.mxu0 0.0
    %4937 = vmatpush1.msra.mxu0 0.0
    %4938 = vmatprep.subr.mxu0 0.0
    %4939 = vmatpush1.msra.mxu0 0.0
    %4940 = vmatprep.subr.mxu0 0.0
    %4941 = vmatpush1.msra.mxu0 0.0
    %4942 = vmatprep.mubr.f32.mxu0 0.0
    %4943 = vmatmul.mubr.f32.gmra.mrb[0].mxu0 %v4876
    %v4944 = vpop.f32.mrb[0].mxu0
    %v4945 = vadd.f32 0.0, %v4944
    %v4946 = vpop.f32.mrb[0].mxu0
    %4947 = vdwg.mxu0
    %v4948 = vadd.f32 %v4875, %v4945
    %v4949 = vxor.u32 %v4948, 2147483648
    %v4950 = vmul.f32 %v4949, 1.442695
    %v4951 = vpow.pop %v4950
    %v4952 = vadd.f32 %v4951, 1.0
    %v4953 = vrcp.pop %v4952
    %v4954 = vmul.f32 1.0, %v4953
    %v4955 = vtanh.pop %v4948
    %v4956 = vmul.f32 %v4954, %v4863
    %4958 = vrot.lane.b32.xlu0 %v4955, 32
    %v4959 = vpop.permute.xlu0 %4958
    %v4961 = vmul.f32 %v4954, %v4959
    %4963 = vrot.lane.b32.xlu0 %v4961, 32
    %v4964 = vpop.permute.xlu0 %4963
    %v4966 = vadd.f32 %v4956, %v4964
    %v4967 = vtanh.pop %v4966
    %4969 = vrot.lane.b32.xlu0 %v4967, 32
    %v4970 = vpop.permute.xlu0 %4969
    %v4972 = vmul.f32 %v4954, %v4970
    %4974 = vrot.lane.b32.xlu0 %v4972, 64
    %v4975 = vpop.permute.xlu0 %4974
    %4977 = vst.msk [vmem:[%s4 + $0x40] sm:$0xff] %vm62, %v4975
    %v4978 = vld [vmem:[#allocation3 + $0x48] sm:$0xff]
    %v4979 = vsel %vm62, %v4975, 0
    %4981 = vmatprep.subr.mxu0 0.0
    %4982 = vmatpush1.msra.mxu0 %v3816
    %4983 = vmatprep.subr.mxu0 0.0
    %4984 = vmatpush1.msra.mxu0 %v3817
    %4985 = vmatprep.subr.mxu0 0.0
    %4986 = vmatpush1.msra.mxu0 %v3818
    %4987 = vmatprep.subr.mxu0 0.0
    %4988 = vmatpush1.msra.mxu0 %v3819
    %4989 = vmatprep.subr.mxu0 0.0
    %4990 = vmatpush1.msra.mxu0 0.0
    %4991 = vmatprep.subr.mxu0 0.0
    %4992 = vmatpush1.msra.mxu0 0.0
    %4993 = vmatprep.subr.mxu0 0.0
    %4994 = vmatpush1.msra.mxu0 0.0
    %4995 = vmatprep.subr.mxu0 0.0
    %4996 = vmatpush1.msra.mxu0 0.0
    %4997 = vmatprep.subr.mxu0 0.0
    %4998 = vmatpush1.msra.mxu0 0.0
    %4999 = vmatprep.subr.mxu0 0.0
    %5000 = vmatpush1.msra.mxu0 0.0
    %5001 = vmatprep.subr.mxu0 0.0
    %5002 = vmatpush1.msra.mxu0 0.0
    %5003 = vmatprep.subr.mxu0 0.0
    %5004 = vmatpush1.msra.mxu0 0.0
    %5005 = vmatprep.subr.mxu0 0.0
    %5006 = vmatpush1.msra.mxu0 0.0
    %5007 = vmatprep.subr.mxu0 0.0
    %5008 = vmatpush1.msra.mxu0 0.0
    %5009 = vmatprep.subr.mxu0 0.0
    %5010 = vmatpush1.msra.mxu0 0.0
    %5011 = vmatprep.subr.mxu0 0.0
    %5012 = vmatpush1.msra.mxu0 0.0
    %5013 = vmatprep.subr.mxu0 0.0
    %5014 = vmatpush1.msra.mxu0 0.0
    %5015 = vmatprep.subr.mxu0 0.0
    %5016 = vmatpush1.msra.mxu0 0.0
    %5017 = vmatprep.subr.mxu0 0.0
    %5018 = vmatpush1.msra.mxu0 0.0
    %5019 = vmatprep.subr.mxu0 0.0
    %5020 = vmatpush1.msra.mxu0 0.0
    %5021 = vmatprep.subr.mxu0 0.0
    %5022 = vmatpush1.msra.mxu0 0.0
    %5023 = vmatprep.subr.mxu0 0.0
    %5024 = vmatpush1.msra.mxu0 0.0
    %5025 = vmatprep.subr.mxu0 0.0
    %5026 = vmatpush1.msra.mxu0 0.0
    %5027 = vmatprep.subr.mxu0 0.0
    %5028 = vmatpush1.msra.mxu0 0.0
    %5029 = vmatprep.subr.mxu0 0.0
    %5030 = vmatpush1.msra.mxu0 0.0
    %5031 = vmatprep.subr.mxu0 0.0
    %5032 = vmatpush1.msra.mxu0 0.0
    %5033 = vmatprep.subr.mxu0 0.0
    %5034 = vmatpush1.msra.mxu0 0.0
    %5035 = vmatprep.subr.mxu0 0.0
    %5036 = vmatpush1.msra.mxu0 0.0
    %5037 = vmatprep.subr.mxu0 0.0
    %5038 = vmatpush1.msra.mxu0 0.0
    %5039 = vmatprep.subr.mxu0 0.0
    %5040 = vmatpush1.msra.mxu0 0.0
    %5041 = vmatprep.subr.mxu0 0.0
    %5042 = vmatpush1.msra.mxu0 0.0
    %5043 = vmatprep.subr.mxu0 0.0
    %5044 = vmatpush1.msra.mxu0 0.0
    %5045 = vmatprep.mubr.f32.mxu0 0.0
    %5046 = vmatmul.mubr.f32.gmra.mrb[0].mxu0 %v4979
    %v5047 = vpop.f32.mrb[0].mxu0
    %v5048 = vadd.f32 0.0, %v5047
    %v5049 = vpop.f32.mrb[0].mxu0
    %5050 = vdwg.mxu0
    %v5051 = vadd.f32 %v4978, %v5048
    %v5052 = vxor.u32 %v5051, 2147483648
    %v5053 = vmul.f32 %v5052, 1.442695
    %v5054 = vpow.pop %v5053
    %v5055 = vadd.f32 %v5054, 1.0
    %v5056 = vrcp.pop %v5055
    %v5057 = vmul.f32 1.0, %v5056
    %v5058 = vtanh.pop %v5051
    %v5059 = vmul.f32 %v5057, %v4966
    %5061 = vrot.lane.b32.xlu0 %v5058, 32
    %v5062 = vpop.permute.xlu0 %5061
    %v5064 = vmul.f32 %v5057, %v5062
    %5066 = vrot.lane.b32.xlu0 %v5064, 32
    %v5067 = vpop.permute.xlu0 %5066
    %v5069 = vadd.f32 %v5059, %v5067
    %v5070 = vtanh.pop %v5069
    %5072 = vrot.lane.b32.xlu0 %v5070, 32
    %v5073 = vpop.permute.xlu0 %5072
    %v5075 = vmul.f32 %v5057, %v5073
    %5077 = vrot.lane.b32.xlu0 %v5075, 64
    %v5078 = vpop.permute.xlu0 %5077
    %5080 = vst.msk [vmem:[%s4 + $0x48] sm:$0xff] %vm62, %v5078
    %v5081 = vld [vmem:[#allocation3 + $0x50] sm:$0xff]
    %v5082 = vsel %vm62, %v5078, 0
    %5084 = vmatprep.subr.mxu0 0.0
    %5085 = vmatpush1.msra.mxu0 %v3816
    %5086 = vmatprep.subr.mxu0 0.0
    %5087 = vmatpush1.msra.mxu0 %v3817
    %5088 = vmatprep.subr.mxu0 0.0
    %5089 = vmatpush1.msra.mxu0 %v3818
    %5090 = vmatprep.subr.mxu0 0.0
    %5091 = vmatpush1.msra.mxu0 %v3819
    %5092 = vmatprep.subr.mxu0 0.0
    %5093 = vmatpush1.msra.mxu0 0.0
    %5094 = vmatprep.subr.mxu0 0.0
    %5095 = vmatpush1.msra.mxu0 0.0
    %5096 = vmatprep.subr.mxu0 0.0
    %5097 = vmatpush1.msra.mxu0 0.0
    %5098 = vmatprep.subr.mxu0 0.0
    %5099 = vmatpush1.msra.mxu0 0.0
    %5100 = vmatprep.subr.mxu0 0.0
    %5101 = vmatpush1.msra.mxu0 0.0
    %5102 = vmatprep.subr.mxu0 0.0
    %5103 = vmatpush1.msra.mxu0 0.0
    %5104 = vmatprep.subr.mxu0 0.0
    %5105 = vmatpush1.msra.mxu0 0.0
    %5106 = vmatprep.subr.mxu0 0.0
    %5107 = vmatpush1.msra.mxu0 0.0
    %5108 = vmatprep.subr.mxu0 0.0
    %5109 = vmatpush1.msra.mxu0 0.0
    %5110 = vmatprep.subr.mxu0 0.0
    %5111 = vmatpush1.msra.mxu0 0.0
    %5112 = vmatprep.subr.mxu0 0.0
    %5113 = vmatpush1.msra.mxu0 0.0
    %5114 = vmatprep.subr.mxu0 0.0
    %5115 = vmatpush1.msra.mxu0 0.0
    %5116 = vmatprep.subr.mxu0 0.0
    %5117 = vmatpush1.msra.mxu0 0.0
    %5118 = vmatprep.subr.mxu0 0.0
    %5119 = vmatpush1.msra.mxu0 0.0
    %5120 = vmatprep.subr.mxu0 0.0
    %5121 = vmatpush1.msra.mxu0 0.0
    %5122 = vmatprep.subr.mxu0 0.0
    %5123 = vmatpush1.msra.mxu0 0.0
    %5124 = vmatprep.subr.mxu0 0.0
    %5125 = vmatpush1.msra.mxu0 0.0
    %5126 = vmatprep.subr.mxu0 0.0
    %5127 = vmatpush1.msra.mxu0 0.0
    %5128 = vmatprep.subr.mxu0 0.0
    %5129 = vmatpush1.msra.mxu0 0.0
    %5130 = vmatprep.subr.mxu0 0.0
    %5131 = vmatpush1.msra.mxu0 0.0
    %5132 = vmatprep.subr.mxu0 0.0
    %5133 = vmatpush1.msra.mxu0 0.0
    %5134 = vmatprep.subr.mxu0 0.0
    %5135 = vmatpush1.msra.mxu0 0.0
    %5136 = vmatprep.subr.mxu0 0.0
    %5137 = vmatpush1.msra.mxu0 0.0
    %5138 = vmatprep.subr.mxu0 0.0
    %5139 = vmatpush1.msra.mxu0 0.0
    %5140 = vmatprep.subr.mxu0 0.0
    %5141 = vmatpush1.msra.mxu0 0.0
    %5142 = vmatprep.subr.mxu0 0.0
    %5143 = vmatpush1.msra.mxu0 0.0
    %5144 = vmatprep.subr.mxu0 0.0
    %5145 = vmatpush1.msra.mxu0 0.0
    %5146 = vmatprep.subr.mxu0 0.0
    %5147 = vmatpush1.msra.mxu0 0.0
    %5148 = vmatprep.mubr.f32.mxu0 0.0
    %5149 = vmatmul.mubr.f32.gmra.mrb[0].mxu0 %v5082
    %v5150 = vpop.f32.mrb[0].mxu0
    %v5151 = vadd.f32 0.0, %v5150
    %v5152 = vpop.f32.mrb[0].mxu0
    %5153 = vdwg.mxu0
    %v5154 = vadd.f32 %v5081, %v5151
    %v5155 = vxor.u32 %v5154, 2147483648
    %v5156 = vmul.f32 %v5155, 1.442695
    %v5157 = vpow.pop %v5156
    %v5158 = vadd.f32 %v5157, 1.0
    %v5159 = vrcp.pop %v5158
    %v5160 = vmul.f32 1.0, %v5159
    %v5161 = vtanh.pop %v5154
    %v5162 = vmul.f32 %v5160, %v5069
    %5164 = vrot.lane.b32.xlu0 %v5161, 32
    %v5165 = vpop.permute.xlu0 %5164
    %v5167 = vmul.f32 %v5160, %v5165
    %5169 = vrot.lane.b32.xlu0 %v5167, 32
    %v5170 = vpop.permute.xlu0 %5169
    %v5172 = vadd.f32 %v5162, %v5170
    %v5173 = vtanh.pop %v5172
    %5175 = vrot.lane.b32.xlu0 %v5173, 32
    %v5176 = vpop.permute.xlu0 %5175
    %v5178 = vmul.f32 %v5160, %v5176
    %5180 = vrot.lane.b32.xlu0 %v5178, 64
    %v5181 = vpop.permute.xlu0 %5180
    %5183 = vst.msk [vmem:[%s4 + $0x50] sm:$0xff] %vm62, %v5181
    %v5184 = vld [vmem:[#allocation3 + $0x58] sm:$0xff]
    %v5185 = vsel %vm62, %v5181, 0
    %5187 = vmatprep.subr.mxu0 0.0
    %5188 = vmatpush1.msra.mxu0 %v3816
    %5189 = vmatprep.subr.mxu0 0.0
    %5190 = vmatpush1.msra.mxu0 %v3817
    %5191 = vmatprep.subr.mxu0 0.0
    %5192 = vmatpush1.msra.mxu0 %v3818
    %5193 = vmatprep.subr.mxu0 0.0
    %5194 = vmatpush1.msra.mxu0 %v3819
    %5195 = vmatprep.subr.mxu0 0.0
    %5196 = vmatpush1.msra.mxu0 0.0
    %5197 = vmatprep.subr.mxu0 0.0
    %5198 = vmatpush1.msra.mxu0 0.0
    %5199 = vmatprep.subr.mxu0 0.0
    %5200 = vmatpush1.msra.mxu0 0.0
    %5201 = vmatprep.subr.mxu0 0.0
    %5202 = vmatpush1.msra.mxu0 0.0
    %5203 = vmatprep.subr.mxu0 0.0
    %5204 = vmatpush1.msra.mxu0 0.0
    %5205 = vmatprep.subr.mxu0 0.0
    %5206 = vmatpush1.msra.mxu0 0.0
    %5207 = vmatprep.subr.mxu0 0.0
    %5208 = vmatpush1.msra.mxu0 0.0
    %5209 = vmatprep.subr.mxu0 0.0
    %5210 = vmatpush1.msra.mxu0 0.0
    %5211 = vmatprep.subr.mxu0 0.0
    %5212 = vmatpush1.msra.mxu0 0.0
    %5213 = vmatprep.subr.mxu0 0.0
    %5214 = vmatpush1.msra.mxu0 0.0
    %5215 = vmatprep.subr.mxu0 0.0
    %5216 = vmatpush1.msra.mxu0 0.0
    %5217 = vmatprep.subr.mxu0 0.0
    %5218 = vmatpush1.msra.mxu0 0.0
    %5219 = vmatprep.subr.mxu0 0.0
    %5220 = vmatpush1.msra.mxu0 0.0
    %5221 = vmatprep.subr.mxu0 0.0
    %5222 = vmatpush1.msra.mxu0 0.0
    %5223 = vmatprep.subr.mxu0 0.0
    %5224 = vmatpush1.msra.mxu0 0.0
    %5225 = vmatprep.subr.mxu0 0.0
    %5226 = vmatpush1.msra.mxu0 0.0
    %5227 = vmatprep.subr.mxu0 0.0
    %5228 = vmatpush1.msra.mxu0 0.0
    %5229 = vmatprep.subr.mxu0 0.0
    %5230 = vmatpush1.msra.mxu0 0.0
    %5231 = vmatprep.subr.mxu0 0.0
    %5232 = vmatpush1.msra.mxu0 0.0
    %5233 = vmatprep.subr.mxu0 0.0
    %5234 = vmatpush1.msra.mxu0 0.0
    %5235 = vmatprep.subr.mxu0 0.0
    %5236 = vmatpush1.msra.mxu0 0.0
    %5237 = vmatprep.subr.mxu0 0.0
    %5238 = vmatpush1.msra.mxu0 0.0
    %5239 = vmatprep.subr.mxu0 0.0
    %5240 = vmatpush1.msra.mxu0 0.0
    %5241 = vmatprep.subr.mxu0 0.0
    %5242 = vmatpush1.msra.mxu0 0.0
    %5243 = vmatprep.subr.mxu0 0.0
    %5244 = vmatpush1.msra.mxu0 0.0
    %5245 = vmatprep.subr.mxu0 0.0
    %5246 = vmatpush1.msra.mxu0 0.0
    %5247 = vmatprep.subr.mxu0 0.0
    %5248 = vmatpush1.msra.mxu0 0.0
    %5249 = vmatprep.subr.mxu0 0.0
    %5250 = vmatpush1.msra.mxu0 0.0
    %5251 = vmatprep.mubr.f32.mxu0 0.0
    %5252 = vmatmul.mubr.f32.gmra.mrb[0].mxu0 %v5185
    %v5253 = vpop.f32.mrb[0].mxu0
    %v5254 = vadd.f32 0.0, %v5253
    %v5255 = vpop.f32.mrb[0].mxu0
    %5256 = vdwg.mxu0
    %v5257 = vadd.f32 %v5184, %v5254
    %v5258 = vxor.u32 %v5257, 2147483648
    %v5259 = vmul.f32 %v5258, 1.442695
    %v5260 = vpow.pop %v5259
    %v5261 = vadd.f32 %v5260, 1.0
    %v5262 = vrcp.pop %v5261
    %v5263 = vmul.f32 1.0, %v5262
    %v5264 = vtanh.pop %v5257
    %v5265 = vmul.f32 %v5263, %v5172
    %5267 = vrot.lane.b32.xlu0 %v5264, 32
    %v5268 = vpop.permute.xlu0 %5267
    %v5270 = vmul.f32 %v5263, %v5268
    %5272 = vrot.lane.b32.xlu0 %v5270, 32
    %v5273 = vpop.permute.xlu0 %5272
    %v5275 = vadd.f32 %v5265, %v5273
    %v5276 = vtanh.pop %v5275
    %5278 = vrot.lane.b32.xlu0 %v5276, 32
    %v5279 = vpop.permute.xlu0 %5278
    %v5281 = vmul.f32 %v5263, %v5279
    %5283 = vrot.lane.b32.xlu0 %v5281, 64
    %v5284 = vpop.permute.xlu0 %5283
    %5286 = vst.msk [vmem:[%s4 + $0x58] sm:$0xff] %vm62, %v5284
    %v5287 = vld [vmem:[#allocation3 + $0x60] sm:$0xff]
    %v5288 = vsel %vm62, %v5284, 0
    %5290 = vmatprep.subr.mxu0 0.0
    %5291 = vmatpush1.msra.mxu0 %v3816
    %5292 = vmatprep.subr.mxu0 0.0
    %5293 = vmatpush1.msra.mxu0 %v3817
    %5294 = vmatprep.subr.mxu0 0.0
    %5295 = vmatpush1.msra.mxu0 %v3818
    %5296 = vmatprep.subr.mxu0 0.0
    %5297 = vmatpush1.msra.mxu0 %v3819
    %5298 = vmatprep.subr.mxu0 0.0
    %5299 = vmatpush1.msra.mxu0 0.0
    %5300 = vmatprep.subr.mxu0 0.0
    %5301 = vmatpush1.msra.mxu0 0.0
    %5302 = vmatprep.subr.mxu0 0.0
    %5303 = vmatpush1.msra.mxu0 0.0
    %5304 = vmatprep.subr.mxu0 0.0
    %5305 = vmatpush1.msra.mxu0 0.0
    %5306 = vmatprep.subr.mxu0 0.0
    %5307 = vmatpush1.msra.mxu0 0.0
    %5308 = vmatprep.subr.mxu0 0.0
    %5309 = vmatpush1.msra.mxu0 0.0
    %5310 = vmatprep.subr.mxu0 0.0
    %5311 = vmatpush1.msra.mxu0 0.0
    %5312 = vmatprep.subr.mxu0 0.0
    %5313 = vmatpush1.msra.mxu0 0.0
    %5314 = vmatprep.subr.mxu0 0.0
    %5315 = vmatpush1.msra.mxu0 0.0
    %5316 = vmatprep.subr.mxu0 0.0
    %5317 = vmatpush1.msra.mxu0 0.0
    %5318 = vmatprep.subr.mxu0 0.0
    %5319 = vmatpush1.msra.mxu0 0.0
    %5320 = vmatprep.subr.mxu0 0.0
    %5321 = vmatpush1.msra.mxu0 0.0
    %5322 = vmatprep.subr.mxu0 0.0
    %5323 = vmatpush1.msra.mxu0 0.0
    %5324 = vmatprep.subr.mxu0 0.0
    %5325 = vmatpush1.msra.mxu0 0.0
    %5326 = vmatprep.subr.mxu0 0.0
    %5327 = vmatpush1.msra.mxu0 0.0
    %5328 = vmatprep.subr.mxu0 0.0
    %5329 = vmatpush1.msra.mxu0 0.0
    %5330 = vmatprep.subr.mxu0 0.0
    %5331 = vmatpush1.msra.mxu0 0.0
    %5332 = vmatprep.subr.mxu0 0.0
    %5333 = vmatpush1.msra.mxu0 0.0
    %5334 = vmatprep.subr.mxu0 0.0
    %5335 = vmatpush1.msra.mxu0 0.0
    %5336 = vmatprep.subr.mxu0 0.0
    %5337 = vmatpush1.msra.mxu0 0.0
    %5338 = vmatprep.subr.mxu0 0.0
    %5339 = vmatpush1.msra.mxu0 0.0
    %5340 = vmatprep.subr.mxu0 0.0
    %5341 = vmatpush1.msra.mxu0 0.0
    %5342 = vmatprep.subr.mxu0 0.0
    %5343 = vmatpush1.msra.mxu0 0.0
    %5344 = vmatprep.subr.mxu0 0.0
    %5345 = vmatpush1.msra.mxu0 0.0
    %5346 = vmatprep.subr.mxu0 0.0
    %5347 = vmatpush1.msra.mxu0 0.0
    %5348 = vmatprep.subr.mxu0 0.0
    %5349 = vmatpush1.msra.mxu0 0.0
    %5350 = vmatprep.subr.mxu0 0.0
    %5351 = vmatpush1.msra.mxu0 0.0
    %5352 = vmatprep.subr.mxu0 0.0
    %5353 = vmatpush1.msra.mxu0 0.0
    %5354 = vmatprep.mubr.f32.mxu0 0.0
    %5355 = vmatmul.mubr.f32.gmra.mrb[0].mxu0 %v5288
    %v5356 = vpop.f32.mrb[0].mxu0
    %v5357 = vadd.f32 0.0, %v5356
    %v5358 = vpop.f32.mrb[0].mxu0
    %5359 = vdwg.mxu0
    %v5360 = vadd.f32 %v5287, %v5357
    %v5361 = vxor.u32 %v5360, 2147483648
    %v5362 = vmul.f32 %v5361, 1.442695
    %v5363 = vpow.pop %v5362
    %v5364 = vadd.f32 %v5363, 1.0
    %v5365 = vrcp.pop %v5364
    %v5366 = vmul.f32 1.0, %v5365
    %v5367 = vtanh.pop %v5360
    %v5368 = vmul.f32 %v5366, %v5275
    %5370 = vrot.lane.b32.xlu0 %v5367, 32
    %v5371 = vpop.permute.xlu0 %5370
    %v5373 = vmul.f32 %v5366, %v5371
    %5375 = vrot.lane.b32.xlu0 %v5373, 32
    %v5376 = vpop.permute.xlu0 %5375
    %v5378 = vadd.f32 %v5368, %v5376
    %v5379 = vtanh.pop %v5378
    %5381 = vrot.lane.b32.xlu0 %v5379, 32
    %v5382 = vpop.permute.xlu0 %5381
    %v5384 = vmul.f32 %v5366, %v5382
    %5386 = vrot.lane.b32.xlu0 %v5384, 64
    %v5387 = vpop.permute.xlu0 %5386
    %5389 = vst.msk [vmem:[%s4 + $0x60] sm:$0xff] %vm62, %v5387
    %v5390 = vld [vmem:[#allocation3 + $0x68] sm:$0xff]
    %v5391 = vsel %vm62, %v5387, 0
    %5393 = vmatprep.subr.mxu0 0.0
    %5394 = vmatpush1.msra.mxu0 %v3816
    %5395 = vmatprep.subr.mxu0 0.0
    %5396 = vmatpush1.msra.mxu0 %v3817
    %5397 = vmatprep.subr.mxu0 0.0
    %5398 = vmatpush1.msra.mxu0 %v3818
    %5399 = vmatprep.subr.mxu0 0.0
    %5400 = vmatpush1.msra.mxu0 %v3819
    %5401 = vmatprep.subr.mxu0 0.0
    %5402 = vmatpush1.msra.mxu0 0.0
    %5403 = vmatprep.subr.mxu0 0.0
    %5404 = vmatpush1.msra.mxu0 0.0
    %5405 = vmatprep.subr.mxu0 0.0
    %5406 = vmatpush1.msra.mxu0 0.0
    %5407 = vmatprep.subr.mxu0 0.0
    %5408 = vmatpush1.msra.mxu0 0.0
    %5409 = vmatprep.subr.mxu0 0.0
    %5410 = vmatpush1.msra.mxu0 0.0
    %5411 = vmatprep.subr.mxu0 0.0
    %5412 = vmatpush1.msra.mxu0 0.0
    %5413 = vmatprep.subr.mxu0 0.0
    %5414 = vmatpush1.msra.mxu0 0.0
    %5415 = vmatprep.subr.mxu0 0.0
    %5416 = vmatpush1.msra.mxu0 0.0
    %5417 = vmatprep.subr.mxu0 0.0
    %5418 = vmatpush1.msra.mxu0 0.0
    %5419 = vmatprep.subr.mxu0 0.0
    %5420 = vmatpush1.msra.mxu0 0.0
    %5421 = vmatprep.subr.mxu0 0.0
    %5422 = vmatpush1.msra.mxu0 0.0
    %5423 = vmatprep.subr.mxu0 0.0
    %5424 = vmatpush1.msra.mxu0 0.0
    %5425 = vmatprep.subr.mxu0 0.0
    %5426 = vmatpush1.msra.mxu0 0.0
    %5427 = vmatprep.subr.mxu0 0.0
    %5428 = vmatpush1.msra.mxu0 0.0
    %5429 = vmatprep.subr.mxu0 0.0
    %5430 = vmatpush1.msra.mxu0 0.0
    %5431 = vmatprep.subr.mxu0 0.0
    %5432 = vmatpush1.msra.mxu0 0.0
    %5433 = vmatprep.subr.mxu0 0.0
    %5434 = vmatpush1.msra.mxu0 0.0
    %5435 = vmatprep.subr.mxu0 0.0
    %5436 = vmatpush1.msra.mxu0 0.0
    %5437 = vmatprep.subr.mxu0 0.0
    %5438 = vmatpush1.msra.mxu0 0.0
    %5439 = vmatprep.subr.mxu0 0.0
    %5440 = vmatpush1.msra.mxu0 0.0
    %5441 = vmatprep.subr.mxu0 0.0
    %5442 = vmatpush1.msra.mxu0 0.0
    %5443 = vmatprep.subr.mxu0 0.0
    %5444 = vmatpush1.msra.mxu0 0.0
    %5445 = vmatprep.subr.mxu0 0.0
    %5446 = vmatpush1.msra.mxu0 0.0
    %5447 = vmatprep.subr.mxu0 0.0
    %5448 = vmatpush1.msra.mxu0 0.0
    %5449 = vmatprep.subr.mxu0 0.0
    %5450 = vmatpush1.msra.mxu0 0.0
    %5451 = vmatprep.subr.mxu0 0.0
    %5452 = vmatpush1.msra.mxu0 0.0
    %5453 = vmatprep.subr.mxu0 0.0
    %5454 = vmatpush1.msra.mxu0 0.0
    %5455 = vmatprep.subr.mxu0 0.0
    %5456 = vmatpush1.msra.mxu0 0.0
    %5457 = vmatprep.mubr.f32.mxu0 0.0
    %5458 = vmatmul.mubr.f32.gmra.mrb[0].mxu0 %v5391
    %v5459 = vpop.f32.mrb[0].mxu0
    %v5460 = vadd.f32 0.0, %v5459
    %v5461 = vpop.f32.mrb[0].mxu0
    %5462 = vdwg.mxu0
    %v5463 = vadd.f32 %v5390, %v5460
    %v5464 = vxor.u32 %v5463, 2147483648
    %v5465 = vmul.f32 %v5464, 1.442695
    %v5466 = vpow.pop %v5465
    %v5467 = vadd.f32 %v5466, 1.0
    %v5468 = vrcp.pop %v5467
    %v5469 = vmul.f32 1.0, %v5468
    %v5470 = vtanh.pop %v5463
    %v5471 = vmul.f32 %v5469, %v5378
    %5473 = vrot.lane.b32.xlu0 %v5470, 32
    %v5474 = vpop.permute.xlu0 %5473
    %v5476 = vmul.f32 %v5469, %v5474
    %5478 = vrot.lane.b32.xlu0 %v5476, 32
    %v5479 = vpop.permute.xlu0 %5478
    %v5481 = vadd.f32 %v5471, %v5479
    %v5482 = vtanh.pop %v5481
    %5484 = vrot.lane.b32.xlu0 %v5482, 32
    %v5485 = vpop.permute.xlu0 %5484
    %v5487 = vmul.f32 %v5469, %v5485
    %5489 = vrot.lane.b32.xlu0 %v5487, 64
    %v5490 = vpop.permute.xlu0 %5489
    %5492 = vst.msk [vmem:[%s4 + $0x68] sm:$0xff] %vm62, %v5490
    %v5493 = vld [vmem:[#allocation3 + $0x70] sm:$0xff]
    %v5494 = vsel %vm62, %v5490, 0
    %5496 = vmatprep.subr.mxu0 0.0
    %5497 = vmatpush1.msra.mxu0 %v3816
    %5498 = vmatprep.subr.mxu0 0.0
    %5499 = vmatpush1.msra.mxu0 %v3817
    %5500 = vmatprep.subr.mxu0 0.0
    %5501 = vmatpush1.msra.mxu0 %v3818
    %5502 = vmatprep.subr.mxu0 0.0
    %5503 = vmatpush1.msra.mxu0 %v3819
    %5504 = vmatprep.subr.mxu0 0.0
    %5505 = vmatpush1.msra.mxu0 0.0
    %5506 = vmatprep.subr.mxu0 0.0
    %5507 = vmatpush1.msra.mxu0 0.0
    %5508 = vmatprep.subr.mxu0 0.0
    %5509 = vmatpush1.msra.mxu0 0.0
    %5510 = vmatprep.subr.mxu0 0.0
    %5511 = vmatpush1.msra.mxu0 0.0
    %5512 = vmatprep.subr.mxu0 0.0
    %5513 = vmatpush1.msra.mxu0 0.0
    %5514 = vmatprep.subr.mxu0 0.0
    %5515 = vmatpush1.msra.mxu0 0.0
    %5516 = vmatprep.subr.mxu0 0.0
    %5517 = vmatpush1.msra.mxu0 0.0
    %5518 = vmatprep.subr.mxu0 0.0
    %5519 = vmatpush1.msra.mxu0 0.0
    %5520 = vmatprep.subr.mxu0 0.0
    %5521 = vmatpush1.msra.mxu0 0.0
    %5522 = vmatprep.subr.mxu0 0.0
    %5523 = vmatpush1.msra.mxu0 0.0
    %5524 = vmatprep.subr.mxu0 0.0
    %5525 = vmatpush1.msra.mxu0 0.0
    %5526 = vmatprep.subr.mxu0 0.0
    %5527 = vmatpush1.msra.mxu0 0.0
    %5528 = vmatprep.subr.mxu0 0.0
    %5529 = vmatpush1.msra.mxu0 0.0
    %5530 = vmatprep.subr.mxu0 0.0
    %5531 = vmatpush1.msra.mxu0 0.0
    %5532 = vmatprep.subr.mxu0 0.0
    %5533 = vmatpush1.msra.mxu0 0.0
    %5534 = vmatprep.subr.mxu0 0.0
    %5535 = vmatpush1.msra.mxu0 0.0
    %5536 = vmatprep.subr.mxu0 0.0
    %5537 = vmatpush1.msra.mxu0 0.0
    %5538 = vmatprep.subr.mxu0 0.0
    %5539 = vmatpush1.msra.mxu0 0.0
    %5540 = vmatprep.subr.mxu0 0.0
    %5541 = vmatpush1.msra.mxu0 0.0
    %5542 = vmatprep.subr.mxu0 0.0
    %5543 = vmatpush1.msra.mxu0 0.0
    %5544 = vmatprep.subr.mxu0 0.0
    %5545 = vmatpush1.msra.mxu0 0.0
    %5546 = vmatprep.subr.mxu0 0.0
    %5547 = vmatpush1.msra.mxu0 0.0
    %5548 = vmatprep.subr.mxu0 0.0
    %5549 = vmatpush1.msra.mxu0 0.0
    %5550 = vmatprep.subr.mxu0 0.0
    %5551 = vmatpush1.msra.mxu0 0.0
    %5552 = vmatprep.subr.mxu0 0.0
    %5553 = vmatpush1.msra.mxu0 0.0
    %5554 = vmatprep.subr.mxu0 0.0
    %5555 = vmatpush1.msra.mxu0 0.0
    %5556 = vmatprep.subr.mxu0 0.0
    %5557 = vmatpush1.msra.mxu0 0.0
    %5558 = vmatprep.subr.mxu0 0.0
    %5559 = vmatpush1.msra.mxu0 0.0
    %5560 = vmatprep.mubr.f32.mxu0 0.0
    %5561 = vmatmul.mubr.f32.gmra.mrb[0].mxu0 %v5494
    %v5562 = vpop.f32.mrb[0].mxu0
    %v5563 = vadd.f32 0.0, %v5562
    %v5564 = vpop.f32.mrb[0].mxu0
    %5565 = vdwg.mxu0
    %v5566 = vadd.f32 %v5493, %v5563
    %v5567 = vxor.u32 %v5566, 2147483648
    %v5568 = vmul.f32 %v5567, 1.442695
    %v5569 = vpow.pop %v5568
    %v5570 = vadd.f32 %v5569, 1.0
    %v5571 = vrcp.pop %v5570
    %v5572 = vmul.f32 1.0, %v5571
    %v5573 = vtanh.pop %v5566
    %v5574 = vmul.f32 %v5572, %v5481
    %5576 = vrot.lane.b32.xlu0 %v5573, 32
    %v5577 = vpop.permute.xlu0 %5576
    %v5579 = vmul.f32 %v5572, %v5577
    %5581 = vrot.lane.b32.xlu0 %v5579, 32
    %v5582 = vpop.permute.xlu0 %5581
    %v5584 = vadd.f32 %v5574, %v5582
    %v5585 = vtanh.pop %v5584
    %5587 = vrot.lane.b32.xlu0 %v5585, 32
    %v5588 = vpop.permute.xlu0 %5587
    %v5590 = vmul.f32 %v5572, %v5588
    %5592 = vrot.lane.b32.xlu0 %v5590, 64
    %v5593 = vpop.permute.xlu0 %5592
    %5595 = vst.msk [vmem:[%s4 + $0x70] sm:$0xff] %vm62, %v5593
    %v5596 = vld [vmem:[#allocation3 + $0x78] sm:$0xff]
    %v5597 = vsel %vm62, %v5593, 0
    %5599 = vmatprep.subr.mxu0 0.0
    %5600 = vmatpush1.msra.mxu0 %v3816
    %5601 = vmatprep.subr.mxu0 0.0
    %5602 = vmatpush1.msra.mxu0 %v3817
    %5603 = vmatprep.subr.mxu0 0.0
    %5604 = vmatpush1.msra.mxu0 %v3818
    %5605 = vmatprep.subr.mxu0 0.0
    %5606 = vmatpush1.msra.mxu0 %v3819
    %5607 = vmatprep.subr.mxu0 0.0
    %5608 = vmatpush1.msra.mxu0 0.0
    %5609 = vmatprep.subr.mxu0 0.0
    %5610 = vmatpush1.msra.mxu0 0.0
    %5611 = vmatprep.subr.mxu0 0.0
    %5612 = vmatpush1.msra.mxu0 0.0
    %5613 = vmatprep.subr.mxu0 0.0
    %5614 = vmatpush1.msra.mxu0 0.0
    %5615 = vmatprep.subr.mxu0 0.0
    %5616 = vmatpush1.msra.mxu0 0.0
    %5617 = vmatprep.subr.mxu0 0.0
    %5618 = vmatpush1.msra.mxu0 0.0
    %5619 = vmatprep.subr.mxu0 0.0
    %5620 = vmatpush1.msra.mxu0 0.0
    %5621 = vmatprep.subr.mxu0 0.0
    %5622 = vmatpush1.msra.mxu0 0.0
    %5623 = vmatprep.subr.mxu0 0.0
    %5624 = vmatpush1.msra.mxu0 0.0
    %5625 = vmatprep.subr.mxu0 0.0
    %5626 = vmatpush1.msra.mxu0 0.0
    %5627 = vmatprep.subr.mxu0 0.0
    %5628 = vmatpush1.msra.mxu0 0.0
    %5629 = vmatprep.subr.mxu0 0.0
    %5630 = vmatpush1.msra.mxu0 0.0
    %5631 = vmatprep.subr.mxu0 0.0
    %5632 = vmatpush1.msra.mxu0 0.0
    %5633 = vmatprep.subr.mxu0 0.0
    %5634 = vmatpush1.msra.mxu0 0.0
    %5635 = vmatprep.subr.mxu0 0.0
    %5636 = vmatpush1.msra.mxu0 0.0
    %5637 = vmatprep.subr.mxu0 0.0
    %5638 = vmatpush1.msra.mxu0 0.0
    %5639 = vmatprep.subr.mxu0 0.0
    %5640 = vmatpush1.msra.mxu0 0.0
    %5641 = vmatprep.subr.mxu0 0.0
    %5642 = vmatpush1.msra.mxu0 0.0
    %5643 = vmatprep.subr.mxu0 0.0
    %5644 = vmatpush1.msra.mxu0 0.0
    %5645 = vmatprep.subr.mxu0 0.0
    %5646 = vmatpush1.msra.mxu0 0.0
    %5647 = vmatprep.subr.mxu0 0.0
    %5648 = vmatpush1.msra.mxu0 0.0
    %5649 = vmatprep.subr.mxu0 0.0
    %5650 = vmatpush1.msra.mxu0 0.0
    %5651 = vmatprep.subr.mxu0 0.0
    %5652 = vmatpush1.msra.mxu0 0.0
    %5653 = vmatprep.subr.mxu0 0.0
    %5654 = vmatpush1.msra.mxu0 0.0
    %5655 = vmatprep.subr.mxu0 0.0
    %5656 = vmatpush1.msra.mxu0 0.0
    %5657 = vmatprep.subr.mxu0 0.0
    %5658 = vmatpush1.msra.mxu0 0.0
    %5659 = vmatprep.subr.mxu0 0.0
    %5660 = vmatpush1.msra.mxu0 0.0
    %5661 = vmatprep.subr.mxu0 0.0
    %5662 = vmatpush1.msra.mxu0 0.0
    %5663 = vmatprep.mubr.f32.mxu0 0.0
    %5664 = vmatmul.mubr.f32.gmra.mrb[0].mxu0 %v5597
    %v5665 = vpop.f32.mrb[0].mxu0
    %v5666 = vadd.f32 0.0, %v5665
    %v5667 = vpop.f32.mrb[0].mxu0
    %5668 = vdwg.mxu0
    %v5669 = vadd.f32 %v5596, %v5666
    %v5670 = vxor.u32 %v5669, 2147483648
    %v5671 = vmul.f32 %v5670, 1.442695
    %v5672 = vpow.pop %v5671
    %v5673 = vadd.f32 %v5672, 1.0
    %v5674 = vrcp.pop %v5673
    %v5675 = vmul.f32 1.0, %v5674
    %v5676 = vtanh.pop %v5669
    %v5677 = vmul.f32 %v5675, %v5584
    %5679 = vrot.lane.b32.xlu0 %v5676, 32
    %v5680 = vpop.permute.xlu0 %5679
    %v5682 = vmul.f32 %v5675, %v5680
    %5684 = vrot.lane.b32.xlu0 %v5682, 32
    %v5685 = vpop.permute.xlu0 %5684
    %v5687 = vadd.f32 %v5677, %v5685
    %v5688 = vtanh.pop %v5687
    %5690 = vrot.lane.b32.xlu0 %v5688, 32
    %v5691 = vpop.permute.xlu0 %5690
    %v5693 = vmul.f32 %v5675, %v5691
    %5695 = vrot.lane.b32.xlu0 %v5693, 64
    %v5696 = vpop.permute.xlu0 %5695
    %5698 = vst.msk [vmem:[%s4 + $0x78] sm:$0xff] %vm62, %v5696
    // Predicated region
    $region22: #{tpu_custom_call.1} parent=1 // pred_check
      _
    $region23: #{tpu_custom_call.1} parent=1 // pred_check_branch
      %5700 = sbr.rel (0) target = $region25
    $region24: #{tpu_custom_call.1} parent=1 // pred_region
      _
    $region25: #{tpu_custom_call.1} parent=1 // pred_fallthru
      _
    // Predicated region
    $region26: #{tpu_custom_call.1} parent=1 // pred_check
      _
    $region27: #{tpu_custom_call.1} parent=1 // pred_check_branch
      %5702 = sbr.rel (0) target = $region29
    $region28: #{tpu_custom_call.1} parent=1 // pred_region
      _
    $region29: #{tpu_custom_call.1} parent=1 // pred_fallthru
      _
    %5703 = vsyncpa [#allocation5], 1

</llo_original>
